<compile_context>
chip_gen: v7x
topology: tpu7x:2x2x1
jax: 0.10.0
libtpu: 0.0.40
codegen_flags: <defaults>
</compile_context>

<pallas_src>
import jax
import jax.numpy as jnp
from jax.experimental import pallas as pl
from jax.experimental.pallas import tpu as pltpu


def linear_bias_residual_kernel(x_ref, w_ref, b_ref, r_ref, o_ref):
    # Grid = (m_blocks, K // tk); output block index is (i, 0) -> resident over k.
    @pl.when(pl.program_id(1) == 0)
    def _():
        # bias add + (dropout == identity) + residual add as accumulator init
        o_ref[...] = r_ref[...] + b_ref[...]

    o_ref[...] += jnp.dot(
        x_ref[...], w_ref[...], preferred_element_type=jnp.float32
    )


def linear_dropout_add(x150, w, b, x148, *, m_blocks=2, tk=1536):
    """x150: [B, S, K], w: [K, N], b: [N], x148: [B, S, N] -> [B, S, N] (f32)."""
    B, S, K = x150.shape
    N = w.shape[1]
    M = B * S

    assert M % m_blocks == 0, "row count must split evenly across m blocks"
    tm = M // m_blocks
    assert tm % 8 == 0 and N % 128 == 0 and K % tk == 0, "tile alignment"

    # bf16 matmul operands; everything else stays f32.
    x2d = x150.reshape(M, K).astype(jnp.bfloat16)
    w_bf = w.astype(jnp.bfloat16)
    r2d = x148.reshape(M, N).astype(jnp.float32)
    b2d = b.reshape(1, N).astype(jnp.float32)

    out = pl.pallas_call(
        linear_bias_residual_kernel,
        out_shape=jax.ShapeDtypeStruct((M, N), jnp.float32),
        grid_spec=pltpu.PrefetchScalarGridSpec(
            num_scalar_prefetch=0,
            grid=(m_blocks, K // tk),
            in_specs=[
                pl.BlockSpec((tm, tk), lambda i, k: (i, k)),  # x  (bf16)
                pl.BlockSpec((tk, N), lambda i, k: (k, 0)),   # w  (bf16)
                pl.BlockSpec((1, N), lambda i, k: (0, 0)),    # bias (f32)
                pl.BlockSpec((tm, N), lambda i, k: (i, 0)),   # residual (f32)
            ],
            out_specs=pl.BlockSpec((tm, N), lambda i, k: (i, 0)),
        ),
        compiler_params=pltpu.CompilerParams(
            dimension_semantics=("parallel", "arbitrary")
        ),
    )(x2d, w_bf, b2d, r2d)

    return out.reshape(B, S, N)


if __name__ == "__main__":
    # Shapes from the original module: x150 [1, 384, 3072], x148 [1, 384, 768].
    B, S, K, N = 1, 384, 3072, 768

    key = jax.random.PRNGKey(0)
    k1, k2, k3, k4 = jax.random.split(key, 4)

    x150 = jax.random.normal(k1, (B, S, K), dtype=jnp.float32)
    x148 = jax.random.normal(k2, (B, S, N), dtype=jnp.float32)

    # Linear weight in PyTorch is [out, in]; we use [in, out].
    w_pt = jax.random.normal(k3, (N, K), dtype=jnp.float32) * 0.02
    b = jax.random.normal(k4, (N,), dtype=jnp.float32) * 0.02
    w = w_pt.T  # [K, N]

    out = linear_dropout_add(x150, w, b, x148)
    jax.block_until_ready(out)

    # Reference with the same bf16-cast matmul operands and f32 accumulation
    # (matches the kernel's numerics; chunked-K accumulation differs only at ~1e-6).
    ref = (
        jnp.dot(
            x150.reshape(B * S, K).astype(jnp.bfloat16),
            w.astype(jnp.bfloat16),
            preferred_element_type=jnp.float32,
        ).reshape(B, S, N)
        + b[None, None, :]
        + x148
    )
    assert jnp.allclose(out, ref, atol=1e-2, rtol=1e-2), "mismatch vs reference"

    print("KERNEL_OK")
</pallas_src>

<mosaic_0001>
module attributes {stable_mosaic.version = 11 : i64} {
  func.func @linear_bias_residual_kernel(%arg0: i32, %arg1: i32, %arg2: memref<192x1536xbf16, #tpu.memory_space<vmem>>, %arg3: memref<1536x768xbf16, #tpu.memory_space<vmem>>, %arg4: memref<1x768xf32, #tpu.memory_space<vmem>>, %arg5: memref<192x768xf32, #tpu.memory_space<vmem>>, %arg6: memref<192x768xf32, #tpu.memory_space<vmem>>) attributes {dimension_semantics = [#tpu.dimension_semantics<parallel>, #tpu.dimension_semantics<arbitrary>], iteration_bounds = array<i64: 2, 2>, scalar_prefetch = 0 : i64, scratch_operands = 0 : i64, tpu.core_type = #tpu.core_type<tc>, window_params = [{transform_indices = @transform_0, window_bounds = array<i64: 192, 1536>}, {transform_indices = @transform_1, window_bounds = array<i64: 1536, 768>}, {pipeline_mode = #tpu.pipeline_mode<synchronous>, transform_indices = @transform_2, window_bounds = array<i64: 1, 768>}, {transform_indices = @transform_3, window_bounds = array<i64: 192, 768>}, {transform_indices = @transform_4, window_bounds = array<i64: 192, 768>}]} {
    %c0_i32 = arith.constant 0 : i32
    %0 = arith.cmpi eq, %arg1, %c0_i32 : i32
    %1 = arith.extui %0 : i1 to i32
    %c0_i32_0 = arith.constant 0 : i32
    %2 = arith.cmpi ne, %1, %c0_i32_0 : i32
    scf.if %2 {
      %c0_8 = arith.constant 0 : index
      %c0_9 = arith.constant 0 : index
      %9 = vector.load %arg5[%c0_8, %c0_9] : memref<192x768xf32, #tpu.memory_space<vmem>>, vector<192x768xf32>
      %c0_10 = arith.constant 0 : index
      %c0_11 = arith.constant 0 : index
      %10 = vector.load %arg4[%c0_10, %c0_11] : memref<1x768xf32, #tpu.memory_space<vmem>>, vector<1x768xf32>
      %11 = vector.broadcast %10 : vector<1x768xf32> to vector<192x768xf32>
      %12 = arith.addf %9, %11 : vector<192x768xf32>
      %c0_12 = arith.constant 0 : index
      %c0_13 = arith.constant 0 : index
      %13 = vector.load %arg6[%c0_12, %c0_13] : memref<192x768xf32, #tpu.memory_space<vmem>>, vector<192x768xf32>
      tpu.vector_store %arg6[%c0_12, %c0_13], %12 {strides = array<i32>} : memref<192x768xf32, #tpu.memory_space<vmem>>, vector<192x768xf32>,
    } else {
    }
    %c0 = arith.constant 0 : index
    %c0_1 = arith.constant 0 : index
    %3 = vector.load %arg6[%c0, %c0_1] : memref<192x768xf32, #tpu.memory_space<vmem>>, vector<192x768xf32>
    %c0_2 = arith.constant 0 : index
    %c0_3 = arith.constant 0 : index
    %4 = vector.load %arg2[%c0_2, %c0_3] : memref<192x1536xbf16, #tpu.memory_space<vmem>>, vector<192x1536xbf16>
    %c0_4 = arith.constant 0 : index
    %c0_5 = arith.constant 0 : index
    %5 = vector.load %arg3[%c0_4, %c0_5] : memref<1536x768xbf16, #tpu.memory_space<vmem>>, vector<1536x768xbf16>
    %cst = arith.constant dense<0.000000e+00> : vector<192x768xf32>
    %6 = tpu.matmul %4, %5, %cst {dimension_numbers = #tpu.dot_dimension_numbers<[1], [0], [0], [1], [0, 0, 1, 1], [], []>} : vector<192x1536xbf16>, vector<1536x768xbf16>, vector<192x768xf32> -> vector<192x768xf32>
    %7 = arith.addf %3, %6 : vector<192x768xf32>
    %c0_6 = arith.constant 0 : index
    %c0_7 = arith.constant 0 : index
    %8 = vector.load %arg6[%c0_6, %c0_7] : memref<192x768xf32, #tpu.memory_space<vmem>>, vector<192x768xf32>
    tpu.vector_store %arg6[%c0_6, %c0_7], %7 {strides = array<i32>} : memref<192x768xf32, #tpu.memory_space<vmem>>, vector<192x768xf32>,
    return
  }
  func.func @transform_0(%arg0: i32, %arg1: i32) -> (i32, i32) {
    %c0_i32 = arith.constant 0 : i32
    return %arg0, %arg1 : i32, i32
  }
  func.func @transform_1(%arg0: i32, %arg1: i32) -> (i32, i32) {
    %c0_i32 = arith.constant 0 : i32
    %c0_i32_0 = arith.constant 0 : i32
    return %arg1, %c0_i32 : i32, i32
  }
  func.func @transform_2(%arg0: i32, %arg1: i32) -> (i32, i32) {
    %c0_i32 = arith.constant 0 : i32
    %c0_i32_0 = arith.constant 0 : i32
    %c0_i32_1 = arith.constant 0 : i32
    return %c0_i32, %c0_i32_0 : i32, i32
  }
  func.func @transform_3(%arg0: i32, %arg1: i32) -> (i32, i32) {
    %c0_i32 = arith.constant 0 : i32
    %c0_i32_0 = arith.constant 0 : i32
    return %arg0, %c0_i32 : i32, i32
  }
  func.func @transform_4(%arg0: i32, %arg1: i32) -> (i32, i32) {
    %c0_i32 = arith.constant 0 : i32
    %c0_i32_0 = arith.constant 0 : i32
    return %arg0, %c0_i32 : i32, i32
  }
}

</mosaic_0001>

<llo_original>
// kernel: tpu_custom_call.1
$region0: #{tpu_custom_call.1}
  #allocation0 [shape = 'u32[]', space=smem, size = 0x4, offset = 0x4, fixed_abs, tag = 'smem constant byte address 0x4 - core index']
  #allocation1 [shape = 'u32[144,128]{1,0:T(1,128)}', space=vmem, size = 0x12000, scoped, tag = 'internal scratch']
  %s0 = inlined_call_operand.hbm [shape: bf16[384,3072], index: 0, kind: input, shape index: {}]
  %s1 = inlined_call_operand.hbm [shape: bf16[3072,768], index: 1, kind: input, shape index: {}]
  %s2 = inlined_call_operand.hbm [shape: f32[1,768], index: 2, kind: input, shape index: {}]
  %s3 = inlined_call_operand.hbm [shape: f32[384,768], index: 3, kind: input, shape index: {}]
  %s4 = inlined_call_operand.hbm [shape: f32[384,768], index: 4, kind: output, shape index: {}]
  %s5 = sld [smem:[#allocation0]]
  $region69: #{tpu_custom_call.1} parent=0
    _
  %s7 = ssub.s32 1, %s5
  %s8 = scalar_select 0, %s7, %s5
  $region1: #{tpu_custom_call.1} parent=0
    #allocation2 [shape = 'u8[1179648]{0}', space=vmem, size = 0x120000, scoped, tag = 'input window, operand 0']
    #allocation3 [shape = 's32[2]{0}', space=sflag, size = 0x8, scoped, tag = 'scoped memory for tpu_custom_call.1']
    #allocation4 [shape = 's32[2]{0}', space=sflag, size = 0x8, scoped, tag = 'scoped memory for tpu_custom_call.1']
    #allocation5 [shape = 'u8[4718592]{0}', space=vmem, size = 0x480000, scoped, tag = 'input window, operand 1']
    #allocation6 [shape = 's32[2]{0}', space=sflag, size = 0x8, scoped, tag = 'scoped memory for tpu_custom_call.1']
    #allocation7 [shape = 'u8[3072]{0}', space=vmem, size = 0xc00, scoped, tag = 'input window, operand 2, single buffered']
    #allocation8 [shape = 'u8[1179648]{0}', space=vmem, size = 0x120000, scoped, tag = 'input window, operand 3']
    #allocation9 [shape = 's32[2]{0}', space=sflag, size = 0x8, scoped, tag = 'scoped memory for tpu_custom_call.1']
    #allocation10 [shape = 'u8[1179648]{0}', space=vmem, size = 0x120000, scoped, tag = 'output window, operand 0']
    %9 = vsyncpa [#allocation3], 0
    %s10 = scalar_lea.sflag [#allocation3], 1
    %11 = vsyncpa %s10, 0
    %12 = vsyncpa [#allocation6], 0
    %s13 = scalar_lea.sflag [#allocation6], 1
    %14 = vsyncpa %s13, 0
    %15 = vsyncpa [#allocation9], 0
    %s16 = scalar_lea.sflag [#allocation9], 1
    %17 = vsyncpa %s16, 0
    %18 = vsyncpa [#allocation4], 0
    %s19 = scalar_lea.sflag [#allocation4], 1
    %20 = vsyncpa %s19, 0
    loop: start=0, step=1, limit=6
    $region2: #{tpu_custom_call.1} parent=1 // loop_pre_header
      _
    $region3: #{tpu_custom_call.1} parent=1 // loop_header
      %s22 = sphi 0, %s26
      %p23 = scmp.ge.s32.totalorder %s22, 6
      %s29 = sphi 0, %s41
      %s30 = sphi 0, %s37
      %s31 = sphi 0, %s29
      %s32 = sphi 0, %s30
      %s33 = sphi 0, %s31
      %s34 = sphi 0, %s32
      %s46 = sphi 0, %s48
      %s49 = sphi 0, %s46
      %s50 = sphi 0, %s49
      %s66 = sphi 0, %s50
      %s72 = sphi 0, %s74
      %s75 = sphi 0, %s72
      %s76 = sphi 0, %s75
      %s92 = sphi 0, %s76
      %s96 = sphi 0, %s96
      %s98 = sphi 0, %s96
      %s99 = sphi 0, %s98
      %s113 = sphi 0, %s99
      %s119 = sphi 0, %s121
      %s122 = sphi 0, %s119
      %s123 = sphi 0, %s122
      %s139 = sphi 0, %s123
      %s145 = sphi 0, %s147
      %s148 = sphi 0, %s145
      %s149 = sphi 0, %s148
      %s165 = sphi 0, %s149
    $region4: #{tpu_custom_call.1} parent=1 // loop_header_branch
      %25 = sbr.rel (%p23) target = $region8
    $region5: #{tpu_custom_call.1} parent=1 // loop_body
      %s27 = ssub.s32 %s22, 1
      %s28 = ssub.s32 %s22, 2
      %s35 = sadd.s32 1, %s30
      %p36 = scmp.ge.s32.totalorder %s35, 2
      %s37 = scalar_select %p36, 0, %s35
      %s38 = sadd.s32 1, %s29
      %s39 = scalar_select %p36, %s38, %s29
      %p40 = scmp.ge.s32.totalorder %s39, 2
      %s41 = scalar_select %p40, 0, %s39
      %s42 = ssub.s32 %s29, %s41
      %s43 = ssub.s32 %s30, %s37
      %s44 = sor.u32 %s42, %s43
      %p45 = scmp.eq.s32.totalorder %s44, 0
      %s47 = sadd.s32 %s46, 1
      %s48 = scalar_select %p45, %s46, %s47
      %p51 = pneg %p45
      %p52 = scmp.eq.s32.totalorder %s22, 3
      %p53 = por %p51, %p52
      %p54 = scmp.ne.s32.totalorder %s46, %s49
      %p55 = scmp.eq.s32.totalorder %s22, 0
      %p56 = por %p54, %p55
      %p57 = scmp.ne.s32.totalorder %s46, %s49
      %p58 = scmp.eq.s32.totalorder %s27, 3
      %p59 = por %p57, %p58
      %p60 = scmp.ne.s32.totalorder %s49, %s50
      %p61 = scmp.eq.s32.totalorder %s27, 0
      %p62 = por %p60, %p61
      %p63 = scmp.ne.s32.totalorder %s49, %s50
      %p64 = scmp.eq.s32.totalorder %s28, 3
      %p65 = por %p63, %p64
      %p67 = scmp.ne.s32.totalorder %s50, %s66
      %p68 = scmp.eq.s32.totalorder %s28, 0
      %p69 = por %p67, %p68
      %s70 = ssub.s32 %s30, %s37
      %p71 = scmp.eq.s32.totalorder %s70, 0
      %s73 = sadd.s32 %s72, 1
      %s74 = scalar_select %p71, %s72, %s73
      %p77 = pneg %p71
      %p78 = scmp.eq.s32.totalorder %s22, 3
      %p79 = por %p77, %p78
      %p80 = scmp.ne.s32.totalorder %s72, %s75
      %p81 = scmp.eq.s32.totalorder %s22, 0
      %p82 = por %p80, %p81
      %p83 = scmp.ne.s32.totalorder %s72, %s75
      %p84 = scmp.eq.s32.totalorder %s27, 3
      %p85 = por %p83, %p84
      %p86 = scmp.ne.s32.totalorder %s75, %s76
      %p87 = scmp.eq.s32.totalorder %s27, 0
      %p88 = por %p86, %p87
      %p89 = scmp.ne.s32.totalorder %s75, %s76
      %p90 = scmp.eq.s32.totalorder %s28, 3
      %p91 = por %p89, %p90
      %p93 = scmp.ne.s32.totalorder %s76, %s92
      %p94 = scmp.eq.s32.totalorder %s28, 0
      %p95 = por %p93, %p94
      %s97 = sadd.s32 %s96, 1
      %p100 = scmp.eq.s32.totalorder %s22, 3
      %p101 = scmp.ne.s32.totalorder %s96, %s98
      %p102 = scmp.eq.s32.totalorder %s22, 0
      %p103 = por %p101, %p102
      %p104 = scmp.ne.s32.totalorder %s96, %s98
      %p105 = scmp.eq.s32.totalorder %s27, 3
      %p106 = por %p104, %p105
      %p107 = scmp.ne.s32.totalorder %s98, %s99
      %p108 = scmp.eq.s32.totalorder %s27, 0
      %p109 = por %p107, %p108
      %p110 = scmp.ne.s32.totalorder %s98, %s99
      %p111 = scmp.eq.s32.totalorder %s28, 3
      %p112 = por %p110, %p111
      %p114 = scmp.ne.s32.totalorder %s99, %s113
      %p115 = scmp.eq.s32.totalorder %s28, 0
      %p116 = por %p114, %p115
      %s117 = ssub.s32 %s29, %s41
      %p118 = scmp.eq.s32.totalorder %s117, 0
      %s120 = sadd.s32 %s119, 1
      %s121 = scalar_select %p118, %s119, %s120
      %p124 = pneg %p118
      %p125 = scmp.eq.s32.totalorder %s22, 3
      %p126 = por %p124, %p125
      %p127 = scmp.ne.s32.totalorder %s119, %s122
      %p128 = scmp.eq.s32.totalorder %s22, 0
      %p129 = por %p127, %p128
      %p130 = scmp.ne.s32.totalorder %s119, %s122
      %p131 = scmp.eq.s32.totalorder %s27, 3
      %p132 = por %p130, %p131
      %p133 = scmp.ne.s32.totalorder %s122, %s123
      %p134 = scmp.eq.s32.totalorder %s27, 0
      %p135 = por %p133, %p134
      %p136 = scmp.ne.s32.totalorder %s122, %s123
      %p137 = scmp.eq.s32.totalorder %s28, 3
      %p138 = por %p136, %p137
      %p140 = scmp.ne.s32.totalorder %s123, %s139
      %p141 = scmp.eq.s32.totalorder %s28, 0
      %p142 = por %p140, %p141
      %s143 = ssub.s32 %s29, %s41
      %p144 = scmp.eq.s32.totalorder %s143, 0
      %s146 = sadd.s32 %s145, 1
      %s147 = scalar_select %p144, %s145, %s146
      %p150 = pneg %p144
      %p151 = scmp.eq.s32.totalorder %s22, 3
      %p152 = por %p150, %p151
      %p153 = scmp.ne.s32.totalorder %s145, %s148
      %p154 = scmp.eq.s32.totalorder %s22, 0
      %p155 = por %p153, %p154
      %p156 = scmp.ne.s32.totalorder %s145, %s148
      %p157 = scmp.eq.s32.totalorder %s27, 3
      %p158 = por %p156, %p157
      %p159 = scmp.ne.s32.totalorder %s148, %s149
      %p160 = scmp.eq.s32.totalorder %s27, 0
      %p161 = por %p159, %p160
      %p162 = scmp.ne.s32.totalorder %s148, %s149
      %p163 = scmp.eq.s32.totalorder %s28, 3
      %p164 = por %p162, %p163
      %p166 = scmp.ne.s32.totalorder %s149, %s165
      %p167 = scmp.eq.s32.totalorder %s28, 0
      %p168 = por %p166, %p167
      %p169 = scmp.le.s32.totalorder 1, %s22
      %p170 = scmp.lt.s32.totalorder %s22, 5
      %p171 = pnand %p169, %p170
      %p172 = pneg %p171
      // Predicated region
      $region9: #{tpu_custom_call.1} parent=5 // pred_check
        _
      $region10: #{tpu_custom_call.1} parent=5 // pred_check_branch
        %174 = sbr.rel (%p171) target = $region12
      $region11: #{tpu_custom_call.1} parent=5 // pred_region
        %s175 = ssub.s32 %s22, 1
        // Predicated region
        $region13: #{tpu_custom_call.1} parent=11 // pred_check
          %p176 = pneg %p109
        $region14: #{tpu_custom_call.1} parent=11 // pred_check_branch
          %178 = sbr.rel (%p176) target = $region16
        $region15: #{tpu_custom_call.1} parent=11 // pred_region
          %s180 = ssub.s32 96, 96
          %181 = vsyncadd [#allocation6], %s180
          %s183 = sshll.u32 [#allocation7], 4
          %s184 = int_to_ptr.vmem [resolvable:$true] %s183
          %186 = dma.hbm_to_vmem [thread:$0]  %s2, 96, %s184, [#allocation6]
        $region16: #{tpu_custom_call.1} parent=11 // pred_fallthru
          _
      $region12: #{tpu_custom_call.1} parent=5 // pred_fallthru
        _
      %p187 = scmp.lt.s32.totalorder %s22, 4
      // Predicated region
      $region17: #{tpu_custom_call.1} parent=5 // pred_check
        %p188 = pneg %p187
      $region18: #{tpu_custom_call.1} parent=5 // pred_check_branch
        %190 = sbr.rel (%p188) target = $region20
      $region19: #{tpu_custom_call.1} parent=5 // pred_region
        // Predicated region
        $region21: #{tpu_custom_call.1} parent=19 // pred_check
          %p191 = pneg %p56
        $region22: #{tpu_custom_call.1} parent=19 // pred_check_branch
          %193 = sbr.rel (%p191) target = $region24
        $region23: #{tpu_custom_call.1} parent=19 // pred_region
          %s194 = sand.u32 %s46, 1
          %s195 = scalar_lea.sflag [#allocation3], %s194
          %s196 = sand.u32 %s46, 1
          %s197 = smul.addr %s196, 1152
          %s198 = scalar_lea.vmem [#allocation2], %s197
          %s199 = smul.u32 24, %s29
          %s200 = smul.u32 12, %s30
          %s202 = ssub.s32 18432, 18432
          %203 = vsyncadd %s195, %s202
          %s204 = smul.addr %s199, 24
          %s205 = sadd.s32 %s200, %s204
          %s206 = smul.addr %s205, 64
          %s207 = scalar_lea.hbm %s0, %s206
          %s208 = sshll.u32 %s198, 4
          %s209 = int_to_ptr.vmem [resolvable:$true] %s208
          %214 = dma.hbm_to_vmem [thread:$0]  %s207, 18432, %s209, %s195, 1536, 768, 48
        $region24: #{tpu_custom_call.1} parent=19 // pred_fallthru
          _
        // Predicated region
        $region25: #{tpu_custom_call.1} parent=19 // pred_check
          %p215 = pneg %p82
        $region26: #{tpu_custom_call.1} parent=19 // pred_check_branch
          %217 = sbr.rel (%p215) target = $region28
        $region27: #{tpu_custom_call.1} parent=19 // pred_region
          %s218 = sand.u32 %s22, 1
          %s219 = scalar_lea.sflag [#allocation6], %s218
          %s220 = sand.u32 %s72, 1
          %s221 = smul.addr %s220, 4608
          %s222 = scalar_lea.vmem [#allocation5], %s221
          %s223 = smul.u32 192, %s30
          %s225 = ssub.s32 73728, 73728
          %226 = vsyncadd %s219, %s225
          %s227 = smul.addr %s223, 6
          %s228 = smul.addr %s227, 64
          %s229 = scalar_lea.hbm %s1, %s228
          %s230 = sshll.u32 %s222, 4
          %s231 = int_to_ptr.vmem [resolvable:$true] %s230
          %236 = dma.hbm_to_vmem [thread:$0]  %s229, 73728, %s231, %s219, 384, 384, 24
        $region28: #{tpu_custom_call.1} parent=19 // pred_fallthru
          _
        // Predicated region
        $region29: #{tpu_custom_call.1} parent=19 // pred_check
          %p237 = pneg %p129
        $region30: #{tpu_custom_call.1} parent=19 // pred_check_branch
          %239 = sbr.rel (%p237) target = $region32
        $region31: #{tpu_custom_call.1} parent=19 // pred_region
          %s240 = sand.u32 %s119, 1
          %s241 = scalar_lea.sflag [#allocation9], %s240
          %s242 = sand.u32 %s119, 1
          %s243 = smul.addr %s242, 1152
          %s244 = scalar_lea.vmem [#allocation8], %s243
          %s245 = smul.u32 24, %s29
          %s247 = ssub.s32 18432, 18432
          %248 = vsyncadd %s241, %s247
          %s249 = smul.addr %s245, 6
          %s250 = smul.addr %s249, 128
          %s251 = scalar_lea.hbm %s3, %s250
          %s252 = sshll.u32 %s244, 4
          %s253 = int_to_ptr.vmem [resolvable:$true] %s252
          %258 = dma.hbm_to_vmem [thread:$0]  %s251, 18432, %s253, %s241, 768, 768, 48
        $region32: #{tpu_custom_call.1} parent=19 // pred_fallthru
          _
      $region20: #{tpu_custom_call.1} parent=5 // pred_fallthru
        _
      %p259 = scmp.le.s32.totalorder 1, %s22
      %p260 = scmp.lt.s32.totalorder %s22, 5
      %p261 = pnand %p259, %p260
      %p262 = pneg %p261
      // Predicated region
      $region33: #{tpu_custom_call.1} parent=5 // pred_check
        _
      $region34: #{tpu_custom_call.1} parent=5 // pred_check_branch
        %264 = sbr.rel (%p261) target = $region36
      $region35: #{tpu_custom_call.1} parent=5 // pred_region
        %s265 = ssub.s32 %s22, 1
        %s266 = sand.u32 %s49, 1
        %s267 = scalar_lea.sflag [#allocation3], %s266
        %s268 = sand.u32 %s49, 1
        %s269 = smul.addr %s268, 1152
        %s270 = scalar_lea.vmem [#allocation2], %s269
        // Predicated region
        $region37: #{tpu_custom_call.1} parent=35 // pred_check
          %p271 = pneg %p62
        $region38: #{tpu_custom_call.1} parent=35 // pred_check_branch
          %273 = sbr.rel (%p271) target = $region40
        $region39: #{tpu_custom_call.1} parent=35 // pred_region
          %274 = dma.done %s267, 18432
        $region40: #{tpu_custom_call.1} parent=35 // pred_fallthru
          _
        %s275 = sand.u32 %s27, 1
        %s276 = scalar_lea.sflag [#allocation6], %s275
        %s277 = sand.u32 %s75, 1
        %s278 = smul.addr %s277, 4608
        %s279 = scalar_lea.vmem [#allocation5], %s278
        // Predicated region
        $region41: #{tpu_custom_call.1} parent=35 // pred_check
          %p280 = pneg %p88
        $region42: #{tpu_custom_call.1} parent=35 // pred_check_branch
          %282 = sbr.rel (%p280) target = $region44
        $region43: #{tpu_custom_call.1} parent=35 // pred_region
          %283 = dma.done %s276, 73728
        $region44: #{tpu_custom_call.1} parent=35 // pred_fallthru
          _
        // Predicated region
        $region45: #{tpu_custom_call.1} parent=35 // pred_check
          %p284 = pneg %p109
        $region46: #{tpu_custom_call.1} parent=35 // pred_check_branch
          %286 = sbr.rel (%p284) target = $region48
        $region47: #{tpu_custom_call.1} parent=35 // pred_region
          %287 = dma.done [#allocation6], 96
        $region48: #{tpu_custom_call.1} parent=35 // pred_fallthru
          _
        %s288 = sand.u32 %s122, 1
        %s289 = scalar_lea.sflag [#allocation9], %s288
        %s290 = sand.u32 %s122, 1
        %s291 = smul.addr %s290, 1152
        %s292 = scalar_lea.vmem [#allocation8], %s291
        // Predicated region
        $region49: #{tpu_custom_call.1} parent=35 // pred_check
          %p293 = pneg %p135
        $region50: #{tpu_custom_call.1} parent=35 // pred_check_branch
          %295 = sbr.rel (%p293) target = $region52
        $region51: #{tpu_custom_call.1} parent=35 // pred_region
          %296 = dma.done %s289, 18432
        $region52: #{tpu_custom_call.1} parent=35 // pred_fallthru
          _
        %s297 = sand.u32 %s49, 1
        %s298 = scalar_lea.sflag [#allocation3], %s297
        %s299 = sand.u32 %s49, 1
        %s300 = smul.addr %s299, 1152
        %s301 = scalar_lea.vmem [#allocation2], %s300
        %p302 = pneg %p62
        %p303 = pneg %p59
        %s304 = sand.u32 %s27, 1
        %s305 = scalar_lea.sflag [#allocation6], %s304
        %s306 = sand.u32 %s75, 1
        %s307 = smul.addr %s306, 4608
        %s308 = scalar_lea.vmem [#allocation5], %s307
        %p309 = pneg %p88
        %p310 = pneg %p85
        %p311 = pneg %p109
        %p312 = pneg %p106
        %s313 = sand.u32 %s122, 1
        %s314 = scalar_lea.sflag [#allocation9], %s313
        %s315 = sand.u32 %s122, 1
        %s316 = smul.addr %s315, 1152
        %s317 = scalar_lea.vmem [#allocation8], %s316
        %p318 = pneg %p135
        %p319 = pneg %p132
        %p320 = pneg %p161
        %p321 = pneg %p158
        %s322 = sand.u32 %s148, 1
        %s323 = scalar_lea.sflag [#allocation4], %s322
        %s324 = sand.u32 %s148, 1
        %s325 = smul.addr %s324, 1152
        %s326 = scalar_lea.vmem [#allocation10], %s325
        %s327 = smul.u32 24, %s31
        %s328 = smul.u32 12, %s32
        %s329 = smul.u32 192, %s32
        %s330 = smul.u32 24, %s31
        %s331 = smul.u32 24, %s31
        %p332 = scmp.eq.s32.totalorder %s32, 0
        // Predicated region
        $region53: #{tpu_custom_call.1} parent=35 // pred_check
          %p333 = pneg %p332
        $region54: #{tpu_custom_call.1} parent=35 // pred_check_branch
          %335 = sbr.rel (%p333) target = $region56
        $region55: #{tpu_custom_call.1} parent=35 // pred_region
          %v336 = vld [vmem:[%s292] sm:$0xff]
          %v337 = vld [vmem:[%s292 + $0x8] sm:$0xff]
          %v338 = vld [vmem:[%s292 + $0x10] sm:$0xff]
          %v339 = vld [vmem:[%s292 + $0x18] sm:$0xff]
          %v340 = vld [vmem:[%s292 + $0x20] sm:$0xff]
          %v341 = vld [vmem:[%s292 + $0x28] sm:$0xff]
          %v342 = vld [vmem:[%s292 + $0x30] sm:$0xff]
          %v343 = vld [vmem:[%s292 + $0x38] sm:$0xff]
          %v344 = vld [vmem:[%s292 + $0x40] sm:$0xff]
          %v345 = vld [vmem:[%s292 + $0x48] sm:$0xff]
          %v346 = vld [vmem:[%s292 + $0x50] sm:$0xff]
          %v347 = vld [vmem:[%s292 + $0x58] sm:$0xff]
          %v348 = vld [vmem:[%s292 + $0x60] sm:$0xff]
          %v349 = vld [vmem:[%s292 + $0x68] sm:$0xff]
          %v350 = vld [vmem:[%s292 + $0x70] sm:$0xff]
          %v351 = vld [vmem:[%s292 + $0x78] sm:$0xff]
          %v352 = vld [vmem:[%s292 + $0x80] sm:$0xff]
          %v353 = vld [vmem:[%s292 + $0x88] sm:$0xff]
          %v354 = vld [vmem:[%s292 + $0x90] sm:$0xff]
          %v355 = vld [vmem:[%s292 + $0x98] sm:$0xff]
          %v356 = vld [vmem:[%s292 + $0xa0] sm:$0xff]
          %v357 = vld [vmem:[%s292 + $0xa8] sm:$0xff]
          %v358 = vld [vmem:[%s292 + $0xb0] sm:$0xff]
          %v359 = vld [vmem:[%s292 + $0xb8] sm:$0xff]
          %v360 = vld [vmem:[%s292 + $0xc0] sm:$0xff]
          %v361 = vld [vmem:[%s292 + $0xc8] sm:$0xff]
          %v362 = vld [vmem:[%s292 + $0xd0] sm:$0xff]
          %v363 = vld [vmem:[%s292 + $0xd8] sm:$0xff]
          %v364 = vld [vmem:[%s292 + $0xe0] sm:$0xff]
          %v365 = vld [vmem:[%s292 + $0xe8] sm:$0xff]
          %v366 = vld [vmem:[%s292 + $0xf0] sm:$0xff]
          %v367 = vld [vmem:[%s292 + $0xf8] sm:$0xff]
          %v368 = vld [vmem:[%s292 + $0x100] sm:$0xff]
          %v369 = vld [vmem:[%s292 + $0x108] sm:$0xff]
          %v370 = vld [vmem:[%s292 + $0x110] sm:$0xff]
          %v371 = vld [vmem:[%s292 + $0x118] sm:$0xff]
          %v372 = vld [vmem:[%s292 + $0x120] sm:$0xff]
          %v373 = vld [vmem:[%s292 + $0x128] sm:$0xff]
          %v374 = vld [vmem:[%s292 + $0x130] sm:$0xff]
          %v375 = vld [vmem:[%s292 + $0x138] sm:$0xff]
          %v376 = vld [vmem:[%s292 + $0x140] sm:$0xff]
          %v377 = vld [vmem:[%s292 + $0x148] sm:$0xff]
          %v378 = vld [vmem:[%s292 + $0x150] sm:$0xff]
          %v379 = vld [vmem:[%s292 + $0x158] sm:$0xff]
          %v380 = vld [vmem:[%s292 + $0x160] sm:$0xff]
          %v381 = vld [vmem:[%s292 + $0x168] sm:$0xff]
          %v382 = vld [vmem:[%s292 + $0x170] sm:$0xff]
          %v383 = vld [vmem:[%s292 + $0x178] sm:$0xff]
          %v384 = vld [vmem:[%s292 + $0x180] sm:$0xff]
          %v385 = vld [vmem:[%s292 + $0x188] sm:$0xff]
          %v386 = vld [vmem:[%s292 + $0x190] sm:$0xff]
          %v387 = vld [vmem:[%s292 + $0x198] sm:$0xff]
          %v388 = vld [vmem:[%s292 + $0x1a0] sm:$0xff]
          %v389 = vld [vmem:[%s292 + $0x1a8] sm:$0xff]
          %v390 = vld [vmem:[%s292 + $0x1b0] sm:$0xff]
          %v391 = vld [vmem:[%s292 + $0x1b8] sm:$0xff]
          %v392 = vld [vmem:[%s292 + $0x1c0] sm:$0xff]
          %v393 = vld [vmem:[%s292 + $0x1c8] sm:$0xff]
          %v394 = vld [vmem:[%s292 + $0x1d0] sm:$0xff]
          %v395 = vld [vmem:[%s292 + $0x1d8] sm:$0xff]
          %v396 = vld [vmem:[%s292 + $0x1e0] sm:$0xff]
          %v397 = vld [vmem:[%s292 + $0x1e8] sm:$0xff]
          %v398 = vld [vmem:[%s292 + $0x1f0] sm:$0xff]
          %v399 = vld [vmem:[%s292 + $0x1f8] sm:$0xff]
          %v400 = vld [vmem:[%s292 + $0x200] sm:$0xff]
          %v401 = vld [vmem:[%s292 + $0x208] sm:$0xff]
          %v402 = vld [vmem:[%s292 + $0x210] sm:$0xff]
          %v403 = vld [vmem:[%s292 + $0x218] sm:$0xff]
          %v404 = vld [vmem:[%s292 + $0x220] sm:$0xff]
          %v405 = vld [vmem:[%s292 + $0x228] sm:$0xff]
          %v406 = vld [vmem:[%s292 + $0x230] sm:$0xff]
          %v407 = vld [vmem:[%s292 + $0x238] sm:$0xff]
          %v408 = vld [vmem:[%s292 + $0x240] sm:$0xff]
          %v409 = vld [vmem:[%s292 + $0x248] sm:$0xff]
          %v410 = vld [vmem:[%s292 + $0x250] sm:$0xff]
          %v411 = vld [vmem:[%s292 + $0x258] sm:$0xff]
          %v412 = vld [vmem:[%s292 + $0x260] sm:$0xff]
          %v413 = vld [vmem:[%s292 + $0x268] sm:$0xff]
          %v414 = vld [vmem:[%s292 + $0x270] sm:$0xff]
          %v415 = vld [vmem:[%s292 + $0x278] sm:$0xff]
          %v416 = vld [vmem:[%s292 + $0x280] sm:$0xff]
          %v417 = vld [vmem:[%s292 + $0x288] sm:$0xff]
          %v418 = vld [vmem:[%s292 + $0x290] sm:$0xff]
          %v419 = vld [vmem:[%s292 + $0x298] sm:$0xff]
          %v420 = vld [vmem:[%s292 + $0x2a0] sm:$0xff]
          %v421 = vld [vmem:[%s292 + $0x2a8] sm:$0xff]
          %v422 = vld [vmem:[%s292 + $0x2b0] sm:$0xff]
          %v423 = vld [vmem:[%s292 + $0x2b8] sm:$0xff]
          %v424 = vld [vmem:[%s292 + $0x2c0] sm:$0xff]
          %v425 = vld [vmem:[%s292 + $0x2c8] sm:$0xff]
          %v426 = vld [vmem:[%s292 + $0x2d0] sm:$0xff]
          %v427 = vld [vmem:[%s292 + $0x2d8] sm:$0xff]
          %v428 = vld [vmem:[%s292 + $0x2e0] sm:$0xff]
          %v429 = vld [vmem:[%s292 + $0x2e8] sm:$0xff]
          %v430 = vld [vmem:[%s292 + $0x2f0] sm:$0xff]
          %v431 = vld [vmem:[%s292 + $0x2f8] sm:$0xff]
          %v432 = vld [vmem:[%s292 + $0x300] sm:$0xff]
          %v433 = vld [vmem:[%s292 + $0x308] sm:$0xff]
          %v434 = vld [vmem:[%s292 + $0x310] sm:$0xff]
          %v435 = vld [vmem:[%s292 + $0x318] sm:$0xff]
          %v436 = vld [vmem:[%s292 + $0x320] sm:$0xff]
          %v437 = vld [vmem:[%s292 + $0x328] sm:$0xff]
          %v438 = vld [vmem:[%s292 + $0x330] sm:$0xff]
          %v439 = vld [vmem:[%s292 + $0x338] sm:$0xff]
          %v440 = vld [vmem:[%s292 + $0x340] sm:$0xff]
          %v441 = vld [vmem:[%s292 + $0x348] sm:$0xff]
          %v442 = vld [vmem:[%s292 + $0x350] sm:$0xff]
          %v443 = vld [vmem:[%s292 + $0x358] sm:$0xff]
          %v444 = vld [vmem:[%s292 + $0x360] sm:$0xff]
          %v445 = vld [vmem:[%s292 + $0x368] sm:$0xff]
          %v446 = vld [vmem:[%s292 + $0x370] sm:$0xff]
          %v447 = vld [vmem:[%s292 + $0x378] sm:$0xff]
          %v448 = vld [vmem:[%s292 + $0x380] sm:$0xff]
          %v449 = vld [vmem:[%s292 + $0x388] sm:$0xff]
          %v450 = vld [vmem:[%s292 + $0x390] sm:$0xff]
          %v451 = vld [vmem:[%s292 + $0x398] sm:$0xff]
          %v452 = vld [vmem:[%s292 + $0x3a0] sm:$0xff]
          %v453 = vld [vmem:[%s292 + $0x3a8] sm:$0xff]
          %v454 = vld [vmem:[%s292 + $0x3b0] sm:$0xff]
          %v455 = vld [vmem:[%s292 + $0x3b8] sm:$0xff]
          %v456 = vld [vmem:[%s292 + $0x3c0] sm:$0xff]
          %v457 = vld [vmem:[%s292 + $0x3c8] sm:$0xff]
          %v458 = vld [vmem:[%s292 + $0x3d0] sm:$0xff]
          %v459 = vld [vmem:[%s292 + $0x3d8] sm:$0xff]
          %v460 = vld [vmem:[%s292 + $0x3e0] sm:$0xff]
          %v461 = vld [vmem:[%s292 + $0x3e8] sm:$0xff]
          %v462 = vld [vmem:[%s292 + $0x3f0] sm:$0xff]
          %v463 = vld [vmem:[%s292 + $0x3f8] sm:$0xff]
          %v464 = vld [vmem:[%s292 + $0x400] sm:$0xff]
          %v465 = vld [vmem:[%s292 + $0x408] sm:$0xff]
          %v466 = vld [vmem:[%s292 + $0x410] sm:$0xff]
          %v467 = vld [vmem:[%s292 + $0x418] sm:$0xff]
          %v468 = vld [vmem:[%s292 + $0x420] sm:$0xff]
          %v469 = vld [vmem:[%s292 + $0x428] sm:$0xff]
          %v470 = vld [vmem:[%s292 + $0x430] sm:$0xff]
          %v471 = vld [vmem:[%s292 + $0x438] sm:$0xff]
          %v472 = vld [vmem:[%s292 + $0x440] sm:$0xff]
          %v473 = vld [vmem:[%s292 + $0x448] sm:$0xff]
          %v474 = vld [vmem:[%s292 + $0x450] sm:$0xff]
          %v475 = vld [vmem:[%s292 + $0x458] sm:$0xff]
          %v476 = vld [vmem:[%s292 + $0x460] sm:$0xff]
          %v477 = vld [vmem:[%s292 + $0x468] sm:$0xff]
          %v478 = vld [vmem:[%s292 + $0x470] sm:$0xff]
          %v479 = vld [vmem:[%s292 + $0x478] sm:$0xff]
          %v480 = vld [vmem:[#allocation7] sm:$0x3f]
          %v482 = vlaneseq
          %v483 = vshrl.u32 %v482, 7
          %v484 = vsub.s32 0, %v483
          %v485 = vrot.slane %v480, %v484
          %v486 = vlaneseq
          %v487 = vshrl.u32 %v486, 7
          %v488 = vsub.s32 1, %v487
          %v489 = vrot.slane %v480, %v488
          %v490 = vlaneseq
          %v491 = vshrl.u32 %v490, 7
          %v492 = vsub.s32 2, %v491
          %v493 = vrot.slane %v480, %v492
          %v494 = vlaneseq
          %v495 = vshrl.u32 %v494, 7
          %v496 = vsub.s32 3, %v495
          %v497 = vrot.slane %v480, %v496
          %v498 = vlaneseq
          %v499 = vshrl.u32 %v498, 7
          %v500 = vsub.s32 4, %v499
          %v501 = vrot.slane %v480, %v500
          %v502 = vlaneseq
          %v503 = vshrl.u32 %v502, 7
          %v504 = vsub.s32 5, %v503
          %v505 = vrot.slane %v480, %v504
          %v512 = vadd.f32 %v336, %v485
          %v513 = vadd.f32 %v337, %v489
          %v514 = vadd.f32 %v338, %v493
          %v515 = vadd.f32 %v339, %v497
          %v516 = vadd.f32 %v340, %v501
          %v517 = vadd.f32 %v341, %v505
          %v518 = vadd.f32 %v342, %v485
          %v519 = vadd.f32 %v343, %v489
          %v520 = vadd.f32 %v344, %v493
          %v521 = vadd.f32 %v345, %v497
          %v522 = vadd.f32 %v346, %v501
          %v523 = vadd.f32 %v347, %v505
          %v524 = vadd.f32 %v348, %v485
          %v525 = vadd.f32 %v349, %v489
          %v526 = vadd.f32 %v350, %v493
          %v527 = vadd.f32 %v351, %v497
          %v528 = vadd.f32 %v352, %v501
          %v529 = vadd.f32 %v353, %v505
          %v530 = vadd.f32 %v354, %v485
          %v531 = vadd.f32 %v355, %v489
          %v532 = vadd.f32 %v356, %v493
          %v533 = vadd.f32 %v357, %v497
          %v534 = vadd.f32 %v358, %v501
          %v535 = vadd.f32 %v359, %v505
          %v536 = vadd.f32 %v360, %v485
          %v537 = vadd.f32 %v361, %v489
          %v538 = vadd.f32 %v362, %v493
          %v539 = vadd.f32 %v363, %v497
          %v540 = vadd.f32 %v364, %v501
          %v541 = vadd.f32 %v365, %v505
          %v542 = vadd.f32 %v366, %v485
          %v543 = vadd.f32 %v367, %v489
          %v544 = vadd.f32 %v368, %v493
          %v545 = vadd.f32 %v369, %v497
          %v546 = vadd.f32 %v370, %v501
          %v547 = vadd.f32 %v371, %v505
          %v548 = vadd.f32 %v372, %v485
          %v549 = vadd.f32 %v373, %v489
          %v550 = vadd.f32 %v374, %v493
          %v551 = vadd.f32 %v375, %v497
          %v552 = vadd.f32 %v376, %v501
          %v553 = vadd.f32 %v377, %v505
          %v554 = vadd.f32 %v378, %v485
          %v555 = vadd.f32 %v379, %v489
          %v556 = vadd.f32 %v380, %v493
          %v557 = vadd.f32 %v381, %v497
          %v558 = vadd.f32 %v382, %v501
          %v559 = vadd.f32 %v383, %v505
          %v560 = vadd.f32 %v384, %v485
          %v561 = vadd.f32 %v385, %v489
          %v562 = vadd.f32 %v386, %v493
          %v563 = vadd.f32 %v387, %v497
          %v564 = vadd.f32 %v388, %v501
          %v565 = vadd.f32 %v389, %v505
          %v566 = vadd.f32 %v390, %v485
          %v567 = vadd.f32 %v391, %v489
          %v568 = vadd.f32 %v392, %v493
          %v569 = vadd.f32 %v393, %v497
          %v570 = vadd.f32 %v394, %v501
          %v571 = vadd.f32 %v395, %v505
          %v572 = vadd.f32 %v396, %v485
          %v573 = vadd.f32 %v397, %v489
          %v574 = vadd.f32 %v398, %v493
          %v575 = vadd.f32 %v399, %v497
          %v576 = vadd.f32 %v400, %v501
          %v577 = vadd.f32 %v401, %v505
          %v578 = vadd.f32 %v402, %v485
          %v579 = vadd.f32 %v403, %v489
          %v580 = vadd.f32 %v404, %v493
          %v581 = vadd.f32 %v405, %v497
          %v582 = vadd.f32 %v406, %v501
          %v583 = vadd.f32 %v407, %v505
          %v584 = vadd.f32 %v408, %v485
          %v585 = vadd.f32 %v409, %v489
          %v586 = vadd.f32 %v410, %v493
          %v587 = vadd.f32 %v411, %v497
          %v588 = vadd.f32 %v412, %v501
          %v589 = vadd.f32 %v413, %v505
          %v590 = vadd.f32 %v414, %v485
          %v591 = vadd.f32 %v415, %v489
          %v592 = vadd.f32 %v416, %v493
          %v593 = vadd.f32 %v417, %v497
          %v594 = vadd.f32 %v418, %v501
          %v595 = vadd.f32 %v419, %v505
          %v596 = vadd.f32 %v420, %v485
          %v597 = vadd.f32 %v421, %v489
          %v598 = vadd.f32 %v422, %v493
          %v599 = vadd.f32 %v423, %v497
          %v600 = vadd.f32 %v424, %v501
          %v601 = vadd.f32 %v425, %v505
          %v602 = vadd.f32 %v426, %v485
          %v603 = vadd.f32 %v427, %v489
          %v604 = vadd.f32 %v428, %v493
          %v605 = vadd.f32 %v429, %v497
          %v606 = vadd.f32 %v430, %v501
          %v607 = vadd.f32 %v431, %v505
          %v608 = vadd.f32 %v432, %v485
          %v609 = vadd.f32 %v433, %v489
          %v610 = vadd.f32 %v434, %v493
          %v611 = vadd.f32 %v435, %v497
          %v612 = vadd.f32 %v436, %v501
          %v613 = vadd.f32 %v437, %v505
          %v614 = vadd.f32 %v438, %v485
          %v615 = vadd.f32 %v439, %v489
          %v616 = vadd.f32 %v440, %v493
          %v617 = vadd.f32 %v441, %v497
          %v618 = vadd.f32 %v442, %v501
          %v619 = vadd.f32 %v443, %v505
          %v620 = vadd.f32 %v444, %v485
          %v621 = vadd.f32 %v445, %v489
          %v622 = vadd.f32 %v446, %v493
          %v623 = vadd.f32 %v447, %v497
          %v624 = vadd.f32 %v448, %v501
          %v625 = vadd.f32 %v449, %v505
          %v626 = vadd.f32 %v450, %v485
          %v627 = vadd.f32 %v451, %v489
          %v628 = vadd.f32 %v452, %v493
          %v629 = vadd.f32 %v453, %v497
          %v630 = vadd.f32 %v454, %v501
          %v631 = vadd.f32 %v455, %v505
          %v632 = vadd.f32 %v456, %v485
          %v633 = vadd.f32 %v457, %v489
          %v634 = vadd.f32 %v458, %v493
          %v635 = vadd.f32 %v459, %v497
          %v636 = vadd.f32 %v460, %v501
          %v637 = vadd.f32 %v461, %v505
          %v638 = vadd.f32 %v462, %v485
          %v639 = vadd.f32 %v463, %v489
          %v640 = vadd.f32 %v464, %v493
          %v641 = vadd.f32 %v465, %v497
          %v642 = vadd.f32 %v466, %v501
          %v643 = vadd.f32 %v467, %v505
          %v644 = vadd.f32 %v468, %v485
          %v645 = vadd.f32 %v469, %v489
          %v646 = vadd.f32 %v470, %v493
          %v647 = vadd.f32 %v471, %v497
          %v648 = vadd.f32 %v472, %v501
          %v649 = vadd.f32 %v473, %v505
          %v650 = vadd.f32 %v474, %v485
          %v651 = vadd.f32 %v475, %v489
          %v652 = vadd.f32 %v476, %v493
          %v653 = vadd.f32 %v477, %v497
          %v654 = vadd.f32 %v478, %v501
          %v655 = vadd.f32 %v479, %v505
          %656 = vst [vmem:[%s326] sm:$0xff] %v512
          %657 = vst [vmem:[%s326 + $0x8] sm:$0xff] %v513
          %658 = vst [vmem:[%s326 + $0x10] sm:$0xff] %v514
          %659 = vst [vmem:[%s326 + $0x18] sm:$0xff] %v515
          %660 = vst [vmem:[%s326 + $0x20] sm:$0xff] %v516
          %661 = vst [vmem:[%s326 + $0x28] sm:$0xff] %v517
          %662 = vst [vmem:[%s326 + $0x30] sm:$0xff] %v518
          %663 = vst [vmem:[%s326 + $0x38] sm:$0xff] %v519
          %664 = vst [vmem:[%s326 + $0x40] sm:$0xff] %v520
          %665 = vst [vmem:[%s326 + $0x48] sm:$0xff] %v521
          %666 = vst [vmem:[%s326 + $0x50] sm:$0xff] %v522
          %667 = vst [vmem:[%s326 + $0x58] sm:$0xff] %v523
          %668 = vst [vmem:[%s326 + $0x60] sm:$0xff] %v524
          %669 = vst [vmem:[%s326 + $0x68] sm:$0xff] %v525
          %670 = vst [vmem:[%s326 + $0x70] sm:$0xff] %v526
          %671 = vst [vmem:[%s326 + $0x78] sm:$0xff] %v527
          %672 = vst [vmem:[%s326 + $0x80] sm:$0xff] %v528
          %673 = vst [vmem:[%s326 + $0x88] sm:$0xff] %v529
          %674 = vst [vmem:[%s326 + $0x90] sm:$0xff] %v530
          %675 = vst [vmem:[%s326 + $0x98] sm:$0xff] %v531
          %676 = vst [vmem:[%s326 + $0xa0] sm:$0xff] %v532
          %677 = vst [vmem:[%s326 + $0xa8] sm:$0xff] %v533
          %678 = vst [vmem:[%s326 + $0xb0] sm:$0xff] %v534
          %679 = vst [vmem:[%s326 + $0xb8] sm:$0xff] %v535
          %680 = vst [vmem:[%s326 + $0xc0] sm:$0xff] %v536
          %681 = vst [vmem:[%s326 + $0xc8] sm:$0xff] %v537
          %682 = vst [vmem:[%s326 + $0xd0] sm:$0xff] %v538
          %683 = vst [vmem:[%s326 + $0xd8] sm:$0xff] %v539
          %684 = vst [vmem:[%s326 + $0xe0] sm:$0xff] %v540
          %685 = vst [vmem:[%s326 + $0xe8] sm:$0xff] %v541
          %686 = vst [vmem:[%s326 + $0xf0] sm:$0xff] %v542
          %687 = vst [vmem:[%s326 + $0xf8] sm:$0xff] %v543
          %688 = vst [vmem:[%s326 + $0x100] sm:$0xff] %v544
          %689 = vst [vmem:[%s326 + $0x108] sm:$0xff] %v545
          %690 = vst [vmem:[%s326 + $0x110] sm:$0xff] %v546
          %691 = vst [vmem:[%s326 + $0x118] sm:$0xff] %v547
          %692 = vst [vmem:[%s326 + $0x120] sm:$0xff] %v548
          %693 = vst [vmem:[%s326 + $0x128] sm:$0xff] %v549
          %694 = vst [vmem:[%s326 + $0x130] sm:$0xff] %v550
          %695 = vst [vmem:[%s326 + $0x138] sm:$0xff] %v551
          %696 = vst [vmem:[%s326 + $0x140] sm:$0xff] %v552
          %697 = vst [vmem:[%s326 + $0x148] sm:$0xff] %v553
          %698 = vst [vmem:[%s326 + $0x150] sm:$0xff] %v554
          %699 = vst [vmem:[%s326 + $0x158] sm:$0xff] %v555
          %700 = vst [vmem:[%s326 + $0x160] sm:$0xff] %v556
          %701 = vst [vmem:[%s326 + $0x168] sm:$0xff] %v557
          %702 = vst [vmem:[%s326 + $0x170] sm:$0xff] %v558
          %703 = vst [vmem:[%s326 + $0x178] sm:$0xff] %v559
          %704 = vst [vmem:[%s326 + $0x180] sm:$0xff] %v560
          %705 = vst [vmem:[%s326 + $0x188] sm:$0xff] %v561
          %706 = vst [vmem:[%s326 + $0x190] sm:$0xff] %v562
          %707 = vst [vmem:[%s326 + $0x198] sm:$0xff] %v563
          %708 = vst [vmem:[%s326 + $0x1a0] sm:$0xff] %v564
          %709 = vst [vmem:[%s326 + $0x1a8] sm:$0xff] %v565
          %710 = vst [vmem:[%s326 + $0x1b0] sm:$0xff] %v566
          %711 = vst [vmem:[%s326 + $0x1b8] sm:$0xff] %v567
          %712 = vst [vmem:[%s326 + $0x1c0] sm:$0xff] %v568
          %713 = vst [vmem:[%s326 + $0x1c8] sm:$0xff] %v569
          %714 = vst [vmem:[%s326 + $0x1d0] sm:$0xff] %v570
          %715 = vst [vmem:[%s326 + $0x1d8] sm:$0xff] %v571
          %716 = vst [vmem:[%s326 + $0x1e0] sm:$0xff] %v572
          %717 = vst [vmem:[%s326 + $0x1e8] sm:$0xff] %v573
          %718 = vst [vmem:[%s326 + $0x1f0] sm:$0xff] %v574
          %719 = vst [vmem:[%s326 + $0x1f8] sm:$0xff] %v575
          %720 = vst [vmem:[%s326 + $0x200] sm:$0xff] %v576
          %721 = vst [vmem:[%s326 + $0x208] sm:$0xff] %v577
          %722 = vst [vmem:[%s326 + $0x210] sm:$0xff] %v578
          %723 = vst [vmem:[%s326 + $0x218] sm:$0xff] %v579
          %724 = vst [vmem:[%s326 + $0x220] sm:$0xff] %v580
          %725 = vst [vmem:[%s326 + $0x228] sm:$0xff] %v581
          %726 = vst [vmem:[%s326 + $0x230] sm:$0xff] %v582
          %727 = vst [vmem:[%s326 + $0x238] sm:$0xff] %v583
          %728 = vst [vmem:[%s326 + $0x240] sm:$0xff] %v584
          %729 = vst [vmem:[%s326 + $0x248] sm:$0xff] %v585
          %730 = vst [vmem:[%s326 + $0x250] sm:$0xff] %v586
          %731 = vst [vmem:[%s326 + $0x258] sm:$0xff] %v587
          %732 = vst [vmem:[%s326 + $0x260] sm:$0xff] %v588
          %733 = vst [vmem:[%s326 + $0x268] sm:$0xff] %v589
          %734 = vst [vmem:[%s326 + $0x270] sm:$0xff] %v590
          %735 = vst [vmem:[%s326 + $0x278] sm:$0xff] %v591
          %736 = vst [vmem:[%s326 + $0x280] sm:$0xff] %v592
          %737 = vst [vmem:[%s326 + $0x288] sm:$0xff] %v593
          %738 = vst [vmem:[%s326 + $0x290] sm:$0xff] %v594
          %739 = vst [vmem:[%s326 + $0x298] sm:$0xff] %v595
          %740 = vst [vmem:[%s326 + $0x2a0] sm:$0xff] %v596
          %741 = vst [vmem:[%s326 + $0x2a8] sm:$0xff] %v597
          %742 = vst [vmem:[%s326 + $0x2b0] sm:$0xff] %v598
          %743 = vst [vmem:[%s326 + $0x2b8] sm:$0xff] %v599
          %744 = vst [vmem:[%s326 + $0x2c0] sm:$0xff] %v600
          %745 = vst [vmem:[%s326 + $0x2c8] sm:$0xff] %v601
          %746 = vst [vmem:[%s326 + $0x2d0] sm:$0xff] %v602
          %747 = vst [vmem:[%s326 + $0x2d8] sm:$0xff] %v603
          %748 = vst [vmem:[%s326 + $0x2e0] sm:$0xff] %v604
          %749 = vst [vmem:[%s326 + $0x2e8] sm:$0xff] %v605
          %750 = vst [vmem:[%s326 + $0x2f0] sm:$0xff] %v606
          %751 = vst [vmem:[%s326 + $0x2f8] sm:$0xff] %v607
          %752 = vst [vmem:[%s326 + $0x300] sm:$0xff] %v608
          %753 = vst [vmem:[%s326 + $0x308] sm:$0xff] %v609
          %754 = vst [vmem:[%s326 + $0x310] sm:$0xff] %v610
          %755 = vst [vmem:[%s326 + $0x318] sm:$0xff] %v611
          %756 = vst [vmem:[%s326 + $0x320] sm:$0xff] %v612
          %757 = vst [vmem:[%s326 + $0x328] sm:$0xff] %v613
          %758 = vst [vmem:[%s326 + $0x330] sm:$0xff] %v614
          %759 = vst [vmem:[%s326 + $0x338] sm:$0xff] %v615
          %760 = vst [vmem:[%s326 + $0x340] sm:$0xff] %v616
          %761 = vst [vmem:[%s326 + $0x348] sm:$0xff] %v617
          %762 = vst [vmem:[%s326 + $0x350] sm:$0xff] %v618
          %763 = vst [vmem:[%s326 + $0x358] sm:$0xff] %v619
          %764 = vst [vmem:[%s326 + $0x360] sm:$0xff] %v620
          %765 = vst [vmem:[%s326 + $0x368] sm:$0xff] %v621
          %766 = vst [vmem:[%s326 + $0x370] sm:$0xff] %v622
          %767 = vst [vmem:[%s326 + $0x378] sm:$0xff] %v623
          %768 = vst [vmem:[%s326 + $0x380] sm:$0xff] %v624
          %769 = vst [vmem:[%s326 + $0x388] sm:$0xff] %v625
          %770 = vst [vmem:[%s326 + $0x390] sm:$0xff] %v626
          %771 = vst [vmem:[%s326 + $0x398] sm:$0xff] %v627
          %772 = vst [vmem:[%s326 + $0x3a0] sm:$0xff] %v628
          %773 = vst [vmem:[%s326 + $0x3a8] sm:$0xff] %v629
          %774 = vst [vmem:[%s326 + $0x3b0] sm:$0xff] %v630
          %775 = vst [vmem:[%s326 + $0x3b8] sm:$0xff] %v631
          %776 = vst [vmem:[%s326 + $0x3c0] sm:$0xff] %v632
          %777 = vst [vmem:[%s326 + $0x3c8] sm:$0xff] %v633
          %778 = vst [vmem:[%s326 + $0x3d0] sm:$0xff] %v634
          %779 = vst [vmem:[%s326 + $0x3d8] sm:$0xff] %v635
          %780 = vst [vmem:[%s326 + $0x3e0] sm:$0xff] %v636
          %781 = vst [vmem:[%s326 + $0x3e8] sm:$0xff] %v637
          %782 = vst [vmem:[%s326 + $0x3f0] sm:$0xff] %v638
          %783 = vst [vmem:[%s326 + $0x3f8] sm:$0xff] %v639
          %784 = vst [vmem:[%s326 + $0x400] sm:$0xff] %v640
          %785 = vst [vmem:[%s326 + $0x408] sm:$0xff] %v641
          %786 = vst [vmem:[%s326 + $0x410] sm:$0xff] %v642
          %787 = vst [vmem:[%s326 + $0x418] sm:$0xff] %v643
          %788 = vst [vmem:[%s326 + $0x420] sm:$0xff] %v644
          %789 = vst [vmem:[%s326 + $0x428] sm:$0xff] %v645
          %790 = vst [vmem:[%s326 + $0x430] sm:$0xff] %v646
          %791 = vst [vmem:[%s326 + $0x438] sm:$0xff] %v647
          %792 = vst [vmem:[%s326 + $0x440] sm:$0xff] %v648
          %793 = vst [vmem:[%s326 + $0x448] sm:$0xff] %v649
          %794 = vst [vmem:[%s326 + $0x450] sm:$0xff] %v650
          %795 = vst [vmem:[%s326 + $0x458] sm:$0xff] %v651
          %796 = vst [vmem:[%s326 + $0x460] sm:$0xff] %v652
          %797 = vst [vmem:[%s326 + $0x468] sm:$0xff] %v653
          %798 = vst [vmem:[%s326 + $0x470] sm:$0xff] %v654
          %799 = vst [vmem:[%s326 + $0x478] sm:$0xff] %v655
        $region56: #{tpu_custom_call.1} parent=35 // pred_fallthru
          _
        %v800 = vld [vmem:[%s326] sm:$0xff]
        %v801 = vld [vmem:[%s326 + $0x8] sm:$0xff]
        %v802 = vld [vmem:[%s326 + $0x10] sm:$0xff]
        %v803 = vld [vmem:[%s326 + $0x18] sm:$0xff]
        %v804 = vld [vmem:[%s326 + $0x20] sm:$0xff]
        %v805 = vld [vmem:[%s326 + $0x28] sm:$0xff]
        %v806 = vld [vmem:[%s326 + $0x30] sm:$0xff]
        %v807 = vld [vmem:[%s326 + $0x38] sm:$0xff]
        %v808 = vld [vmem:[%s326 + $0x40] sm:$0xff]
        %v809 = vld [vmem:[%s326 + $0x48] sm:$0xff]
        %v810 = vld [vmem:[%s326 + $0x50] sm:$0xff]
        %v811 = vld [vmem:[%s326 + $0x58] sm:$0xff]
        %v812 = vld [vmem:[%s326 + $0x60] sm:$0xff]
        %v813 = vld [vmem:[%s326 + $0x68] sm:$0xff]
        %v814 = vld [vmem:[%s326 + $0x70] sm:$0xff]
        %v815 = vld [vmem:[%s326 + $0x78] sm:$0xff]
        %v816 = vld [vmem:[%s326 + $0x80] sm:$0xff]
        %v817 = vld [vmem:[%s326 + $0x88] sm:$0xff]
        %v818 = vld [vmem:[%s326 + $0x90] sm:$0xff]
        %v819 = vld [vmem:[%s326 + $0x98] sm:$0xff]
        %v820 = vld [vmem:[%s326 + $0xa0] sm:$0xff]
        %v821 = vld [vmem:[%s326 + $0xa8] sm:$0xff]
        %v822 = vld [vmem:[%s326 + $0xb0] sm:$0xff]
        %v823 = vld [vmem:[%s326 + $0xb8] sm:$0xff]
        %v824 = vld [vmem:[%s326 + $0xc0] sm:$0xff]
        %v825 = vld [vmem:[%s326 + $0xc8] sm:$0xff]
        %v826 = vld [vmem:[%s326 + $0xd0] sm:$0xff]
        %v827 = vld [vmem:[%s326 + $0xd8] sm:$0xff]
        %v828 = vld [vmem:[%s326 + $0xe0] sm:$0xff]
        %v829 = vld [vmem:[%s326 + $0xe8] sm:$0xff]
        %v830 = vld [vmem:[%s326 + $0xf0] sm:$0xff]
        %v831 = vld [vmem:[%s326 + $0xf8] sm:$0xff]
        %v832 = vld [vmem:[%s326 + $0x100] sm:$0xff]
        %v833 = vld [vmem:[%s326 + $0x108] sm:$0xff]
        %v834 = vld [vmem:[%s326 + $0x110] sm:$0xff]
        %v835 = vld [vmem:[%s326 + $0x118] sm:$0xff]
        %v836 = vld [vmem:[%s326 + $0x120] sm:$0xff]
        %v837 = vld [vmem:[%s326 + $0x128] sm:$0xff]
        %v838 = vld [vmem:[%s326 + $0x130] sm:$0xff]
        %v839 = vld [vmem:[%s326 + $0x138] sm:$0xff]
        %v840 = vld [vmem:[%s326 + $0x140] sm:$0xff]
        %v841 = vld [vmem:[%s326 + $0x148] sm:$0xff]
        %v842 = vld [vmem:[%s326 + $0x150] sm:$0xff]
        %v843 = vld [vmem:[%s326 + $0x158] sm:$0xff]
        %v844 = vld [vmem:[%s326 + $0x160] sm:$0xff]
        %v845 = vld [vmem:[%s326 + $0x168] sm:$0xff]
        %v846 = vld [vmem:[%s326 + $0x170] sm:$0xff]
        %v847 = vld [vmem:[%s326 + $0x178] sm:$0xff]
        %v848 = vld [vmem:[%s326 + $0x180] sm:$0xff]
        %v849 = vld [vmem:[%s326 + $0x188] sm:$0xff]
        %v850 = vld [vmem:[%s326 + $0x190] sm:$0xff]
        %v851 = vld [vmem:[%s326 + $0x198] sm:$0xff]
        %v852 = vld [vmem:[%s326 + $0x1a0] sm:$0xff]
        %v853 = vld [vmem:[%s326 + $0x1a8] sm:$0xff]
        %v854 = vld [vmem:[%s326 + $0x1b0] sm:$0xff]
        %v855 = vld [vmem:[%s326 + $0x1b8] sm:$0xff]
        %v856 = vld [vmem:[%s326 + $0x1c0] sm:$0xff]
        %v857 = vld [vmem:[%s326 + $0x1c8] sm:$0xff]
        %v858 = vld [vmem:[%s326 + $0x1d0] sm:$0xff]
        %v859 = vld [vmem:[%s326 + $0x1d8] sm:$0xff]
        %v860 = vld [vmem:[%s326 + $0x1e0] sm:$0xff]
        %v861 = vld [vmem:[%s326 + $0x1e8] sm:$0xff]
        %v862 = vld [vmem:[%s326 + $0x1f0] sm:$0xff]
        %v863 = vld [vmem:[%s326 + $0x1f8] sm:$0xff]
        %v864 = vld [vmem:[%s326 + $0x200] sm:$0xff]
        %v865 = vld [vmem:[%s326 + $0x208] sm:$0xff]
        %v866 = vld [vmem:[%s326 + $0x210] sm:$0xff]
        %v867 = vld [vmem:[%s326 + $0x218] sm:$0xff]
        %v868 = vld [vmem:[%s326 + $0x220] sm:$0xff]
        %v869 = vld [vmem:[%s326 + $0x228] sm:$0xff]
        %v870 = vld [vmem:[%s326 + $0x230] sm:$0xff]
        %v871 = vld [vmem:[%s326 + $0x238] sm:$0xff]
        %v872 = vld [vmem:[%s326 + $0x240] sm:$0xff]
        %v873 = vld [vmem:[%s326 + $0x248] sm:$0xff]
        %v874 = vld [vmem:[%s326 + $0x250] sm:$0xff]
        %v875 = vld [vmem:[%s326 + $0x258] sm:$0xff]
        %v876 = vld [vmem:[%s326 + $0x260] sm:$0xff]
        %v877 = vld [vmem:[%s326 + $0x268] sm:$0xff]
        %v878 = vld [vmem:[%s326 + $0x270] sm:$0xff]
        %v879 = vld [vmem:[%s326 + $0x278] sm:$0xff]
        %v880 = vld [vmem:[%s326 + $0x280] sm:$0xff]
        %v881 = vld [vmem:[%s326 + $0x288] sm:$0xff]
        %v882 = vld [vmem:[%s326 + $0x290] sm:$0xff]
        %v883 = vld [vmem:[%s326 + $0x298] sm:$0xff]
        %v884 = vld [vmem:[%s326 + $0x2a0] sm:$0xff]
        %v885 = vld [vmem:[%s326 + $0x2a8] sm:$0xff]
        %v886 = vld [vmem:[%s326 + $0x2b0] sm:$0xff]
        %v887 = vld [vmem:[%s326 + $0x2b8] sm:$0xff]
        %v888 = vld [vmem:[%s326 + $0x2c0] sm:$0xff]
        %v889 = vld [vmem:[%s326 + $0x2c8] sm:$0xff]
        %v890 = vld [vmem:[%s326 + $0x2d0] sm:$0xff]
        %v891 = vld [vmem:[%s326 + $0x2d8] sm:$0xff]
        %v892 = vld [vmem:[%s326 + $0x2e0] sm:$0xff]
        %v893 = vld [vmem:[%s326 + $0x2e8] sm:$0xff]
        %v894 = vld [vmem:[%s326 + $0x2f0] sm:$0xff]
        %v895 = vld [vmem:[%s326 + $0x2f8] sm:$0xff]
        %v896 = vld [vmem:[%s326 + $0x300] sm:$0xff]
        %v897 = vld [vmem:[%s326 + $0x308] sm:$0xff]
        %v898 = vld [vmem:[%s326 + $0x310] sm:$0xff]
        %v899 = vld [vmem:[%s326 + $0x318] sm:$0xff]
        %v900 = vld [vmem:[%s326 + $0x320] sm:$0xff]
        %v901 = vld [vmem:[%s326 + $0x328] sm:$0xff]
        %v902 = vld [vmem:[%s326 + $0x330] sm:$0xff]
        %v903 = vld [vmem:[%s326 + $0x338] sm:$0xff]
        %v904 = vld [vmem:[%s326 + $0x340] sm:$0xff]
        %v905 = vld [vmem:[%s326 + $0x348] sm:$0xff]
        %v906 = vld [vmem:[%s326 + $0x350] sm:$0xff]
        %v907 = vld [vmem:[%s326 + $0x358] sm:$0xff]
        %v908 = vld [vmem:[%s326 + $0x360] sm:$0xff]
        %v909 = vld [vmem:[%s326 + $0x368] sm:$0xff]
        %v910 = vld [vmem:[%s326 + $0x370] sm:$0xff]
        %v911 = vld [vmem:[%s326 + $0x378] sm:$0xff]
        %v912 = vld [vmem:[%s326 + $0x380] sm:$0xff]
        %v913 = vld [vmem:[%s326 + $0x388] sm:$0xff]
        %v914 = vld [vmem:[%s326 + $0x390] sm:$0xff]
        %v915 = vld [vmem:[%s326 + $0x398] sm:$0xff]
        %v916 = vld [vmem:[%s326 + $0x3a0] sm:$0xff]
        %v917 = vld [vmem:[%s326 + $0x3a8] sm:$0xff]
        %v918 = vld [vmem:[%s326 + $0x3b0] sm:$0xff]
        %v919 = vld [vmem:[%s326 + $0x3b8] sm:$0xff]
        %v920 = vld [vmem:[%s326 + $0x3c0] sm:$0xff]
        %v921 = vld [vmem:[%s326 + $0x3c8] sm:$0xff]
        %v922 = vld [vmem:[%s326 + $0x3d0] sm:$0xff]
        %v923 = vld [vmem:[%s326 + $0x3d8] sm:$0xff]
        %v924 = vld [vmem:[%s326 + $0x3e0] sm:$0xff]
        %v925 = vld [vmem:[%s326 + $0x3e8] sm:$0xff]
        %v926 = vld [vmem:[%s326 + $0x3f0] sm:$0xff]
        %v927 = vld [vmem:[%s326 + $0x3f8] sm:$0xff]
        %v928 = vld [vmem:[%s326 + $0x400] sm:$0xff]
        %v929 = vld [vmem:[%s326 + $0x408] sm:$0xff]
        %v930 = vld [vmem:[%s326 + $0x410] sm:$0xff]
        %v931 = vld [vmem:[%s326 + $0x418] sm:$0xff]
        %v932 = vld [vmem:[%s326 + $0x420] sm:$0xff]
        %v933 = vld [vmem:[%s326 + $0x428] sm:$0xff]
        %v934 = vld [vmem:[%s326 + $0x430] sm:$0xff]
        %v935 = vld [vmem:[%s326 + $0x438] sm:$0xff]
        %v936 = vld [vmem:[%s326 + $0x440] sm:$0xff]
        %v937 = vld [vmem:[%s326 + $0x448] sm:$0xff]
        %v938 = vld [vmem:[%s326 + $0x450] sm:$0xff]
        %v939 = vld [vmem:[%s326 + $0x458] sm:$0xff]
        %v940 = vld [vmem:[%s326 + $0x460] sm:$0xff]
        %v941 = vld [vmem:[%s326 + $0x468] sm:$0xff]
        %v942 = vld [vmem:[%s326 + $0x470] sm:$0xff]
        %v943 = vld [vmem:[%s326 + $0x478] sm:$0xff]
        %v944 = vld [vmem:[%s270] sm:$0xff]
        %v945 = vld [vmem:[%s270 + $0x8] sm:$0xff]
        %v946 = vld [vmem:[%s270 + $0x10] sm:$0xff]
        %v947 = vld [vmem:[%s270 + $0x18] sm:$0xff]
        %v948 = vld [vmem:[%s270 + $0x20] sm:$0xff]
        %v949 = vld [vmem:[%s270 + $0x28] sm:$0xff]
        %v950 = vld [vmem:[%s270 + $0x30] sm:$0xff]
        %v951 = vld [vmem:[%s270 + $0x38] sm:$0xff]
        %v952 = vld [vmem:[%s270 + $0x40] sm:$0xff]
        %v953 = vld [vmem:[%s270 + $0x48] sm:$0xff]
        %v954 = vld [vmem:[%s270 + $0x50] sm:$0xff]
        %v955 = vld [vmem:[%s270 + $0x58] sm:$0xff]
        %v956 = vld [vmem:[%s270 + $0x60] sm:$0xff]
        %v957 = vld [vmem:[%s270 + $0x68] sm:$0xff]
        %v958 = vld [vmem:[%s270 + $0x70] sm:$0xff]
        %v959 = vld [vmem:[%s270 + $0x78] sm:$0xff]
        %v960 = vld [vmem:[%s270 + $0x80] sm:$0xff]
        %v961 = vld [vmem:[%s270 + $0x88] sm:$0xff]
        %v962 = vld [vmem:[%s270 + $0x90] sm:$0xff]
        %v963 = vld [vmem:[%s270 + $0x98] sm:$0xff]
        %v964 = vld [vmem:[%s270 + $0xa0] sm:$0xff]
        %v965 = vld [vmem:[%s270 + $0xa8] sm:$0xff]
        %v966 = vld [vmem:[%s270 + $0xb0] sm:$0xff]
        %v967 = vld [vmem:[%s270 + $0xb8] sm:$0xff]
        %v968 = vld [vmem:[%s270 + $0xc0] sm:$0xff]
        %v969 = vld [vmem:[%s270 + $0xc8] sm:$0xff]
        %v970 = vld [vmem:[%s270 + $0xd0] sm:$0xff]
        %v971 = vld [vmem:[%s270 + $0xd8] sm:$0xff]
        %v972 = vld [vmem:[%s270 + $0xe0] sm:$0xff]
        %v973 = vld [vmem:[%s270 + $0xe8] sm:$0xff]
        %v974 = vld [vmem:[%s270 + $0xf0] sm:$0xff]
        %v975 = vld [vmem:[%s270 + $0xf8] sm:$0xff]
        %v976 = vld [vmem:[%s270 + $0x100] sm:$0xff]
        %v977 = vld [vmem:[%s270 + $0x108] sm:$0xff]
        %v978 = vld [vmem:[%s270 + $0x110] sm:$0xff]
        %v979 = vld [vmem:[%s270 + $0x118] sm:$0xff]
        %v980 = vld [vmem:[%s270 + $0x120] sm:$0xff]
        %v981 = vld [vmem:[%s270 + $0x128] sm:$0xff]
        %v982 = vld [vmem:[%s270 + $0x130] sm:$0xff]
        %v983 = vld [vmem:[%s270 + $0x138] sm:$0xff]
        %v984 = vld [vmem:[%s270 + $0x140] sm:$0xff]
        %v985 = vld [vmem:[%s270 + $0x148] sm:$0xff]
        %v986 = vld [vmem:[%s270 + $0x150] sm:$0xff]
        %v987 = vld [vmem:[%s270 + $0x158] sm:$0xff]
        %v988 = vld [vmem:[%s270 + $0x160] sm:$0xff]
        %v989 = vld [vmem:[%s270 + $0x168] sm:$0xff]
        %v990 = vld [vmem:[%s270 + $0x170] sm:$0xff]
        %v991 = vld [vmem:[%s270 + $0x178] sm:$0xff]
        %v992 = vld [vmem:[%s270 + $0x180] sm:$0xff]
        %v993 = vld [vmem:[%s270 + $0x188] sm:$0xff]
        %v994 = vld [vmem:[%s270 + $0x190] sm:$0xff]
        %v995 = vld [vmem:[%s270 + $0x198] sm:$0xff]
        %v996 = vld [vmem:[%s270 + $0x1a0] sm:$0xff]
        %v997 = vld [vmem:[%s270 + $0x1a8] sm:$0xff]
        %v998 = vld [vmem:[%s270 + $0x1b0] sm:$0xff]
        %v999 = vld [vmem:[%s270 + $0x1b8] sm:$0xff]
        %v1000 = vld [vmem:[%s270 + $0x1c0] sm:$0xff]
        %v1001 = vld [vmem:[%s270 + $0x1c8] sm:$0xff]
        %v1002 = vld [vmem:[%s270 + $0x1d0] sm:$0xff]
        %v1003 = vld [vmem:[%s270 + $0x1d8] sm:$0xff]
        %v1004 = vld [vmem:[%s270 + $0x1e0] sm:$0xff]
        %v1005 = vld [vmem:[%s270 + $0x1e8] sm:$0xff]
        %v1006 = vld [vmem:[%s270 + $0x1f0] sm:$0xff]
        %v1007 = vld [vmem:[%s270 + $0x1f8] sm:$0xff]
        %v1008 = vld [vmem:[%s270 + $0x200] sm:$0xff]
        %v1009 = vld [vmem:[%s270 + $0x208] sm:$0xff]
        %v1010 = vld [vmem:[%s270 + $0x210] sm:$0xff]
        %v1011 = vld [vmem:[%s270 + $0x218] sm:$0xff]
        %v1012 = vld [vmem:[%s270 + $0x220] sm:$0xff]
        %v1013 = vld [vmem:[%s270 + $0x228] sm:$0xff]
        %v1014 = vld [vmem:[%s270 + $0x230] sm:$0xff]
        %v1015 = vld [vmem:[%s270 + $0x238] sm:$0xff]
        %v1016 = vld [vmem:[%s270 + $0x240] sm:$0xff]
        %v1017 = vld [vmem:[%s270 + $0x248] sm:$0xff]
        %v1018 = vld [vmem:[%s270 + $0x250] sm:$0xff]
        %v1019 = vld [vmem:[%s270 + $0x258] sm:$0xff]
        %v1020 = vld [vmem:[%s270 + $0x260] sm:$0xff]
        %v1021 = vld [vmem:[%s270 + $0x268] sm:$0xff]
        %v1022 = vld [vmem:[%s270 + $0x270] sm:$0xff]
        %v1023 = vld [vmem:[%s270 + $0x278] sm:$0xff]
        %v1024 = vld [vmem:[%s270 + $0x280] sm:$0xff]
        %v1025 = vld [vmem:[%s270 + $0x288] sm:$0xff]
        %v1026 = vld [vmem:[%s270 + $0x290] sm:$0xff]
        %v1027 = vld [vmem:[%s270 + $0x298] sm:$0xff]
        %v1028 = vld [vmem:[%s270 + $0x2a0] sm:$0xff]
        %v1029 = vld [vmem:[%s270 + $0x2a8] sm:$0xff]
        %v1030 = vld [vmem:[%s270 + $0x2b0] sm:$0xff]
        %v1031 = vld [vmem:[%s270 + $0x2b8] sm:$0xff]
        %v1032 = vld [vmem:[%s270 + $0x2c0] sm:$0xff]
        %v1033 = vld [vmem:[%s270 + $0x2c8] sm:$0xff]
        %v1034 = vld [vmem:[%s270 + $0x2d0] sm:$0xff]
        %v1035 = vld [vmem:[%s270 + $0x2d8] sm:$0xff]
        %v1036 = vld [vmem:[%s270 + $0x2e0] sm:$0xff]
        %v1037 = vld [vmem:[%s270 + $0x2e8] sm:$0xff]
        %v1038 = vld [vmem:[%s270 + $0x2f0] sm:$0xff]
        %v1039 = vld [vmem:[%s270 + $0x2f8] sm:$0xff]
        %v1040 = vld [vmem:[%s270 + $0x300] sm:$0xff]
        %v1041 = vld [vmem:[%s270 + $0x308] sm:$0xff]
        %v1042 = vld [vmem:[%s270 + $0x310] sm:$0xff]
        %v1043 = vld [vmem:[%s270 + $0x318] sm:$0xff]
        %v1044 = vld [vmem:[%s270 + $0x320] sm:$0xff]
        %v1045 = vld [vmem:[%s270 + $0x328] sm:$0xff]
        %v1046 = vld [vmem:[%s270 + $0x330] sm:$0xff]
        %v1047 = vld [vmem:[%s270 + $0x338] sm:$0xff]
        %v1048 = vld [vmem:[%s270 + $0x340] sm:$0xff]
        %v1049 = vld [vmem:[%s270 + $0x348] sm:$0xff]
        %v1050 = vld [vmem:[%s270 + $0x350] sm:$0xff]
        %v1051 = vld [vmem:[%s270 + $0x358] sm:$0xff]
        %v1052 = vld [vmem:[%s270 + $0x360] sm:$0xff]
        %v1053 = vld [vmem:[%s270 + $0x368] sm:$0xff]
        %v1054 = vld [vmem:[%s270 + $0x370] sm:$0xff]
        %v1055 = vld [vmem:[%s270 + $0x378] sm:$0xff]
        %v1056 = vld [vmem:[%s270 + $0x380] sm:$0xff]
        %v1057 = vld [vmem:[%s270 + $0x388] sm:$0xff]
        %v1058 = vld [vmem:[%s270 + $0x390] sm:$0xff]
        %v1059 = vld [vmem:[%s270 + $0x398] sm:$0xff]
        %v1060 = vld [vmem:[%s270 + $0x3a0] sm:$0xff]
        %v1061 = vld [vmem:[%s270 + $0x3a8] sm:$0xff]
        %v1062 = vld [vmem:[%s270 + $0x3b0] sm:$0xff]
        %v1063 = vld [vmem:[%s270 + $0x3b8] sm:$0xff]
        %v1064 = vld [vmem:[%s270 + $0x3c0] sm:$0xff]
        %v1065 = vld [vmem:[%s270 + $0x3c8] sm:$0xff]
        %v1066 = vld [vmem:[%s270 + $0x3d0] sm:$0xff]
        %v1067 = vld [vmem:[%s270 + $0x3d8] sm:$0xff]
        %v1068 = vld [vmem:[%s270 + $0x3e0] sm:$0xff]
        %v1069 = vld [vmem:[%s270 + $0x3e8] sm:$0xff]
        %v1070 = vld [vmem:[%s270 + $0x3f0] sm:$0xff]
        %v1071 = vld [vmem:[%s270 + $0x3f8] sm:$0xff]
        %v1072 = vld [vmem:[%s270 + $0x400] sm:$0xff]
        %v1073 = vld [vmem:[%s270 + $0x408] sm:$0xff]
        %v1074 = vld [vmem:[%s270 + $0x410] sm:$0xff]
        %v1075 = vld [vmem:[%s270 + $0x418] sm:$0xff]
        %v1076 = vld [vmem:[%s270 + $0x420] sm:$0xff]
        %v1077 = vld [vmem:[%s270 + $0x428] sm:$0xff]
        %v1078 = vld [vmem:[%s270 + $0x430] sm:$0xff]
        %v1079 = vld [vmem:[%s270 + $0x438] sm:$0xff]
        %v1080 = vld [vmem:[%s270 + $0x440] sm:$0xff]
        %v1081 = vld [vmem:[%s270 + $0x448] sm:$0xff]
        %v1082 = vld [vmem:[%s270 + $0x450] sm:$0xff]
        %v1083 = vld [vmem:[%s270 + $0x458] sm:$0xff]
        %v1084 = vld [vmem:[%s270 + $0x460] sm:$0xff]
        %v1085 = vld [vmem:[%s270 + $0x468] sm:$0xff]
        %v1086 = vld [vmem:[%s270 + $0x470] sm:$0xff]
        %v1087 = vld [vmem:[%s270 + $0x478] sm:$0xff]
        %v1088 = vld [vmem:[%s279] sm:$0xff]
        %v1089 = vld [vmem:[%s279 + $0x8] sm:$0xff]
        %v1090 = vld [vmem:[%s279 + $0x10] sm:$0xff]
        %v1091 = vld [vmem:[%s279 + $0x18] sm:$0xff]
        %v1092 = vld [vmem:[%s279 + $0x20] sm:$0xff]
        %v1093 = vld [vmem:[%s279 + $0x28] sm:$0xff]
        %v1094 = vld [vmem:[%s279 + $0x30] sm:$0xff]
        %v1095 = vld [vmem:[%s279 + $0x38] sm:$0xff]
        %v1096 = vld [vmem:[%s279 + $0x40] sm:$0xff]
        %v1097 = vld [vmem:[%s279 + $0x48] sm:$0xff]
        %v1098 = vld [vmem:[%s279 + $0x50] sm:$0xff]
        %v1099 = vld [vmem:[%s279 + $0x58] sm:$0xff]
        %v1100 = vld [vmem:[%s279 + $0x60] sm:$0xff]
        %v1101 = vld [vmem:[%s279 + $0x68] sm:$0xff]
        %v1102 = vld [vmem:[%s279 + $0x70] sm:$0xff]
        %v1103 = vld [vmem:[%s279 + $0x78] sm:$0xff]
        %v1104 = vld [vmem:[%s279 + $0x80] sm:$0xff]
        %v1105 = vld [vmem:[%s279 + $0x88] sm:$0xff]
        %v1106 = vld [vmem:[%s279 + $0x90] sm:$0xff]
        %v1107 = vld [vmem:[%s279 + $0x98] sm:$0xff]
        %v1108 = vld [vmem:[%s279 + $0xa0] sm:$0xff]
        %v1109 = vld [vmem:[%s279 + $0xa8] sm:$0xff]
        %v1110 = vld [vmem:[%s279 + $0xb0] sm:$0xff]
        %v1111 = vld [vmem:[%s279 + $0xb8] sm:$0xff]
        %v1112 = vld [vmem:[%s279 + $0xc0] sm:$0xff]
        %v1113 = vld [vmem:[%s279 + $0xc8] sm:$0xff]
        %v1114 = vld [vmem:[%s279 + $0xd0] sm:$0xff]
        %v1115 = vld [vmem:[%s279 + $0xd8] sm:$0xff]
        %v1116 = vld [vmem:[%s279 + $0xe0] sm:$0xff]
        %v1117 = vld [vmem:[%s279 + $0xe8] sm:$0xff]
        %v1118 = vld [vmem:[%s279 + $0xf0] sm:$0xff]
        %v1119 = vld [vmem:[%s279 + $0xf8] sm:$0xff]
        %v1120 = vld [vmem:[%s279 + $0x100] sm:$0xff]
        %v1121 = vld [vmem:[%s279 + $0x108] sm:$0xff]
        %v1122 = vld [vmem:[%s279 + $0x110] sm:$0xff]
        %v1123 = vld [vmem:[%s279 + $0x118] sm:$0xff]
        %v1124 = vld [vmem:[%s279 + $0x120] sm:$0xff]
        %v1125 = vld [vmem:[%s279 + $0x128] sm:$0xff]
        %v1126 = vld [vmem:[%s279 + $0x130] sm:$0xff]
        %v1127 = vld [vmem:[%s279 + $0x138] sm:$0xff]
        %v1128 = vld [vmem:[%s279 + $0x140] sm:$0xff]
        %v1129 = vld [vmem:[%s279 + $0x148] sm:$0xff]
        %v1130 = vld [vmem:[%s279 + $0x150] sm:$0xff]
        %v1131 = vld [vmem:[%s279 + $0x158] sm:$0xff]
        %v1132 = vld [vmem:[%s279 + $0x160] sm:$0xff]
        %v1133 = vld [vmem:[%s279 + $0x168] sm:$0xff]
        %v1134 = vld [vmem:[%s279 + $0x170] sm:$0xff]
        %v1135 = vld [vmem:[%s279 + $0x178] sm:$0xff]
        %v1136 = vld [vmem:[%s279 + $0x180] sm:$0xff]
        %v1137 = vld [vmem:[%s279 + $0x188] sm:$0xff]
        %v1138 = vld [vmem:[%s279 + $0x190] sm:$0xff]
        %v1139 = vld [vmem:[%s279 + $0x198] sm:$0xff]
        %v1140 = vld [vmem:[%s279 + $0x1a0] sm:$0xff]
        %v1141 = vld [vmem:[%s279 + $0x1a8] sm:$0xff]
        %v1142 = vld [vmem:[%s279 + $0x1b0] sm:$0xff]
        %v1143 = vld [vmem:[%s279 + $0x1b8] sm:$0xff]
        %v1144 = vld [vmem:[%s279 + $0x1c0] sm:$0xff]
        %v1145 = vld [vmem:[%s279 + $0x1c8] sm:$0xff]
        %v1146 = vld [vmem:[%s279 + $0x1d0] sm:$0xff]
        %v1147 = vld [vmem:[%s279 + $0x1d8] sm:$0xff]
        %v1148 = vld [vmem:[%s279 + $0x1e0] sm:$0xff]
        %v1149 = vld [vmem:[%s279 + $0x1e8] sm:$0xff]
        %v1150 = vld [vmem:[%s279 + $0x1f0] sm:$0xff]
        %v1151 = vld [vmem:[%s279 + $0x1f8] sm:$0xff]
        %v1152 = vld [vmem:[%s279 + $0x200] sm:$0xff]
        %v1153 = vld [vmem:[%s279 + $0x208] sm:$0xff]
        %v1154 = vld [vmem:[%s279 + $0x210] sm:$0xff]
        %v1155 = vld [vmem:[%s279 + $0x218] sm:$0xff]
        %v1156 = vld [vmem:[%s279 + $0x220] sm:$0xff]
        %v1157 = vld [vmem:[%s279 + $0x228] sm:$0xff]
        %v1158 = vld [vmem:[%s279 + $0x230] sm:$0xff]
        %v1159 = vld [vmem:[%s279 + $0x238] sm:$0xff]
        %v1160 = vld [vmem:[%s279 + $0x240] sm:$0xff]
        %v1161 = vld [vmem:[%s279 + $0x248] sm:$0xff]
        %v1162 = vld [vmem:[%s279 + $0x250] sm:$0xff]
        %v1163 = vld [vmem:[%s279 + $0x258] sm:$0xff]
        %v1164 = vld [vmem:[%s279 + $0x260] sm:$0xff]
        %v1165 = vld [vmem:[%s279 + $0x268] sm:$0xff]
        %v1166 = vld [vmem:[%s279 + $0x270] sm:$0xff]
        %v1167 = vld [vmem:[%s279 + $0x278] sm:$0xff]
        %v1168 = vld [vmem:[%s279 + $0x280] sm:$0xff]
        %v1169 = vld [vmem:[%s279 + $0x288] sm:$0xff]
        %v1170 = vld [vmem:[%s279 + $0x290] sm:$0xff]
        %v1171 = vld [vmem:[%s279 + $0x298] sm:$0xff]
        %v1172 = vld [vmem:[%s279 + $0x2a0] sm:$0xff]
        %v1173 = vld [vmem:[%s279 + $0x2a8] sm:$0xff]
        %v1174 = vld [vmem:[%s279 + $0x2b0] sm:$0xff]
        %v1175 = vld [vmem:[%s279 + $0x2b8] sm:$0xff]
        %v1176 = vld [vmem:[%s279 + $0x2c0] sm:$0xff]
        %v1177 = vld [vmem:[%s279 + $0x2c8] sm:$0xff]
        %v1178 = vld [vmem:[%s279 + $0x2d0] sm:$0xff]
        %v1179 = vld [vmem:[%s279 + $0x2d8] sm:$0xff]
        %v1180 = vld [vmem:[%s279 + $0x2e0] sm:$0xff]
        %v1181 = vld [vmem:[%s279 + $0x2e8] sm:$0xff]
        %v1182 = vld [vmem:[%s279 + $0x2f0] sm:$0xff]
        %v1183 = vld [vmem:[%s279 + $0x2f8] sm:$0xff]
        %v1184 = vld [vmem:[%s279 + $0x300] sm:$0xff]
        %v1185 = vld [vmem:[%s279 + $0x308] sm:$0xff]
        %v1186 = vld [vmem:[%s279 + $0x310] sm:$0xff]
        %v1187 = vld [vmem:[%s279 + $0x318] sm:$0xff]
        %v1188 = vld [vmem:[%s279 + $0x320] sm:$0xff]
        %v1189 = vld [vmem:[%s279 + $0x328] sm:$0xff]
        %v1190 = vld [vmem:[%s279 + $0x330] sm:$0xff]
        %v1191 = vld [vmem:[%s279 + $0x338] sm:$0xff]
        %v1192 = vld [vmem:[%s279 + $0x340] sm:$0xff]
        %v1193 = vld [vmem:[%s279 + $0x348] sm:$0xff]
        %v1194 = vld [vmem:[%s279 + $0x350] sm:$0xff]
        %v1195 = vld [vmem:[%s279 + $0x358] sm:$0xff]
        %v1196 = vld [vmem:[%s279 + $0x360] sm:$0xff]
        %v1197 = vld [vmem:[%s279 + $0x368] sm:$0xff]
        %v1198 = vld [vmem:[%s279 + $0x370] sm:$0xff]
        %v1199 = vld [vmem:[%s279 + $0x378] sm:$0xff]
        %v1200 = vld [vmem:[%s279 + $0x380] sm:$0xff]
        %v1201 = vld [vmem:[%s279 + $0x388] sm:$0xff]
        %v1202 = vld [vmem:[%s279 + $0x390] sm:$0xff]
        %v1203 = vld [vmem:[%s279 + $0x398] sm:$0xff]
        %v1204 = vld [vmem:[%s279 + $0x3a0] sm:$0xff]
        %v1205 = vld [vmem:[%s279 + $0x3a8] sm:$0xff]
        %v1206 = vld [vmem:[%s279 + $0x3b0] sm:$0xff]
        %v1207 = vld [vmem:[%s279 + $0x3b8] sm:$0xff]
        %v1208 = vld [vmem:[%s279 + $0x3c0] sm:$0xff]
        %v1209 = vld [vmem:[%s279 + $0x3c8] sm:$0xff]
        %v1210 = vld [vmem:[%s279 + $0x3d0] sm:$0xff]
        %v1211 = vld [vmem:[%s279 + $0x3d8] sm:$0xff]
        %v1212 = vld [vmem:[%s279 + $0x3e0] sm:$0xff]
        %v1213 = vld [vmem:[%s279 + $0x3e8] sm:$0xff]
        %v1214 = vld [vmem:[%s279 + $0x3f0] sm:$0xff]
        %v1215 = vld [vmem:[%s279 + $0x3f8] sm:$0xff]
        %v1216 = vld [vmem:[%s279 + $0x400] sm:$0xff]
        %v1217 = vld [vmem:[%s279 + $0x408] sm:$0xff]
        %v1218 = vld [vmem:[%s279 + $0x410] sm:$0xff]
        %v1219 = vld [vmem:[%s279 + $0x418] sm:$0xff]
        %v1220 = vld [vmem:[%s279 + $0x420] sm:$0xff]
        %v1221 = vld [vmem:[%s279 + $0x428] sm:$0xff]
        %v1222 = vld [vmem:[%s279 + $0x430] sm:$0xff]
        %v1223 = vld [vmem:[%s279 + $0x438] sm:$0xff]
        %v1224 = vld [vmem:[%s279 + $0x440] sm:$0xff]
        %v1225 = vld [vmem:[%s279 + $0x448] sm:$0xff]
        %v1226 = vld [vmem:[%s279 + $0x450] sm:$0xff]
        %v1227 = vld [vmem:[%s279 + $0x458] sm:$0xff]
        %v1228 = vld [vmem:[%s279 + $0x460] sm:$0xff]
        %v1229 = vld [vmem:[%s279 + $0x468] sm:$0xff]
        %v1230 = vld [vmem:[%s279 + $0x470] sm:$0xff]
        %v1231 = vld [vmem:[%s279 + $0x478] sm:$0xff]
        %v1232 = vld [vmem:[%s279 + $0x480] sm:$0xff]
        %v1233 = vld [vmem:[%s279 + $0x488] sm:$0xff]
        %v1234 = vld [vmem:[%s279 + $0x490] sm:$0xff]
        %v1235 = vld [vmem:[%s279 + $0x498] sm:$0xff]
        %v1236 = vld [vmem:[%s279 + $0x4a0] sm:$0xff]
        %v1237 = vld [vmem:[%s279 + $0x4a8] sm:$0xff]
        %v1238 = vld [vmem:[%s279 + $0x4b0] sm:$0xff]
        %v1239 = vld [vmem:[%s279 + $0x4b8] sm:$0xff]
        %v1240 = vld [vmem:[%s279 + $0x4c0] sm:$0xff]
        %v1241 = vld [vmem:[%s279 + $0x4c8] sm:$0xff]
        %v1242 = vld [vmem:[%s279 + $0x4d0] sm:$0xff]
        %v1243 = vld [vmem:[%s279 + $0x4d8] sm:$0xff]
        %v1244 = vld [vmem:[%s279 + $0x4e0] sm:$0xff]
        %v1245 = vld [vmem:[%s279 + $0x4e8] sm:$0xff]
        %v1246 = vld [vmem:[%s279 + $0x4f0] sm:$0xff]
        %v1247 = vld [vmem:[%s279 + $0x4f8] sm:$0xff]
        %v1248 = vld [vmem:[%s279 + $0x500] sm:$0xff]
        %v1249 = vld [vmem:[%s279 + $0x508] sm:$0xff]
        %v1250 = vld [vmem:[%s279 + $0x510] sm:$0xff]
        %v1251 = vld [vmem:[%s279 + $0x518] sm:$0xff]
        %v1252 = vld [vmem:[%s279 + $0x520] sm:$0xff]
        %v1253 = vld [vmem:[%s279 + $0x528] sm:$0xff]
        %v1254 = vld [vmem:[%s279 + $0x530] sm:$0xff]
        %v1255 = vld [vmem:[%s279 + $0x538] sm:$0xff]
        %v1256 = vld [vmem:[%s279 + $0x540] sm:$0xff]
        %v1257 = vld [vmem:[%s279 + $0x548] sm:$0xff]
        %v1258 = vld [vmem:[%s279 + $0x550] sm:$0xff]
        %v1259 = vld [vmem:[%s279 + $0x558] sm:$0xff]
        %v1260 = vld [vmem:[%s279 + $0x560] sm:$0xff]
        %v1261 = vld [vmem:[%s279 + $0x568] sm:$0xff]
        %v1262 = vld [vmem:[%s279 + $0x570] sm:$0xff]
        %v1263 = vld [vmem:[%s279 + $0x578] sm:$0xff]
        %v1264 = vld [vmem:[%s279 + $0x580] sm:$0xff]
        %v1265 = vld [vmem:[%s279 + $0x588] sm:$0xff]
        %v1266 = vld [vmem:[%s279 + $0x590] sm:$0xff]
        %v1267 = vld [vmem:[%s279 + $0x598] sm:$0xff]
        %v1268 = vld [vmem:[%s279 + $0x5a0] sm:$0xff]
        %v1269 = vld [vmem:[%s279 + $0x5a8] sm:$0xff]
        %v1270 = vld [vmem:[%s279 + $0x5b0] sm:$0xff]
        %v1271 = vld [vmem:[%s279 + $0x5b8] sm:$0xff]
        %v1272 = vld [vmem:[%s279 + $0x5c0] sm:$0xff]
        %v1273 = vld [vmem:[%s279 + $0x5c8] sm:$0xff]
        %v1274 = vld [vmem:[%s279 + $0x5d0] sm:$0xff]
        %v1275 = vld [vmem:[%s279 + $0x5d8] sm:$0xff]
        %v1276 = vld [vmem:[%s279 + $0x5e0] sm:$0xff]
        %v1277 = vld [vmem:[%s279 + $0x5e8] sm:$0xff]
        %v1278 = vld [vmem:[%s279 + $0x5f0] sm:$0xff]
        %v1279 = vld [vmem:[%s279 + $0x5f8] sm:$0xff]
        %v1280 = vld [vmem:[%s279 + $0x600] sm:$0xff]
        %v1281 = vld [vmem:[%s279 + $0x608] sm:$0xff]
        %v1282 = vld [vmem:[%s279 + $0x610] sm:$0xff]
        %v1283 = vld [vmem:[%s279 + $0x618] sm:$0xff]
        %v1284 = vld [vmem:[%s279 + $0x620] sm:$0xff]
        %v1285 = vld [vmem:[%s279 + $0x628] sm:$0xff]
        %v1286 = vld [vmem:[%s279 + $0x630] sm:$0xff]
        %v1287 = vld [vmem:[%s279 + $0x638] sm:$0xff]
        %v1288 = vld [vmem:[%s279 + $0x640] sm:$0xff]
        %v1289 = vld [vmem:[%s279 + $0x648] sm:$0xff]
        %v1290 = vld [vmem:[%s279 + $0x650] sm:$0xff]
        %v1291 = vld [vmem:[%s279 + $0x658] sm:$0xff]
        %v1292 = vld [vmem:[%s279 + $0x660] sm:$0xff]
        %v1293 = vld [vmem:[%s279 + $0x668] sm:$0xff]
        %v1294 = vld [vmem:[%s279 + $0x670] sm:$0xff]
        %v1295 = vld [vmem:[%s279 + $0x678] sm:$0xff]
        %v1296 = vld [vmem:[%s279 + $0x680] sm:$0xff]
        %v1297 = vld [vmem:[%s279 + $0x688] sm:$0xff]
        %v1298 = vld [vmem:[%s279 + $0x690] sm:$0xff]
        %v1299 = vld [vmem:[%s279 + $0x698] sm:$0xff]
        %v1300 = vld [vmem:[%s279 + $0x6a0] sm:$0xff]
        %v1301 = vld [vmem:[%s279 + $0x6a8] sm:$0xff]
        %v1302 = vld [vmem:[%s279 + $0x6b0] sm:$0xff]
        %v1303 = vld [vmem:[%s279 + $0x6b8] sm:$0xff]
        %v1304 = vld [vmem:[%s279 + $0x6c0] sm:$0xff]
        %v1305 = vld [vmem:[%s279 + $0x6c8] sm:$0xff]
        %v1306 = vld [vmem:[%s279 + $0x6d0] sm:$0xff]
        %v1307 = vld [vmem:[%s279 + $0x6d8] sm:$0xff]
        %v1308 = vld [vmem:[%s279 + $0x6e0] sm:$0xff]
        %v1309 = vld [vmem:[%s279 + $0x6e8] sm:$0xff]
        %v1310 = vld [vmem:[%s279 + $0x6f0] sm:$0xff]
        %v1311 = vld [vmem:[%s279 + $0x6f8] sm:$0xff]
        %v1312 = vld [vmem:[%s279 + $0x700] sm:$0xff]
        %v1313 = vld [vmem:[%s279 + $0x708] sm:$0xff]
        %v1314 = vld [vmem:[%s279 + $0x710] sm:$0xff]
        %v1315 = vld [vmem:[%s279 + $0x718] sm:$0xff]
        %v1316 = vld [vmem:[%s279 + $0x720] sm:$0xff]
        %v1317 = vld [vmem:[%s279 + $0x728] sm:$0xff]
        %v1318 = vld [vmem:[%s279 + $0x730] sm:$0xff]
        %v1319 = vld [vmem:[%s279 + $0x738] sm:$0xff]
        %v1320 = vld [vmem:[%s279 + $0x740] sm:$0xff]
        %v1321 = vld [vmem:[%s279 + $0x748] sm:$0xff]
        %v1322 = vld [vmem:[%s279 + $0x750] sm:$0xff]
        %v1323 = vld [vmem:[%s279 + $0x758] sm:$0xff]
        %v1324 = vld [vmem:[%s279 + $0x760] sm:$0xff]
        %v1325 = vld [vmem:[%s279 + $0x768] sm:$0xff]
        %v1326 = vld [vmem:[%s279 + $0x770] sm:$0xff]
        %v1327 = vld [vmem:[%s279 + $0x778] sm:$0xff]
        %v1328 = vld [vmem:[%s279 + $0x780] sm:$0xff]
        %v1329 = vld [vmem:[%s279 + $0x788] sm:$0xff]
        %v1330 = vld [vmem:[%s279 + $0x790] sm:$0xff]
        %v1331 = vld [vmem:[%s279 + $0x798] sm:$0xff]
        %v1332 = vld [vmem:[%s279 + $0x7a0] sm:$0xff]
        %v1333 = vld [vmem:[%s279 + $0x7a8] sm:$0xff]
        %v1334 = vld [vmem:[%s279 + $0x7b0] sm:$0xff]
        %v1335 = vld [vmem:[%s279 + $0x7b8] sm:$0xff]
        %v1336 = vld [vmem:[%s279 + $0x7c0] sm:$0xff]
        %v1337 = vld [vmem:[%s279 + $0x7c8] sm:$0xff]
        %v1338 = vld [vmem:[%s279 + $0x7d0] sm:$0xff]
        %v1339 = vld [vmem:[%s279 + $0x7d8] sm:$0xff]
        %v1340 = vld [vmem:[%s279 + $0x7e0] sm:$0xff]
        %v1341 = vld [vmem:[%s279 + $0x7e8] sm:$0xff]
        %v1342 = vld [vmem:[%s279 + $0x7f0] sm:$0xff]
        %v1343 = vld [vmem:[%s279 + $0x7f8] sm:$0xff]
        %v1344 = vld [vmem:[%s279 + $0x800] sm:$0xff]
        %v1345 = vld [vmem:[%s279 + $0x808] sm:$0xff]
        %v1346 = vld [vmem:[%s279 + $0x810] sm:$0xff]
        %v1347 = vld [vmem:[%s279 + $0x818] sm:$0xff]
        %v1348 = vld [vmem:[%s279 + $0x820] sm:$0xff]
        %v1349 = vld [vmem:[%s279 + $0x828] sm:$0xff]
        %v1350 = vld [vmem:[%s279 + $0x830] sm:$0xff]
        %v1351 = vld [vmem:[%s279 + $0x838] sm:$0xff]
        %v1352 = vld [vmem:[%s279 + $0x840] sm:$0xff]
        %v1353 = vld [vmem:[%s279 + $0x848] sm:$0xff]
        %v1354 = vld [vmem:[%s279 + $0x850] sm:$0xff]
        %v1355 = vld [vmem:[%s279 + $0x858] sm:$0xff]
        %v1356 = vld [vmem:[%s279 + $0x860] sm:$0xff]
        %v1357 = vld [vmem:[%s279 + $0x868] sm:$0xff]
        %v1358 = vld [vmem:[%s279 + $0x870] sm:$0xff]
        %v1359 = vld [vmem:[%s279 + $0x878] sm:$0xff]
        %v1360 = vld [vmem:[%s279 + $0x880] sm:$0xff]
        %v1361 = vld [vmem:[%s279 + $0x888] sm:$0xff]
        %v1362 = vld [vmem:[%s279 + $0x890] sm:$0xff]
        %v1363 = vld [vmem:[%s279 + $0x898] sm:$0xff]
        %v1364 = vld [vmem:[%s279 + $0x8a0] sm:$0xff]
        %v1365 = vld [vmem:[%s279 + $0x8a8] sm:$0xff]
        %v1366 = vld [vmem:[%s279 + $0x8b0] sm:$0xff]
        %v1367 = vld [vmem:[%s279 + $0x8b8] sm:$0xff]
        %v1368 = vld [vmem:[%s279 + $0x8c0] sm:$0xff]
        %v1369 = vld [vmem:[%s279 + $0x8c8] sm:$0xff]
        %v1370 = vld [vmem:[%s279 + $0x8d0] sm:$0xff]
        %v1371 = vld [vmem:[%s279 + $0x8d8] sm:$0xff]
        %v1372 = vld [vmem:[%s279 + $0x8e0] sm:$0xff]
        %v1373 = vld [vmem:[%s279 + $0x8e8] sm:$0xff]
        %v1374 = vld [vmem:[%s279 + $0x8f0] sm:$0xff]
        %v1375 = vld [vmem:[%s279 + $0x8f8] sm:$0xff]
        %v1376 = vld [vmem:[%s279 + $0x900] sm:$0xff]
        %v1377 = vld [vmem:[%s279 + $0x908] sm:$0xff]
        %v1378 = vld [vmem:[%s279 + $0x910] sm:$0xff]
        %v1379 = vld [vmem:[%s279 + $0x918] sm:$0xff]
        %v1380 = vld [vmem:[%s279 + $0x920] sm:$0xff]
        %v1381 = vld [vmem:[%s279 + $0x928] sm:$0xff]
        %v1382 = vld [vmem:[%s279 + $0x930] sm:$0xff]
        %v1383 = vld [vmem:[%s279 + $0x938] sm:$0xff]
        %v1384 = vld [vmem:[%s279 + $0x940] sm:$0xff]
        %v1385 = vld [vmem:[%s279 + $0x948] sm:$0xff]
        %v1386 = vld [vmem:[%s279 + $0x950] sm:$0xff]
        %v1387 = vld [vmem:[%s279 + $0x958] sm:$0xff]
        %v1388 = vld [vmem:[%s279 + $0x960] sm:$0xff]
        %v1389 = vld [vmem:[%s279 + $0x968] sm:$0xff]
        %v1390 = vld [vmem:[%s279 + $0x970] sm:$0xff]
        %v1391 = vld [vmem:[%s279 + $0x978] sm:$0xff]
        %v1392 = vld [vmem:[%s279 + $0x980] sm:$0xff]
        %v1393 = vld [vmem:[%s279 + $0x988] sm:$0xff]
        %v1394 = vld [vmem:[%s279 + $0x990] sm:$0xff]
        %v1395 = vld [vmem:[%s279 + $0x998] sm:$0xff]
        %v1396 = vld [vmem:[%s279 + $0x9a0] sm:$0xff]
        %v1397 = vld [vmem:[%s279 + $0x9a8] sm:$0xff]
        %v1398 = vld [vmem:[%s279 + $0x9b0] sm:$0xff]
        %v1399 = vld [vmem:[%s279 + $0x9b8] sm:$0xff]
        %v1400 = vld [vmem:[%s279 + $0x9c0] sm:$0xff]
        %v1401 = vld [vmem:[%s279 + $0x9c8] sm:$0xff]
        %v1402 = vld [vmem:[%s279 + $0x9d0] sm:$0xff]
        %v1403 = vld [vmem:[%s279 + $0x9d8] sm:$0xff]
        %v1404 = vld [vmem:[%s279 + $0x9e0] sm:$0xff]
        %v1405 = vld [vmem:[%s279 + $0x9e8] sm:$0xff]
        %v1406 = vld [vmem:[%s279 + $0x9f0] sm:$0xff]
        %v1407 = vld [vmem:[%s279 + $0x9f8] sm:$0xff]
        %v1408 = vld [vmem:[%s279 + $0xa00] sm:$0xff]
        %v1409 = vld [vmem:[%s279 + $0xa08] sm:$0xff]
        %v1410 = vld [vmem:[%s279 + $0xa10] sm:$0xff]
        %v1411 = vld [vmem:[%s279 + $0xa18] sm:$0xff]
        %v1412 = vld [vmem:[%s279 + $0xa20] sm:$0xff]
        %v1413 = vld [vmem:[%s279 + $0xa28] sm:$0xff]
        %v1414 = vld [vmem:[%s279 + $0xa30] sm:$0xff]
        %v1415 = vld [vmem:[%s279 + $0xa38] sm:$0xff]
        %v1416 = vld [vmem:[%s279 + $0xa40] sm:$0xff]
        %v1417 = vld [vmem:[%s279 + $0xa48] sm:$0xff]
        %v1418 = vld [vmem:[%s279 + $0xa50] sm:$0xff]
        %v1419 = vld [vmem:[%s279 + $0xa58] sm:$0xff]
        %v1420 = vld [vmem:[%s279 + $0xa60] sm:$0xff]
        %v1421 = vld [vmem:[%s279 + $0xa68] sm:$0xff]
        %v1422 = vld [vmem:[%s279 + $0xa70] sm:$0xff]
        %v1423 = vld [vmem:[%s279 + $0xa78] sm:$0xff]
        %v1424 = vld [vmem:[%s279 + $0xa80] sm:$0xff]
        %v1425 = vld [vmem:[%s279 + $0xa88] sm:$0xff]
        %v1426 = vld [vmem:[%s279 + $0xa90] sm:$0xff]
        %v1427 = vld [vmem:[%s279 + $0xa98] sm:$0xff]
        %v1428 = vld [vmem:[%s279 + $0xaa0] sm:$0xff]
        %v1429 = vld [vmem:[%s279 + $0xaa8] sm:$0xff]
        %v1430 = vld [vmem:[%s279 + $0xab0] sm:$0xff]
        %v1431 = vld [vmem:[%s279 + $0xab8] sm:$0xff]
        %v1432 = vld [vmem:[%s279 + $0xac0] sm:$0xff]
        %v1433 = vld [vmem:[%s279 + $0xac8] sm:$0xff]
        %v1434 = vld [vmem:[%s279 + $0xad0] sm:$0xff]
        %v1435 = vld [vmem:[%s279 + $0xad8] sm:$0xff]
        %v1436 = vld [vmem:[%s279 + $0xae0] sm:$0xff]
        %v1437 = vld [vmem:[%s279 + $0xae8] sm:$0xff]
        %v1438 = vld [vmem:[%s279 + $0xaf0] sm:$0xff]
        %v1439 = vld [vmem:[%s279 + $0xaf8] sm:$0xff]
        %v1440 = vld [vmem:[%s279 + $0xb00] sm:$0xff]
        %v1441 = vld [vmem:[%s279 + $0xb08] sm:$0xff]
        %v1442 = vld [vmem:[%s279 + $0xb10] sm:$0xff]
        %v1443 = vld [vmem:[%s279 + $0xb18] sm:$0xff]
        %v1444 = vld [vmem:[%s279 + $0xb20] sm:$0xff]
        %v1445 = vld [vmem:[%s279 + $0xb28] sm:$0xff]
        %v1446 = vld [vmem:[%s279 + $0xb30] sm:$0xff]
        %v1447 = vld [vmem:[%s279 + $0xb38] sm:$0xff]
        %v1448 = vld [vmem:[%s279 + $0xb40] sm:$0xff]
        %v1449 = vld [vmem:[%s279 + $0xb48] sm:$0xff]
        %v1450 = vld [vmem:[%s279 + $0xb50] sm:$0xff]
        %v1451 = vld [vmem:[%s279 + $0xb58] sm:$0xff]
        %v1452 = vld [vmem:[%s279 + $0xb60] sm:$0xff]
        %v1453 = vld [vmem:[%s279 + $0xb68] sm:$0xff]
        %v1454 = vld [vmem:[%s279 + $0xb70] sm:$0xff]
        %v1455 = vld [vmem:[%s279 + $0xb78] sm:$0xff]
        %v1456 = vld [vmem:[%s279 + $0xb80] sm:$0xff]
        %v1457 = vld [vmem:[%s279 + $0xb88] sm:$0xff]
        %v1458 = vld [vmem:[%s279 + $0xb90] sm:$0xff]
        %v1459 = vld [vmem:[%s279 + $0xb98] sm:$0xff]
        %v1460 = vld [vmem:[%s279 + $0xba0] sm:$0xff]
        %v1461 = vld [vmem:[%s279 + $0xba8] sm:$0xff]
        %v1462 = vld [vmem:[%s279 + $0xbb0] sm:$0xff]
        %v1463 = vld [vmem:[%s279 + $0xbb8] sm:$0xff]
        %v1464 = vld [vmem:[%s279 + $0xbc0] sm:$0xff]
        %v1465 = vld [vmem:[%s279 + $0xbc8] sm:$0xff]
        %v1466 = vld [vmem:[%s279 + $0xbd0] sm:$0xff]
        %v1467 = vld [vmem:[%s279 + $0xbd8] sm:$0xff]
        %v1468 = vld [vmem:[%s279 + $0xbe0] sm:$0xff]
        %v1469 = vld [vmem:[%s279 + $0xbe8] sm:$0xff]
        %v1470 = vld [vmem:[%s279 + $0xbf0] sm:$0xff]
        %v1471 = vld [vmem:[%s279 + $0xbf8] sm:$0xff]
        %v1472 = vld [vmem:[%s279 + $0xc00] sm:$0xff]
        %v1473 = vld [vmem:[%s279 + $0xc08] sm:$0xff]
        %v1474 = vld [vmem:[%s279 + $0xc10] sm:$0xff]
        %v1475 = vld [vmem:[%s279 + $0xc18] sm:$0xff]
        %v1476 = vld [vmem:[%s279 + $0xc20] sm:$0xff]
        %v1477 = vld [vmem:[%s279 + $0xc28] sm:$0xff]
        %v1478 = vld [vmem:[%s279 + $0xc30] sm:$0xff]
        %v1479 = vld [vmem:[%s279 + $0xc38] sm:$0xff]
        %v1480 = vld [vmem:[%s279 + $0xc40] sm:$0xff]
        %v1481 = vld [vmem:[%s279 + $0xc48] sm:$0xff]
        %v1482 = vld [vmem:[%s279 + $0xc50] sm:$0xff]
        %v1483 = vld [vmem:[%s279 + $0xc58] sm:$0xff]
        %v1484 = vld [vmem:[%s279 + $0xc60] sm:$0xff]
        %v1485 = vld [vmem:[%s279 + $0xc68] sm:$0xff]
        %v1486 = vld [vmem:[%s279 + $0xc70] sm:$0xff]
        %v1487 = vld [vmem:[%s279 + $0xc78] sm:$0xff]
        %v1488 = vld [vmem:[%s279 + $0xc80] sm:$0xff]
        %v1489 = vld [vmem:[%s279 + $0xc88] sm:$0xff]
        %v1490 = vld [vmem:[%s279 + $0xc90] sm:$0xff]
        %v1491 = vld [vmem:[%s279 + $0xc98] sm:$0xff]
        %v1492 = vld [vmem:[%s279 + $0xca0] sm:$0xff]
        %v1493 = vld [vmem:[%s279 + $0xca8] sm:$0xff]
        %v1494 = vld [vmem:[%s279 + $0xcb0] sm:$0xff]
        %v1495 = vld [vmem:[%s279 + $0xcb8] sm:$0xff]
        %v1496 = vld [vmem:[%s279 + $0xcc0] sm:$0xff]
        %v1497 = vld [vmem:[%s279 + $0xcc8] sm:$0xff]
        %v1498 = vld [vmem:[%s279 + $0xcd0] sm:$0xff]
        %v1499 = vld [vmem:[%s279 + $0xcd8] sm:$0xff]
        %v1500 = vld [vmem:[%s279 + $0xce0] sm:$0xff]
        %v1501 = vld [vmem:[%s279 + $0xce8] sm:$0xff]
        %v1502 = vld [vmem:[%s279 + $0xcf0] sm:$0xff]
        %v1503 = vld [vmem:[%s279 + $0xcf8] sm:$0xff]
        %v1504 = vld [vmem:[%s279 + $0xd00] sm:$0xff]
        %v1505 = vld [vmem:[%s279 + $0xd08] sm:$0xff]
        %v1506 = vld [vmem:[%s279 + $0xd10] sm:$0xff]
        %v1507 = vld [vmem:[%s279 + $0xd18] sm:$0xff]
        %v1508 = vld [vmem:[%s279 + $0xd20] sm:$0xff]
        %v1509 = vld [vmem:[%s279 + $0xd28] sm:$0xff]
        %v1510 = vld [vmem:[%s279 + $0xd30] sm:$0xff]
        %v1511 = vld [vmem:[%s279 + $0xd38] sm:$0xff]
        %v1512 = vld [vmem:[%s279 + $0xd40] sm:$0xff]
        %v1513 = vld [vmem:[%s279 + $0xd48] sm:$0xff]
        %v1514 = vld [vmem:[%s279 + $0xd50] sm:$0xff]
        %v1515 = vld [vmem:[%s279 + $0xd58] sm:$0xff]
        %v1516 = vld [vmem:[%s279 + $0xd60] sm:$0xff]
        %v1517 = vld [vmem:[%s279 + $0xd68] sm:$0xff]
        %v1518 = vld [vmem:[%s279 + $0xd70] sm:$0xff]
        %v1519 = vld [vmem:[%s279 + $0xd78] sm:$0xff]
        %v1520 = vld [vmem:[%s279 + $0xd80] sm:$0xff]
        %v1521 = vld [vmem:[%s279 + $0xd88] sm:$0xff]
        %v1522 = vld [vmem:[%s279 + $0xd90] sm:$0xff]
        %v1523 = vld [vmem:[%s279 + $0xd98] sm:$0xff]
        %v1524 = vld [vmem:[%s279 + $0xda0] sm:$0xff]
        %v1525 = vld [vmem:[%s279 + $0xda8] sm:$0xff]
        %v1526 = vld [vmem:[%s279 + $0xdb0] sm:$0xff]
        %v1527 = vld [vmem:[%s279 + $0xdb8] sm:$0xff]
        %v1528 = vld [vmem:[%s279 + $0xdc0] sm:$0xff]
        %v1529 = vld [vmem:[%s279 + $0xdc8] sm:$0xff]
        %v1530 = vld [vmem:[%s279 + $0xdd0] sm:$0xff]
        %v1531 = vld [vmem:[%s279 + $0xdd8] sm:$0xff]
        %v1532 = vld [vmem:[%s279 + $0xde0] sm:$0xff]
        %v1533 = vld [vmem:[%s279 + $0xde8] sm:$0xff]
        %v1534 = vld [vmem:[%s279 + $0xdf0] sm:$0xff]
        %v1535 = vld [vmem:[%s279 + $0xdf8] sm:$0xff]
        %v1536 = vld [vmem:[%s279 + $0xe00] sm:$0xff]
        %v1537 = vld [vmem:[%s279 + $0xe08] sm:$0xff]
        %v1538 = vld [vmem:[%s279 + $0xe10] sm:$0xff]
        %v1539 = vld [vmem:[%s279 + $0xe18] sm:$0xff]
        %v1540 = vld [vmem:[%s279 + $0xe20] sm:$0xff]
        %v1541 = vld [vmem:[%s279 + $0xe28] sm:$0xff]
        %v1542 = vld [vmem:[%s279 + $0xe30] sm:$0xff]
        %v1543 = vld [vmem:[%s279 + $0xe38] sm:$0xff]
        %v1544 = vld [vmem:[%s279 + $0xe40] sm:$0xff]
        %v1545 = vld [vmem:[%s279 + $0xe48] sm:$0xff]
        %v1546 = vld [vmem:[%s279 + $0xe50] sm:$0xff]
        %v1547 = vld [vmem:[%s279 + $0xe58] sm:$0xff]
        %v1548 = vld [vmem:[%s279 + $0xe60] sm:$0xff]
        %v1549 = vld [vmem:[%s279 + $0xe68] sm:$0xff]
        %v1550 = vld [vmem:[%s279 + $0xe70] sm:$0xff]
        %v1551 = vld [vmem:[%s279 + $0xe78] sm:$0xff]
        %v1552 = vld [vmem:[%s279 + $0xe80] sm:$0xff]
        %v1553 = vld [vmem:[%s279 + $0xe88] sm:$0xff]
        %v1554 = vld [vmem:[%s279 + $0xe90] sm:$0xff]
        %v1555 = vld [vmem:[%s279 + $0xe98] sm:$0xff]
        %v1556 = vld [vmem:[%s279 + $0xea0] sm:$0xff]
        %v1557 = vld [vmem:[%s279 + $0xea8] sm:$0xff]
        %v1558 = vld [vmem:[%s279 + $0xeb0] sm:$0xff]
        %v1559 = vld [vmem:[%s279 + $0xeb8] sm:$0xff]
        %v1560 = vld [vmem:[%s279 + $0xec0] sm:$0xff]
        %v1561 = vld [vmem:[%s279 + $0xec8] sm:$0xff]
        %v1562 = vld [vmem:[%s279 + $0xed0] sm:$0xff]
        %v1563 = vld [vmem:[%s279 + $0xed8] sm:$0xff]
        %v1564 = vld [vmem:[%s279 + $0xee0] sm:$0xff]
        %v1565 = vld [vmem:[%s279 + $0xee8] sm:$0xff]
        %v1566 = vld [vmem:[%s279 + $0xef0] sm:$0xff]
        %v1567 = vld [vmem:[%s279 + $0xef8] sm:$0xff]
        %v1568 = vld [vmem:[%s279 + $0xf00] sm:$0xff]
        %v1569 = vld [vmem:[%s279 + $0xf08] sm:$0xff]
        %v1570 = vld [vmem:[%s279 + $0xf10] sm:$0xff]
        %v1571 = vld [vmem:[%s279 + $0xf18] sm:$0xff]
        %v1572 = vld [vmem:[%s279 + $0xf20] sm:$0xff]
        %v1573 = vld [vmem:[%s279 + $0xf28] sm:$0xff]
        %v1574 = vld [vmem:[%s279 + $0xf30] sm:$0xff]
        %v1575 = vld [vmem:[%s279 + $0xf38] sm:$0xff]
        %v1576 = vld [vmem:[%s279 + $0xf40] sm:$0xff]
        %v1577 = vld [vmem:[%s279 + $0xf48] sm:$0xff]
        %v1578 = vld [vmem:[%s279 + $0xf50] sm:$0xff]
        %v1579 = vld [vmem:[%s279 + $0xf58] sm:$0xff]
        %v1580 = vld [vmem:[%s279 + $0xf60] sm:$0xff]
        %v1581 = vld [vmem:[%s279 + $0xf68] sm:$0xff]
        %v1582 = vld [vmem:[%s279 + $0xf70] sm:$0xff]
        %v1583 = vld [vmem:[%s279 + $0xf78] sm:$0xff]
        %v1584 = vld [vmem:[%s279 + $0xf80] sm:$0xff]
        %v1585 = vld [vmem:[%s279 + $0xf88] sm:$0xff]
        %v1586 = vld [vmem:[%s279 + $0xf90] sm:$0xff]
        %v1587 = vld [vmem:[%s279 + $0xf98] sm:$0xff]
        %v1588 = vld [vmem:[%s279 + $0xfa0] sm:$0xff]
        %v1589 = vld [vmem:[%s279 + $0xfa8] sm:$0xff]
        %v1590 = vld [vmem:[%s279 + $0xfb0] sm:$0xff]
        %v1591 = vld [vmem:[%s279 + $0xfb8] sm:$0xff]
        %v1592 = vld [vmem:[%s279 + $0xfc0] sm:$0xff]
        %v1593 = vld [vmem:[%s279 + $0xfc8] sm:$0xff]
        %v1594 = vld [vmem:[%s279 + $0xfd0] sm:$0xff]
        %v1595 = vld [vmem:[%s279 + $0xfd8] sm:$0xff]
        %v1596 = vld [vmem:[%s279 + $0xfe0] sm:$0xff]
        %v1597 = vld [vmem:[%s279 + $0xfe8] sm:$0xff]
        %v1598 = vld [vmem:[%s279 + $0xff0] sm:$0xff]
        %v1599 = vld [vmem:[%s279 + $0xff8] sm:$0xff]
        %v1600 = vld [vmem:[%s279 + $0x1000] sm:$0xff]
        %v1601 = vld [vmem:[%s279 + $0x1008] sm:$0xff]
        %v1602 = vld [vmem:[%s279 + $0x1010] sm:$0xff]
        %v1603 = vld [vmem:[%s279 + $0x1018] sm:$0xff]
        %v1604 = vld [vmem:[%s279 + $0x1020] sm:$0xff]
        %v1605 = vld [vmem:[%s279 + $0x1028] sm:$0xff]
        %v1606 = vld [vmem:[%s279 + $0x1030] sm:$0xff]
        %v1607 = vld [vmem:[%s279 + $0x1038] sm:$0xff]
        %v1608 = vld [vmem:[%s279 + $0x1040] sm:$0xff]
        %v1609 = vld [vmem:[%s279 + $0x1048] sm:$0xff]
        %v1610 = vld [vmem:[%s279 + $0x1050] sm:$0xff]
        %v1611 = vld [vmem:[%s279 + $0x1058] sm:$0xff]
        %v1612 = vld [vmem:[%s279 + $0x1060] sm:$0xff]
        %v1613 = vld [vmem:[%s279 + $0x1068] sm:$0xff]
        %v1614 = vld [vmem:[%s279 + $0x1070] sm:$0xff]
        %v1615 = vld [vmem:[%s279 + $0x1078] sm:$0xff]
        %v1616 = vld [vmem:[%s279 + $0x1080] sm:$0xff]
        %v1617 = vld [vmem:[%s279 + $0x1088] sm:$0xff]
        %v1618 = vld [vmem:[%s279 + $0x1090] sm:$0xff]
        %v1619 = vld [vmem:[%s279 + $0x1098] sm:$0xff]
        %v1620 = vld [vmem:[%s279 + $0x10a0] sm:$0xff]
        %v1621 = vld [vmem:[%s279 + $0x10a8] sm:$0xff]
        %v1622 = vld [vmem:[%s279 + $0x10b0] sm:$0xff]
        %v1623 = vld [vmem:[%s279 + $0x10b8] sm:$0xff]
        %v1624 = vld [vmem:[%s279 + $0x10c0] sm:$0xff]
        %v1625 = vld [vmem:[%s279 + $0x10c8] sm:$0xff]
        %v1626 = vld [vmem:[%s279 + $0x10d0] sm:$0xff]
        %v1627 = vld [vmem:[%s279 + $0x10d8] sm:$0xff]
        %v1628 = vld [vmem:[%s279 + $0x10e0] sm:$0xff]
        %v1629 = vld [vmem:[%s279 + $0x10e8] sm:$0xff]
        %v1630 = vld [vmem:[%s279 + $0x10f0] sm:$0xff]
        %v1631 = vld [vmem:[%s279 + $0x10f8] sm:$0xff]
        %v1632 = vld [vmem:[%s279 + $0x1100] sm:$0xff]
        %v1633 = vld [vmem:[%s279 + $0x1108] sm:$0xff]
        %v1634 = vld [vmem:[%s279 + $0x1110] sm:$0xff]
        %v1635 = vld [vmem:[%s279 + $0x1118] sm:$0xff]
        %v1636 = vld [vmem:[%s279 + $0x1120] sm:$0xff]
        %v1637 = vld [vmem:[%s279 + $0x1128] sm:$0xff]
        %v1638 = vld [vmem:[%s279 + $0x1130] sm:$0xff]
        %v1639 = vld [vmem:[%s279 + $0x1138] sm:$0xff]
        %v1640 = vld [vmem:[%s279 + $0x1140] sm:$0xff]
        %v1641 = vld [vmem:[%s279 + $0x1148] sm:$0xff]
        %v1642 = vld [vmem:[%s279 + $0x1150] sm:$0xff]
        %v1643 = vld [vmem:[%s279 + $0x1158] sm:$0xff]
        %v1644 = vld [vmem:[%s279 + $0x1160] sm:$0xff]
        %v1645 = vld [vmem:[%s279 + $0x1168] sm:$0xff]
        %v1646 = vld [vmem:[%s279 + $0x1170] sm:$0xff]
        %v1647 = vld [vmem:[%s279 + $0x1178] sm:$0xff]
        %v1648 = vld [vmem:[%s279 + $0x1180] sm:$0xff]
        %v1649 = vld [vmem:[%s279 + $0x1188] sm:$0xff]
        %v1650 = vld [vmem:[%s279 + $0x1190] sm:$0xff]
        %v1651 = vld [vmem:[%s279 + $0x1198] sm:$0xff]
        %v1652 = vld [vmem:[%s279 + $0x11a0] sm:$0xff]
        %v1653 = vld [vmem:[%s279 + $0x11a8] sm:$0xff]
        %v1654 = vld [vmem:[%s279 + $0x11b0] sm:$0xff]
        %v1655 = vld [vmem:[%s279 + $0x11b8] sm:$0xff]
        %v1656 = vld [vmem:[%s279 + $0x11c0] sm:$0xff]
        %v1657 = vld [vmem:[%s279 + $0x11c8] sm:$0xff]
        %v1658 = vld [vmem:[%s279 + $0x11d0] sm:$0xff]
        %v1659 = vld [vmem:[%s279 + $0x11d8] sm:$0xff]
        %v1660 = vld [vmem:[%s279 + $0x11e0] sm:$0xff]
        %v1661 = vld [vmem:[%s279 + $0x11e8] sm:$0xff]
        %v1662 = vld [vmem:[%s279 + $0x11f0] sm:$0xff]
        %v1663 = vld [vmem:[%s279 + $0x11f8] sm:$0xff]
        %v1808 = vunpack.c.l.b16 %v944
        %v1809 = vunpack.c.h.b16 %v944
        %v1810 = vunpack.c.l.b16 %v945
        %v1811 = vunpack.c.h.b16 %v945
        %v1812 = vunpack.c.l.b16 %v946
        %v1813 = vunpack.c.h.b16 %v946
        %v1814 = vunpack.c.l.b16 %v947
        %v1815 = vunpack.c.h.b16 %v947
        %v1816 = vunpack.c.l.b16 %v948
        %v1817 = vunpack.c.h.b16 %v948
        %v1818 = vunpack.c.l.b16 %v949
        %v1819 = vunpack.c.h.b16 %v949
        %v1820 = vunpack.c.l.b16 %v950
        %v1821 = vunpack.c.h.b16 %v950
        %v1822 = vunpack.c.l.b16 %v951
        %v1823 = vunpack.c.h.b16 %v951
        %v1824 = vunpack.c.l.b16 %v952
        %v1825 = vunpack.c.h.b16 %v952
        %v1826 = vunpack.c.l.b16 %v953
        %v1827 = vunpack.c.h.b16 %v953
        %v1828 = vunpack.c.l.b16 %v954
        %v1829 = vunpack.c.h.b16 %v954
        %v1830 = vunpack.c.l.b16 %v955
        %v1831 = vunpack.c.h.b16 %v955
        %v1832 = vunpack.c.l.b16 %v956
        %v1833 = vunpack.c.h.b16 %v956
        %v1834 = vunpack.c.l.b16 %v957
        %v1835 = vunpack.c.h.b16 %v957
        %v1836 = vunpack.c.l.b16 %v958
        %v1837 = vunpack.c.h.b16 %v958
        %v1838 = vunpack.c.l.b16 %v959
        %v1839 = vunpack.c.h.b16 %v959
        %v1840 = vunpack.c.l.b16 %v960
        %v1841 = vunpack.c.h.b16 %v960
        %v1842 = vunpack.c.l.b16 %v961
        %v1843 = vunpack.c.h.b16 %v961
        %v1844 = vunpack.c.l.b16 %v962
        %v1845 = vunpack.c.h.b16 %v962
        %v1846 = vunpack.c.l.b16 %v963
        %v1847 = vunpack.c.h.b16 %v963
        %v1848 = vunpack.c.l.b16 %v964
        %v1849 = vunpack.c.h.b16 %v964
        %v1850 = vunpack.c.l.b16 %v965
        %v1851 = vunpack.c.h.b16 %v965
        %v1852 = vunpack.c.l.b16 %v966
        %v1853 = vunpack.c.h.b16 %v966
        %v1854 = vunpack.c.l.b16 %v967
        %v1855 = vunpack.c.h.b16 %v967
        %v1856 = vunpack.c.l.b16 %v968
        %v1857 = vunpack.c.h.b16 %v968
        %v1858 = vunpack.c.l.b16 %v969
        %v1859 = vunpack.c.h.b16 %v969
        %v1860 = vunpack.c.l.b16 %v970
        %v1861 = vunpack.c.h.b16 %v970
        %v1862 = vunpack.c.l.b16 %v971
        %v1863 = vunpack.c.h.b16 %v971
        %v1864 = vunpack.c.l.b16 %v972
        %v1865 = vunpack.c.h.b16 %v972
        %v1866 = vunpack.c.l.b16 %v973
        %v1867 = vunpack.c.h.b16 %v973
        %v1868 = vunpack.c.l.b16 %v974
        %v1869 = vunpack.c.h.b16 %v974
        %v1870 = vunpack.c.l.b16 %v975
        %v1871 = vunpack.c.h.b16 %v975
        %v1872 = vunpack.c.l.b16 %v976
        %v1873 = vunpack.c.h.b16 %v976
        %v1874 = vunpack.c.l.b16 %v977
        %v1875 = vunpack.c.h.b16 %v977
        %v1876 = vunpack.c.l.b16 %v978
        %v1877 = vunpack.c.h.b16 %v978
        %v1878 = vunpack.c.l.b16 %v979
        %v1879 = vunpack.c.h.b16 %v979
        %v1880 = vunpack.c.l.b16 %v980
        %v1881 = vunpack.c.h.b16 %v980
        %v1882 = vunpack.c.l.b16 %v981
        %v1883 = vunpack.c.h.b16 %v981
        %v1884 = vunpack.c.l.b16 %v982
        %v1885 = vunpack.c.h.b16 %v982
        %v1886 = vunpack.c.l.b16 %v983
        %v1887 = vunpack.c.h.b16 %v983
        %v1888 = vunpack.c.l.b16 %v984
        %v1889 = vunpack.c.h.b16 %v984
        %v1890 = vunpack.c.l.b16 %v985
        %v1891 = vunpack.c.h.b16 %v985
        %v1892 = vunpack.c.l.b16 %v986
        %v1893 = vunpack.c.h.b16 %v986
        %v1894 = vunpack.c.l.b16 %v987
        %v1895 = vunpack.c.h.b16 %v987
        %v1896 = vunpack.c.l.b16 %v988
        %v1897 = vunpack.c.h.b16 %v988
        %v1898 = vunpack.c.l.b16 %v989
        %v1899 = vunpack.c.h.b16 %v989
        %v1900 = vunpack.c.l.b16 %v990
        %v1901 = vunpack.c.h.b16 %v990
        %v1902 = vunpack.c.l.b16 %v991
        %v1903 = vunpack.c.h.b16 %v991
        %v1904 = vunpack.c.l.b16 %v992
        %v1905 = vunpack.c.h.b16 %v992
        %v1906 = vunpack.c.l.b16 %v993
        %v1907 = vunpack.c.h.b16 %v993
        %v1908 = vunpack.c.l.b16 %v994
        %v1909 = vunpack.c.h.b16 %v994
        %v1910 = vunpack.c.l.b16 %v995
        %v1911 = vunpack.c.h.b16 %v995
        %v1912 = vunpack.c.l.b16 %v996
        %v1913 = vunpack.c.h.b16 %v996
        %v1914 = vunpack.c.l.b16 %v997
        %v1915 = vunpack.c.h.b16 %v997
        %v1916 = vunpack.c.l.b16 %v998
        %v1917 = vunpack.c.h.b16 %v998
        %v1918 = vunpack.c.l.b16 %v999
        %v1919 = vunpack.c.h.b16 %v999
        %v1920 = vunpack.c.l.b16 %v1000
        %v1921 = vunpack.c.h.b16 %v1000
        %v1922 = vunpack.c.l.b16 %v1001
        %v1923 = vunpack.c.h.b16 %v1001
        %v1924 = vunpack.c.l.b16 %v1002
        %v1925 = vunpack.c.h.b16 %v1002
        %v1926 = vunpack.c.l.b16 %v1003
        %v1927 = vunpack.c.h.b16 %v1003
        %v1928 = vunpack.c.l.b16 %v1004
        %v1929 = vunpack.c.h.b16 %v1004
        %v1930 = vunpack.c.l.b16 %v1005
        %v1931 = vunpack.c.h.b16 %v1005
        %v1932 = vunpack.c.l.b16 %v1006
        %v1933 = vunpack.c.h.b16 %v1006
        %v1934 = vunpack.c.l.b16 %v1007
        %v1935 = vunpack.c.h.b16 %v1007
        %v1936 = vunpack.c.l.b16 %v1008
        %v1937 = vunpack.c.h.b16 %v1008
        %v1938 = vunpack.c.l.b16 %v1009
        %v1939 = vunpack.c.h.b16 %v1009
        %v1940 = vunpack.c.l.b16 %v1010
        %v1941 = vunpack.c.h.b16 %v1010
        %v1942 = vunpack.c.l.b16 %v1011
        %v1943 = vunpack.c.h.b16 %v1011
        %v1944 = vunpack.c.l.b16 %v1012
        %v1945 = vunpack.c.h.b16 %v1012
        %v1946 = vunpack.c.l.b16 %v1013
        %v1947 = vunpack.c.h.b16 %v1013
        %v1948 = vunpack.c.l.b16 %v1014
        %v1949 = vunpack.c.h.b16 %v1014
        %v1950 = vunpack.c.l.b16 %v1015
        %v1951 = vunpack.c.h.b16 %v1015
        %v1952 = vunpack.c.l.b16 %v1016
        %v1953 = vunpack.c.h.b16 %v1016
        %v1954 = vunpack.c.l.b16 %v1017
        %v1955 = vunpack.c.h.b16 %v1017
        %v1956 = vunpack.c.l.b16 %v1018
        %v1957 = vunpack.c.h.b16 %v1018
        %v1958 = vunpack.c.l.b16 %v1019
        %v1959 = vunpack.c.h.b16 %v1019
        %v1960 = vunpack.c.l.b16 %v1020
        %v1961 = vunpack.c.h.b16 %v1020
        %v1962 = vunpack.c.l.b16 %v1021
        %v1963 = vunpack.c.h.b16 %v1021
        %v1964 = vunpack.c.l.b16 %v1022
        %v1965 = vunpack.c.h.b16 %v1022
        %v1966 = vunpack.c.l.b16 %v1023
        %v1967 = vunpack.c.h.b16 %v1023
        %v1968 = vunpack.c.l.b16 %v1024
        %v1969 = vunpack.c.h.b16 %v1024
        %v1970 = vunpack.c.l.b16 %v1025
        %v1971 = vunpack.c.h.b16 %v1025
        %v1972 = vunpack.c.l.b16 %v1026
        %v1973 = vunpack.c.h.b16 %v1026
        %v1974 = vunpack.c.l.b16 %v1027
        %v1975 = vunpack.c.h.b16 %v1027
        %v1976 = vunpack.c.l.b16 %v1028
        %v1977 = vunpack.c.h.b16 %v1028
        %v1978 = vunpack.c.l.b16 %v1029
        %v1979 = vunpack.c.h.b16 %v1029
        %v1980 = vunpack.c.l.b16 %v1030
        %v1981 = vunpack.c.h.b16 %v1030
        %v1982 = vunpack.c.l.b16 %v1031
        %v1983 = vunpack.c.h.b16 %v1031
        %v1984 = vunpack.c.l.b16 %v1032
        %v1985 = vunpack.c.h.b16 %v1032
        %v1986 = vunpack.c.l.b16 %v1033
        %v1987 = vunpack.c.h.b16 %v1033
        %v1988 = vunpack.c.l.b16 %v1034
        %v1989 = vunpack.c.h.b16 %v1034
        %v1990 = vunpack.c.l.b16 %v1035
        %v1991 = vunpack.c.h.b16 %v1035
        %v1992 = vunpack.c.l.b16 %v1036
        %v1993 = vunpack.c.h.b16 %v1036
        %v1994 = vunpack.c.l.b16 %v1037
        %v1995 = vunpack.c.h.b16 %v1037
        %v1996 = vunpack.c.l.b16 %v1038
        %v1997 = vunpack.c.h.b16 %v1038
        %v1998 = vunpack.c.l.b16 %v1039
        %v1999 = vunpack.c.h.b16 %v1039
        %v2000 = vunpack.c.l.b16 %v1040
        %v2001 = vunpack.c.h.b16 %v1040
        %v2002 = vunpack.c.l.b16 %v1041
        %v2003 = vunpack.c.h.b16 %v1041
        %v2004 = vunpack.c.l.b16 %v1042
        %v2005 = vunpack.c.h.b16 %v1042
        %v2006 = vunpack.c.l.b16 %v1043
        %v2007 = vunpack.c.h.b16 %v1043
        %v2008 = vunpack.c.l.b16 %v1044
        %v2009 = vunpack.c.h.b16 %v1044
        %v2010 = vunpack.c.l.b16 %v1045
        %v2011 = vunpack.c.h.b16 %v1045
        %v2012 = vunpack.c.l.b16 %v1046
        %v2013 = vunpack.c.h.b16 %v1046
        %v2014 = vunpack.c.l.b16 %v1047
        %v2015 = vunpack.c.h.b16 %v1047
        %v2016 = vunpack.c.l.b16 %v1048
        %v2017 = vunpack.c.h.b16 %v1048
        %v2018 = vunpack.c.l.b16 %v1049
        %v2019 = vunpack.c.h.b16 %v1049
        %v2020 = vunpack.c.l.b16 %v1050
        %v2021 = vunpack.c.h.b16 %v1050
        %v2022 = vunpack.c.l.b16 %v1051
        %v2023 = vunpack.c.h.b16 %v1051
        %v2024 = vunpack.c.l.b16 %v1052
        %v2025 = vunpack.c.h.b16 %v1052
        %v2026 = vunpack.c.l.b16 %v1053
        %v2027 = vunpack.c.h.b16 %v1053
        %v2028 = vunpack.c.l.b16 %v1054
        %v2029 = vunpack.c.h.b16 %v1054
        %v2030 = vunpack.c.l.b16 %v1055
        %v2031 = vunpack.c.h.b16 %v1055
        %v2032 = vunpack.c.l.b16 %v1056
        %v2033 = vunpack.c.h.b16 %v1056
        %v2034 = vunpack.c.l.b16 %v1057
        %v2035 = vunpack.c.h.b16 %v1057
        %v2036 = vunpack.c.l.b16 %v1058
        %v2037 = vunpack.c.h.b16 %v1058
        %v2038 = vunpack.c.l.b16 %v1059
        %v2039 = vunpack.c.h.b16 %v1059
        %v2040 = vunpack.c.l.b16 %v1060
        %v2041 = vunpack.c.h.b16 %v1060
        %v2042 = vunpack.c.l.b16 %v1061
        %v2043 = vunpack.c.h.b16 %v1061
        %v2044 = vunpack.c.l.b16 %v1062
        %v2045 = vunpack.c.h.b16 %v1062
        %v2046 = vunpack.c.l.b16 %v1063
        %v2047 = vunpack.c.h.b16 %v1063
        %v2048 = vunpack.c.l.b16 %v1064
        %v2049 = vunpack.c.h.b16 %v1064
        %v2050 = vunpack.c.l.b16 %v1065
        %v2051 = vunpack.c.h.b16 %v1065
        %v2052 = vunpack.c.l.b16 %v1066
        %v2053 = vunpack.c.h.b16 %v1066
        %v2054 = vunpack.c.l.b16 %v1067
        %v2055 = vunpack.c.h.b16 %v1067
        %v2056 = vunpack.c.l.b16 %v1068
        %v2057 = vunpack.c.h.b16 %v1068
        %v2058 = vunpack.c.l.b16 %v1069
        %v2059 = vunpack.c.h.b16 %v1069
        %v2060 = vunpack.c.l.b16 %v1070
        %v2061 = vunpack.c.h.b16 %v1070
        %v2062 = vunpack.c.l.b16 %v1071
        %v2063 = vunpack.c.h.b16 %v1071
        %v2064 = vunpack.c.l.b16 %v1072
        %v2065 = vunpack.c.h.b16 %v1072
        %v2066 = vunpack.c.l.b16 %v1073
        %v2067 = vunpack.c.h.b16 %v1073
        %v2068 = vunpack.c.l.b16 %v1074
        %v2069 = vunpack.c.h.b16 %v1074
        %v2070 = vunpack.c.l.b16 %v1075
        %v2071 = vunpack.c.h.b16 %v1075
        %v2072 = vunpack.c.l.b16 %v1076
        %v2073 = vunpack.c.h.b16 %v1076
        %v2074 = vunpack.c.l.b16 %v1077
        %v2075 = vunpack.c.h.b16 %v1077
        %v2076 = vunpack.c.l.b16 %v1078
        %v2077 = vunpack.c.h.b16 %v1078
        %v2078 = vunpack.c.l.b16 %v1079
        %v2079 = vunpack.c.h.b16 %v1079
        %v2080 = vunpack.c.l.b16 %v1080
        %v2081 = vunpack.c.h.b16 %v1080
        %v2082 = vunpack.c.l.b16 %v1081
        %v2083 = vunpack.c.h.b16 %v1081
        %v2084 = vunpack.c.l.b16 %v1082
        %v2085 = vunpack.c.h.b16 %v1082
        %v2086 = vunpack.c.l.b16 %v1083
        %v2087 = vunpack.c.h.b16 %v1083
        %v2088 = vunpack.c.l.b16 %v1084
        %v2089 = vunpack.c.h.b16 %v1084
        %v2090 = vunpack.c.l.b16 %v1085
        %v2091 = vunpack.c.h.b16 %v1085
        %v2092 = vunpack.c.l.b16 %v1086
        %v2093 = vunpack.c.h.b16 %v1086
        %v2094 = vunpack.c.l.b16 %v1087
        %v2095 = vunpack.c.h.b16 %v1087
        %v2096 = vpack.c.b16 %v1820, %v1808
        %v2097 = vpack.c.b16 %v1821, %v1809
        %v2098 = vpack.c.b16 %v1822, %v1810
        %v2099 = vpack.c.b16 %v1823, %v1811
        %v2100 = vpack.c.b16 %v1824, %v1812
        %v2101 = vpack.c.b16 %v1825, %v1813
        %v2102 = vpack.c.b16 %v1826, %v1814
        %v2103 = vpack.c.b16 %v1827, %v1815
        %v2104 = vpack.c.b16 %v1828, %v1816
        %v2105 = vpack.c.b16 %v1829, %v1817
        %v2106 = vpack.c.b16 %v1830, %v1818
        %v2107 = vpack.c.b16 %v1831, %v1819
        %v2108 = vpack.c.b16 %v1844, %v1832
        %v2109 = vpack.c.b16 %v1845, %v1833
        %v2110 = vpack.c.b16 %v1846, %v1834
        %v2111 = vpack.c.b16 %v1847, %v1835
        %v2112 = vpack.c.b16 %v1848, %v1836
        %v2113 = vpack.c.b16 %v1849, %v1837
        %v2114 = vpack.c.b16 %v1850, %v1838
        %v2115 = vpack.c.b16 %v1851, %v1839
        %v2116 = vpack.c.b16 %v1852, %v1840
        %v2117 = vpack.c.b16 %v1853, %v1841
        %v2118 = vpack.c.b16 %v1854, %v1842
        %v2119 = vpack.c.b16 %v1855, %v1843
        %v2120 = vpack.c.b16 %v1868, %v1856
        %v2121 = vpack.c.b16 %v1869, %v1857
        %v2122 = vpack.c.b16 %v1870, %v1858
        %v2123 = vpack.c.b16 %v1871, %v1859
        %v2124 = vpack.c.b16 %v1872, %v1860
        %v2125 = vpack.c.b16 %v1873, %v1861
        %v2126 = vpack.c.b16 %v1874, %v1862
        %v2127 = vpack.c.b16 %v1875, %v1863
        %v2128 = vpack.c.b16 %v1876, %v1864
        %v2129 = vpack.c.b16 %v1877, %v1865
        %v2130 = vpack.c.b16 %v1878, %v1866
        %v2131 = vpack.c.b16 %v1879, %v1867
        %v2132 = vpack.c.b16 %v1892, %v1880
        %v2133 = vpack.c.b16 %v1893, %v1881
        %v2134 = vpack.c.b16 %v1894, %v1882
        %v2135 = vpack.c.b16 %v1895, %v1883
        %v2136 = vpack.c.b16 %v1896, %v1884
        %v2137 = vpack.c.b16 %v1897, %v1885
        %v2138 = vpack.c.b16 %v1898, %v1886
        %v2139 = vpack.c.b16 %v1899, %v1887
        %v2140 = vpack.c.b16 %v1900, %v1888
        %v2141 = vpack.c.b16 %v1901, %v1889
        %v2142 = vpack.c.b16 %v1902, %v1890
        %v2143 = vpack.c.b16 %v1903, %v1891
        %v2144 = vpack.c.b16 %v1916, %v1904
        %v2145 = vpack.c.b16 %v1917, %v1905
        %v2146 = vpack.c.b16 %v1918, %v1906
        %v2147 = vpack.c.b16 %v1919, %v1907
        %v2148 = vpack.c.b16 %v1920, %v1908
        %v2149 = vpack.c.b16 %v1921, %v1909
        %v2150 = vpack.c.b16 %v1922, %v1910
        %v2151 = vpack.c.b16 %v1923, %v1911
        %v2152 = vpack.c.b16 %v1924, %v1912
        %v2153 = vpack.c.b16 %v1925, %v1913
        %v2154 = vpack.c.b16 %v1926, %v1914
        %v2155 = vpack.c.b16 %v1927, %v1915
        %v2156 = vpack.c.b16 %v1940, %v1928
        %v2157 = vpack.c.b16 %v1941, %v1929
        %v2158 = vpack.c.b16 %v1942, %v1930
        %v2159 = vpack.c.b16 %v1943, %v1931
        %v2160 = vpack.c.b16 %v1944, %v1932
        %v2161 = vpack.c.b16 %v1945, %v1933
        %v2162 = vpack.c.b16 %v1946, %v1934
        %v2163 = vpack.c.b16 %v1947, %v1935
        %v2164 = vpack.c.b16 %v1948, %v1936
        %v2165 = vpack.c.b16 %v1949, %v1937
        %v2166 = vpack.c.b16 %v1950, %v1938
        %v2167 = vpack.c.b16 %v1951, %v1939
        %v2168 = vpack.c.b16 %v1964, %v1952
        %v2169 = vpack.c.b16 %v1965, %v1953
        %v2170 = vpack.c.b16 %v1966, %v1954
        %v2171 = vpack.c.b16 %v1967, %v1955
        %v2172 = vpack.c.b16 %v1968, %v1956
        %v2173 = vpack.c.b16 %v1969, %v1957
        %v2174 = vpack.c.b16 %v1970, %v1958
        %v2175 = vpack.c.b16 %v1971, %v1959
        %v2176 = vpack.c.b16 %v1972, %v1960
        %v2177 = vpack.c.b16 %v1973, %v1961
        %v2178 = vpack.c.b16 %v1974, %v1962
        %v2179 = vpack.c.b16 %v1975, %v1963
        %v2180 = vpack.c.b16 %v1988, %v1976
        %v2181 = vpack.c.b16 %v1989, %v1977
        %v2182 = vpack.c.b16 %v1990, %v1978
        %v2183 = vpack.c.b16 %v1991, %v1979
        %v2184 = vpack.c.b16 %v1992, %v1980
        %v2185 = vpack.c.b16 %v1993, %v1981
        %v2186 = vpack.c.b16 %v1994, %v1982
        %v2187 = vpack.c.b16 %v1995, %v1983
        %v2188 = vpack.c.b16 %v1996, %v1984
        %v2189 = vpack.c.b16 %v1997, %v1985
        %v2190 = vpack.c.b16 %v1998, %v1986
        %v2191 = vpack.c.b16 %v1999, %v1987
        %v2192 = vpack.c.b16 %v2012, %v2000
        %v2193 = vpack.c.b16 %v2013, %v2001
        %v2194 = vpack.c.b16 %v2014, %v2002
        %v2195 = vpack.c.b16 %v2015, %v2003
        %v2196 = vpack.c.b16 %v2016, %v2004
        %v2197 = vpack.c.b16 %v2017, %v2005
        %v2198 = vpack.c.b16 %v2018, %v2006
        %v2199 = vpack.c.b16 %v2019, %v2007
        %v2200 = vpack.c.b16 %v2020, %v2008
        %v2201 = vpack.c.b16 %v2021, %v2009
        %v2202 = vpack.c.b16 %v2022, %v2010
        %v2203 = vpack.c.b16 %v2023, %v2011
        %v2204 = vpack.c.b16 %v2036, %v2024
        %v2205 = vpack.c.b16 %v2037, %v2025
        %v2206 = vpack.c.b16 %v2038, %v2026
        %v2207 = vpack.c.b16 %v2039, %v2027
        %v2208 = vpack.c.b16 %v2040, %v2028
        %v2209 = vpack.c.b16 %v2041, %v2029
        %v2210 = vpack.c.b16 %v2042, %v2030
        %v2211 = vpack.c.b16 %v2043, %v2031
        %v2212 = vpack.c.b16 %v2044, %v2032
        %v2213 = vpack.c.b16 %v2045, %v2033
        %v2214 = vpack.c.b16 %v2046, %v2034
        %v2215 = vpack.c.b16 %v2047, %v2035
        %v2216 = vpack.c.b16 %v2060, %v2048
        %v2217 = vpack.c.b16 %v2061, %v2049
        %v2218 = vpack.c.b16 %v2062, %v2050
        %v2219 = vpack.c.b16 %v2063, %v2051
        %v2220 = vpack.c.b16 %v2064, %v2052
        %v2221 = vpack.c.b16 %v2065, %v2053
        %v2222 = vpack.c.b16 %v2066, %v2054
        %v2223 = vpack.c.b16 %v2067, %v2055
        %v2224 = vpack.c.b16 %v2068, %v2056
        %v2225 = vpack.c.b16 %v2069, %v2057
        %v2226 = vpack.c.b16 %v2070, %v2058
        %v2227 = vpack.c.b16 %v2071, %v2059
        %v2228 = vpack.c.b16 %v2084, %v2072
        %v2229 = vpack.c.b16 %v2085, %v2073
        %v2230 = vpack.c.b16 %v2086, %v2074
        %v2231 = vpack.c.b16 %v2087, %v2075
        %v2232 = vpack.c.b16 %v2088, %v2076
        %v2233 = vpack.c.b16 %v2089, %v2077
        %v2234 = vpack.c.b16 %v2090, %v2078
        %v2235 = vpack.c.b16 %v2091, %v2079
        %v2236 = vpack.c.b16 %v2092, %v2080
        %v2237 = vpack.c.b16 %v2093, %v2081
        %v2238 = vpack.c.b16 %v2094, %v2082
        %v2239 = vpack.c.b16 %v2095, %v2083
        %v2960 = vunpack.c.l.b16 %v1088
        %v2961 = vunpack.c.h.b16 %v1088
        %v2962 = vunpack.c.l.b16 %v1089
        %v2963 = vunpack.c.h.b16 %v1089
        %v2964 = vunpack.c.l.b16 %v1090
        %v2965 = vunpack.c.h.b16 %v1090
        %v2966 = vunpack.c.l.b16 %v1091
        %v2967 = vunpack.c.h.b16 %v1091
        %v2968 = vunpack.c.l.b16 %v1092
        %v2969 = vunpack.c.h.b16 %v1092
        %v2970 = vunpack.c.l.b16 %v1093
        %v2971 = vunpack.c.h.b16 %v1093
        %v2972 = vunpack.c.l.b16 %v1094
        %v2973 = vunpack.c.h.b16 %v1094
        %v2974 = vunpack.c.l.b16 %v1095
        %v2975 = vunpack.c.h.b16 %v1095
        %v2976 = vunpack.c.l.b16 %v1096
        %v2977 = vunpack.c.h.b16 %v1096
        %v2978 = vunpack.c.l.b16 %v1097
        %v2979 = vunpack.c.h.b16 %v1097
        %v2980 = vunpack.c.l.b16 %v1098
        %v2981 = vunpack.c.h.b16 %v1098
        %v2982 = vunpack.c.l.b16 %v1099
        %v2983 = vunpack.c.h.b16 %v1099
        %v2984 = vunpack.c.l.b16 %v1100
        %v2985 = vunpack.c.h.b16 %v1100
        %v2986 = vunpack.c.l.b16 %v1101
        %v2987 = vunpack.c.h.b16 %v1101
        %v2988 = vunpack.c.l.b16 %v1102
        %v2989 = vunpack.c.h.b16 %v1102
        %v2990 = vunpack.c.l.b16 %v1103
        %v2991 = vunpack.c.h.b16 %v1103
        %v2992 = vunpack.c.l.b16 %v1104
        %v2993 = vunpack.c.h.b16 %v1104
        %v2994 = vunpack.c.l.b16 %v1105
        %v2995 = vunpack.c.h.b16 %v1105
        %v2996 = vunpack.c.l.b16 %v1106
        %v2997 = vunpack.c.h.b16 %v1106
        %v2998 = vunpack.c.l.b16 %v1107
        %v2999 = vunpack.c.h.b16 %v1107
        %v3000 = vunpack.c.l.b16 %v1108
        %v3001 = vunpack.c.h.b16 %v1108
        %v3002 = vunpack.c.l.b16 %v1109
        %v3003 = vunpack.c.h.b16 %v1109
        %v3004 = vunpack.c.l.b16 %v1110
        %v3005 = vunpack.c.h.b16 %v1110
        %v3006 = vunpack.c.l.b16 %v1111
        %v3007 = vunpack.c.h.b16 %v1111
        %v3008 = vunpack.c.l.b16 %v1112
        %v3009 = vunpack.c.h.b16 %v1112
        %v3010 = vunpack.c.l.b16 %v1113
        %v3011 = vunpack.c.h.b16 %v1113
        %v3012 = vunpack.c.l.b16 %v1114
        %v3013 = vunpack.c.h.b16 %v1114
        %v3014 = vunpack.c.l.b16 %v1115
        %v3015 = vunpack.c.h.b16 %v1115
        %v3016 = vunpack.c.l.b16 %v1116
        %v3017 = vunpack.c.h.b16 %v1116
        %v3018 = vunpack.c.l.b16 %v1117
        %v3019 = vunpack.c.h.b16 %v1117
        %v3020 = vunpack.c.l.b16 %v1118
        %v3021 = vunpack.c.h.b16 %v1118
        %v3022 = vunpack.c.l.b16 %v1119
        %v3023 = vunpack.c.h.b16 %v1119
        %v3024 = vunpack.c.l.b16 %v1120
        %v3025 = vunpack.c.h.b16 %v1120
        %v3026 = vunpack.c.l.b16 %v1121
        %v3027 = vunpack.c.h.b16 %v1121
        %v3028 = vunpack.c.l.b16 %v1122
        %v3029 = vunpack.c.h.b16 %v1122
        %v3030 = vunpack.c.l.b16 %v1123
        %v3031 = vunpack.c.h.b16 %v1123
        %v3032 = vunpack.c.l.b16 %v1124
        %v3033 = vunpack.c.h.b16 %v1124
        %v3034 = vunpack.c.l.b16 %v1125
        %v3035 = vunpack.c.h.b16 %v1125
        %v3036 = vunpack.c.l.b16 %v1126
        %v3037 = vunpack.c.h.b16 %v1126
        %v3038 = vunpack.c.l.b16 %v1127
        %v3039 = vunpack.c.h.b16 %v1127
        %v3040 = vunpack.c.l.b16 %v1128
        %v3041 = vunpack.c.h.b16 %v1128
        %v3042 = vunpack.c.l.b16 %v1129
        %v3043 = vunpack.c.h.b16 %v1129
        %v3044 = vunpack.c.l.b16 %v1130
        %v3045 = vunpack.c.h.b16 %v1130
        %v3046 = vunpack.c.l.b16 %v1131
        %v3047 = vunpack.c.h.b16 %v1131
        %v3048 = vunpack.c.l.b16 %v1132
        %v3049 = vunpack.c.h.b16 %v1132
        %v3050 = vunpack.c.l.b16 %v1133
        %v3051 = vunpack.c.h.b16 %v1133
        %v3052 = vunpack.c.l.b16 %v1134
        %v3053 = vunpack.c.h.b16 %v1134
        %v3054 = vunpack.c.l.b16 %v1135
        %v3055 = vunpack.c.h.b16 %v1135
        %v3056 = vunpack.c.l.b16 %v1136
        %v3057 = vunpack.c.h.b16 %v1136
        %v3058 = vunpack.c.l.b16 %v1137
        %v3059 = vunpack.c.h.b16 %v1137
        %v3060 = vunpack.c.l.b16 %v1138
        %v3061 = vunpack.c.h.b16 %v1138
        %v3062 = vunpack.c.l.b16 %v1139
        %v3063 = vunpack.c.h.b16 %v1139
        %v3064 = vunpack.c.l.b16 %v1140
        %v3065 = vunpack.c.h.b16 %v1140
        %v3066 = vunpack.c.l.b16 %v1141
        %v3067 = vunpack.c.h.b16 %v1141
        %v3068 = vunpack.c.l.b16 %v1142
        %v3069 = vunpack.c.h.b16 %v1142
        %v3070 = vunpack.c.l.b16 %v1143
        %v3071 = vunpack.c.h.b16 %v1143
        %v3072 = vunpack.c.l.b16 %v1144
        %v3073 = vunpack.c.h.b16 %v1144
        %v3074 = vunpack.c.l.b16 %v1145
        %v3075 = vunpack.c.h.b16 %v1145
        %v3076 = vunpack.c.l.b16 %v1146
        %v3077 = vunpack.c.h.b16 %v1146
        %v3078 = vunpack.c.l.b16 %v1147
        %v3079 = vunpack.c.h.b16 %v1147
        %v3080 = vunpack.c.l.b16 %v1148
        %v3081 = vunpack.c.h.b16 %v1148
        %v3082 = vunpack.c.l.b16 %v1149
        %v3083 = vunpack.c.h.b16 %v1149
        %v3084 = vunpack.c.l.b16 %v1150
        %v3085 = vunpack.c.h.b16 %v1150
        %v3086 = vunpack.c.l.b16 %v1151
        %v3087 = vunpack.c.h.b16 %v1151
        %v3088 = vunpack.c.l.b16 %v1152
        %v3089 = vunpack.c.h.b16 %v1152
        %v3090 = vunpack.c.l.b16 %v1153
        %v3091 = vunpack.c.h.b16 %v1153
        %v3092 = vunpack.c.l.b16 %v1154
        %v3093 = vunpack.c.h.b16 %v1154
        %v3094 = vunpack.c.l.b16 %v1155
        %v3095 = vunpack.c.h.b16 %v1155
        %v3096 = vunpack.c.l.b16 %v1156
        %v3097 = vunpack.c.h.b16 %v1156
        %v3098 = vunpack.c.l.b16 %v1157
        %v3099 = vunpack.c.h.b16 %v1157
        %v3100 = vunpack.c.l.b16 %v1158
        %v3101 = vunpack.c.h.b16 %v1158
        %v3102 = vunpack.c.l.b16 %v1159
        %v3103 = vunpack.c.h.b16 %v1159
        %v3104 = vunpack.c.l.b16 %v1160
        %v3105 = vunpack.c.h.b16 %v1160
        %v3106 = vunpack.c.l.b16 %v1161
        %v3107 = vunpack.c.h.b16 %v1161
        %v3108 = vunpack.c.l.b16 %v1162
        %v3109 = vunpack.c.h.b16 %v1162
        %v3110 = vunpack.c.l.b16 %v1163
        %v3111 = vunpack.c.h.b16 %v1163
        %v3112 = vunpack.c.l.b16 %v1164
        %v3113 = vunpack.c.h.b16 %v1164
        %v3114 = vunpack.c.l.b16 %v1165
        %v3115 = vunpack.c.h.b16 %v1165
        %v3116 = vunpack.c.l.b16 %v1166
        %v3117 = vunpack.c.h.b16 %v1166
        %v3118 = vunpack.c.l.b16 %v1167
        %v3119 = vunpack.c.h.b16 %v1167
        %v3120 = vunpack.c.l.b16 %v1168
        %v3121 = vunpack.c.h.b16 %v1168
        %v3122 = vunpack.c.l.b16 %v1169
        %v3123 = vunpack.c.h.b16 %v1169
        %v3124 = vunpack.c.l.b16 %v1170
        %v3125 = vunpack.c.h.b16 %v1170
        %v3126 = vunpack.c.l.b16 %v1171
        %v3127 = vunpack.c.h.b16 %v1171
        %v3128 = vunpack.c.l.b16 %v1172
        %v3129 = vunpack.c.h.b16 %v1172
        %v3130 = vunpack.c.l.b16 %v1173
        %v3131 = vunpack.c.h.b16 %v1173
        %v3132 = vunpack.c.l.b16 %v1174
        %v3133 = vunpack.c.h.b16 %v1174
        %v3134 = vunpack.c.l.b16 %v1175
        %v3135 = vunpack.c.h.b16 %v1175
        %v3136 = vunpack.c.l.b16 %v1176
        %v3137 = vunpack.c.h.b16 %v1176
        %v3138 = vunpack.c.l.b16 %v1177
        %v3139 = vunpack.c.h.b16 %v1177
        %v3140 = vunpack.c.l.b16 %v1178
        %v3141 = vunpack.c.h.b16 %v1178
        %v3142 = vunpack.c.l.b16 %v1179
        %v3143 = vunpack.c.h.b16 %v1179
        %v3144 = vunpack.c.l.b16 %v1180
        %v3145 = vunpack.c.h.b16 %v1180
        %v3146 = vunpack.c.l.b16 %v1181
        %v3147 = vunpack.c.h.b16 %v1181
        %v3148 = vunpack.c.l.b16 %v1182
        %v3149 = vunpack.c.h.b16 %v1182
        %v3150 = vunpack.c.l.b16 %v1183
        %v3151 = vunpack.c.h.b16 %v1183
        %v3152 = vunpack.c.l.b16 %v1184
        %v3153 = vunpack.c.h.b16 %v1184
        %v3154 = vunpack.c.l.b16 %v1185
        %v3155 = vunpack.c.h.b16 %v1185
        %v3156 = vunpack.c.l.b16 %v1186
        %v3157 = vunpack.c.h.b16 %v1186
        %v3158 = vunpack.c.l.b16 %v1187
        %v3159 = vunpack.c.h.b16 %v1187
        %v3160 = vunpack.c.l.b16 %v1188
        %v3161 = vunpack.c.h.b16 %v1188
        %v3162 = vunpack.c.l.b16 %v1189
        %v3163 = vunpack.c.h.b16 %v1189
        %v3164 = vunpack.c.l.b16 %v1190
        %v3165 = vunpack.c.h.b16 %v1190
        %v3166 = vunpack.c.l.b16 %v1191
        %v3167 = vunpack.c.h.b16 %v1191
        %v3168 = vunpack.c.l.b16 %v1192
        %v3169 = vunpack.c.h.b16 %v1192
        %v3170 = vunpack.c.l.b16 %v1193
        %v3171 = vunpack.c.h.b16 %v1193
        %v3172 = vunpack.c.l.b16 %v1194
        %v3173 = vunpack.c.h.b16 %v1194
        %v3174 = vunpack.c.l.b16 %v1195
        %v3175 = vunpack.c.h.b16 %v1195
        %v3176 = vunpack.c.l.b16 %v1196
        %v3177 = vunpack.c.h.b16 %v1196
        %v3178 = vunpack.c.l.b16 %v1197
        %v3179 = vunpack.c.h.b16 %v1197
        %v3180 = vunpack.c.l.b16 %v1198
        %v3181 = vunpack.c.h.b16 %v1198
        %v3182 = vunpack.c.l.b16 %v1199
        %v3183 = vunpack.c.h.b16 %v1199
        %v3184 = vunpack.c.l.b16 %v1200
        %v3185 = vunpack.c.h.b16 %v1200
        %v3186 = vunpack.c.l.b16 %v1201
        %v3187 = vunpack.c.h.b16 %v1201
        %v3188 = vunpack.c.l.b16 %v1202
        %v3189 = vunpack.c.h.b16 %v1202
        %v3190 = vunpack.c.l.b16 %v1203
        %v3191 = vunpack.c.h.b16 %v1203
        %v3192 = vunpack.c.l.b16 %v1204
        %v3193 = vunpack.c.h.b16 %v1204
        %v3194 = vunpack.c.l.b16 %v1205
        %v3195 = vunpack.c.h.b16 %v1205
        %v3196 = vunpack.c.l.b16 %v1206
        %v3197 = vunpack.c.h.b16 %v1206
        %v3198 = vunpack.c.l.b16 %v1207
        %v3199 = vunpack.c.h.b16 %v1207
        %v3200 = vunpack.c.l.b16 %v1208
        %v3201 = vunpack.c.h.b16 %v1208
        %v3202 = vunpack.c.l.b16 %v1209
        %v3203 = vunpack.c.h.b16 %v1209
        %v3204 = vunpack.c.l.b16 %v1210
        %v3205 = vunpack.c.h.b16 %v1210
        %v3206 = vunpack.c.l.b16 %v1211
        %v3207 = vunpack.c.h.b16 %v1211
        %v3208 = vunpack.c.l.b16 %v1212
        %v3209 = vunpack.c.h.b16 %v1212
        %v3210 = vunpack.c.l.b16 %v1213
        %v3211 = vunpack.c.h.b16 %v1213
        %v3212 = vunpack.c.l.b16 %v1214
        %v3213 = vunpack.c.h.b16 %v1214
        %v3214 = vunpack.c.l.b16 %v1215
        %v3215 = vunpack.c.h.b16 %v1215
        %v3216 = vunpack.c.l.b16 %v1216
        %v3217 = vunpack.c.h.b16 %v1216
        %v3218 = vunpack.c.l.b16 %v1217
        %v3219 = vunpack.c.h.b16 %v1217
        %v3220 = vunpack.c.l.b16 %v1218
        %v3221 = vunpack.c.h.b16 %v1218
        %v3222 = vunpack.c.l.b16 %v1219
        %v3223 = vunpack.c.h.b16 %v1219
        %v3224 = vunpack.c.l.b16 %v1220
        %v3225 = vunpack.c.h.b16 %v1220
        %v3226 = vunpack.c.l.b16 %v1221
        %v3227 = vunpack.c.h.b16 %v1221
        %v3228 = vunpack.c.l.b16 %v1222
        %v3229 = vunpack.c.h.b16 %v1222
        %v3230 = vunpack.c.l.b16 %v1223
        %v3231 = vunpack.c.h.b16 %v1223
        %v3232 = vunpack.c.l.b16 %v1224
        %v3233 = vunpack.c.h.b16 %v1224
        %v3234 = vunpack.c.l.b16 %v1225
        %v3235 = vunpack.c.h.b16 %v1225
        %v3236 = vunpack.c.l.b16 %v1226
        %v3237 = vunpack.c.h.b16 %v1226
        %v3238 = vunpack.c.l.b16 %v1227
        %v3239 = vunpack.c.h.b16 %v1227
        %v3240 = vunpack.c.l.b16 %v1228
        %v3241 = vunpack.c.h.b16 %v1228
        %v3242 = vunpack.c.l.b16 %v1229
        %v3243 = vunpack.c.h.b16 %v1229
        %v3244 = vunpack.c.l.b16 %v1230
        %v3245 = vunpack.c.h.b16 %v1230
        %v3246 = vunpack.c.l.b16 %v1231
        %v3247 = vunpack.c.h.b16 %v1231
        %v3248 = vunpack.c.l.b16 %v1232
        %v3249 = vunpack.c.h.b16 %v1232
        %v3250 = vunpack.c.l.b16 %v1233
        %v3251 = vunpack.c.h.b16 %v1233
        %v3252 = vunpack.c.l.b16 %v1234
        %v3253 = vunpack.c.h.b16 %v1234
        %v3254 = vunpack.c.l.b16 %v1235
        %v3255 = vunpack.c.h.b16 %v1235
        %v3256 = vunpack.c.l.b16 %v1236
        %v3257 = vunpack.c.h.b16 %v1236
        %v3258 = vunpack.c.l.b16 %v1237
        %v3259 = vunpack.c.h.b16 %v1237
        %v3260 = vunpack.c.l.b16 %v1238
        %v3261 = vunpack.c.h.b16 %v1238
        %v3262 = vunpack.c.l.b16 %v1239
        %v3263 = vunpack.c.h.b16 %v1239
        %v3264 = vunpack.c.l.b16 %v1240
        %v3265 = vunpack.c.h.b16 %v1240
        %v3266 = vunpack.c.l.b16 %v1241
        %v3267 = vunpack.c.h.b16 %v1241
        %v3268 = vunpack.c.l.b16 %v1242
        %v3269 = vunpack.c.h.b16 %v1242
        %v3270 = vunpack.c.l.b16 %v1243
        %v3271 = vunpack.c.h.b16 %v1243
        %v3272 = vunpack.c.l.b16 %v1244
        %v3273 = vunpack.c.h.b16 %v1244
        %v3274 = vunpack.c.l.b16 %v1245
        %v3275 = vunpack.c.h.b16 %v1245
        %v3276 = vunpack.c.l.b16 %v1246
        %v3277 = vunpack.c.h.b16 %v1246
        %v3278 = vunpack.c.l.b16 %v1247
        %v3279 = vunpack.c.h.b16 %v1247
        %v3280 = vunpack.c.l.b16 %v1248
        %v3281 = vunpack.c.h.b16 %v1248
        %v3282 = vunpack.c.l.b16 %v1249
        %v3283 = vunpack.c.h.b16 %v1249
        %v3284 = vunpack.c.l.b16 %v1250
        %v3285 = vunpack.c.h.b16 %v1250
        %v3286 = vunpack.c.l.b16 %v1251
        %v3287 = vunpack.c.h.b16 %v1251
        %v3288 = vunpack.c.l.b16 %v1252
        %v3289 = vunpack.c.h.b16 %v1252
        %v3290 = vunpack.c.l.b16 %v1253
        %v3291 = vunpack.c.h.b16 %v1253
        %v3292 = vunpack.c.l.b16 %v1254
        %v3293 = vunpack.c.h.b16 %v1254
        %v3294 = vunpack.c.l.b16 %v1255
        %v3295 = vunpack.c.h.b16 %v1255
        %v3296 = vunpack.c.l.b16 %v1256
        %v3297 = vunpack.c.h.b16 %v1256
        %v3298 = vunpack.c.l.b16 %v1257
        %v3299 = vunpack.c.h.b16 %v1257
        %v3300 = vunpack.c.l.b16 %v1258
        %v3301 = vunpack.c.h.b16 %v1258
        %v3302 = vunpack.c.l.b16 %v1259
        %v3303 = vunpack.c.h.b16 %v1259
        %v3304 = vunpack.c.l.b16 %v1260
        %v3305 = vunpack.c.h.b16 %v1260
        %v3306 = vunpack.c.l.b16 %v1261
        %v3307 = vunpack.c.h.b16 %v1261
        %v3308 = vunpack.c.l.b16 %v1262
        %v3309 = vunpack.c.h.b16 %v1262
        %v3310 = vunpack.c.l.b16 %v1263
        %v3311 = vunpack.c.h.b16 %v1263
        %v3312 = vunpack.c.l.b16 %v1264
        %v3313 = vunpack.c.h.b16 %v1264
        %v3314 = vunpack.c.l.b16 %v1265
        %v3315 = vunpack.c.h.b16 %v1265
        %v3316 = vunpack.c.l.b16 %v1266
        %v3317 = vunpack.c.h.b16 %v1266
        %v3318 = vunpack.c.l.b16 %v1267
        %v3319 = vunpack.c.h.b16 %v1267
        %v3320 = vunpack.c.l.b16 %v1268
        %v3321 = vunpack.c.h.b16 %v1268
        %v3322 = vunpack.c.l.b16 %v1269
        %v3323 = vunpack.c.h.b16 %v1269
        %v3324 = vunpack.c.l.b16 %v1270
        %v3325 = vunpack.c.h.b16 %v1270
        %v3326 = vunpack.c.l.b16 %v1271
        %v3327 = vunpack.c.h.b16 %v1271
        %v3328 = vunpack.c.l.b16 %v1272
        %v3329 = vunpack.c.h.b16 %v1272
        %v3330 = vunpack.c.l.b16 %v1273
        %v3331 = vunpack.c.h.b16 %v1273
        %v3332 = vunpack.c.l.b16 %v1274
        %v3333 = vunpack.c.h.b16 %v1274
        %v3334 = vunpack.c.l.b16 %v1275
        %v3335 = vunpack.c.h.b16 %v1275
        %v3336 = vunpack.c.l.b16 %v1276
        %v3337 = vunpack.c.h.b16 %v1276
        %v3338 = vunpack.c.l.b16 %v1277
        %v3339 = vunpack.c.h.b16 %v1277
        %v3340 = vunpack.c.l.b16 %v1278
        %v3341 = vunpack.c.h.b16 %v1278
        %v3342 = vunpack.c.l.b16 %v1279
        %v3343 = vunpack.c.h.b16 %v1279
        %v3344 = vunpack.c.l.b16 %v1280
        %v3345 = vunpack.c.h.b16 %v1280
        %v3346 = vunpack.c.l.b16 %v1281
        %v3347 = vunpack.c.h.b16 %v1281
        %v3348 = vunpack.c.l.b16 %v1282
        %v3349 = vunpack.c.h.b16 %v1282
        %v3350 = vunpack.c.l.b16 %v1283
        %v3351 = vunpack.c.h.b16 %v1283
        %v3352 = vunpack.c.l.b16 %v1284
        %v3353 = vunpack.c.h.b16 %v1284
        %v3354 = vunpack.c.l.b16 %v1285
        %v3355 = vunpack.c.h.b16 %v1285
        %v3356 = vunpack.c.l.b16 %v1286
        %v3357 = vunpack.c.h.b16 %v1286
        %v3358 = vunpack.c.l.b16 %v1287
        %v3359 = vunpack.c.h.b16 %v1287
        %v3360 = vunpack.c.l.b16 %v1288
        %v3361 = vunpack.c.h.b16 %v1288
        %v3362 = vunpack.c.l.b16 %v1289
        %v3363 = vunpack.c.h.b16 %v1289
        %v3364 = vunpack.c.l.b16 %v1290
        %v3365 = vunpack.c.h.b16 %v1290
        %v3366 = vunpack.c.l.b16 %v1291
        %v3367 = vunpack.c.h.b16 %v1291
        %v3368 = vunpack.c.l.b16 %v1292
        %v3369 = vunpack.c.h.b16 %v1292
        %v3370 = vunpack.c.l.b16 %v1293
        %v3371 = vunpack.c.h.b16 %v1293
        %v3372 = vunpack.c.l.b16 %v1294
        %v3373 = vunpack.c.h.b16 %v1294
        %v3374 = vunpack.c.l.b16 %v1295
        %v3375 = vunpack.c.h.b16 %v1295
        %v3376 = vunpack.c.l.b16 %v1296
        %v3377 = vunpack.c.h.b16 %v1296
        %v3378 = vunpack.c.l.b16 %v1297
        %v3379 = vunpack.c.h.b16 %v1297
        %v3380 = vunpack.c.l.b16 %v1298
        %v3381 = vunpack.c.h.b16 %v1298
        %v3382 = vunpack.c.l.b16 %v1299
        %v3383 = vunpack.c.h.b16 %v1299
        %v3384 = vunpack.c.l.b16 %v1300
        %v3385 = vunpack.c.h.b16 %v1300
        %v3386 = vunpack.c.l.b16 %v1301
        %v3387 = vunpack.c.h.b16 %v1301
        %v3388 = vunpack.c.l.b16 %v1302
        %v3389 = vunpack.c.h.b16 %v1302
        %v3390 = vunpack.c.l.b16 %v1303
        %v3391 = vunpack.c.h.b16 %v1303
        %v3392 = vunpack.c.l.b16 %v1304
        %v3393 = vunpack.c.h.b16 %v1304
        %v3394 = vunpack.c.l.b16 %v1305
        %v3395 = vunpack.c.h.b16 %v1305
        %v3396 = vunpack.c.l.b16 %v1306
        %v3397 = vunpack.c.h.b16 %v1306
        %v3398 = vunpack.c.l.b16 %v1307
        %v3399 = vunpack.c.h.b16 %v1307
        %v3400 = vunpack.c.l.b16 %v1308
        %v3401 = vunpack.c.h.b16 %v1308
        %v3402 = vunpack.c.l.b16 %v1309
        %v3403 = vunpack.c.h.b16 %v1309
        %v3404 = vunpack.c.l.b16 %v1310
        %v3405 = vunpack.c.h.b16 %v1310
        %v3406 = vunpack.c.l.b16 %v1311
        %v3407 = vunpack.c.h.b16 %v1311
        %v3408 = vunpack.c.l.b16 %v1312
        %v3409 = vunpack.c.h.b16 %v1312
        %v3410 = vunpack.c.l.b16 %v1313
        %v3411 = vunpack.c.h.b16 %v1313
        %v3412 = vunpack.c.l.b16 %v1314
        %v3413 = vunpack.c.h.b16 %v1314
        %v3414 = vunpack.c.l.b16 %v1315
        %v3415 = vunpack.c.h.b16 %v1315
        %v3416 = vunpack.c.l.b16 %v1316
        %v3417 = vunpack.c.h.b16 %v1316
        %v3418 = vunpack.c.l.b16 %v1317
        %v3419 = vunpack.c.h.b16 %v1317
        %v3420 = vunpack.c.l.b16 %v1318
        %v3421 = vunpack.c.h.b16 %v1318
        %v3422 = vunpack.c.l.b16 %v1319
        %v3423 = vunpack.c.h.b16 %v1319
        %v3424 = vunpack.c.l.b16 %v1320
        %v3425 = vunpack.c.h.b16 %v1320
        %v3426 = vunpack.c.l.b16 %v1321
        %v3427 = vunpack.c.h.b16 %v1321
        %v3428 = vunpack.c.l.b16 %v1322
        %v3429 = vunpack.c.h.b16 %v1322
        %v3430 = vunpack.c.l.b16 %v1323
        %v3431 = vunpack.c.h.b16 %v1323
        %v3432 = vunpack.c.l.b16 %v1324
        %v3433 = vunpack.c.h.b16 %v1324
        %v3434 = vunpack.c.l.b16 %v1325
        %v3435 = vunpack.c.h.b16 %v1325
        %v3436 = vunpack.c.l.b16 %v1326
        %v3437 = vunpack.c.h.b16 %v1326
        %v3438 = vunpack.c.l.b16 %v1327
        %v3439 = vunpack.c.h.b16 %v1327
        %v3440 = vunpack.c.l.b16 %v1328
        %v3441 = vunpack.c.h.b16 %v1328
        %v3442 = vunpack.c.l.b16 %v1329
        %v3443 = vunpack.c.h.b16 %v1329
        %v3444 = vunpack.c.l.b16 %v1330
        %v3445 = vunpack.c.h.b16 %v1330
        %v3446 = vunpack.c.l.b16 %v1331
        %v3447 = vunpack.c.h.b16 %v1331
        %v3448 = vunpack.c.l.b16 %v1332
        %v3449 = vunpack.c.h.b16 %v1332
        %v3450 = vunpack.c.l.b16 %v1333
        %v3451 = vunpack.c.h.b16 %v1333
        %v3452 = vunpack.c.l.b16 %v1334
        %v3453 = vunpack.c.h.b16 %v1334
        %v3454 = vunpack.c.l.b16 %v1335
        %v3455 = vunpack.c.h.b16 %v1335
        %v3456 = vunpack.c.l.b16 %v1336
        %v3457 = vunpack.c.h.b16 %v1336
        %v3458 = vunpack.c.l.b16 %v1337
        %v3459 = vunpack.c.h.b16 %v1337
        %v3460 = vunpack.c.l.b16 %v1338
        %v3461 = vunpack.c.h.b16 %v1338
        %v3462 = vunpack.c.l.b16 %v1339
        %v3463 = vunpack.c.h.b16 %v1339
        %v3464 = vunpack.c.l.b16 %v1340
        %v3465 = vunpack.c.h.b16 %v1340
        %v3466 = vunpack.c.l.b16 %v1341
        %v3467 = vunpack.c.h.b16 %v1341
        %v3468 = vunpack.c.l.b16 %v1342
        %v3469 = vunpack.c.h.b16 %v1342
        %v3470 = vunpack.c.l.b16 %v1343
        %v3471 = vunpack.c.h.b16 %v1343
        %v3472 = vunpack.c.l.b16 %v1344
        %v3473 = vunpack.c.h.b16 %v1344
        %v3474 = vunpack.c.l.b16 %v1345
        %v3475 = vunpack.c.h.b16 %v1345
        %v3476 = vunpack.c.l.b16 %v1346
        %v3477 = vunpack.c.h.b16 %v1346
        %v3478 = vunpack.c.l.b16 %v1347
        %v3479 = vunpack.c.h.b16 %v1347
        %v3480 = vunpack.c.l.b16 %v1348
        %v3481 = vunpack.c.h.b16 %v1348
        %v3482 = vunpack.c.l.b16 %v1349
        %v3483 = vunpack.c.h.b16 %v1349
        %v3484 = vunpack.c.l.b16 %v1350
        %v3485 = vunpack.c.h.b16 %v1350
        %v3486 = vunpack.c.l.b16 %v1351
        %v3487 = vunpack.c.h.b16 %v1351
        %v3488 = vunpack.c.l.b16 %v1352
        %v3489 = vunpack.c.h.b16 %v1352
        %v3490 = vunpack.c.l.b16 %v1353
        %v3491 = vunpack.c.h.b16 %v1353
        %v3492 = vunpack.c.l.b16 %v1354
        %v3493 = vunpack.c.h.b16 %v1354
        %v3494 = vunpack.c.l.b16 %v1355
        %v3495 = vunpack.c.h.b16 %v1355
        %v3496 = vunpack.c.l.b16 %v1356
        %v3497 = vunpack.c.h.b16 %v1356
        %v3498 = vunpack.c.l.b16 %v1357
        %v3499 = vunpack.c.h.b16 %v1357
        %v3500 = vunpack.c.l.b16 %v1358
        %v3501 = vunpack.c.h.b16 %v1358
        %v3502 = vunpack.c.l.b16 %v1359
        %v3503 = vunpack.c.h.b16 %v1359
        %v3504 = vunpack.c.l.b16 %v1360
        %v3505 = vunpack.c.h.b16 %v1360
        %v3506 = vunpack.c.l.b16 %v1361
        %v3507 = vunpack.c.h.b16 %v1361
        %v3508 = vunpack.c.l.b16 %v1362
        %v3509 = vunpack.c.h.b16 %v1362
        %v3510 = vunpack.c.l.b16 %v1363
        %v3511 = vunpack.c.h.b16 %v1363
        %v3512 = vunpack.c.l.b16 %v1364
        %v3513 = vunpack.c.h.b16 %v1364
        %v3514 = vunpack.c.l.b16 %v1365
        %v3515 = vunpack.c.h.b16 %v1365
        %v3516 = vunpack.c.l.b16 %v1366
        %v3517 = vunpack.c.h.b16 %v1366
        %v3518 = vunpack.c.l.b16 %v1367
        %v3519 = vunpack.c.h.b16 %v1367
        %v3520 = vunpack.c.l.b16 %v1368
        %v3521 = vunpack.c.h.b16 %v1368
        %v3522 = vunpack.c.l.b16 %v1369
        %v3523 = vunpack.c.h.b16 %v1369
        %v3524 = vunpack.c.l.b16 %v1370
        %v3525 = vunpack.c.h.b16 %v1370
        %v3526 = vunpack.c.l.b16 %v1371
        %v3527 = vunpack.c.h.b16 %v1371
        %v3528 = vunpack.c.l.b16 %v1372
        %v3529 = vunpack.c.h.b16 %v1372
        %v3530 = vunpack.c.l.b16 %v1373
        %v3531 = vunpack.c.h.b16 %v1373
        %v3532 = vunpack.c.l.b16 %v1374
        %v3533 = vunpack.c.h.b16 %v1374
        %v3534 = vunpack.c.l.b16 %v1375
        %v3535 = vunpack.c.h.b16 %v1375
        %v3536 = vunpack.c.l.b16 %v1376
        %v3537 = vunpack.c.h.b16 %v1376
        %v3538 = vunpack.c.l.b16 %v1377
        %v3539 = vunpack.c.h.b16 %v1377
        %v3540 = vunpack.c.l.b16 %v1378
        %v3541 = vunpack.c.h.b16 %v1378
        %v3542 = vunpack.c.l.b16 %v1379
        %v3543 = vunpack.c.h.b16 %v1379
        %v3544 = vunpack.c.l.b16 %v1380
        %v3545 = vunpack.c.h.b16 %v1380
        %v3546 = vunpack.c.l.b16 %v1381
        %v3547 = vunpack.c.h.b16 %v1381
        %v3548 = vunpack.c.l.b16 %v1382
        %v3549 = vunpack.c.h.b16 %v1382
        %v3550 = vunpack.c.l.b16 %v1383
        %v3551 = vunpack.c.h.b16 %v1383
        %v3552 = vunpack.c.l.b16 %v1384
        %v3553 = vunpack.c.h.b16 %v1384
        %v3554 = vunpack.c.l.b16 %v1385
        %v3555 = vunpack.c.h.b16 %v1385
        %v3556 = vunpack.c.l.b16 %v1386
        %v3557 = vunpack.c.h.b16 %v1386
        %v3558 = vunpack.c.l.b16 %v1387
        %v3559 = vunpack.c.h.b16 %v1387
        %v3560 = vunpack.c.l.b16 %v1388
        %v3561 = vunpack.c.h.b16 %v1388
        %v3562 = vunpack.c.l.b16 %v1389
        %v3563 = vunpack.c.h.b16 %v1389
        %v3564 = vunpack.c.l.b16 %v1390
        %v3565 = vunpack.c.h.b16 %v1390
        %v3566 = vunpack.c.l.b16 %v1391
        %v3567 = vunpack.c.h.b16 %v1391
        %v3568 = vunpack.c.l.b16 %v1392
        %v3569 = vunpack.c.h.b16 %v1392
        %v3570 = vunpack.c.l.b16 %v1393
        %v3571 = vunpack.c.h.b16 %v1393
        %v3572 = vunpack.c.l.b16 %v1394
        %v3573 = vunpack.c.h.b16 %v1394
        %v3574 = vunpack.c.l.b16 %v1395
        %v3575 = vunpack.c.h.b16 %v1395
        %v3576 = vunpack.c.l.b16 %v1396
        %v3577 = vunpack.c.h.b16 %v1396
        %v3578 = vunpack.c.l.b16 %v1397
        %v3579 = vunpack.c.h.b16 %v1397
        %v3580 = vunpack.c.l.b16 %v1398
        %v3581 = vunpack.c.h.b16 %v1398
        %v3582 = vunpack.c.l.b16 %v1399
        %v3583 = vunpack.c.h.b16 %v1399
        %v3584 = vunpack.c.l.b16 %v1400
        %v3585 = vunpack.c.h.b16 %v1400
        %v3586 = vunpack.c.l.b16 %v1401
        %v3587 = vunpack.c.h.b16 %v1401
        %v3588 = vunpack.c.l.b16 %v1402
        %v3589 = vunpack.c.h.b16 %v1402
        %v3590 = vunpack.c.l.b16 %v1403
        %v3591 = vunpack.c.h.b16 %v1403
        %v3592 = vunpack.c.l.b16 %v1404
        %v3593 = vunpack.c.h.b16 %v1404
        %v3594 = vunpack.c.l.b16 %v1405
        %v3595 = vunpack.c.h.b16 %v1405
        %v3596 = vunpack.c.l.b16 %v1406
        %v3597 = vunpack.c.h.b16 %v1406
        %v3598 = vunpack.c.l.b16 %v1407
        %v3599 = vunpack.c.h.b16 %v1407
        %v3600 = vunpack.c.l.b16 %v1408
        %v3601 = vunpack.c.h.b16 %v1408
        %v3602 = vunpack.c.l.b16 %v1409
        %v3603 = vunpack.c.h.b16 %v1409
        %v3604 = vunpack.c.l.b16 %v1410
        %v3605 = vunpack.c.h.b16 %v1410
        %v3606 = vunpack.c.l.b16 %v1411
        %v3607 = vunpack.c.h.b16 %v1411
        %v3608 = vunpack.c.l.b16 %v1412
        %v3609 = vunpack.c.h.b16 %v1412
        %v3610 = vunpack.c.l.b16 %v1413
        %v3611 = vunpack.c.h.b16 %v1413
        %v3612 = vunpack.c.l.b16 %v1414
        %v3613 = vunpack.c.h.b16 %v1414
        %v3614 = vunpack.c.l.b16 %v1415
        %v3615 = vunpack.c.h.b16 %v1415
        %v3616 = vunpack.c.l.b16 %v1416
        %v3617 = vunpack.c.h.b16 %v1416
        %v3618 = vunpack.c.l.b16 %v1417
        %v3619 = vunpack.c.h.b16 %v1417
        %v3620 = vunpack.c.l.b16 %v1418
        %v3621 = vunpack.c.h.b16 %v1418
        %v3622 = vunpack.c.l.b16 %v1419
        %v3623 = vunpack.c.h.b16 %v1419
        %v3624 = vunpack.c.l.b16 %v1420
        %v3625 = vunpack.c.h.b16 %v1420
        %v3626 = vunpack.c.l.b16 %v1421
        %v3627 = vunpack.c.h.b16 %v1421
        %v3628 = vunpack.c.l.b16 %v1422
        %v3629 = vunpack.c.h.b16 %v1422
        %v3630 = vunpack.c.l.b16 %v1423
        %v3631 = vunpack.c.h.b16 %v1423
        %v3632 = vunpack.c.l.b16 %v1424
        %v3633 = vunpack.c.h.b16 %v1424
        %v3634 = vunpack.c.l.b16 %v1425
        %v3635 = vunpack.c.h.b16 %v1425
        %v3636 = vunpack.c.l.b16 %v1426
        %v3637 = vunpack.c.h.b16 %v1426
        %v3638 = vunpack.c.l.b16 %v1427
        %v3639 = vunpack.c.h.b16 %v1427
        %v3640 = vunpack.c.l.b16 %v1428
        %v3641 = vunpack.c.h.b16 %v1428
        %v3642 = vunpack.c.l.b16 %v1429
        %v3643 = vunpack.c.h.b16 %v1429
        %v3644 = vunpack.c.l.b16 %v1430
        %v3645 = vunpack.c.h.b16 %v1430
        %v3646 = vunpack.c.l.b16 %v1431
        %v3647 = vunpack.c.h.b16 %v1431
        %v3648 = vunpack.c.l.b16 %v1432
        %v3649 = vunpack.c.h.b16 %v1432
        %v3650 = vunpack.c.l.b16 %v1433
        %v3651 = vunpack.c.h.b16 %v1433
        %v3652 = vunpack.c.l.b16 %v1434
        %v3653 = vunpack.c.h.b16 %v1434
        %v3654 = vunpack.c.l.b16 %v1435
        %v3655 = vunpack.c.h.b16 %v1435
        %v3656 = vunpack.c.l.b16 %v1436
        %v3657 = vunpack.c.h.b16 %v1436
        %v3658 = vunpack.c.l.b16 %v1437
        %v3659 = vunpack.c.h.b16 %v1437
        %v3660 = vunpack.c.l.b16 %v1438
        %v3661 = vunpack.c.h.b16 %v1438
        %v3662 = vunpack.c.l.b16 %v1439
        %v3663 = vunpack.c.h.b16 %v1439
        %v3664 = vunpack.c.l.b16 %v1440
        %v3665 = vunpack.c.h.b16 %v1440
        %v3666 = vunpack.c.l.b16 %v1441
        %v3667 = vunpack.c.h.b16 %v1441
        %v3668 = vunpack.c.l.b16 %v1442
        %v3669 = vunpack.c.h.b16 %v1442
        %v3670 = vunpack.c.l.b16 %v1443
        %v3671 = vunpack.c.h.b16 %v1443
        %v3672 = vunpack.c.l.b16 %v1444
        %v3673 = vunpack.c.h.b16 %v1444
        %v3674 = vunpack.c.l.b16 %v1445
        %v3675 = vunpack.c.h.b16 %v1445
        %v3676 = vunpack.c.l.b16 %v1446
        %v3677 = vunpack.c.h.b16 %v1446
        %v3678 = vunpack.c.l.b16 %v1447
        %v3679 = vunpack.c.h.b16 %v1447
        %v3680 = vunpack.c.l.b16 %v1448
        %v3681 = vunpack.c.h.b16 %v1448
        %v3682 = vunpack.c.l.b16 %v1449
        %v3683 = vunpack.c.h.b16 %v1449
        %v3684 = vunpack.c.l.b16 %v1450
        %v3685 = vunpack.c.h.b16 %v1450
        %v3686 = vunpack.c.l.b16 %v1451
        %v3687 = vunpack.c.h.b16 %v1451
        %v3688 = vunpack.c.l.b16 %v1452
        %v3689 = vunpack.c.h.b16 %v1452
        %v3690 = vunpack.c.l.b16 %v1453
        %v3691 = vunpack.c.h.b16 %v1453
        %v3692 = vunpack.c.l.b16 %v1454
        %v3693 = vunpack.c.h.b16 %v1454
        %v3694 = vunpack.c.l.b16 %v1455
        %v3695 = vunpack.c.h.b16 %v1455
        %v3696 = vunpack.c.l.b16 %v1456
        %v3697 = vunpack.c.h.b16 %v1456
        %v3698 = vunpack.c.l.b16 %v1457
        %v3699 = vunpack.c.h.b16 %v1457
        %v3700 = vunpack.c.l.b16 %v1458
        %v3701 = vunpack.c.h.b16 %v1458
        %v3702 = vunpack.c.l.b16 %v1459
        %v3703 = vunpack.c.h.b16 %v1459
        %v3704 = vunpack.c.l.b16 %v1460
        %v3705 = vunpack.c.h.b16 %v1460
        %v3706 = vunpack.c.l.b16 %v1461
        %v3707 = vunpack.c.h.b16 %v1461
        %v3708 = vunpack.c.l.b16 %v1462
        %v3709 = vunpack.c.h.b16 %v1462
        %v3710 = vunpack.c.l.b16 %v1463
        %v3711 = vunpack.c.h.b16 %v1463
        %v3712 = vunpack.c.l.b16 %v1464
        %v3713 = vunpack.c.h.b16 %v1464
        %v3714 = vunpack.c.l.b16 %v1465
        %v3715 = vunpack.c.h.b16 %v1465
        %v3716 = vunpack.c.l.b16 %v1466
        %v3717 = vunpack.c.h.b16 %v1466
        %v3718 = vunpack.c.l.b16 %v1467
        %v3719 = vunpack.c.h.b16 %v1467
        %v3720 = vunpack.c.l.b16 %v1468
        %v3721 = vunpack.c.h.b16 %v1468
        %v3722 = vunpack.c.l.b16 %v1469
        %v3723 = vunpack.c.h.b16 %v1469
        %v3724 = vunpack.c.l.b16 %v1470
        %v3725 = vunpack.c.h.b16 %v1470
        %v3726 = vunpack.c.l.b16 %v1471
        %v3727 = vunpack.c.h.b16 %v1471
        %v3728 = vunpack.c.l.b16 %v1472
        %v3729 = vunpack.c.h.b16 %v1472
        %v3730 = vunpack.c.l.b16 %v1473
        %v3731 = vunpack.c.h.b16 %v1473
        %v3732 = vunpack.c.l.b16 %v1474
        %v3733 = vunpack.c.h.b16 %v1474
        %v3734 = vunpack.c.l.b16 %v1475
        %v3735 = vunpack.c.h.b16 %v1475
        %v3736 = vunpack.c.l.b16 %v1476
        %v3737 = vunpack.c.h.b16 %v1476
        %v3738 = vunpack.c.l.b16 %v1477
        %v3739 = vunpack.c.h.b16 %v1477
        %v3740 = vunpack.c.l.b16 %v1478
        %v3741 = vunpack.c.h.b16 %v1478
        %v3742 = vunpack.c.l.b16 %v1479
        %v3743 = vunpack.c.h.b16 %v1479
        %v3744 = vunpack.c.l.b16 %v1480
        %v3745 = vunpack.c.h.b16 %v1480
        %v3746 = vunpack.c.l.b16 %v1481
        %v3747 = vunpack.c.h.b16 %v1481
        %v3748 = vunpack.c.l.b16 %v1482
        %v3749 = vunpack.c.h.b16 %v1482
        %v3750 = vunpack.c.l.b16 %v1483
        %v3751 = vunpack.c.h.b16 %v1483
        %v3752 = vunpack.c.l.b16 %v1484
        %v3753 = vunpack.c.h.b16 %v1484
        %v3754 = vunpack.c.l.b16 %v1485
        %v3755 = vunpack.c.h.b16 %v1485
        %v3756 = vunpack.c.l.b16 %v1486
        %v3757 = vunpack.c.h.b16 %v1486
        %v3758 = vunpack.c.l.b16 %v1487
        %v3759 = vunpack.c.h.b16 %v1487
        %v3760 = vunpack.c.l.b16 %v1488
        %v3761 = vunpack.c.h.b16 %v1488
        %v3762 = vunpack.c.l.b16 %v1489
        %v3763 = vunpack.c.h.b16 %v1489
        %v3764 = vunpack.c.l.b16 %v1490
        %v3765 = vunpack.c.h.b16 %v1490
        %v3766 = vunpack.c.l.b16 %v1491
        %v3767 = vunpack.c.h.b16 %v1491
        %v3768 = vunpack.c.l.b16 %v1492
        %v3769 = vunpack.c.h.b16 %v1492
        %v3770 = vunpack.c.l.b16 %v1493
        %v3771 = vunpack.c.h.b16 %v1493
        %v3772 = vunpack.c.l.b16 %v1494
        %v3773 = vunpack.c.h.b16 %v1494
        %v3774 = vunpack.c.l.b16 %v1495
        %v3775 = vunpack.c.h.b16 %v1495
        %v3776 = vunpack.c.l.b16 %v1496
        %v3777 = vunpack.c.h.b16 %v1496
        %v3778 = vunpack.c.l.b16 %v1497
        %v3779 = vunpack.c.h.b16 %v1497
        %v3780 = vunpack.c.l.b16 %v1498
        %v3781 = vunpack.c.h.b16 %v1498
        %v3782 = vunpack.c.l.b16 %v1499
        %v3783 = vunpack.c.h.b16 %v1499
        %v3784 = vunpack.c.l.b16 %v1500
        %v3785 = vunpack.c.h.b16 %v1500
        %v3786 = vunpack.c.l.b16 %v1501
        %v3787 = vunpack.c.h.b16 %v1501
        %v3788 = vunpack.c.l.b16 %v1502
        %v3789 = vunpack.c.h.b16 %v1502
        %v3790 = vunpack.c.l.b16 %v1503
        %v3791 = vunpack.c.h.b16 %v1503
        %v3792 = vunpack.c.l.b16 %v1504
        %v3793 = vunpack.c.h.b16 %v1504
        %v3794 = vunpack.c.l.b16 %v1505
        %v3795 = vunpack.c.h.b16 %v1505
        %v3796 = vunpack.c.l.b16 %v1506
        %v3797 = vunpack.c.h.b16 %v1506
        %v3798 = vunpack.c.l.b16 %v1507
        %v3799 = vunpack.c.h.b16 %v1507
        %v3800 = vunpack.c.l.b16 %v1508
        %v3801 = vunpack.c.h.b16 %v1508
        %v3802 = vunpack.c.l.b16 %v1509
        %v3803 = vunpack.c.h.b16 %v1509
        %v3804 = vunpack.c.l.b16 %v1510
        %v3805 = vunpack.c.h.b16 %v1510
        %v3806 = vunpack.c.l.b16 %v1511
        %v3807 = vunpack.c.h.b16 %v1511
        %v3808 = vunpack.c.l.b16 %v1512
        %v3809 = vunpack.c.h.b16 %v1512
        %v3810 = vunpack.c.l.b16 %v1513
        %v3811 = vunpack.c.h.b16 %v1513
        %v3812 = vunpack.c.l.b16 %v1514
        %v3813 = vunpack.c.h.b16 %v1514
        %v3814 = vunpack.c.l.b16 %v1515
        %v3815 = vunpack.c.h.b16 %v1515
        %v3816 = vunpack.c.l.b16 %v1516
        %v3817 = vunpack.c.h.b16 %v1516
        %v3818 = vunpack.c.l.b16 %v1517
        %v3819 = vunpack.c.h.b16 %v1517
        %v3820 = vunpack.c.l.b16 %v1518
        %v3821 = vunpack.c.h.b16 %v1518
        %v3822 = vunpack.c.l.b16 %v1519
        %v3823 = vunpack.c.h.b16 %v1519
        %v3824 = vunpack.c.l.b16 %v1520
        %v3825 = vunpack.c.h.b16 %v1520
        %v3826 = vunpack.c.l.b16 %v1521
        %v3827 = vunpack.c.h.b16 %v1521
        %v3828 = vunpack.c.l.b16 %v1522
        %v3829 = vunpack.c.h.b16 %v1522
        %v3830 = vunpack.c.l.b16 %v1523
        %v3831 = vunpack.c.h.b16 %v1523
        %v3832 = vunpack.c.l.b16 %v1524
        %v3833 = vunpack.c.h.b16 %v1524
        %v3834 = vunpack.c.l.b16 %v1525
        %v3835 = vunpack.c.h.b16 %v1525
        %v3836 = vunpack.c.l.b16 %v1526
        %v3837 = vunpack.c.h.b16 %v1526
        %v3838 = vunpack.c.l.b16 %v1527
        %v3839 = vunpack.c.h.b16 %v1527
        %v3840 = vunpack.c.l.b16 %v1528
        %v3841 = vunpack.c.h.b16 %v1528
        %v3842 = vunpack.c.l.b16 %v1529
        %v3843 = vunpack.c.h.b16 %v1529
        %v3844 = vunpack.c.l.b16 %v1530
        %v3845 = vunpack.c.h.b16 %v1530
        %v3846 = vunpack.c.l.b16 %v1531
        %v3847 = vunpack.c.h.b16 %v1531
        %v3848 = vunpack.c.l.b16 %v1532
        %v3849 = vunpack.c.h.b16 %v1532
        %v3850 = vunpack.c.l.b16 %v1533
        %v3851 = vunpack.c.h.b16 %v1533
        %v3852 = vunpack.c.l.b16 %v1534
        %v3853 = vunpack.c.h.b16 %v1534
        %v3854 = vunpack.c.l.b16 %v1535
        %v3855 = vunpack.c.h.b16 %v1535
        %v3856 = vunpack.c.l.b16 %v1536
        %v3857 = vunpack.c.h.b16 %v1536
        %v3858 = vunpack.c.l.b16 %v1537
        %v3859 = vunpack.c.h.b16 %v1537
        %v3860 = vunpack.c.l.b16 %v1538
        %v3861 = vunpack.c.h.b16 %v1538
        %v3862 = vunpack.c.l.b16 %v1539
        %v3863 = vunpack.c.h.b16 %v1539
        %v3864 = vunpack.c.l.b16 %v1540
        %v3865 = vunpack.c.h.b16 %v1540
        %v3866 = vunpack.c.l.b16 %v1541
        %v3867 = vunpack.c.h.b16 %v1541
        %v3868 = vunpack.c.l.b16 %v1542
        %v3869 = vunpack.c.h.b16 %v1542
        %v3870 = vunpack.c.l.b16 %v1543
        %v3871 = vunpack.c.h.b16 %v1543
        %v3872 = vunpack.c.l.b16 %v1544
        %v3873 = vunpack.c.h.b16 %v1544
        %v3874 = vunpack.c.l.b16 %v1545
        %v3875 = vunpack.c.h.b16 %v1545
        %v3876 = vunpack.c.l.b16 %v1546
        %v3877 = vunpack.c.h.b16 %v1546
        %v3878 = vunpack.c.l.b16 %v1547
        %v3879 = vunpack.c.h.b16 %v1547
        %v3880 = vunpack.c.l.b16 %v1548
        %v3881 = vunpack.c.h.b16 %v1548
        %v3882 = vunpack.c.l.b16 %v1549
        %v3883 = vunpack.c.h.b16 %v1549
        %v3884 = vunpack.c.l.b16 %v1550
        %v3885 = vunpack.c.h.b16 %v1550
        %v3886 = vunpack.c.l.b16 %v1551
        %v3887 = vunpack.c.h.b16 %v1551
        %v3888 = vunpack.c.l.b16 %v1552
        %v3889 = vunpack.c.h.b16 %v1552
        %v3890 = vunpack.c.l.b16 %v1553
        %v3891 = vunpack.c.h.b16 %v1553
        %v3892 = vunpack.c.l.b16 %v1554
        %v3893 = vunpack.c.h.b16 %v1554
        %v3894 = vunpack.c.l.b16 %v1555
        %v3895 = vunpack.c.h.b16 %v1555
        %v3896 = vunpack.c.l.b16 %v1556
        %v3897 = vunpack.c.h.b16 %v1556
        %v3898 = vunpack.c.l.b16 %v1557
        %v3899 = vunpack.c.h.b16 %v1557
        %v3900 = vunpack.c.l.b16 %v1558
        %v3901 = vunpack.c.h.b16 %v1558
        %v3902 = vunpack.c.l.b16 %v1559
        %v3903 = vunpack.c.h.b16 %v1559
        %v3904 = vunpack.c.l.b16 %v1560
        %v3905 = vunpack.c.h.b16 %v1560
        %v3906 = vunpack.c.l.b16 %v1561
        %v3907 = vunpack.c.h.b16 %v1561
        %v3908 = vunpack.c.l.b16 %v1562
        %v3909 = vunpack.c.h.b16 %v1562
        %v3910 = vunpack.c.l.b16 %v1563
        %v3911 = vunpack.c.h.b16 %v1563
        %v3912 = vunpack.c.l.b16 %v1564
        %v3913 = vunpack.c.h.b16 %v1564
        %v3914 = vunpack.c.l.b16 %v1565
        %v3915 = vunpack.c.h.b16 %v1565
        %v3916 = vunpack.c.l.b16 %v1566
        %v3917 = vunpack.c.h.b16 %v1566
        %v3918 = vunpack.c.l.b16 %v1567
        %v3919 = vunpack.c.h.b16 %v1567
        %v3920 = vunpack.c.l.b16 %v1568
        %v3921 = vunpack.c.h.b16 %v1568
        %v3922 = vunpack.c.l.b16 %v1569
        %v3923 = vunpack.c.h.b16 %v1569
        %v3924 = vunpack.c.l.b16 %v1570
        %v3925 = vunpack.c.h.b16 %v1570
        %v3926 = vunpack.c.l.b16 %v1571
        %v3927 = vunpack.c.h.b16 %v1571
        %v3928 = vunpack.c.l.b16 %v1572
        %v3929 = vunpack.c.h.b16 %v1572
        %v3930 = vunpack.c.l.b16 %v1573
        %v3931 = vunpack.c.h.b16 %v1573
        %v3932 = vunpack.c.l.b16 %v1574
        %v3933 = vunpack.c.h.b16 %v1574
        %v3934 = vunpack.c.l.b16 %v1575
        %v3935 = vunpack.c.h.b16 %v1575
        %v3936 = vunpack.c.l.b16 %v1576
        %v3937 = vunpack.c.h.b16 %v1576
        %v3938 = vunpack.c.l.b16 %v1577
        %v3939 = vunpack.c.h.b16 %v1577
        %v3940 = vunpack.c.l.b16 %v1578
        %v3941 = vunpack.c.h.b16 %v1578
        %v3942 = vunpack.c.l.b16 %v1579
        %v3943 = vunpack.c.h.b16 %v1579
        %v3944 = vunpack.c.l.b16 %v1580
        %v3945 = vunpack.c.h.b16 %v1580
        %v3946 = vunpack.c.l.b16 %v1581
        %v3947 = vunpack.c.h.b16 %v1581
        %v3948 = vunpack.c.l.b16 %v1582
        %v3949 = vunpack.c.h.b16 %v1582
        %v3950 = vunpack.c.l.b16 %v1583
        %v3951 = vunpack.c.h.b16 %v1583
        %v3952 = vunpack.c.l.b16 %v1584
        %v3953 = vunpack.c.h.b16 %v1584
        %v3954 = vunpack.c.l.b16 %v1585
        %v3955 = vunpack.c.h.b16 %v1585
        %v3956 = vunpack.c.l.b16 %v1586
        %v3957 = vunpack.c.h.b16 %v1586
        %v3958 = vunpack.c.l.b16 %v1587
        %v3959 = vunpack.c.h.b16 %v1587
        %v3960 = vunpack.c.l.b16 %v1588
        %v3961 = vunpack.c.h.b16 %v1588
        %v3962 = vunpack.c.l.b16 %v1589
        %v3963 = vunpack.c.h.b16 %v1589
        %v3964 = vunpack.c.l.b16 %v1590
        %v3965 = vunpack.c.h.b16 %v1590
        %v3966 = vunpack.c.l.b16 %v1591
        %v3967 = vunpack.c.h.b16 %v1591
        %v3968 = vunpack.c.l.b16 %v1592
        %v3969 = vunpack.c.h.b16 %v1592
        %v3970 = vunpack.c.l.b16 %v1593
        %v3971 = vunpack.c.h.b16 %v1593
        %v3972 = vunpack.c.l.b16 %v1594
        %v3973 = vunpack.c.h.b16 %v1594
        %v3974 = vunpack.c.l.b16 %v1595
        %v3975 = vunpack.c.h.b16 %v1595
        %v3976 = vunpack.c.l.b16 %v1596
        %v3977 = vunpack.c.h.b16 %v1596
        %v3978 = vunpack.c.l.b16 %v1597
        %v3979 = vunpack.c.h.b16 %v1597
        %v3980 = vunpack.c.l.b16 %v1598
        %v3981 = vunpack.c.h.b16 %v1598
        %v3982 = vunpack.c.l.b16 %v1599
        %v3983 = vunpack.c.h.b16 %v1599
        %v3984 = vunpack.c.l.b16 %v1600
        %v3985 = vunpack.c.h.b16 %v1600
        %v3986 = vunpack.c.l.b16 %v1601
        %v3987 = vunpack.c.h.b16 %v1601
        %v3988 = vunpack.c.l.b16 %v1602
        %v3989 = vunpack.c.h.b16 %v1602
        %v3990 = vunpack.c.l.b16 %v1603
        %v3991 = vunpack.c.h.b16 %v1603
        %v3992 = vunpack.c.l.b16 %v1604
        %v3993 = vunpack.c.h.b16 %v1604
        %v3994 = vunpack.c.l.b16 %v1605
        %v3995 = vunpack.c.h.b16 %v1605
        %v3996 = vunpack.c.l.b16 %v1606
        %v3997 = vunpack.c.h.b16 %v1606
        %v3998 = vunpack.c.l.b16 %v1607
        %v3999 = vunpack.c.h.b16 %v1607
        %v4000 = vunpack.c.l.b16 %v1608
        %v4001 = vunpack.c.h.b16 %v1608
        %v4002 = vunpack.c.l.b16 %v1609
        %v4003 = vunpack.c.h.b16 %v1609
        %v4004 = vunpack.c.l.b16 %v1610
        %v4005 = vunpack.c.h.b16 %v1610
        %v4006 = vunpack.c.l.b16 %v1611
        %v4007 = vunpack.c.h.b16 %v1611
        %v4008 = vunpack.c.l.b16 %v1612
        %v4009 = vunpack.c.h.b16 %v1612
        %v4010 = vunpack.c.l.b16 %v1613
        %v4011 = vunpack.c.h.b16 %v1613
        %v4012 = vunpack.c.l.b16 %v1614
        %v4013 = vunpack.c.h.b16 %v1614
        %v4014 = vunpack.c.l.b16 %v1615
        %v4015 = vunpack.c.h.b16 %v1615
        %v4016 = vunpack.c.l.b16 %v1616
        %v4017 = vunpack.c.h.b16 %v1616
        %v4018 = vunpack.c.l.b16 %v1617
        %v4019 = vunpack.c.h.b16 %v1617
        %v4020 = vunpack.c.l.b16 %v1618
        %v4021 = vunpack.c.h.b16 %v1618
        %v4022 = vunpack.c.l.b16 %v1619
        %v4023 = vunpack.c.h.b16 %v1619
        %v4024 = vunpack.c.l.b16 %v1620
        %v4025 = vunpack.c.h.b16 %v1620
        %v4026 = vunpack.c.l.b16 %v1621
        %v4027 = vunpack.c.h.b16 %v1621
        %v4028 = vunpack.c.l.b16 %v1622
        %v4029 = vunpack.c.h.b16 %v1622
        %v4030 = vunpack.c.l.b16 %v1623
        %v4031 = vunpack.c.h.b16 %v1623
        %v4032 = vunpack.c.l.b16 %v1624
        %v4033 = vunpack.c.h.b16 %v1624
        %v4034 = vunpack.c.l.b16 %v1625
        %v4035 = vunpack.c.h.b16 %v1625
        %v4036 = vunpack.c.l.b16 %v1626
        %v4037 = vunpack.c.h.b16 %v1626
        %v4038 = vunpack.c.l.b16 %v1627
        %v4039 = vunpack.c.h.b16 %v1627
        %v4040 = vunpack.c.l.b16 %v1628
        %v4041 = vunpack.c.h.b16 %v1628
        %v4042 = vunpack.c.l.b16 %v1629
        %v4043 = vunpack.c.h.b16 %v1629
        %v4044 = vunpack.c.l.b16 %v1630
        %v4045 = vunpack.c.h.b16 %v1630
        %v4046 = vunpack.c.l.b16 %v1631
        %v4047 = vunpack.c.h.b16 %v1631
        %v4048 = vunpack.c.l.b16 %v1632
        %v4049 = vunpack.c.h.b16 %v1632
        %v4050 = vunpack.c.l.b16 %v1633
        %v4051 = vunpack.c.h.b16 %v1633
        %v4052 = vunpack.c.l.b16 %v1634
        %v4053 = vunpack.c.h.b16 %v1634
        %v4054 = vunpack.c.l.b16 %v1635
        %v4055 = vunpack.c.h.b16 %v1635
        %v4056 = vunpack.c.l.b16 %v1636
        %v4057 = vunpack.c.h.b16 %v1636
        %v4058 = vunpack.c.l.b16 %v1637
        %v4059 = vunpack.c.h.b16 %v1637
        %v4060 = vunpack.c.l.b16 %v1638
        %v4061 = vunpack.c.h.b16 %v1638
        %v4062 = vunpack.c.l.b16 %v1639
        %v4063 = vunpack.c.h.b16 %v1639
        %v4064 = vunpack.c.l.b16 %v1640
        %v4065 = vunpack.c.h.b16 %v1640
        %v4066 = vunpack.c.l.b16 %v1641
        %v4067 = vunpack.c.h.b16 %v1641
        %v4068 = vunpack.c.l.b16 %v1642
        %v4069 = vunpack.c.h.b16 %v1642
        %v4070 = vunpack.c.l.b16 %v1643
        %v4071 = vunpack.c.h.b16 %v1643
        %v4072 = vunpack.c.l.b16 %v1644
        %v4073 = vunpack.c.h.b16 %v1644
        %v4074 = vunpack.c.l.b16 %v1645
        %v4075 = vunpack.c.h.b16 %v1645
        %v4076 = vunpack.c.l.b16 %v1646
        %v4077 = vunpack.c.h.b16 %v1646
        %v4078 = vunpack.c.l.b16 %v1647
        %v4079 = vunpack.c.h.b16 %v1647
        %v4080 = vunpack.c.l.b16 %v1648
        %v4081 = vunpack.c.h.b16 %v1648
        %v4082 = vunpack.c.l.b16 %v1649
        %v4083 = vunpack.c.h.b16 %v1649
        %v4084 = vunpack.c.l.b16 %v1650
        %v4085 = vunpack.c.h.b16 %v1650
        %v4086 = vunpack.c.l.b16 %v1651
        %v4087 = vunpack.c.h.b16 %v1651
        %v4088 = vunpack.c.l.b16 %v1652
        %v4089 = vunpack.c.h.b16 %v1652
        %v4090 = vunpack.c.l.b16 %v1653
        %v4091 = vunpack.c.h.b16 %v1653
        %v4092 = vunpack.c.l.b16 %v1654
        %v4093 = vunpack.c.h.b16 %v1654
        %v4094 = vunpack.c.l.b16 %v1655
        %v4095 = vunpack.c.h.b16 %v1655
        %v4096 = vunpack.c.l.b16 %v1656
        %v4097 = vunpack.c.h.b16 %v1656
        %v4098 = vunpack.c.l.b16 %v1657
        %v4099 = vunpack.c.h.b16 %v1657
        %v4100 = vunpack.c.l.b16 %v1658
        %v4101 = vunpack.c.h.b16 %v1658
        %v4102 = vunpack.c.l.b16 %v1659
        %v4103 = vunpack.c.h.b16 %v1659
        %v4104 = vunpack.c.l.b16 %v1660
        %v4105 = vunpack.c.h.b16 %v1660
        %v4106 = vunpack.c.l.b16 %v1661
        %v4107 = vunpack.c.h.b16 %v1661
        %v4108 = vunpack.c.l.b16 %v1662
        %v4109 = vunpack.c.h.b16 %v1662
        %v4110 = vunpack.c.l.b16 %v1663
        %v4111 = vunpack.c.h.b16 %v1663
        %v4112 = vpack.c.b16 %v2966, %v2960
        %v4113 = vpack.c.b16 %v2967, %v2961
        %v4114 = vpack.c.b16 %v2968, %v2962
        %v4115 = vpack.c.b16 %v2969, %v2963
        %v4116 = vpack.c.b16 %v2970, %v2964
        %v4117 = vpack.c.b16 %v2971, %v2965
        %v4118 = vpack.c.b16 %v2978, %v2972
        %v4119 = vpack.c.b16 %v2979, %v2973
        %v4120 = vpack.c.b16 %v2980, %v2974
        %v4121 = vpack.c.b16 %v2981, %v2975
        %v4122 = vpack.c.b16 %v2982, %v2976
        %v4123 = vpack.c.b16 %v2983, %v2977
        %v4124 = vpack.c.b16 %v2990, %v2984
        %v4125 = vpack.c.b16 %v2991, %v2985
        %v4126 = vpack.c.b16 %v2992, %v2986
        %v4127 = vpack.c.b16 %v2993, %v2987
        %v4128 = vpack.c.b16 %v2994, %v2988
        %v4129 = vpack.c.b16 %v2995, %v2989
        %v4130 = vpack.c.b16 %v3002, %v2996
        %v4131 = vpack.c.b16 %v3003, %v2997
        %v4132 = vpack.c.b16 %v3004, %v2998
        %v4133 = vpack.c.b16 %v3005, %v2999
        %v4134 = vpack.c.b16 %v3006, %v3000
        %v4135 = vpack.c.b16 %v3007, %v3001
        %v4136 = vpack.c.b16 %v3014, %v3008
        %v4137 = vpack.c.b16 %v3015, %v3009
        %v4138 = vpack.c.b16 %v3016, %v3010
        %v4139 = vpack.c.b16 %v3017, %v3011
        %v4140 = vpack.c.b16 %v3018, %v3012
        %v4141 = vpack.c.b16 %v3019, %v3013
        %v4142 = vpack.c.b16 %v3026, %v3020
        %v4143 = vpack.c.b16 %v3027, %v3021
        %v4144 = vpack.c.b16 %v3028, %v3022
        %v4145 = vpack.c.b16 %v3029, %v3023
        %v4146 = vpack.c.b16 %v3030, %v3024
        %v4147 = vpack.c.b16 %v3031, %v3025
        %v4148 = vpack.c.b16 %v3038, %v3032
        %v4149 = vpack.c.b16 %v3039, %v3033
        %v4150 = vpack.c.b16 %v3040, %v3034
        %v4151 = vpack.c.b16 %v3041, %v3035
        %v4152 = vpack.c.b16 %v3042, %v3036
        %v4153 = vpack.c.b16 %v3043, %v3037
        %v4154 = vpack.c.b16 %v3050, %v3044
        %v4155 = vpack.c.b16 %v3051, %v3045
        %v4156 = vpack.c.b16 %v3052, %v3046
        %v4157 = vpack.c.b16 %v3053, %v3047
        %v4158 = vpack.c.b16 %v3054, %v3048
        %v4159 = vpack.c.b16 %v3055, %v3049
        %v4160 = vpack.c.b16 %v3062, %v3056
        %v4161 = vpack.c.b16 %v3063, %v3057
        %v4162 = vpack.c.b16 %v3064, %v3058
        %v4163 = vpack.c.b16 %v3065, %v3059
        %v4164 = vpack.c.b16 %v3066, %v3060
        %v4165 = vpack.c.b16 %v3067, %v3061
        %v4166 = vpack.c.b16 %v3074, %v3068
        %v4167 = vpack.c.b16 %v3075, %v3069
        %v4168 = vpack.c.b16 %v3076, %v3070
        %v4169 = vpack.c.b16 %v3077, %v3071
        %v4170 = vpack.c.b16 %v3078, %v3072
        %v4171 = vpack.c.b16 %v3079, %v3073
        %v4172 = vpack.c.b16 %v3086, %v3080
        %v4173 = vpack.c.b16 %v3087, %v3081
        %v4174 = vpack.c.b16 %v3088, %v3082
        %v4175 = vpack.c.b16 %v3089, %v3083
        %v4176 = vpack.c.b16 %v3090, %v3084
        %v4177 = vpack.c.b16 %v3091, %v3085
        %v4178 = vpack.c.b16 %v3098, %v3092
        %v4179 = vpack.c.b16 %v3099, %v3093
        %v4180 = vpack.c.b16 %v3100, %v3094
        %v4181 = vpack.c.b16 %v3101, %v3095
        %v4182 = vpack.c.b16 %v3102, %v3096
        %v4183 = vpack.c.b16 %v3103, %v3097
        %v4184 = vpack.c.b16 %v3110, %v3104
        %v4185 = vpack.c.b16 %v3111, %v3105
        %v4186 = vpack.c.b16 %v3112, %v3106
        %v4187 = vpack.c.b16 %v3113, %v3107
        %v4188 = vpack.c.b16 %v3114, %v3108
        %v4189 = vpack.c.b16 %v3115, %v3109
        %v4190 = vpack.c.b16 %v3122, %v3116
        %v4191 = vpack.c.b16 %v3123, %v3117
        %v4192 = vpack.c.b16 %v3124, %v3118
        %v4193 = vpack.c.b16 %v3125, %v3119
        %v4194 = vpack.c.b16 %v3126, %v3120
        %v4195 = vpack.c.b16 %v3127, %v3121
        %v4196 = vpack.c.b16 %v3134, %v3128
        %v4197 = vpack.c.b16 %v3135, %v3129
        %v4198 = vpack.c.b16 %v3136, %v3130
        %v4199 = vpack.c.b16 %v3137, %v3131
        %v4200 = vpack.c.b16 %v3138, %v3132
        %v4201 = vpack.c.b16 %v3139, %v3133
        %v4202 = vpack.c.b16 %v3146, %v3140
        %v4203 = vpack.c.b16 %v3147, %v3141
        %v4204 = vpack.c.b16 %v3148, %v3142
        %v4205 = vpack.c.b16 %v3149, %v3143
        %v4206 = vpack.c.b16 %v3150, %v3144
        %v4207 = vpack.c.b16 %v3151, %v3145
        %v4208 = vpack.c.b16 %v3158, %v3152
        %v4209 = vpack.c.b16 %v3159, %v3153
        %v4210 = vpack.c.b16 %v3160, %v3154
        %v4211 = vpack.c.b16 %v3161, %v3155
        %v4212 = vpack.c.b16 %v3162, %v3156
        %v4213 = vpack.c.b16 %v3163, %v3157
        %v4214 = vpack.c.b16 %v3170, %v3164
        %v4215 = vpack.c.b16 %v3171, %v3165
        %v4216 = vpack.c.b16 %v3172, %v3166
        %v4217 = vpack.c.b16 %v3173, %v3167
        %v4218 = vpack.c.b16 %v3174, %v3168
        %v4219 = vpack.c.b16 %v3175, %v3169
        %v4220 = vpack.c.b16 %v3182, %v3176
        %v4221 = vpack.c.b16 %v3183, %v3177
        %v4222 = vpack.c.b16 %v3184, %v3178
        %v4223 = vpack.c.b16 %v3185, %v3179
        %v4224 = vpack.c.b16 %v3186, %v3180
        %v4225 = vpack.c.b16 %v3187, %v3181
        %v4226 = vpack.c.b16 %v3194, %v3188
        %v4227 = vpack.c.b16 %v3195, %v3189
        %v4228 = vpack.c.b16 %v3196, %v3190
        %v4229 = vpack.c.b16 %v3197, %v3191
        %v4230 = vpack.c.b16 %v3198, %v3192
        %v4231 = vpack.c.b16 %v3199, %v3193
        %v4232 = vpack.c.b16 %v3206, %v3200
        %v4233 = vpack.c.b16 %v3207, %v3201
        %v4234 = vpack.c.b16 %v3208, %v3202
        %v4235 = vpack.c.b16 %v3209, %v3203
        %v4236 = vpack.c.b16 %v3210, %v3204
        %v4237 = vpack.c.b16 %v3211, %v3205
        %v4238 = vpack.c.b16 %v3218, %v3212
        %v4239 = vpack.c.b16 %v3219, %v3213
        %v4240 = vpack.c.b16 %v3220, %v3214
        %v4241 = vpack.c.b16 %v3221, %v3215
        %v4242 = vpack.c.b16 %v3222, %v3216
        %v4243 = vpack.c.b16 %v3223, %v3217
        %v4244 = vpack.c.b16 %v3230, %v3224
        %v4245 = vpack.c.b16 %v3231, %v3225
        %v4246 = vpack.c.b16 %v3232, %v3226
        %v4247 = vpack.c.b16 %v3233, %v3227
        %v4248 = vpack.c.b16 %v3234, %v3228
        %v4249 = vpack.c.b16 %v3235, %v3229
        %v4250 = vpack.c.b16 %v3242, %v3236
        %v4251 = vpack.c.b16 %v3243, %v3237
        %v4252 = vpack.c.b16 %v3244, %v3238
        %v4253 = vpack.c.b16 %v3245, %v3239
        %v4254 = vpack.c.b16 %v3246, %v3240
        %v4255 = vpack.c.b16 %v3247, %v3241
        %v4256 = vpack.c.b16 %v3254, %v3248
        %v4257 = vpack.c.b16 %v3255, %v3249
        %v4258 = vpack.c.b16 %v3256, %v3250
        %v4259 = vpack.c.b16 %v3257, %v3251
        %v4260 = vpack.c.b16 %v3258, %v3252
        %v4261 = vpack.c.b16 %v3259, %v3253
        %v4262 = vpack.c.b16 %v3266, %v3260
        %v4263 = vpack.c.b16 %v3267, %v3261
        %v4264 = vpack.c.b16 %v3268, %v3262
        %v4265 = vpack.c.b16 %v3269, %v3263
        %v4266 = vpack.c.b16 %v3270, %v3264
        %v4267 = vpack.c.b16 %v3271, %v3265
        %v4268 = vpack.c.b16 %v3278, %v3272
        %v4269 = vpack.c.b16 %v3279, %v3273
        %v4270 = vpack.c.b16 %v3280, %v3274
        %v4271 = vpack.c.b16 %v3281, %v3275
        %v4272 = vpack.c.b16 %v3282, %v3276
        %v4273 = vpack.c.b16 %v3283, %v3277
        %v4274 = vpack.c.b16 %v3290, %v3284
        %v4275 = vpack.c.b16 %v3291, %v3285
        %v4276 = vpack.c.b16 %v3292, %v3286
        %v4277 = vpack.c.b16 %v3293, %v3287
        %v4278 = vpack.c.b16 %v3294, %v3288
        %v4279 = vpack.c.b16 %v3295, %v3289
        %v4280 = vpack.c.b16 %v3302, %v3296
        %v4281 = vpack.c.b16 %v3303, %v3297
        %v4282 = vpack.c.b16 %v3304, %v3298
        %v4283 = vpack.c.b16 %v3305, %v3299
        %v4284 = vpack.c.b16 %v3306, %v3300
        %v4285 = vpack.c.b16 %v3307, %v3301
        %v4286 = vpack.c.b16 %v3314, %v3308
        %v4287 = vpack.c.b16 %v3315, %v3309
        %v4288 = vpack.c.b16 %v3316, %v3310
        %v4289 = vpack.c.b16 %v3317, %v3311
        %v4290 = vpack.c.b16 %v3318, %v3312
        %v4291 = vpack.c.b16 %v3319, %v3313
        %v4292 = vpack.c.b16 %v3326, %v3320
        %v4293 = vpack.c.b16 %v3327, %v3321
        %v4294 = vpack.c.b16 %v3328, %v3322
        %v4295 = vpack.c.b16 %v3329, %v3323
        %v4296 = vpack.c.b16 %v3330, %v3324
        %v4297 = vpack.c.b16 %v3331, %v3325
        %v4298 = vpack.c.b16 %v3338, %v3332
        %v4299 = vpack.c.b16 %v3339, %v3333
        %v4300 = vpack.c.b16 %v3340, %v3334
        %v4301 = vpack.c.b16 %v3341, %v3335
        %v4302 = vpack.c.b16 %v3342, %v3336
        %v4303 = vpack.c.b16 %v3343, %v3337
        %v4304 = vpack.c.b16 %v3350, %v3344
        %v4305 = vpack.c.b16 %v3351, %v3345
        %v4306 = vpack.c.b16 %v3352, %v3346
        %v4307 = vpack.c.b16 %v3353, %v3347
        %v4308 = vpack.c.b16 %v3354, %v3348
        %v4309 = vpack.c.b16 %v3355, %v3349
        %v4310 = vpack.c.b16 %v3362, %v3356
        %v4311 = vpack.c.b16 %v3363, %v3357
        %v4312 = vpack.c.b16 %v3364, %v3358
        %v4313 = vpack.c.b16 %v3365, %v3359
        %v4314 = vpack.c.b16 %v3366, %v3360
        %v4315 = vpack.c.b16 %v3367, %v3361
        %v4316 = vpack.c.b16 %v3374, %v3368
        %v4317 = vpack.c.b16 %v3375, %v3369
        %v4318 = vpack.c.b16 %v3376, %v3370
        %v4319 = vpack.c.b16 %v3377, %v3371
        %v4320 = vpack.c.b16 %v3378, %v3372
        %v4321 = vpack.c.b16 %v3379, %v3373
        %v4322 = vpack.c.b16 %v3386, %v3380
        %v4323 = vpack.c.b16 %v3387, %v3381
        %v4324 = vpack.c.b16 %v3388, %v3382
        %v4325 = vpack.c.b16 %v3389, %v3383
        %v4326 = vpack.c.b16 %v3390, %v3384
        %v4327 = vpack.c.b16 %v3391, %v3385
        %v4328 = vpack.c.b16 %v3398, %v3392
        %v4329 = vpack.c.b16 %v3399, %v3393
        %v4330 = vpack.c.b16 %v3400, %v3394
        %v4331 = vpack.c.b16 %v3401, %v3395
        %v4332 = vpack.c.b16 %v3402, %v3396
        %v4333 = vpack.c.b16 %v3403, %v3397
        %v4334 = vpack.c.b16 %v3410, %v3404
        %v4335 = vpack.c.b16 %v3411, %v3405
        %v4336 = vpack.c.b16 %v3412, %v3406
        %v4337 = vpack.c.b16 %v3413, %v3407
        %v4338 = vpack.c.b16 %v3414, %v3408
        %v4339 = vpack.c.b16 %v3415, %v3409
        %v4340 = vpack.c.b16 %v3422, %v3416
        %v4341 = vpack.c.b16 %v3423, %v3417
        %v4342 = vpack.c.b16 %v3424, %v3418
        %v4343 = vpack.c.b16 %v3425, %v3419
        %v4344 = vpack.c.b16 %v3426, %v3420
        %v4345 = vpack.c.b16 %v3427, %v3421
        %v4346 = vpack.c.b16 %v3434, %v3428
        %v4347 = vpack.c.b16 %v3435, %v3429
        %v4348 = vpack.c.b16 %v3436, %v3430
        %v4349 = vpack.c.b16 %v3437, %v3431
        %v4350 = vpack.c.b16 %v3438, %v3432
        %v4351 = vpack.c.b16 %v3439, %v3433
        %v4352 = vpack.c.b16 %v3446, %v3440
        %v4353 = vpack.c.b16 %v3447, %v3441
        %v4354 = vpack.c.b16 %v3448, %v3442
        %v4355 = vpack.c.b16 %v3449, %v3443
        %v4356 = vpack.c.b16 %v3450, %v3444
        %v4357 = vpack.c.b16 %v3451, %v3445
        %v4358 = vpack.c.b16 %v3458, %v3452
        %v4359 = vpack.c.b16 %v3459, %v3453
        %v4360 = vpack.c.b16 %v3460, %v3454
        %v4361 = vpack.c.b16 %v3461, %v3455
        %v4362 = vpack.c.b16 %v3462, %v3456
        %v4363 = vpack.c.b16 %v3463, %v3457
        %v4364 = vpack.c.b16 %v3470, %v3464
        %v4365 = vpack.c.b16 %v3471, %v3465
        %v4366 = vpack.c.b16 %v3472, %v3466
        %v4367 = vpack.c.b16 %v3473, %v3467
        %v4368 = vpack.c.b16 %v3474, %v3468
        %v4369 = vpack.c.b16 %v3475, %v3469
        %v4370 = vpack.c.b16 %v3482, %v3476
        %v4371 = vpack.c.b16 %v3483, %v3477
        %v4372 = vpack.c.b16 %v3484, %v3478
        %v4373 = vpack.c.b16 %v3485, %v3479
        %v4374 = vpack.c.b16 %v3486, %v3480
        %v4375 = vpack.c.b16 %v3487, %v3481
        %v4376 = vpack.c.b16 %v3494, %v3488
        %v4377 = vpack.c.b16 %v3495, %v3489
        %v4378 = vpack.c.b16 %v3496, %v3490
        %v4379 = vpack.c.b16 %v3497, %v3491
        %v4380 = vpack.c.b16 %v3498, %v3492
        %v4381 = vpack.c.b16 %v3499, %v3493
        %v4382 = vpack.c.b16 %v3506, %v3500
        %v4383 = vpack.c.b16 %v3507, %v3501
        %v4384 = vpack.c.b16 %v3508, %v3502
        %v4385 = vpack.c.b16 %v3509, %v3503
        %v4386 = vpack.c.b16 %v3510, %v3504
        %v4387 = vpack.c.b16 %v3511, %v3505
        %v4388 = vpack.c.b16 %v3518, %v3512
        %v4389 = vpack.c.b16 %v3519, %v3513
        %v4390 = vpack.c.b16 %v3520, %v3514
        %v4391 = vpack.c.b16 %v3521, %v3515
        %v4392 = vpack.c.b16 %v3522, %v3516
        %v4393 = vpack.c.b16 %v3523, %v3517
        %v4394 = vpack.c.b16 %v3530, %v3524
        %v4395 = vpack.c.b16 %v3531, %v3525
        %v4396 = vpack.c.b16 %v3532, %v3526
        %v4397 = vpack.c.b16 %v3533, %v3527
        %v4398 = vpack.c.b16 %v3534, %v3528
        %v4399 = vpack.c.b16 %v3535, %v3529
        %v4400 = vpack.c.b16 %v3542, %v3536
        %v4401 = vpack.c.b16 %v3543, %v3537
        %v4402 = vpack.c.b16 %v3544, %v3538
        %v4403 = vpack.c.b16 %v3545, %v3539
        %v4404 = vpack.c.b16 %v3546, %v3540
        %v4405 = vpack.c.b16 %v3547, %v3541
        %v4406 = vpack.c.b16 %v3554, %v3548
        %v4407 = vpack.c.b16 %v3555, %v3549
        %v4408 = vpack.c.b16 %v3556, %v3550
        %v4409 = vpack.c.b16 %v3557, %v3551
        %v4410 = vpack.c.b16 %v3558, %v3552
        %v4411 = vpack.c.b16 %v3559, %v3553
        %v4412 = vpack.c.b16 %v3566, %v3560
        %v4413 = vpack.c.b16 %v3567, %v3561
        %v4414 = vpack.c.b16 %v3568, %v3562
        %v4415 = vpack.c.b16 %v3569, %v3563
        %v4416 = vpack.c.b16 %v3570, %v3564
        %v4417 = vpack.c.b16 %v3571, %v3565
        %v4418 = vpack.c.b16 %v3578, %v3572
        %v4419 = vpack.c.b16 %v3579, %v3573
        %v4420 = vpack.c.b16 %v3580, %v3574
        %v4421 = vpack.c.b16 %v3581, %v3575
        %v4422 = vpack.c.b16 %v3582, %v3576
        %v4423 = vpack.c.b16 %v3583, %v3577
        %v4424 = vpack.c.b16 %v3590, %v3584
        %v4425 = vpack.c.b16 %v3591, %v3585
        %v4426 = vpack.c.b16 %v3592, %v3586
        %v4427 = vpack.c.b16 %v3593, %v3587
        %v4428 = vpack.c.b16 %v3594, %v3588
        %v4429 = vpack.c.b16 %v3595, %v3589
        %v4430 = vpack.c.b16 %v3602, %v3596
        %v4431 = vpack.c.b16 %v3603, %v3597
        %v4432 = vpack.c.b16 %v3604, %v3598
        %v4433 = vpack.c.b16 %v3605, %v3599
        %v4434 = vpack.c.b16 %v3606, %v3600
        %v4435 = vpack.c.b16 %v3607, %v3601
        %v4436 = vpack.c.b16 %v3614, %v3608
        %v4437 = vpack.c.b16 %v3615, %v3609
        %v4438 = vpack.c.b16 %v3616, %v3610
        %v4439 = vpack.c.b16 %v3617, %v3611
        %v4440 = vpack.c.b16 %v3618, %v3612
        %v4441 = vpack.c.b16 %v3619, %v3613
        %v4442 = vpack.c.b16 %v3626, %v3620
        %v4443 = vpack.c.b16 %v3627, %v3621
        %v4444 = vpack.c.b16 %v3628, %v3622
        %v4445 = vpack.c.b16 %v3629, %v3623
        %v4446 = vpack.c.b16 %v3630, %v3624
        %v4447 = vpack.c.b16 %v3631, %v3625
        %v4448 = vpack.c.b16 %v3638, %v3632
        %v4449 = vpack.c.b16 %v3639, %v3633
        %v4450 = vpack.c.b16 %v3640, %v3634
        %v4451 = vpack.c.b16 %v3641, %v3635
        %v4452 = vpack.c.b16 %v3642, %v3636
        %v4453 = vpack.c.b16 %v3643, %v3637
        %v4454 = vpack.c.b16 %v3650, %v3644
        %v4455 = vpack.c.b16 %v3651, %v3645
        %v4456 = vpack.c.b16 %v3652, %v3646
        %v4457 = vpack.c.b16 %v3653, %v3647
        %v4458 = vpack.c.b16 %v3654, %v3648
        %v4459 = vpack.c.b16 %v3655, %v3649
        %v4460 = vpack.c.b16 %v3662, %v3656
        %v4461 = vpack.c.b16 %v3663, %v3657
        %v4462 = vpack.c.b16 %v3664, %v3658
        %v4463 = vpack.c.b16 %v3665, %v3659
        %v4464 = vpack.c.b16 %v3666, %v3660
        %v4465 = vpack.c.b16 %v3667, %v3661
        %v4466 = vpack.c.b16 %v3674, %v3668
        %v4467 = vpack.c.b16 %v3675, %v3669
        %v4468 = vpack.c.b16 %v3676, %v3670
        %v4469 = vpack.c.b16 %v3677, %v3671
        %v4470 = vpack.c.b16 %v3678, %v3672
        %v4471 = vpack.c.b16 %v3679, %v3673
        %v4472 = vpack.c.b16 %v3686, %v3680
        %v4473 = vpack.c.b16 %v3687, %v3681
        %v4474 = vpack.c.b16 %v3688, %v3682
        %v4475 = vpack.c.b16 %v3689, %v3683
        %v4476 = vpack.c.b16 %v3690, %v3684
        %v4477 = vpack.c.b16 %v3691, %v3685
        %v4478 = vpack.c.b16 %v3698, %v3692
        %v4479 = vpack.c.b16 %v3699, %v3693
        %v4480 = vpack.c.b16 %v3700, %v3694
        %v4481 = vpack.c.b16 %v3701, %v3695
        %v4482 = vpack.c.b16 %v3702, %v3696
        %v4483 = vpack.c.b16 %v3703, %v3697
        %v4484 = vpack.c.b16 %v3710, %v3704
        %v4485 = vpack.c.b16 %v3711, %v3705
        %v4486 = vpack.c.b16 %v3712, %v3706
        %v4487 = vpack.c.b16 %v3713, %v3707
        %v4488 = vpack.c.b16 %v3714, %v3708
        %v4489 = vpack.c.b16 %v3715, %v3709
        %v4490 = vpack.c.b16 %v3722, %v3716
        %v4491 = vpack.c.b16 %v3723, %v3717
        %v4492 = vpack.c.b16 %v3724, %v3718
        %v4493 = vpack.c.b16 %v3725, %v3719
        %v4494 = vpack.c.b16 %v3726, %v3720
        %v4495 = vpack.c.b16 %v3727, %v3721
        %v4496 = vpack.c.b16 %v3734, %v3728
        %v4497 = vpack.c.b16 %v3735, %v3729
        %v4498 = vpack.c.b16 %v3736, %v3730
        %v4499 = vpack.c.b16 %v3737, %v3731
        %v4500 = vpack.c.b16 %v3738, %v3732
        %v4501 = vpack.c.b16 %v3739, %v3733
        %v4502 = vpack.c.b16 %v3746, %v3740
        %v4503 = vpack.c.b16 %v3747, %v3741
        %v4504 = vpack.c.b16 %v3748, %v3742
        %v4505 = vpack.c.b16 %v3749, %v3743
        %v4506 = vpack.c.b16 %v3750, %v3744
        %v4507 = vpack.c.b16 %v3751, %v3745
        %v4508 = vpack.c.b16 %v3758, %v3752
        %v4509 = vpack.c.b16 %v3759, %v3753
        %v4510 = vpack.c.b16 %v3760, %v3754
        %v4511 = vpack.c.b16 %v3761, %v3755
        %v4512 = vpack.c.b16 %v3762, %v3756
        %v4513 = vpack.c.b16 %v3763, %v3757
        %v4514 = vpack.c.b16 %v3770, %v3764
        %v4515 = vpack.c.b16 %v3771, %v3765
        %v4516 = vpack.c.b16 %v3772, %v3766
        %v4517 = vpack.c.b16 %v3773, %v3767
        %v4518 = vpack.c.b16 %v3774, %v3768
        %v4519 = vpack.c.b16 %v3775, %v3769
        %v4520 = vpack.c.b16 %v3782, %v3776
        %v4521 = vpack.c.b16 %v3783, %v3777
        %v4522 = vpack.c.b16 %v3784, %v3778
        %v4523 = vpack.c.b16 %v3785, %v3779
        %v4524 = vpack.c.b16 %v3786, %v3780
        %v4525 = vpack.c.b16 %v3787, %v3781
        %v4526 = vpack.c.b16 %v3794, %v3788
        %v4527 = vpack.c.b16 %v3795, %v3789
        %v4528 = vpack.c.b16 %v3796, %v3790
        %v4529 = vpack.c.b16 %v3797, %v3791
        %v4530 = vpack.c.b16 %v3798, %v3792
        %v4531 = vpack.c.b16 %v3799, %v3793
        %v4532 = vpack.c.b16 %v3806, %v3800
        %v4533 = vpack.c.b16 %v3807, %v3801
        %v4534 = vpack.c.b16 %v3808, %v3802
        %v4535 = vpack.c.b16 %v3809, %v3803
        %v4536 = vpack.c.b16 %v3810, %v3804
        %v4537 = vpack.c.b16 %v3811, %v3805
        %v4538 = vpack.c.b16 %v3818, %v3812
        %v4539 = vpack.c.b16 %v3819, %v3813
        %v4540 = vpack.c.b16 %v3820, %v3814
        %v4541 = vpack.c.b16 %v3821, %v3815
        %v4542 = vpack.c.b16 %v3822, %v3816
        %v4543 = vpack.c.b16 %v3823, %v3817
        %v4544 = vpack.c.b16 %v3830, %v3824
        %v4545 = vpack.c.b16 %v3831, %v3825
        %v4546 = vpack.c.b16 %v3832, %v3826
        %v4547 = vpack.c.b16 %v3833, %v3827
        %v4548 = vpack.c.b16 %v3834, %v3828
        %v4549 = vpack.c.b16 %v3835, %v3829
        %v4550 = vpack.c.b16 %v3842, %v3836
        %v4551 = vpack.c.b16 %v3843, %v3837
        %v4552 = vpack.c.b16 %v3844, %v3838
        %v4553 = vpack.c.b16 %v3845, %v3839
        %v4554 = vpack.c.b16 %v3846, %v3840
        %v4555 = vpack.c.b16 %v3847, %v3841
        %v4556 = vpack.c.b16 %v3854, %v3848
        %v4557 = vpack.c.b16 %v3855, %v3849
        %v4558 = vpack.c.b16 %v3856, %v3850
        %v4559 = vpack.c.b16 %v3857, %v3851
        %v4560 = vpack.c.b16 %v3858, %v3852
        %v4561 = vpack.c.b16 %v3859, %v3853
        %v4562 = vpack.c.b16 %v3866, %v3860
        %v4563 = vpack.c.b16 %v3867, %v3861
        %v4564 = vpack.c.b16 %v3868, %v3862
        %v4565 = vpack.c.b16 %v3869, %v3863
        %v4566 = vpack.c.b16 %v3870, %v3864
        %v4567 = vpack.c.b16 %v3871, %v3865
        %v4568 = vpack.c.b16 %v3878, %v3872
        %v4569 = vpack.c.b16 %v3879, %v3873
        %v4570 = vpack.c.b16 %v3880, %v3874
        %v4571 = vpack.c.b16 %v3881, %v3875
        %v4572 = vpack.c.b16 %v3882, %v3876
        %v4573 = vpack.c.b16 %v3883, %v3877
        %v4574 = vpack.c.b16 %v3890, %v3884
        %v4575 = vpack.c.b16 %v3891, %v3885
        %v4576 = vpack.c.b16 %v3892, %v3886
        %v4577 = vpack.c.b16 %v3893, %v3887
        %v4578 = vpack.c.b16 %v3894, %v3888
        %v4579 = vpack.c.b16 %v3895, %v3889
        %v4580 = vpack.c.b16 %v3902, %v3896
        %v4581 = vpack.c.b16 %v3903, %v3897
        %v4582 = vpack.c.b16 %v3904, %v3898
        %v4583 = vpack.c.b16 %v3905, %v3899
        %v4584 = vpack.c.b16 %v3906, %v3900
        %v4585 = vpack.c.b16 %v3907, %v3901
        %v4586 = vpack.c.b16 %v3914, %v3908
        %v4587 = vpack.c.b16 %v3915, %v3909
        %v4588 = vpack.c.b16 %v3916, %v3910
        %v4589 = vpack.c.b16 %v3917, %v3911
        %v4590 = vpack.c.b16 %v3918, %v3912
        %v4591 = vpack.c.b16 %v3919, %v3913
        %v4592 = vpack.c.b16 %v3926, %v3920
        %v4593 = vpack.c.b16 %v3927, %v3921
        %v4594 = vpack.c.b16 %v3928, %v3922
        %v4595 = vpack.c.b16 %v3929, %v3923
        %v4596 = vpack.c.b16 %v3930, %v3924
        %v4597 = vpack.c.b16 %v3931, %v3925
        %v4598 = vpack.c.b16 %v3938, %v3932
        %v4599 = vpack.c.b16 %v3939, %v3933
        %v4600 = vpack.c.b16 %v3940, %v3934
        %v4601 = vpack.c.b16 %v3941, %v3935
        %v4602 = vpack.c.b16 %v3942, %v3936
        %v4603 = vpack.c.b16 %v3943, %v3937
        %v4604 = vpack.c.b16 %v3950, %v3944
        %v4605 = vpack.c.b16 %v3951, %v3945
        %v4606 = vpack.c.b16 %v3952, %v3946
        %v4607 = vpack.c.b16 %v3953, %v3947
        %v4608 = vpack.c.b16 %v3954, %v3948
        %v4609 = vpack.c.b16 %v3955, %v3949
        %v4610 = vpack.c.b16 %v3962, %v3956
        %v4611 = vpack.c.b16 %v3963, %v3957
        %v4612 = vpack.c.b16 %v3964, %v3958
        %v4613 = vpack.c.b16 %v3965, %v3959
        %v4614 = vpack.c.b16 %v3966, %v3960
        %v4615 = vpack.c.b16 %v3967, %v3961
        %v4616 = vpack.c.b16 %v3974, %v3968
        %v4617 = vpack.c.b16 %v3975, %v3969
        %v4618 = vpack.c.b16 %v3976, %v3970
        %v4619 = vpack.c.b16 %v3977, %v3971
        %v4620 = vpack.c.b16 %v3978, %v3972
        %v4621 = vpack.c.b16 %v3979, %v3973
        %v4622 = vpack.c.b16 %v3986, %v3980
        %v4623 = vpack.c.b16 %v3987, %v3981
        %v4624 = vpack.c.b16 %v3988, %v3982
        %v4625 = vpack.c.b16 %v3989, %v3983
        %v4626 = vpack.c.b16 %v3990, %v3984
        %v4627 = vpack.c.b16 %v3991, %v3985
        %v4628 = vpack.c.b16 %v3998, %v3992
        %v4629 = vpack.c.b16 %v3999, %v3993
        %v4630 = vpack.c.b16 %v4000, %v3994
        %v4631 = vpack.c.b16 %v4001, %v3995
        %v4632 = vpack.c.b16 %v4002, %v3996
        %v4633 = vpack.c.b16 %v4003, %v3997
        %v4634 = vpack.c.b16 %v4010, %v4004
        %v4635 = vpack.c.b16 %v4011, %v4005
        %v4636 = vpack.c.b16 %v4012, %v4006
        %v4637 = vpack.c.b16 %v4013, %v4007
        %v4638 = vpack.c.b16 %v4014, %v4008
        %v4639 = vpack.c.b16 %v4015, %v4009
        %v4640 = vpack.c.b16 %v4022, %v4016
        %v4641 = vpack.c.b16 %v4023, %v4017
        %v4642 = vpack.c.b16 %v4024, %v4018
        %v4643 = vpack.c.b16 %v4025, %v4019
        %v4644 = vpack.c.b16 %v4026, %v4020
        %v4645 = vpack.c.b16 %v4027, %v4021
        %v4646 = vpack.c.b16 %v4034, %v4028
        %v4647 = vpack.c.b16 %v4035, %v4029
        %v4648 = vpack.c.b16 %v4036, %v4030
        %v4649 = vpack.c.b16 %v4037, %v4031
        %v4650 = vpack.c.b16 %v4038, %v4032
        %v4651 = vpack.c.b16 %v4039, %v4033
        %v4652 = vpack.c.b16 %v4046, %v4040
        %v4653 = vpack.c.b16 %v4047, %v4041
        %v4654 = vpack.c.b16 %v4048, %v4042
        %v4655 = vpack.c.b16 %v4049, %v4043
        %v4656 = vpack.c.b16 %v4050, %v4044
        %v4657 = vpack.c.b16 %v4051, %v4045
        %v4658 = vpack.c.b16 %v4058, %v4052
        %v4659 = vpack.c.b16 %v4059, %v4053
        %v4660 = vpack.c.b16 %v4060, %v4054
        %v4661 = vpack.c.b16 %v4061, %v4055
        %v4662 = vpack.c.b16 %v4062, %v4056
        %v4663 = vpack.c.b16 %v4063, %v4057
        %v4664 = vpack.c.b16 %v4070, %v4064
        %v4665 = vpack.c.b16 %v4071, %v4065
        %v4666 = vpack.c.b16 %v4072, %v4066
        %v4667 = vpack.c.b16 %v4073, %v4067
        %v4668 = vpack.c.b16 %v4074, %v4068
        %v4669 = vpack.c.b16 %v4075, %v4069
        %v4670 = vpack.c.b16 %v4082, %v4076
        %v4671 = vpack.c.b16 %v4083, %v4077
        %v4672 = vpack.c.b16 %v4084, %v4078
        %v4673 = vpack.c.b16 %v4085, %v4079
        %v4674 = vpack.c.b16 %v4086, %v4080
        %v4675 = vpack.c.b16 %v4087, %v4081
        %v4676 = vpack.c.b16 %v4094, %v4088
        %v4677 = vpack.c.b16 %v4095, %v4089
        %v4678 = vpack.c.b16 %v4096, %v4090
        %v4679 = vpack.c.b16 %v4097, %v4091
        %v4680 = vpack.c.b16 %v4098, %v4092
        %v4681 = vpack.c.b16 %v4099, %v4093
        %v4682 = vpack.c.b16 %v4106, %v4100
        %v4683 = vpack.c.b16 %v4107, %v4101
        %v4684 = vpack.c.b16 %v4108, %v4102
        %v4685 = vpack.c.b16 %v4109, %v4103
        %v4686 = vpack.c.b16 %v4110, %v4104
        %v4687 = vpack.c.b16 %v4111, %v4105
        %5264 = vmatprep.subr.bf16.mxu0 %v4113
        %5265 = vmatpush1.bf16.msra.mxu0 %v4112
        %5266 = vmatprep.subr.bf16.mxu0 %v4119
        %5267 = vmatpush1.bf16.msra.mxu0 %v4118
        %5268 = vmatprep.subr.bf16.mxu0 %v4125
        %5269 = vmatpush1.bf16.msra.mxu0 %v4124
        %5270 = vmatprep.subr.bf16.mxu0 %v4131
        %5271 = vmatpush1.bf16.msra.mxu0 %v4130
        %5272 = vmatprep.subr.bf16.mxu0 %v4137
        %5273 = vmatpush1.bf16.msra.mxu0 %v4136
        %5274 = vmatprep.subr.bf16.mxu0 %v4143
        %5275 = vmatpush1.bf16.msra.mxu0 %v4142
        %5276 = vmatprep.subr.bf16.mxu0 %v4149
        %5277 = vmatpush1.bf16.msra.mxu0 %v4148
        %5278 = vmatprep.subr.bf16.mxu0 %v4155
        %5279 = vmatpush1.bf16.msra.mxu0 %v4154
        %5280 = vmatprep.subr.bf16.mxu0 %v4161
        %5281 = vmatpush1.bf16.msra.mxu0 %v4160
        %5282 = vmatprep.subr.bf16.mxu0 %v4167
        %5283 = vmatpush1.bf16.msra.mxu0 %v4166
        %5284 = vmatprep.subr.bf16.mxu0 %v4173
        %5285 = vmatpush1.bf16.msra.mxu0 %v4172
        %5286 = vmatprep.subr.bf16.mxu0 %v4179
        %5287 = vmatpush1.bf16.msra.mxu0 %v4178
        %5288 = vmatprep.subr.bf16.mxu0 %v4185
        %5289 = vmatpush1.bf16.msra.mxu0 %v4184
        %5290 = vmatprep.subr.bf16.mxu0 %v4191
        %5291 = vmatpush1.bf16.msra.mxu0 %v4190
        %5292 = vmatprep.subr.bf16.mxu0 %v4197
        %5293 = vmatpush1.bf16.msra.mxu0 %v4196
        %5294 = vmatprep.subr.bf16.mxu0 %v4203
        %5295 = vmatpush1.bf16.msra.mxu0 %v4202
        %5296 = vmatprep.mubr.bf16.mxu0 %v2097
        %5297 = vmatmul.mubr.bf16.gmra.mrb[0].mxu0 %v2096
        %v5298 = vpop.f32.mrb[0].mxu0
        %v5299 = vadd.f32 0.0, %v5298
        %v5300 = vpop.f32.mrb[0].mxu0
        %v5301 = vadd.f32 0.0, %v5300
        %v5302 = vpop.f32.mrb[0].mxu0
        %v5303 = vadd.f32 0.0, %v5302
        %v5304 = vpop.f32.mrb[0].mxu0
        %v5305 = vadd.f32 0.0, %v5304
        %5306 = vmatprep.mubr.bf16.mxu0 %v2109
        %5307 = vmatmul.mubr.bf16.gmra.mrb[0].mxu0 %v2108
        %v5308 = vpop.f32.mrb[0].mxu0
        %v5309 = vadd.f32 0.0, %v5308
        %v5310 = vpop.f32.mrb[0].mxu0
        %v5311 = vadd.f32 0.0, %v5310
        %v5312 = vpop.f32.mrb[0].mxu0
        %v5313 = vadd.f32 0.0, %v5312
        %v5314 = vpop.f32.mrb[0].mxu0
        %v5315 = vadd.f32 0.0, %v5314
        %5316 = vmatprep.mubr.bf16.mxu0 %v2121
        %5317 = vmatmul.mubr.bf16.gmra.mrb[0].mxu0 %v2120
        %v5318 = vpop.f32.mrb[0].mxu0
        %v5319 = vadd.f32 0.0, %v5318
        %v5320 = vpop.f32.mrb[0].mxu0
        %v5321 = vadd.f32 0.0, %v5320
        %v5322 = vpop.f32.mrb[0].mxu0
        %v5323 = vadd.f32 0.0, %v5322
        %v5324 = vpop.f32.mrb[0].mxu0
        %v5325 = vadd.f32 0.0, %v5324
        %5326 = vmatprep.mubr.bf16.mxu0 %v2133
        %5327 = vmatmul.mubr.bf16.gmra.mrb[0].mxu0 %v2132
        %v5328 = vpop.f32.mrb[0].mxu0
        %v5329 = vadd.f32 0.0, %v5328
        %v5330 = vpop.f32.mrb[0].mxu0
        %v5331 = vadd.f32 0.0, %v5330
        %v5332 = vpop.f32.mrb[0].mxu0
        %v5333 = vadd.f32 0.0, %v5332
        %v5334 = vpop.f32.mrb[0].mxu0
        %v5335 = vadd.f32 0.0, %v5334
        %5336 = vmatprep.mubr.bf16.mxu0 %v2145
        %5337 = vmatmul.mubr.bf16.gmra.mrb[0].mxu0 %v2144
        %v5338 = vpop.f32.mrb[0].mxu0
        %v5339 = vadd.f32 0.0, %v5338
        %v5340 = vpop.f32.mrb[0].mxu0
        %v5341 = vadd.f32 0.0, %v5340
        %v5342 = vpop.f32.mrb[0].mxu0
        %v5343 = vadd.f32 0.0, %v5342
        %v5344 = vpop.f32.mrb[0].mxu0
        %v5345 = vadd.f32 0.0, %v5344
        %5346 = vmatprep.mubr.bf16.mxu0 %v2157
        %5347 = vmatmul.mubr.bf16.gmra.mrb[0].mxu0 %v2156
        %v5348 = vpop.f32.mrb[0].mxu0
        %v5349 = vadd.f32 0.0, %v5348
        %v5350 = vpop.f32.mrb[0].mxu0
        %v5351 = vadd.f32 0.0, %v5350
        %v5352 = vpop.f32.mrb[0].mxu0
        %v5353 = vadd.f32 0.0, %v5352
        %v5354 = vpop.f32.mrb[0].mxu0
        %v5355 = vadd.f32 0.0, %v5354
        %5356 = vmatprep.mubr.bf16.mxu0 %v2169
        %5357 = vmatmul.mubr.bf16.gmra.mrb[0].mxu0 %v2168
        %v5358 = vpop.f32.mrb[0].mxu0
        %v5359 = vadd.f32 0.0, %v5358
        %v5360 = vpop.f32.mrb[0].mxu0
        %v5361 = vadd.f32 0.0, %v5360
        %v5362 = vpop.f32.mrb[0].mxu0
        %v5363 = vadd.f32 0.0, %v5362
        %v5364 = vpop.f32.mrb[0].mxu0
        %v5365 = vadd.f32 0.0, %v5364
        %5366 = vmatprep.mubr.bf16.mxu0 %v2181
        %5367 = vmatmul.mubr.bf16.gmra.mrb[0].mxu0 %v2180
        %v5368 = vpop.f32.mrb[0].mxu0
        %v5369 = vadd.f32 0.0, %v5368
        %v5370 = vpop.f32.mrb[0].mxu0
        %v5371 = vadd.f32 0.0, %v5370
        %v5372 = vpop.f32.mrb[0].mxu0
        %v5373 = vadd.f32 0.0, %v5372
        %v5374 = vpop.f32.mrb[0].mxu0
        %v5375 = vadd.f32 0.0, %v5374
        %5376 = vmatprep.mubr.bf16.mxu0 %v2193
        %5377 = vmatmul.mubr.bf16.gmra.mrb[0].mxu0 %v2192
        %v5378 = vpop.f32.mrb[0].mxu0
        %v5379 = vadd.f32 0.0, %v5378
        %v5380 = vpop.f32.mrb[0].mxu0
        %v5381 = vadd.f32 0.0, %v5380
        %v5382 = vpop.f32.mrb[0].mxu0
        %v5383 = vadd.f32 0.0, %v5382
        %v5384 = vpop.f32.mrb[0].mxu0
        %v5385 = vadd.f32 0.0, %v5384
        %5386 = vmatprep.mubr.bf16.mxu0 %v2205
        %5387 = vmatmul.mubr.bf16.gmra.mrb[0].mxu0 %v2204
        %v5388 = vpop.f32.mrb[0].mxu0
        %v5389 = vadd.f32 0.0, %v5388
        %v5390 = vpop.f32.mrb[0].mxu0
        %v5391 = vadd.f32 0.0, %v5390
        %v5392 = vpop.f32.mrb[0].mxu0
        %v5393 = vadd.f32 0.0, %v5392
        %v5394 = vpop.f32.mrb[0].mxu0
        %v5395 = vadd.f32 0.0, %v5394
        %5396 = vmatprep.mubr.bf16.mxu0 %v2217
        %5397 = vmatmul.mubr.bf16.gmra.mrb[0].mxu0 %v2216
        %v5398 = vpop.f32.mrb[0].mxu0
        %v5399 = vadd.f32 0.0, %v5398
        %v5400 = vpop.f32.mrb[0].mxu0
        %v5401 = vadd.f32 0.0, %v5400
        %v5402 = vpop.f32.mrb[0].mxu0
        %v5403 = vadd.f32 0.0, %v5402
        %v5404 = vpop.f32.mrb[0].mxu0
        %v5405 = vadd.f32 0.0, %v5404
        %5406 = vmatprep.mubr.bf16.mxu0 %v2229
        %5407 = vmatmul.mubr.bf16.gmra.mrb[0].mxu0 %v2228
        %v5408 = vpop.f32.mrb[0].mxu0
        %v5409 = vadd.f32 0.0, %v5408
        %v5410 = vpop.f32.mrb[0].mxu0
        %v5411 = vadd.f32 0.0, %v5410
        %v5412 = vpop.f32.mrb[0].mxu0
        %v5413 = vadd.f32 0.0, %v5412
        %v5414 = vpop.f32.mrb[0].mxu0
        %v5415 = vadd.f32 0.0, %v5414
        %5416 = vdwg.mxu0
        %5417 = vmatprep.subr.bf16.mxu0 %v4209
        %5418 = vmatpush1.bf16.msra.mxu0 %v4208
        %5419 = vmatprep.subr.bf16.mxu0 %v4215
        %5420 = vmatpush1.bf16.msra.mxu0 %v4214
        %5421 = vmatprep.subr.bf16.mxu0 %v4221
        %5422 = vmatpush1.bf16.msra.mxu0 %v4220
        %5423 = vmatprep.subr.bf16.mxu0 %v4227
        %5424 = vmatpush1.bf16.msra.mxu0 %v4226
        %5425 = vmatprep.subr.bf16.mxu0 %v4233
        %5426 = vmatpush1.bf16.msra.mxu0 %v4232
        %5427 = vmatprep.subr.bf16.mxu0 %v4239
        %5428 = vmatpush1.bf16.msra.mxu0 %v4238
        %5429 = vmatprep.subr.bf16.mxu0 %v4245
        %5430 = vmatpush1.bf16.msra.mxu0 %v4244
        %5431 = vmatprep.subr.bf16.mxu0 %v4251
        %5432 = vmatpush1.bf16.msra.mxu0 %v4250
        %5433 = vmatprep.subr.bf16.mxu0 %v4257
        %5434 = vmatpush1.bf16.msra.mxu0 %v4256
        %5435 = vmatprep.subr.bf16.mxu0 %v4263
        %5436 = vmatpush1.bf16.msra.mxu0 %v4262
        %5437 = vmatprep.subr.bf16.mxu0 %v4269
        %5438 = vmatpush1.bf16.msra.mxu0 %v4268
        %5439 = vmatprep.subr.bf16.mxu0 %v4275
        %5440 = vmatpush1.bf16.msra.mxu0 %v4274
        %5441 = vmatprep.subr.bf16.mxu0 %v4281
        %5442 = vmatpush1.bf16.msra.mxu0 %v4280
        %5443 = vmatprep.subr.bf16.mxu0 %v4287
        %5444 = vmatpush1.bf16.msra.mxu0 %v4286
        %5445 = vmatprep.subr.bf16.mxu0 %v4293
        %5446 = vmatpush1.bf16.msra.mxu0 %v4292
        %5447 = vmatprep.subr.bf16.mxu0 %v4299
        %5448 = vmatpush1.bf16.msra.mxu0 %v4298
        %5449 = vmatprep.mubr.bf16.mxu0 %v2099
        %5450 = vmatmul.mubr.bf16.gmra.mrb[0].mxu0 %v2098
        %v5451 = vpop.f32.mrb[0].mxu0
        %v5452 = vadd.f32 %v5299, %v5451
        %v5453 = vpop.f32.mrb[0].mxu0
        %v5454 = vadd.f32 %v5301, %v5453
        %v5455 = vpop.f32.mrb[0].mxu0
        %v5456 = vadd.f32 %v5303, %v5455
        %v5457 = vpop.f32.mrb[0].mxu0
        %v5458 = vadd.f32 %v5305, %v5457
        %5459 = vmatprep.mubr.bf16.mxu0 %v2111
        %5460 = vmatmul.mubr.bf16.gmra.mrb[0].mxu0 %v2110
        %v5461 = vpop.f32.mrb[0].mxu0
        %v5462 = vadd.f32 %v5309, %v5461
        %v5463 = vpop.f32.mrb[0].mxu0
        %v5464 = vadd.f32 %v5311, %v5463
        %v5465 = vpop.f32.mrb[0].mxu0
        %v5466 = vadd.f32 %v5313, %v5465
        %v5467 = vpop.f32.mrb[0].mxu0
        %v5468 = vadd.f32 %v5315, %v5467
        %5469 = vmatprep.mubr.bf16.mxu0 %v2123
        %5470 = vmatmul.mubr.bf16.gmra.mrb[0].mxu0 %v2122
        %v5471 = vpop.f32.mrb[0].mxu0
        %v5472 = vadd.f32 %v5319, %v5471
        %v5473 = vpop.f32.mrb[0].mxu0
        %v5474 = vadd.f32 %v5321, %v5473
        %v5475 = vpop.f32.mrb[0].mxu0
        %v5476 = vadd.f32 %v5323, %v5475
        %v5477 = vpop.f32.mrb[0].mxu0
        %v5478 = vadd.f32 %v5325, %v5477
        %5479 = vmatprep.mubr.bf16.mxu0 %v2135
        %5480 = vmatmul.mubr.bf16.gmra.mrb[0].mxu0 %v2134
        %v5481 = vpop.f32.mrb[0].mxu0
        %v5482 = vadd.f32 %v5329, %v5481
        %v5483 = vpop.f32.mrb[0].mxu0
        %v5484 = vadd.f32 %v5331, %v5483
        %v5485 = vpop.f32.mrb[0].mxu0
        %v5486 = vadd.f32 %v5333, %v5485
        %v5487 = vpop.f32.mrb[0].mxu0
        %v5488 = vadd.f32 %v5335, %v5487
        %5489 = vmatprep.mubr.bf16.mxu0 %v2147
        %5490 = vmatmul.mubr.bf16.gmra.mrb[0].mxu0 %v2146
        %v5491 = vpop.f32.mrb[0].mxu0
        %v5492 = vadd.f32 %v5339, %v5491
        %v5493 = vpop.f32.mrb[0].mxu0
        %v5494 = vadd.f32 %v5341, %v5493
        %v5495 = vpop.f32.mrb[0].mxu0
        %v5496 = vadd.f32 %v5343, %v5495
        %v5497 = vpop.f32.mrb[0].mxu0
        %v5498 = vadd.f32 %v5345, %v5497
        %5499 = vmatprep.mubr.bf16.mxu0 %v2159
        %5500 = vmatmul.mubr.bf16.gmra.mrb[0].mxu0 %v2158
        %v5501 = vpop.f32.mrb[0].mxu0
        %v5502 = vadd.f32 %v5349, %v5501
        %v5503 = vpop.f32.mrb[0].mxu0
        %v5504 = vadd.f32 %v5351, %v5503
        %v5505 = vpop.f32.mrb[0].mxu0
        %v5506 = vadd.f32 %v5353, %v5505
        %v5507 = vpop.f32.mrb[0].mxu0
        %v5508 = vadd.f32 %v5355, %v5507
        %5509 = vmatprep.mubr.bf16.mxu0 %v2171
        %5510 = vmatmul.mubr.bf16.gmra.mrb[0].mxu0 %v2170
        %v5511 = vpop.f32.mrb[0].mxu0
        %v5512 = vadd.f32 %v5359, %v5511
        %v5513 = vpop.f32.mrb[0].mxu0
        %v5514 = vadd.f32 %v5361, %v5513
        %v5515 = vpop.f32.mrb[0].mxu0
        %v5516 = vadd.f32 %v5363, %v5515
        %v5517 = vpop.f32.mrb[0].mxu0
        %v5518 = vadd.f32 %v5365, %v5517
        %5519 = vmatprep.mubr.bf16.mxu0 %v2183
        %5520 = vmatmul.mubr.bf16.gmra.mrb[0].mxu0 %v2182
        %v5521 = vpop.f32.mrb[0].mxu0
        %v5522 = vadd.f32 %v5369, %v5521
        %v5523 = vpop.f32.mrb[0].mxu0
        %v5524 = vadd.f32 %v5371, %v5523
        %v5525 = vpop.f32.mrb[0].mxu0
        %v5526 = vadd.f32 %v5373, %v5525
        %v5527 = vpop.f32.mrb[0].mxu0
        %v5528 = vadd.f32 %v5375, %v5527
        %5529 = vmatprep.mubr.bf16.mxu0 %v2195
        %5530 = vmatmul.mubr.bf16.gmra.mrb[0].mxu0 %v2194
        %v5531 = vpop.f32.mrb[0].mxu0
        %v5532 = vadd.f32 %v5379, %v5531
        %v5533 = vpop.f32.mrb[0].mxu0
        %v5534 = vadd.f32 %v5381, %v5533
        %v5535 = vpop.f32.mrb[0].mxu0
        %v5536 = vadd.f32 %v5383, %v5535
        %v5537 = vpop.f32.mrb[0].mxu0
        %v5538 = vadd.f32 %v5385, %v5537
        %5539 = vmatprep.mubr.bf16.mxu0 %v2207
        %5540 = vmatmul.mubr.bf16.gmra.mrb[0].mxu0 %v2206
        %v5541 = vpop.f32.mrb[0].mxu0
        %v5542 = vadd.f32 %v5389, %v5541
        %v5543 = vpop.f32.mrb[0].mxu0
        %v5544 = vadd.f32 %v5391, %v5543
        %v5545 = vpop.f32.mrb[0].mxu0
        %v5546 = vadd.f32 %v5393, %v5545
        %v5547 = vpop.f32.mrb[0].mxu0
        %v5548 = vadd.f32 %v5395, %v5547
        %5549 = vmatprep.mubr.bf16.mxu0 %v2219
        %5550 = vmatmul.mubr.bf16.gmra.mrb[0].mxu0 %v2218
        %v5551 = vpop.f32.mrb[0].mxu0
        %v5552 = vadd.f32 %v5399, %v5551
        %v5553 = vpop.f32.mrb[0].mxu0
        %v5554 = vadd.f32 %v5401, %v5553
        %v5555 = vpop.f32.mrb[0].mxu0
        %v5556 = vadd.f32 %v5403, %v5555
        %v5557 = vpop.f32.mrb[0].mxu0
        %v5558 = vadd.f32 %v5405, %v5557
        %5559 = vmatprep.mubr.bf16.mxu0 %v2231
        %5560 = vmatmul.mubr.bf16.gmra.mrb[0].mxu0 %v2230
        %v5561 = vpop.f32.mrb[0].mxu0
        %v5562 = vadd.f32 %v5409, %v5561
        %v5563 = vpop.f32.mrb[0].mxu0
        %v5564 = vadd.f32 %v5411, %v5563
        %v5565 = vpop.f32.mrb[0].mxu0
        %v5566 = vadd.f32 %v5413, %v5565
        %v5567 = vpop.f32.mrb[0].mxu0
        %v5568 = vadd.f32 %v5415, %v5567
        %5569 = vdwg.mxu0
        %5570 = vmatprep.subr.bf16.mxu0 %v4305
        %5571 = vmatpush1.bf16.msra.mxu0 %v4304
        %5572 = vmatprep.subr.bf16.mxu0 %v4311
        %5573 = vmatpush1.bf16.msra.mxu0 %v4310
        %5574 = vmatprep.subr.bf16.mxu0 %v4317
        %5575 = vmatpush1.bf16.msra.mxu0 %v4316
        %5576 = vmatprep.subr.bf16.mxu0 %v4323
        %5577 = vmatpush1.bf16.msra.mxu0 %v4322
        %5578 = vmatprep.subr.bf16.mxu0 %v4329
        %5579 = vmatpush1.bf16.msra.mxu0 %v4328
        %5580 = vmatprep.subr.bf16.mxu0 %v4335
        %5581 = vmatpush1.bf16.msra.mxu0 %v4334
        %5582 = vmatprep.subr.bf16.mxu0 %v4341
        %5583 = vmatpush1.bf16.msra.mxu0 %v4340
        %5584 = vmatprep.subr.bf16.mxu0 %v4347
        %5585 = vmatpush1.bf16.msra.mxu0 %v4346
        %5586 = vmatprep.subr.bf16.mxu0 %v4353
        %5587 = vmatpush1.bf16.msra.mxu0 %v4352
        %5588 = vmatprep.subr.bf16.mxu0 %v4359
        %5589 = vmatpush1.bf16.msra.mxu0 %v4358
        %5590 = vmatprep.subr.bf16.mxu0 %v4365
        %5591 = vmatpush1.bf16.msra.mxu0 %v4364
        %5592 = vmatprep.subr.bf16.mxu0 %v4371
        %5593 = vmatpush1.bf16.msra.mxu0 %v4370
        %5594 = vmatprep.subr.bf16.mxu0 %v4377
        %5595 = vmatpush1.bf16.msra.mxu0 %v4376
        %5596 = vmatprep.subr.bf16.mxu0 %v4383
        %5597 = vmatpush1.bf16.msra.mxu0 %v4382
        %5598 = vmatprep.subr.bf16.mxu0 %v4389
        %5599 = vmatpush1.bf16.msra.mxu0 %v4388
        %5600 = vmatprep.subr.bf16.mxu0 %v4395
        %5601 = vmatpush1.bf16.msra.mxu0 %v4394
        %5602 = vmatprep.mubr.bf16.mxu0 %v2101
        %5603 = vmatmul.mubr.bf16.gmra.mrb[0].mxu0 %v2100
        %v5604 = vpop.f32.mrb[0].mxu0
        %v5605 = vadd.f32 %v5452, %v5604
        %v5606 = vpop.f32.mrb[0].mxu0
        %v5607 = vadd.f32 %v5454, %v5606
        %v5608 = vpop.f32.mrb[0].mxu0
        %v5609 = vadd.f32 %v5456, %v5608
        %v5610 = vpop.f32.mrb[0].mxu0
        %v5611 = vadd.f32 %v5458, %v5610
        %5612 = vmatprep.mubr.bf16.mxu0 %v2113
        %5613 = vmatmul.mubr.bf16.gmra.mrb[0].mxu0 %v2112
        %v5614 = vpop.f32.mrb[0].mxu0
        %v5615 = vadd.f32 %v5462, %v5614
        %v5616 = vpop.f32.mrb[0].mxu0
        %v5617 = vadd.f32 %v5464, %v5616
        %v5618 = vpop.f32.mrb[0].mxu0
        %v5619 = vadd.f32 %v5466, %v5618
        %v5620 = vpop.f32.mrb[0].mxu0
        %v5621 = vadd.f32 %v5468, %v5620
        %5622 = vmatprep.mubr.bf16.mxu0 %v2125
        %5623 = vmatmul.mubr.bf16.gmra.mrb[0].mxu0 %v2124
        %v5624 = vpop.f32.mrb[0].mxu0
        %v5625 = vadd.f32 %v5472, %v5624
        %v5626 = vpop.f32.mrb[0].mxu0
        %v5627 = vadd.f32 %v5474, %v5626
        %v5628 = vpop.f32.mrb[0].mxu0
        %v5629 = vadd.f32 %v5476, %v5628
        %v5630 = vpop.f32.mrb[0].mxu0
        %v5631 = vadd.f32 %v5478, %v5630
        %5632 = vmatprep.mubr.bf16.mxu0 %v2137
        %5633 = vmatmul.mubr.bf16.gmra.mrb[0].mxu0 %v2136
        %v5634 = vpop.f32.mrb[0].mxu0
        %v5635 = vadd.f32 %v5482, %v5634
        %v5636 = vpop.f32.mrb[0].mxu0
        %v5637 = vadd.f32 %v5484, %v5636
        %v5638 = vpop.f32.mrb[0].mxu0
        %v5639 = vadd.f32 %v5486, %v5638
        %v5640 = vpop.f32.mrb[0].mxu0
        %v5641 = vadd.f32 %v5488, %v5640
        %5642 = vmatprep.mubr.bf16.mxu0 %v2149
        %5643 = vmatmul.mubr.bf16.gmra.mrb[0].mxu0 %v2148
        %v5644 = vpop.f32.mrb[0].mxu0
        %v5645 = vadd.f32 %v5492, %v5644
        %v5646 = vpop.f32.mrb[0].mxu0
        %v5647 = vadd.f32 %v5494, %v5646
        %v5648 = vpop.f32.mrb[0].mxu0
        %v5649 = vadd.f32 %v5496, %v5648
        %v5650 = vpop.f32.mrb[0].mxu0
        %v5651 = vadd.f32 %v5498, %v5650
        %5652 = vmatprep.mubr.bf16.mxu0 %v2161
        %5653 = vmatmul.mubr.bf16.gmra.mrb[0].mxu0 %v2160
        %v5654 = vpop.f32.mrb[0].mxu0
        %v5655 = vadd.f32 %v5502, %v5654
        %v5656 = vpop.f32.mrb[0].mxu0
        %v5657 = vadd.f32 %v5504, %v5656
        %v5658 = vpop.f32.mrb[0].mxu0
        %v5659 = vadd.f32 %v5506, %v5658
        %v5660 = vpop.f32.mrb[0].mxu0
        %v5661 = vadd.f32 %v5508, %v5660
        %5662 = vmatprep.mubr.bf16.mxu0 %v2173
        %5663 = vmatmul.mubr.bf16.gmra.mrb[0].mxu0 %v2172
        %v5664 = vpop.f32.mrb[0].mxu0
        %v5665 = vadd.f32 %v5512, %v5664
        %v5666 = vpop.f32.mrb[0].mxu0
        %v5667 = vadd.f32 %v5514, %v5666
        %v5668 = vpop.f32.mrb[0].mxu0
        %v5669 = vadd.f32 %v5516, %v5668
        %v5670 = vpop.f32.mrb[0].mxu0
        %v5671 = vadd.f32 %v5518, %v5670
        %5672 = vmatprep.mubr.bf16.mxu0 %v2185
        %5673 = vmatmul.mubr.bf16.gmra.mrb[0].mxu0 %v2184
        %v5674 = vpop.f32.mrb[0].mxu0
        %v5675 = vadd.f32 %v5522, %v5674
        %v5676 = vpop.f32.mrb[0].mxu0
        %v5677 = vadd.f32 %v5524, %v5676
        %v5678 = vpop.f32.mrb[0].mxu0
        %v5679 = vadd.f32 %v5526, %v5678
        %v5680 = vpop.f32.mrb[0].mxu0
        %v5681 = vadd.f32 %v5528, %v5680
        %5682 = vmatprep.mubr.bf16.mxu0 %v2197
        %5683 = vmatmul.mubr.bf16.gmra.mrb[0].mxu0 %v2196
        %v5684 = vpop.f32.mrb[0].mxu0
        %v5685 = vadd.f32 %v5532, %v5684
        %v5686 = vpop.f32.mrb[0].mxu0
        %v5687 = vadd.f32 %v5534, %v5686
        %v5688 = vpop.f32.mrb[0].mxu0
        %v5689 = vadd.f32 %v5536, %v5688
        %v5690 = vpop.f32.mrb[0].mxu0
        %v5691 = vadd.f32 %v5538, %v5690
        %5692 = vmatprep.mubr.bf16.mxu0 %v2209
        %5693 = vmatmul.mubr.bf16.gmra.mrb[0].mxu0 %v2208
        %v5694 = vpop.f32.mrb[0].mxu0
        %v5695 = vadd.f32 %v5542, %v5694
        %v5696 = vpop.f32.mrb[0].mxu0
        %v5697 = vadd.f32 %v5544, %v5696
        %v5698 = vpop.f32.mrb[0].mxu0
        %v5699 = vadd.f32 %v5546, %v5698
        %v5700 = vpop.f32.mrb[0].mxu0
        %v5701 = vadd.f32 %v5548, %v5700
        %5702 = vmatprep.mubr.bf16.mxu0 %v2221
        %5703 = vmatmul.mubr.bf16.gmra.mrb[0].mxu0 %v2220
        %v5704 = vpop.f32.mrb[0].mxu0
        %v5705 = vadd.f32 %v5552, %v5704
        %v5706 = vpop.f32.mrb[0].mxu0
        %v5707 = vadd.f32 %v5554, %v5706
        %v5708 = vpop.f32.mrb[0].mxu0
        %v5709 = vadd.f32 %v5556, %v5708
        %v5710 = vpop.f32.mrb[0].mxu0
        %v5711 = vadd.f32 %v5558, %v5710
        %5712 = vmatprep.mubr.bf16.mxu0 %v2233
        %5713 = vmatmul.mubr.bf16.gmra.mrb[0].mxu0 %v2232
        %v5714 = vpop.f32.mrb[0].mxu0
        %v5715 = vadd.f32 %v5562, %v5714
        %v5716 = vpop.f32.mrb[0].mxu0
        %v5717 = vadd.f32 %v5564, %v5716
        %v5718 = vpop.f32.mrb[0].mxu0
        %v5719 = vadd.f32 %v5566, %v5718
        %v5720 = vpop.f32.mrb[0].mxu0
        %v5721 = vadd.f32 %v5568, %v5720
        %5722 = vdwg.mxu0
        %5723 = vmatprep.subr.bf16.mxu0 %v4401
        %5724 = vmatpush1.bf16.msra.mxu0 %v4400
        %5725 = vmatprep.subr.bf16.mxu0 %v4407
        %5726 = vmatpush1.bf16.msra.mxu0 %v4406
        %5727 = vmatprep.subr.bf16.mxu0 %v4413
        %5728 = vmatpush1.bf16.msra.mxu0 %v4412
        %5729 = vmatprep.subr.bf16.mxu0 %v4419
        %5730 = vmatpush1.bf16.msra.mxu0 %v4418
        %5731 = vmatprep.subr.bf16.mxu0 %v4425
        %5732 = vmatpush1.bf16.msra.mxu0 %v4424
        %5733 = vmatprep.subr.bf16.mxu0 %v4431
        %5734 = vmatpush1.bf16.msra.mxu0 %v4430
        %5735 = vmatprep.subr.bf16.mxu0 %v4437
        %5736 = vmatpush1.bf16.msra.mxu0 %v4436
        %5737 = vmatprep.subr.bf16.mxu0 %v4443
        %5738 = vmatpush1.bf16.msra.mxu0 %v4442
        %5739 = vmatprep.subr.bf16.mxu0 %v4449
        %5740 = vmatpush1.bf16.msra.mxu0 %v4448
        %5741 = vmatprep.subr.bf16.mxu0 %v4455
        %5742 = vmatpush1.bf16.msra.mxu0 %v4454
        %5743 = vmatprep.subr.bf16.mxu0 %v4461
        %5744 = vmatpush1.bf16.msra.mxu0 %v4460
        %5745 = vmatprep.subr.bf16.mxu0 %v4467
        %5746 = vmatpush1.bf16.msra.mxu0 %v4466
        %5747 = vmatprep.subr.bf16.mxu0 %v4473
        %5748 = vmatpush1.bf16.msra.mxu0 %v4472
        %5749 = vmatprep.subr.bf16.mxu0 %v4479
        %5750 = vmatpush1.bf16.msra.mxu0 %v4478
        %5751 = vmatprep.subr.bf16.mxu0 %v4485
        %5752 = vmatpush1.bf16.msra.mxu0 %v4484
        %5753 = vmatprep.subr.bf16.mxu0 %v4491
        %5754 = vmatpush1.bf16.msra.mxu0 %v4490
        %5755 = vmatprep.mubr.bf16.mxu0 %v2103
        %5756 = vmatmul.mubr.bf16.gmra.mrb[0].mxu0 %v2102
        %v5757 = vpop.f32.mrb[0].mxu0
        %v5758 = vadd.f32 %v5605, %v5757
        %v5759 = vpop.f32.mrb[0].mxu0
        %v5760 = vadd.f32 %v5607, %v5759
        %v5761 = vpop.f32.mrb[0].mxu0
        %v5762 = vadd.f32 %v5609, %v5761
        %v5763 = vpop.f32.mrb[0].mxu0
        %v5764 = vadd.f32 %v5611, %v5763
        %5765 = vmatprep.mubr.bf16.mxu0 %v2115
        %5766 = vmatmul.mubr.bf16.gmra.mrb[0].mxu0 %v2114
        %v5767 = vpop.f32.mrb[0].mxu0
        %v5768 = vadd.f32 %v5615, %v5767
        %v5769 = vpop.f32.mrb[0].mxu0
        %v5770 = vadd.f32 %v5617, %v5769
        %v5771 = vpop.f32.mrb[0].mxu0
        %v5772 = vadd.f32 %v5619, %v5771
        %v5773 = vpop.f32.mrb[0].mxu0
        %v5774 = vadd.f32 %v5621, %v5773
        %5775 = vmatprep.mubr.bf16.mxu0 %v2127
        %5776 = vmatmul.mubr.bf16.gmra.mrb[0].mxu0 %v2126
        %v5777 = vpop.f32.mrb[0].mxu0
        %v5778 = vadd.f32 %v5625, %v5777
        %v5779 = vpop.f32.mrb[0].mxu0
        %v5780 = vadd.f32 %v5627, %v5779
        %v5781 = vpop.f32.mrb[0].mxu0
        %v5782 = vadd.f32 %v5629, %v5781
        %v5783 = vpop.f32.mrb[0].mxu0
        %v5784 = vadd.f32 %v5631, %v5783
        %5785 = vmatprep.mubr.bf16.mxu0 %v2139
        %5786 = vmatmul.mubr.bf16.gmra.mrb[0].mxu0 %v2138
        %v5787 = vpop.f32.mrb[0].mxu0
        %v5788 = vadd.f32 %v5635, %v5787
        %v5789 = vpop.f32.mrb[0].mxu0
        %v5790 = vadd.f32 %v5637, %v5789
        %v5791 = vpop.f32.mrb[0].mxu0
        %v5792 = vadd.f32 %v5639, %v5791
        %v5793 = vpop.f32.mrb[0].mxu0
        %v5794 = vadd.f32 %v5641, %v5793
        %5795 = vmatprep.mubr.bf16.mxu0 %v2151
        %5796 = vmatmul.mubr.bf16.gmra.mrb[0].mxu0 %v2150
        %v5797 = vpop.f32.mrb[0].mxu0
        %v5798 = vadd.f32 %v5645, %v5797
        %v5799 = vpop.f32.mrb[0].mxu0
        %v5800 = vadd.f32 %v5647, %v5799
        %v5801 = vpop.f32.mrb[0].mxu0
        %v5802 = vadd.f32 %v5649, %v5801
        %v5803 = vpop.f32.mrb[0].mxu0
        %v5804 = vadd.f32 %v5651, %v5803
        %5805 = vmatprep.mubr.bf16.mxu0 %v2163
        %5806 = vmatmul.mubr.bf16.gmra.mrb[0].mxu0 %v2162
        %v5807 = vpop.f32.mrb[0].mxu0
        %v5808 = vadd.f32 %v5655, %v5807
        %v5809 = vpop.f32.mrb[0].mxu0
        %v5810 = vadd.f32 %v5657, %v5809
        %v5811 = vpop.f32.mrb[0].mxu0
        %v5812 = vadd.f32 %v5659, %v5811
        %v5813 = vpop.f32.mrb[0].mxu0
        %v5814 = vadd.f32 %v5661, %v5813
        %5815 = vmatprep.mubr.bf16.mxu0 %v2175
        %5816 = vmatmul.mubr.bf16.gmra.mrb[0].mxu0 %v2174
        %v5817 = vpop.f32.mrb[0].mxu0
        %v5818 = vadd.f32 %v5665, %v5817
        %v5819 = vpop.f32.mrb[0].mxu0
        %v5820 = vadd.f32 %v5667, %v5819
        %v5821 = vpop.f32.mrb[0].mxu0
        %v5822 = vadd.f32 %v5669, %v5821
        %v5823 = vpop.f32.mrb[0].mxu0
        %v5824 = vadd.f32 %v5671, %v5823
        %5825 = vmatprep.mubr.bf16.mxu0 %v2187
        %5826 = vmatmul.mubr.bf16.gmra.mrb[0].mxu0 %v2186
        %v5827 = vpop.f32.mrb[0].mxu0
        %v5828 = vadd.f32 %v5675, %v5827
        %v5829 = vpop.f32.mrb[0].mxu0
        %v5830 = vadd.f32 %v5677, %v5829
        %v5831 = vpop.f32.mrb[0].mxu0
        %v5832 = vadd.f32 %v5679, %v5831
        %v5833 = vpop.f32.mrb[0].mxu0
        %v5834 = vadd.f32 %v5681, %v5833
        %5835 = vmatprep.mubr.bf16.mxu0 %v2199
        %5836 = vmatmul.mubr.bf16.gmra.mrb[0].mxu0 %v2198
        %v5837 = vpop.f32.mrb[0].mxu0
        %v5838 = vadd.f32 %v5685, %v5837
        %v5839 = vpop.f32.mrb[0].mxu0
        %v5840 = vadd.f32 %v5687, %v5839
        %v5841 = vpop.f32.mrb[0].mxu0
        %v5842 = vadd.f32 %v5689, %v5841
        %v5843 = vpop.f32.mrb[0].mxu0
        %v5844 = vadd.f32 %v5691, %v5843
        %5845 = vmatprep.mubr.bf16.mxu0 %v2211
        %5846 = vmatmul.mubr.bf16.gmra.mrb[0].mxu0 %v2210
        %v5847 = vpop.f32.mrb[0].mxu0
        %v5848 = vadd.f32 %v5695, %v5847
        %v5849 = vpop.f32.mrb[0].mxu0
        %v5850 = vadd.f32 %v5697, %v5849
        %v5851 = vpop.f32.mrb[0].mxu0
        %v5852 = vadd.f32 %v5699, %v5851
        %v5853 = vpop.f32.mrb[0].mxu0
        %v5854 = vadd.f32 %v5701, %v5853
        %5855 = vmatprep.mubr.bf16.mxu0 %v2223
        %5856 = vmatmul.mubr.bf16.gmra.mrb[0].mxu0 %v2222
        %v5857 = vpop.f32.mrb[0].mxu0
        %v5858 = vadd.f32 %v5705, %v5857
        %v5859 = vpop.f32.mrb[0].mxu0
        %v5860 = vadd.f32 %v5707, %v5859
        %v5861 = vpop.f32.mrb[0].mxu0
        %v5862 = vadd.f32 %v5709, %v5861
        %v5863 = vpop.f32.mrb[0].mxu0
        %v5864 = vadd.f32 %v5711, %v5863
        %5865 = vmatprep.mubr.bf16.mxu0 %v2235
        %5866 = vmatmul.mubr.bf16.gmra.mrb[0].mxu0 %v2234
        %v5867 = vpop.f32.mrb[0].mxu0
        %v5868 = vadd.f32 %v5715, %v5867
        %v5869 = vpop.f32.mrb[0].mxu0
        %v5870 = vadd.f32 %v5717, %v5869
        %v5871 = vpop.f32.mrb[0].mxu0
        %v5872 = vadd.f32 %v5719, %v5871
        %v5873 = vpop.f32.mrb[0].mxu0
        %v5874 = vadd.f32 %v5721, %v5873
        %5875 = vdwg.mxu0
        %5876 = vmatprep.subr.bf16.mxu0 %v4497
        %5877 = vmatpush1.bf16.msra.mxu0 %v4496
        %5878 = vmatprep.subr.bf16.mxu0 %v4503
        %5879 = vmatpush1.bf16.msra.mxu0 %v4502
        %5880 = vmatprep.subr.bf16.mxu0 %v4509
        %5881 = vmatpush1.bf16.msra.mxu0 %v4508
        %5882 = vmatprep.subr.bf16.mxu0 %v4515
        %5883 = vmatpush1.bf16.msra.mxu0 %v4514
        %5884 = vmatprep.subr.bf16.mxu0 %v4521
        %5885 = vmatpush1.bf16.msra.mxu0 %v4520
        %5886 = vmatprep.subr.bf16.mxu0 %v4527
        %5887 = vmatpush1.bf16.msra.mxu0 %v4526
        %5888 = vmatprep.subr.bf16.mxu0 %v4533
        %5889 = vmatpush1.bf16.msra.mxu0 %v4532
        %5890 = vmatprep.subr.bf16.mxu0 %v4539
        %5891 = vmatpush1.bf16.msra.mxu0 %v4538
        %5892 = vmatprep.subr.bf16.mxu0 %v4545
        %5893 = vmatpush1.bf16.msra.mxu0 %v4544
        %5894 = vmatprep.subr.bf16.mxu0 %v4551
        %5895 = vmatpush1.bf16.msra.mxu0 %v4550
        %5896 = vmatprep.subr.bf16.mxu0 %v4557
        %5897 = vmatpush1.bf16.msra.mxu0 %v4556
        %5898 = vmatprep.subr.bf16.mxu0 %v4563
        %5899 = vmatpush1.bf16.msra.mxu0 %v4562
        %5900 = vmatprep.subr.bf16.mxu0 %v4569
        %5901 = vmatpush1.bf16.msra.mxu0 %v4568
        %5902 = vmatprep.subr.bf16.mxu0 %v4575
        %5903 = vmatpush1.bf16.msra.mxu0 %v4574
        %5904 = vmatprep.subr.bf16.mxu0 %v4581
        %5905 = vmatpush1.bf16.msra.mxu0 %v4580
        %5906 = vmatprep.subr.bf16.mxu0 %v4587
        %5907 = vmatpush1.bf16.msra.mxu0 %v4586
        %5908 = vmatprep.mubr.bf16.mxu0 %v2105
        %5909 = vmatmul.mubr.bf16.gmra.mrb[0].mxu0 %v2104
        %v5910 = vpop.f32.mrb[0].mxu0
        %v5911 = vadd.f32 %v5758, %v5910
        %v5912 = vpop.f32.mrb[0].mxu0
        %v5913 = vadd.f32 %v5760, %v5912
        %v5914 = vpop.f32.mrb[0].mxu0
        %v5915 = vadd.f32 %v5762, %v5914
        %v5916 = vpop.f32.mrb[0].mxu0
        %v5917 = vadd.f32 %v5764, %v5916
        %5918 = vmatprep.mubr.bf16.mxu0 %v2117
        %5919 = vmatmul.mubr.bf16.gmra.mrb[0].mxu0 %v2116
        %v5920 = vpop.f32.mrb[0].mxu0
        %v5921 = vadd.f32 %v5768, %v5920
        %v5922 = vpop.f32.mrb[0].mxu0
        %v5923 = vadd.f32 %v5770, %v5922
        %v5924 = vpop.f32.mrb[0].mxu0
        %v5925 = vadd.f32 %v5772, %v5924
        %v5926 = vpop.f32.mrb[0].mxu0
        %v5927 = vadd.f32 %v5774, %v5926
        %5928 = vmatprep.mubr.bf16.mxu0 %v2129
        %5929 = vmatmul.mubr.bf16.gmra.mrb[0].mxu0 %v2128
        %v5930 = vpop.f32.mrb[0].mxu0
        %v5931 = vadd.f32 %v5778, %v5930
        %v5932 = vpop.f32.mrb[0].mxu0
        %v5933 = vadd.f32 %v5780, %v5932
        %v5934 = vpop.f32.mrb[0].mxu0
        %v5935 = vadd.f32 %v5782, %v5934
        %v5936 = vpop.f32.mrb[0].mxu0
        %v5937 = vadd.f32 %v5784, %v5936
        %5938 = vmatprep.mubr.bf16.mxu0 %v2141
        %5939 = vmatmul.mubr.bf16.gmra.mrb[0].mxu0 %v2140
        %v5940 = vpop.f32.mrb[0].mxu0
        %v5941 = vadd.f32 %v5788, %v5940
        %v5942 = vpop.f32.mrb[0].mxu0
        %v5943 = vadd.f32 %v5790, %v5942
        %v5944 = vpop.f32.mrb[0].mxu0
        %v5945 = vadd.f32 %v5792, %v5944
        %v5946 = vpop.f32.mrb[0].mxu0
        %v5947 = vadd.f32 %v5794, %v5946
        %5948 = vmatprep.mubr.bf16.mxu0 %v2153
        %5949 = vmatmul.mubr.bf16.gmra.mrb[0].mxu0 %v2152
        %v5950 = vpop.f32.mrb[0].mxu0
        %v5951 = vadd.f32 %v5798, %v5950
        %v5952 = vpop.f32.mrb[0].mxu0
        %v5953 = vadd.f32 %v5800, %v5952
        %v5954 = vpop.f32.mrb[0].mxu0
        %v5955 = vadd.f32 %v5802, %v5954
        %v5956 = vpop.f32.mrb[0].mxu0
        %v5957 = vadd.f32 %v5804, %v5956
        %5958 = vmatprep.mubr.bf16.mxu0 %v2165
        %5959 = vmatmul.mubr.bf16.gmra.mrb[0].mxu0 %v2164
        %v5960 = vpop.f32.mrb[0].mxu0
        %v5961 = vadd.f32 %v5808, %v5960
        %v5962 = vpop.f32.mrb[0].mxu0
        %v5963 = vadd.f32 %v5810, %v5962
        %v5964 = vpop.f32.mrb[0].mxu0
        %v5965 = vadd.f32 %v5812, %v5964
        %v5966 = vpop.f32.mrb[0].mxu0
        %v5967 = vadd.f32 %v5814, %v5966
        %5968 = vmatprep.mubr.bf16.mxu0 %v2177
        %5969 = vmatmul.mubr.bf16.gmra.mrb[0].mxu0 %v2176
        %v5970 = vpop.f32.mrb[0].mxu0
        %v5971 = vadd.f32 %v5818, %v5970
        %v5972 = vpop.f32.mrb[0].mxu0
        %v5973 = vadd.f32 %v5820, %v5972
        %v5974 = vpop.f32.mrb[0].mxu0
        %v5975 = vadd.f32 %v5822, %v5974
        %v5976 = vpop.f32.mrb[0].mxu0
        %v5977 = vadd.f32 %v5824, %v5976
        %5978 = vmatprep.mubr.bf16.mxu0 %v2189
        %5979 = vmatmul.mubr.bf16.gmra.mrb[0].mxu0 %v2188
        %v5980 = vpop.f32.mrb[0].mxu0
        %v5981 = vadd.f32 %v5828, %v5980
        %v5982 = vpop.f32.mrb[0].mxu0
        %v5983 = vadd.f32 %v5830, %v5982
        %v5984 = vpop.f32.mrb[0].mxu0
        %v5985 = vadd.f32 %v5832, %v5984
        %v5986 = vpop.f32.mrb[0].mxu0
        %v5987 = vadd.f32 %v5834, %v5986
        %5988 = vmatprep.mubr.bf16.mxu0 %v2201
        %5989 = vmatmul.mubr.bf16.gmra.mrb[0].mxu0 %v2200
        %v5990 = vpop.f32.mrb[0].mxu0
        %v5991 = vadd.f32 %v5838, %v5990
        %v5992 = vpop.f32.mrb[0].mxu0
        %v5993 = vadd.f32 %v5840, %v5992
        %v5994 = vpop.f32.mrb[0].mxu0
        %v5995 = vadd.f32 %v5842, %v5994
        %v5996 = vpop.f32.mrb[0].mxu0
        %v5997 = vadd.f32 %v5844, %v5996
        %5998 = vmatprep.mubr.bf16.mxu0 %v2213
        %5999 = vmatmul.mubr.bf16.gmra.mrb[0].mxu0 %v2212
        %v6000 = vpop.f32.mrb[0].mxu0
        %v6001 = vadd.f32 %v5848, %v6000
        %v6002 = vpop.f32.mrb[0].mxu0
        %v6003 = vadd.f32 %v5850, %v6002
        %v6004 = vpop.f32.mrb[0].mxu0
        %v6005 = vadd.f32 %v5852, %v6004
        %v6006 = vpop.f32.mrb[0].mxu0
        %v6007 = vadd.f32 %v5854, %v6006
        %6008 = vmatprep.mubr.bf16.mxu0 %v2225
        %6009 = vmatmul.mubr.bf16.gmra.mrb[0].mxu0 %v2224
        %v6010 = vpop.f32.mrb[0].mxu0
        %v6011 = vadd.f32 %v5858, %v6010
        %v6012 = vpop.f32.mrb[0].mxu0
        %v6013 = vadd.f32 %v5860, %v6012
        %v6014 = vpop.f32.mrb[0].mxu0
        %v6015 = vadd.f32 %v5862, %v6014
        %v6016 = vpop.f32.mrb[0].mxu0
        %v6017 = vadd.f32 %v5864, %v6016
        %6018 = vmatprep.mubr.bf16.mxu0 %v2237
        %6019 = vmatmul.mubr.bf16.gmra.mrb[0].mxu0 %v2236
        %v6020 = vpop.f32.mrb[0].mxu0
        %v6021 = vadd.f32 %v5868, %v6020
        %v6022 = vpop.f32.mrb[0].mxu0
        %v6023 = vadd.f32 %v5870, %v6022
        %v6024 = vpop.f32.mrb[0].mxu0
        %v6025 = vadd.f32 %v5872, %v6024
        %v6026 = vpop.f32.mrb[0].mxu0
        %v6027 = vadd.f32 %v5874, %v6026
        %6028 = vdwg.mxu0
        %6029 = vmatprep.subr.bf16.mxu0 %v4593
        %6030 = vmatpush1.bf16.msra.mxu0 %v4592
        %6031 = vmatprep.subr.bf16.mxu0 %v4599
        %6032 = vmatpush1.bf16.msra.mxu0 %v4598
        %6033 = vmatprep.subr.bf16.mxu0 %v4605
        %6034 = vmatpush1.bf16.msra.mxu0 %v4604
        %6035 = vmatprep.subr.bf16.mxu0 %v4611
        %6036 = vmatpush1.bf16.msra.mxu0 %v4610
        %6037 = vmatprep.subr.bf16.mxu0 %v4617
        %6038 = vmatpush1.bf16.msra.mxu0 %v4616
        %6039 = vmatprep.subr.bf16.mxu0 %v4623
        %6040 = vmatpush1.bf16.msra.mxu0 %v4622
        %6041 = vmatprep.subr.bf16.mxu0 %v4629
        %6042 = vmatpush1.bf16.msra.mxu0 %v4628
        %6043 = vmatprep.subr.bf16.mxu0 %v4635
        %6044 = vmatpush1.bf16.msra.mxu0 %v4634
        %6045 = vmatprep.subr.bf16.mxu0 %v4641
        %6046 = vmatpush1.bf16.msra.mxu0 %v4640
        %6047 = vmatprep.subr.bf16.mxu0 %v4647
        %6048 = vmatpush1.bf16.msra.mxu0 %v4646
        %6049 = vmatprep.subr.bf16.mxu0 %v4653
        %6050 = vmatpush1.bf16.msra.mxu0 %v4652
        %6051 = vmatprep.subr.bf16.mxu0 %v4659
        %6052 = vmatpush1.bf16.msra.mxu0 %v4658
        %6053 = vmatprep.subr.bf16.mxu0 %v4665
        %6054 = vmatpush1.bf16.msra.mxu0 %v4664
        %6055 = vmatprep.subr.bf16.mxu0 %v4671
        %6056 = vmatpush1.bf16.msra.mxu0 %v4670
        %6057 = vmatprep.subr.bf16.mxu0 %v4677
        %6058 = vmatpush1.bf16.msra.mxu0 %v4676
        %6059 = vmatprep.subr.bf16.mxu0 %v4683
        %6060 = vmatpush1.bf16.msra.mxu0 %v4682
        %6061 = vmatprep.mubr.bf16.mxu0 %v2107
        %6062 = vmatmul.mubr.bf16.gmra.mrb[0].mxu0 %v2106
        %v6063 = vpop.f32.mrb[0].mxu0
        %v6064 = vadd.f32 %v5911, %v6063
        %v6065 = vpop.f32.mrb[0].mxu0
        %v6066 = vadd.f32 %v5913, %v6065
        %v6067 = vpop.f32.mrb[0].mxu0
        %v6068 = vadd.f32 %v5915, %v6067
        %v6069 = vpop.f32.mrb[0].mxu0
        %v6070 = vadd.f32 %v5917, %v6069
        %6071 = vmatprep.mubr.bf16.mxu0 %v2119
        %6072 = vmatmul.mubr.bf16.gmra.mrb[0].mxu0 %v2118
        %v6073 = vpop.f32.mrb[0].mxu0
        %v6074 = vadd.f32 %v5921, %v6073
        %v6075 = vpop.f32.mrb[0].mxu0
        %v6076 = vadd.f32 %v5923, %v6075
        %v6077 = vpop.f32.mrb[0].mxu0
        %v6078 = vadd.f32 %v5925, %v6077
        %v6079 = vpop.f32.mrb[0].mxu0
        %v6080 = vadd.f32 %v5927, %v6079
        %6081 = vmatprep.mubr.bf16.mxu0 %v2131
        %6082 = vmatmul.mubr.bf16.gmra.mrb[0].mxu0 %v2130
        %v6083 = vpop.f32.mrb[0].mxu0
        %v6084 = vadd.f32 %v5931, %v6083
        %v6085 = vpop.f32.mrb[0].mxu0
        %v6086 = vadd.f32 %v5933, %v6085
        %v6087 = vpop.f32.mrb[0].mxu0
        %v6088 = vadd.f32 %v5935, %v6087
        %v6089 = vpop.f32.mrb[0].mxu0
        %v6090 = vadd.f32 %v5937, %v6089
        %6091 = vmatprep.mubr.bf16.mxu0 %v2143
        %6092 = vmatmul.mubr.bf16.gmra.mrb[0].mxu0 %v2142
        %v6093 = vpop.f32.mrb[0].mxu0
        %v6094 = vadd.f32 %v5941, %v6093
        %v6095 = vpop.f32.mrb[0].mxu0
        %v6096 = vadd.f32 %v5943, %v6095
        %v6097 = vpop.f32.mrb[0].mxu0
        %v6098 = vadd.f32 %v5945, %v6097
        %v6099 = vpop.f32.mrb[0].mxu0
        %v6100 = vadd.f32 %v5947, %v6099
        %6101 = vmatprep.mubr.bf16.mxu0 %v2155
        %6102 = vmatmul.mubr.bf16.gmra.mrb[0].mxu0 %v2154
        %v6103 = vpop.f32.mrb[0].mxu0
        %v6104 = vadd.f32 %v5951, %v6103
        %v6105 = vpop.f32.mrb[0].mxu0
        %v6106 = vadd.f32 %v5953, %v6105
        %v6107 = vpop.f32.mrb[0].mxu0
        %v6108 = vadd.f32 %v5955, %v6107
        %v6109 = vpop.f32.mrb[0].mxu0
        %v6110 = vadd.f32 %v5957, %v6109
        %6111 = vmatprep.mubr.bf16.mxu0 %v2167
        %6112 = vmatmul.mubr.bf16.gmra.mrb[0].mxu0 %v2166
        %v6113 = vpop.f32.mrb[0].mxu0
        %v6114 = vadd.f32 %v5961, %v6113
        %v6115 = vpop.f32.mrb[0].mxu0
        %v6116 = vadd.f32 %v5963, %v6115
        %v6117 = vpop.f32.mrb[0].mxu0
        %v6118 = vadd.f32 %v5965, %v6117
        %v6119 = vpop.f32.mrb[0].mxu0
        %v6120 = vadd.f32 %v5967, %v6119
        %6121 = vmatprep.mubr.bf16.mxu0 %v2179
        %6122 = vmatmul.mubr.bf16.gmra.mrb[0].mxu0 %v2178
        %v6123 = vpop.f32.mrb[0].mxu0
        %v6124 = vadd.f32 %v5971, %v6123
        %v6125 = vpop.f32.mrb[0].mxu0
        %v6126 = vadd.f32 %v5973, %v6125
        %v6127 = vpop.f32.mrb[0].mxu0
        %v6128 = vadd.f32 %v5975, %v6127
        %v6129 = vpop.f32.mrb[0].mxu0
        %v6130 = vadd.f32 %v5977, %v6129
        %6131 = vmatprep.mubr.bf16.mxu0 %v2191
        %6132 = vmatmul.mubr.bf16.gmra.mrb[0].mxu0 %v2190
        %v6133 = vpop.f32.mrb[0].mxu0
        %v6134 = vadd.f32 %v5981, %v6133
        %v6135 = vpop.f32.mrb[0].mxu0
        %v6136 = vadd.f32 %v5983, %v6135
        %v6137 = vpop.f32.mrb[0].mxu0
        %v6138 = vadd.f32 %v5985, %v6137
        %v6139 = vpop.f32.mrb[0].mxu0
        %v6140 = vadd.f32 %v5987, %v6139
        %6141 = vmatprep.mubr.bf16.mxu0 %v2203
        %6142 = vmatmul.mubr.bf16.gmra.mrb[0].mxu0 %v2202
        %v6143 = vpop.f32.mrb[0].mxu0
        %v6144 = vadd.f32 %v5991, %v6143
        %v6145 = vpop.f32.mrb[0].mxu0
        %v6146 = vadd.f32 %v5993, %v6145
        %v6147 = vpop.f32.mrb[0].mxu0
        %v6148 = vadd.f32 %v5995, %v6147
        %v6149 = vpop.f32.mrb[0].mxu0
        %v6150 = vadd.f32 %v5997, %v6149
        %6151 = vmatprep.mubr.bf16.mxu0 %v2215
        %6152 = vmatmul.mubr.bf16.gmra.mrb[0].mxu0 %v2214
        %v6153 = vpop.f32.mrb[0].mxu0
        %v6154 = vadd.f32 %v6001, %v6153
        %v6155 = vpop.f32.mrb[0].mxu0
        %v6156 = vadd.f32 %v6003, %v6155
        %v6157 = vpop.f32.mrb[0].mxu0
        %v6158 = vadd.f32 %v6005, %v6157
        %v6159 = vpop.f32.mrb[0].mxu0
        %v6160 = vadd.f32 %v6007, %v6159
        %6161 = vmatprep.mubr.bf16.mxu0 %v2227
        %6162 = vmatmul.mubr.bf16.gmra.mrb[0].mxu0 %v2226
        %v6163 = vpop.f32.mrb[0].mxu0
        %v6164 = vadd.f32 %v6011, %v6163
        %v6165 = vpop.f32.mrb[0].mxu0
        %v6166 = vadd.f32 %v6013, %v6165
        %v6167 = vpop.f32.mrb[0].mxu0
        %v6168 = vadd.f32 %v6015, %v6167
        %v6169 = vpop.f32.mrb[0].mxu0
        %v6170 = vadd.f32 %v6017, %v6169
        %6171 = vmatprep.mubr.bf16.mxu0 %v2239
        %6172 = vmatmul.mubr.bf16.gmra.mrb[0].mxu0 %v2238
        %v6173 = vpop.f32.mrb[0].mxu0
        %v6174 = vadd.f32 %v6021, %v6173
        %v6175 = vpop.f32.mrb[0].mxu0
        %v6176 = vadd.f32 %v6023, %v6175
        %v6177 = vpop.f32.mrb[0].mxu0
        %v6178 = vadd.f32 %v6025, %v6177
        %v6179 = vpop.f32.mrb[0].mxu0
        %v6180 = vadd.f32 %v6027, %v6179
        %6181 = vdwg.mxu0
        %6182 = vmatprep.subr.bf16.mxu0 %v4115
        %6183 = vmatpush1.bf16.msra.mxu0 %v4114
        %6184 = vmatprep.subr.bf16.mxu0 %v4121
        %6185 = vmatpush1.bf16.msra.mxu0 %v4120
        %6186 = vmatprep.subr.bf16.mxu0 %v4127
        %6187 = vmatpush1.bf16.msra.mxu0 %v4126
        %6188 = vmatprep.subr.bf16.mxu0 %v4133
        %6189 = vmatpush1.bf16.msra.mxu0 %v4132
        %6190 = vmatprep.subr.bf16.mxu0 %v4139
        %6191 = vmatpush1.bf16.msra.mxu0 %v4138
        %6192 = vmatprep.subr.bf16.mxu0 %v4145
        %6193 = vmatpush1.bf16.msra.mxu0 %v4144
        %6194 = vmatprep.subr.bf16.mxu0 %v4151
        %6195 = vmatpush1.bf16.msra.mxu0 %v4150
        %6196 = vmatprep.subr.bf16.mxu0 %v4157
        %6197 = vmatpush1.bf16.msra.mxu0 %v4156
        %6198 = vmatprep.subr.bf16.mxu0 %v4163
        %6199 = vmatpush1.bf16.msra.mxu0 %v4162
        %6200 = vmatprep.subr.bf16.mxu0 %v4169
        %6201 = vmatpush1.bf16.msra.mxu0 %v4168
        %6202 = vmatprep.subr.bf16.mxu0 %v4175
        %6203 = vmatpush1.bf16.msra.mxu0 %v4174
        %6204 = vmatprep.subr.bf16.mxu0 %v4181
        %6205 = vmatpush1.bf16.msra.mxu0 %v4180
        %6206 = vmatprep.subr.bf16.mxu0 %v4187
        %6207 = vmatpush1.bf16.msra.mxu0 %v4186
        %6208 = vmatprep.subr.bf16.mxu0 %v4193
        %6209 = vmatpush1.bf16.msra.mxu0 %v4192
        %6210 = vmatprep.subr.bf16.mxu0 %v4199
        %6211 = vmatpush1.bf16.msra.mxu0 %v4198
        %6212 = vmatprep.subr.bf16.mxu0 %v4205
        %6213 = vmatpush1.bf16.msra.mxu0 %v4204
        %6214 = vmatprep.mubr.bf16.mxu0 %v2097
        %6215 = vmatmul.mubr.bf16.gmra.mrb[0].mxu0 %v2096
        %v6216 = vpop.f32.mrb[0].mxu0
        %v6217 = vadd.f32 0.0, %v6216
        %v6218 = vpop.f32.mrb[0].mxu0
        %v6219 = vadd.f32 0.0, %v6218
        %v6220 = vpop.f32.mrb[0].mxu0
        %v6221 = vadd.f32 0.0, %v6220
        %v6222 = vpop.f32.mrb[0].mxu0
        %v6223 = vadd.f32 0.0, %v6222
        %6224 = vmatprep.mubr.bf16.mxu0 %v2109
        %6225 = vmatmul.mubr.bf16.gmra.mrb[0].mxu0 %v2108
        %v6226 = vpop.f32.mrb[0].mxu0
        %v6227 = vadd.f32 0.0, %v6226
        %v6228 = vpop.f32.mrb[0].mxu0
        %v6229 = vadd.f32 0.0, %v6228
        %v6230 = vpop.f32.mrb[0].mxu0
        %v6231 = vadd.f32 0.0, %v6230
        %v6232 = vpop.f32.mrb[0].mxu0
        %v6233 = vadd.f32 0.0, %v6232
        %6234 = vmatprep.mubr.bf16.mxu0 %v2121
        %6235 = vmatmul.mubr.bf16.gmra.mrb[0].mxu0 %v2120
        %v6236 = vpop.f32.mrb[0].mxu0
        %v6237 = vadd.f32 0.0, %v6236
        %v6238 = vpop.f32.mrb[0].mxu0
        %v6239 = vadd.f32 0.0, %v6238
        %v6240 = vpop.f32.mrb[0].mxu0
        %v6241 = vadd.f32 0.0, %v6240
        %v6242 = vpop.f32.mrb[0].mxu0
        %v6243 = vadd.f32 0.0, %v6242
        %6244 = vmatprep.mubr.bf16.mxu0 %v2133
        %6245 = vmatmul.mubr.bf16.gmra.mrb[0].mxu0 %v2132
        %v6246 = vpop.f32.mrb[0].mxu0
        %v6247 = vadd.f32 0.0, %v6246
        %v6248 = vpop.f32.mrb[0].mxu0
        %v6249 = vadd.f32 0.0, %v6248
        %v6250 = vpop.f32.mrb[0].mxu0
        %v6251 = vadd.f32 0.0, %v6250
        %v6252 = vpop.f32.mrb[0].mxu0
        %v6253 = vadd.f32 0.0, %v6252
        %6254 = vmatprep.mubr.bf16.mxu0 %v2145
        %6255 = vmatmul.mubr.bf16.gmra.mrb[0].mxu0 %v2144
        %v6256 = vpop.f32.mrb[0].mxu0
        %v6257 = vadd.f32 0.0, %v6256
        %v6258 = vpop.f32.mrb[0].mxu0
        %v6259 = vadd.f32 0.0, %v6258
        %v6260 = vpop.f32.mrb[0].mxu0
        %v6261 = vadd.f32 0.0, %v6260
        %v6262 = vpop.f32.mrb[0].mxu0
        %v6263 = vadd.f32 0.0, %v6262
        %6264 = vmatprep.mubr.bf16.mxu0 %v2157
        %6265 = vmatmul.mubr.bf16.gmra.mrb[0].mxu0 %v2156
        %v6266 = vpop.f32.mrb[0].mxu0
        %v6267 = vadd.f32 0.0, %v6266
        %v6268 = vpop.f32.mrb[0].mxu0
        %v6269 = vadd.f32 0.0, %v6268
        %v6270 = vpop.f32.mrb[0].mxu0
        %v6271 = vadd.f32 0.0, %v6270
        %v6272 = vpop.f32.mrb[0].mxu0
        %v6273 = vadd.f32 0.0, %v6272
        %6274 = vmatprep.mubr.bf16.mxu0 %v2169
        %6275 = vmatmul.mubr.bf16.gmra.mrb[0].mxu0 %v2168
        %v6276 = vpop.f32.mrb[0].mxu0
        %v6277 = vadd.f32 0.0, %v6276
        %v6278 = vpop.f32.mrb[0].mxu0
        %v6279 = vadd.f32 0.0, %v6278
        %v6280 = vpop.f32.mrb[0].mxu0
        %v6281 = vadd.f32 0.0, %v6280
        %v6282 = vpop.f32.mrb[0].mxu0
        %v6283 = vadd.f32 0.0, %v6282
        %6284 = vmatprep.mubr.bf16.mxu0 %v2181
        %6285 = vmatmul.mubr.bf16.gmra.mrb[0].mxu0 %v2180
        %v6286 = vpop.f32.mrb[0].mxu0
        %v6287 = vadd.f32 0.0, %v6286
        %v6288 = vpop.f32.mrb[0].mxu0
        %v6289 = vadd.f32 0.0, %v6288
        %v6290 = vpop.f32.mrb[0].mxu0
        %v6291 = vadd.f32 0.0, %v6290
        %v6292 = vpop.f32.mrb[0].mxu0
        %v6293 = vadd.f32 0.0, %v6292
        %6294 = vmatprep.mubr.bf16.mxu0 %v2193
        %6295 = vmatmul.mubr.bf16.gmra.mrb[0].mxu0 %v2192
        %v6296 = vpop.f32.mrb[0].mxu0
        %v6297 = vadd.f32 0.0, %v6296
        %v6298 = vpop.f32.mrb[0].mxu0
        %v6299 = vadd.f32 0.0, %v6298
        %v6300 = vpop.f32.mrb[0].mxu0
        %v6301 = vadd.f32 0.0, %v6300
        %v6302 = vpop.f32.mrb[0].mxu0
        %v6303 = vadd.f32 0.0, %v6302
        %6304 = vmatprep.mubr.bf16.mxu0 %v2205
        %6305 = vmatmul.mubr.bf16.gmra.mrb[0].mxu0 %v2204
        %v6306 = vpop.f32.mrb[0].mxu0
        %v6307 = vadd.f32 0.0, %v6306
        %v6308 = vpop.f32.mrb[0].mxu0
        %v6309 = vadd.f32 0.0, %v6308
        %v6310 = vpop.f32.mrb[0].mxu0
        %v6311 = vadd.f32 0.0, %v6310
        %v6312 = vpop.f32.mrb[0].mxu0
        %v6313 = vadd.f32 0.0, %v6312
        %6314 = vmatprep.mubr.bf16.mxu0 %v2217
        %6315 = vmatmul.mubr.bf16.gmra.mrb[0].mxu0 %v2216
        %v6316 = vpop.f32.mrb[0].mxu0
        %v6317 = vadd.f32 0.0, %v6316
        %v6318 = vpop.f32.mrb[0].mxu0
        %v6319 = vadd.f32 0.0, %v6318
        %v6320 = vpop.f32.mrb[0].mxu0
        %v6321 = vadd.f32 0.0, %v6320
        %v6322 = vpop.f32.mrb[0].mxu0
        %v6323 = vadd.f32 0.0, %v6322
        %6324 = vmatprep.mubr.bf16.mxu0 %v2229
        %6325 = vmatmul.mubr.bf16.gmra.mrb[0].mxu0 %v2228
        %v6326 = vpop.f32.mrb[0].mxu0
        %v6327 = vadd.f32 0.0, %v6326
        %v6328 = vpop.f32.mrb[0].mxu0
        %v6329 = vadd.f32 0.0, %v6328
        %v6330 = vpop.f32.mrb[0].mxu0
        %v6331 = vadd.f32 0.0, %v6330
        %v6332 = vpop.f32.mrb[0].mxu0
        %v6333 = vadd.f32 0.0, %v6332
        %6334 = vdwg.mxu0
        %6335 = vmatprep.subr.bf16.mxu0 %v4211
        %6336 = vmatpush1.bf16.msra.mxu0 %v4210
        %6337 = vmatprep.subr.bf16.mxu0 %v4217
        %6338 = vmatpush1.bf16.msra.mxu0 %v4216
        %6339 = vmatprep.subr.bf16.mxu0 %v4223
        %6340 = vmatpush1.bf16.msra.mxu0 %v4222
        %6341 = vmatprep.subr.bf16.mxu0 %v4229
        %6342 = vmatpush1.bf16.msra.mxu0 %v4228
        %6343 = vmatprep.subr.bf16.mxu0 %v4235
        %6344 = vmatpush1.bf16.msra.mxu0 %v4234
        %6345 = vmatprep.subr.bf16.mxu0 %v4241
        %6346 = vmatpush1.bf16.msra.mxu0 %v4240
        %6347 = vmatprep.subr.bf16.mxu0 %v4247
        %6348 = vmatpush1.bf16.msra.mxu0 %v4246
        %6349 = vmatprep.subr.bf16.mxu0 %v4253
        %6350 = vmatpush1.bf16.msra.mxu0 %v4252
        %6351 = vmatprep.subr.bf16.mxu0 %v4259
        %6352 = vmatpush1.bf16.msra.mxu0 %v4258
        %6353 = vmatprep.subr.bf16.mxu0 %v4265
        %6354 = vmatpush1.bf16.msra.mxu0 %v4264
        %6355 = vmatprep.subr.bf16.mxu0 %v4271
        %6356 = vmatpush1.bf16.msra.mxu0 %v4270
        %6357 = vmatprep.subr.bf16.mxu0 %v4277
        %6358 = vmatpush1.bf16.msra.mxu0 %v4276
        %6359 = vmatprep.subr.bf16.mxu0 %v4283
        %6360 = vmatpush1.bf16.msra.mxu0 %v4282
        %6361 = vmatprep.subr.bf16.mxu0 %v4289
        %6362 = vmatpush1.bf16.msra.mxu0 %v4288
        %6363 = vmatprep.subr.bf16.mxu0 %v4295
        %6364 = vmatpush1.bf16.msra.mxu0 %v4294
        %6365 = vmatprep.subr.bf16.mxu0 %v4301
        %6366 = vmatpush1.bf16.msra.mxu0 %v4300
        %6367 = vmatprep.mubr.bf16.mxu0 %v2099
        %6368 = vmatmul.mubr.bf16.gmra.mrb[0].mxu0 %v2098
        %v6369 = vpop.f32.mrb[0].mxu0
        %v6370 = vadd.f32 %v6217, %v6369
        %v6371 = vpop.f32.mrb[0].mxu0
        %v6372 = vadd.f32 %v6219, %v6371
        %v6373 = vpop.f32.mrb[0].mxu0
        %v6374 = vadd.f32 %v6221, %v6373
        %v6375 = vpop.f32.mrb[0].mxu0
        %v6376 = vadd.f32 %v6223, %v6375
        %6377 = vmatprep.mubr.bf16.mxu0 %v2111
        %6378 = vmatmul.mubr.bf16.gmra.mrb[0].mxu0 %v2110
        %v6379 = vpop.f32.mrb[0].mxu0
        %v6380 = vadd.f32 %v6227, %v6379
        %v6381 = vpop.f32.mrb[0].mxu0
        %v6382 = vadd.f32 %v6229, %v6381
        %v6383 = vpop.f32.mrb[0].mxu0
        %v6384 = vadd.f32 %v6231, %v6383
        %v6385 = vpop.f32.mrb[0].mxu0
        %v6386 = vadd.f32 %v6233, %v6385
        %6387 = vmatprep.mubr.bf16.mxu0 %v2123
        %6388 = vmatmul.mubr.bf16.gmra.mrb[0].mxu0 %v2122
        %v6389 = vpop.f32.mrb[0].mxu0
        %v6390 = vadd.f32 %v6237, %v6389
        %v6391 = vpop.f32.mrb[0].mxu0
        %v6392 = vadd.f32 %v6239, %v6391
        %v6393 = vpop.f32.mrb[0].mxu0
        %v6394 = vadd.f32 %v6241, %v6393
        %v6395 = vpop.f32.mrb[0].mxu0
        %v6396 = vadd.f32 %v6243, %v6395
        %6397 = vmatprep.mubr.bf16.mxu0 %v2135
        %6398 = vmatmul.mubr.bf16.gmra.mrb[0].mxu0 %v2134
        %v6399 = vpop.f32.mrb[0].mxu0
        %v6400 = vadd.f32 %v6247, %v6399
        %v6401 = vpop.f32.mrb[0].mxu0
        %v6402 = vadd.f32 %v6249, %v6401
        %v6403 = vpop.f32.mrb[0].mxu0
        %v6404 = vadd.f32 %v6251, %v6403
        %v6405 = vpop.f32.mrb[0].mxu0
        %v6406 = vadd.f32 %v6253, %v6405
        %6407 = vmatprep.mubr.bf16.mxu0 %v2147
        %6408 = vmatmul.mubr.bf16.gmra.mrb[0].mxu0 %v2146
        %v6409 = vpop.f32.mrb[0].mxu0
        %v6410 = vadd.f32 %v6257, %v6409
        %v6411 = vpop.f32.mrb[0].mxu0
        %v6412 = vadd.f32 %v6259, %v6411
        %v6413 = vpop.f32.mrb[0].mxu0
        %v6414 = vadd.f32 %v6261, %v6413
        %v6415 = vpop.f32.mrb[0].mxu0
        %v6416 = vadd.f32 %v6263, %v6415
        %6417 = vmatprep.mubr.bf16.mxu0 %v2159
        %6418 = vmatmul.mubr.bf16.gmra.mrb[0].mxu0 %v2158
        %v6419 = vpop.f32.mrb[0].mxu0
        %v6420 = vadd.f32 %v6267, %v6419
        %v6421 = vpop.f32.mrb[0].mxu0
        %v6422 = vadd.f32 %v6269, %v6421
        %v6423 = vpop.f32.mrb[0].mxu0
        %v6424 = vadd.f32 %v6271, %v6423
        %v6425 = vpop.f32.mrb[0].mxu0
        %v6426 = vadd.f32 %v6273, %v6425
        %6427 = vmatprep.mubr.bf16.mxu0 %v2171
        %6428 = vmatmul.mubr.bf16.gmra.mrb[0].mxu0 %v2170
        %v6429 = vpop.f32.mrb[0].mxu0
        %v6430 = vadd.f32 %v6277, %v6429
        %v6431 = vpop.f32.mrb[0].mxu0
        %v6432 = vadd.f32 %v6279, %v6431
        %v6433 = vpop.f32.mrb[0].mxu0
        %v6434 = vadd.f32 %v6281, %v6433
        %v6435 = vpop.f32.mrb[0].mxu0
        %v6436 = vadd.f32 %v6283, %v6435
        %6437 = vmatprep.mubr.bf16.mxu0 %v2183
        %6438 = vmatmul.mubr.bf16.gmra.mrb[0].mxu0 %v2182
        %v6439 = vpop.f32.mrb[0].mxu0
        %v6440 = vadd.f32 %v6287, %v6439
        %v6441 = vpop.f32.mrb[0].mxu0
        %v6442 = vadd.f32 %v6289, %v6441
        %v6443 = vpop.f32.mrb[0].mxu0
        %v6444 = vadd.f32 %v6291, %v6443
        %v6445 = vpop.f32.mrb[0].mxu0
        %v6446 = vadd.f32 %v6293, %v6445
        %6447 = vmatprep.mubr.bf16.mxu0 %v2195
        %6448 = vmatmul.mubr.bf16.gmra.mrb[0].mxu0 %v2194
        %v6449 = vpop.f32.mrb[0].mxu0
        %v6450 = vadd.f32 %v6297, %v6449
        %v6451 = vpop.f32.mrb[0].mxu0
        %v6452 = vadd.f32 %v6299, %v6451
        %v6453 = vpop.f32.mrb[0].mxu0
        %v6454 = vadd.f32 %v6301, %v6453
        %v6455 = vpop.f32.mrb[0].mxu0
        %v6456 = vadd.f32 %v6303, %v6455
        %6457 = vmatprep.mubr.bf16.mxu0 %v2207
        %6458 = vmatmul.mubr.bf16.gmra.mrb[0].mxu0 %v2206
        %v6459 = vpop.f32.mrb[0].mxu0
        %v6460 = vadd.f32 %v6307, %v6459
        %v6461 = vpop.f32.mrb[0].mxu0
        %v6462 = vadd.f32 %v6309, %v6461
        %v6463 = vpop.f32.mrb[0].mxu0
        %v6464 = vadd.f32 %v6311, %v6463
        %v6465 = vpop.f32.mrb[0].mxu0
        %v6466 = vadd.f32 %v6313, %v6465
        %6467 = vmatprep.mubr.bf16.mxu0 %v2219
        %6468 = vmatmul.mubr.bf16.gmra.mrb[0].mxu0 %v2218
        %v6469 = vpop.f32.mrb[0].mxu0
        %v6470 = vadd.f32 %v6317, %v6469
        %v6471 = vpop.f32.mrb[0].mxu0
        %v6472 = vadd.f32 %v6319, %v6471
        %v6473 = vpop.f32.mrb[0].mxu0
        %v6474 = vadd.f32 %v6321, %v6473
        %v6475 = vpop.f32.mrb[0].mxu0
        %v6476 = vadd.f32 %v6323, %v6475
        %6477 = vmatprep.mubr.bf16.mxu0 %v2231
        %6478 = vmatmul.mubr.bf16.gmra.mrb[0].mxu0 %v2230
        %v6479 = vpop.f32.mrb[0].mxu0
        %v6480 = vadd.f32 %v6327, %v6479
        %v6481 = vpop.f32.mrb[0].mxu0
        %v6482 = vadd.f32 %v6329, %v6481
        %v6483 = vpop.f32.mrb[0].mxu0
        %v6484 = vadd.f32 %v6331, %v6483
        %v6485 = vpop.f32.mrb[0].mxu0
        %v6486 = vadd.f32 %v6333, %v6485
        %6487 = vdwg.mxu0
        %6488 = vmatprep.subr.bf16.mxu0 %v4307
        %6489 = vmatpush1.bf16.msra.mxu0 %v4306
        %6490 = vmatprep.subr.bf16.mxu0 %v4313
        %6491 = vmatpush1.bf16.msra.mxu0 %v4312
        %6492 = vmatprep.subr.bf16.mxu0 %v4319
        %6493 = vmatpush1.bf16.msra.mxu0 %v4318
        %6494 = vmatprep.subr.bf16.mxu0 %v4325
        %6495 = vmatpush1.bf16.msra.mxu0 %v4324
        %6496 = vmatprep.subr.bf16.mxu0 %v4331
        %6497 = vmatpush1.bf16.msra.mxu0 %v4330
        %6498 = vmatprep.subr.bf16.mxu0 %v4337
        %6499 = vmatpush1.bf16.msra.mxu0 %v4336
        %6500 = vmatprep.subr.bf16.mxu0 %v4343
        %6501 = vmatpush1.bf16.msra.mxu0 %v4342
        %6502 = vmatprep.subr.bf16.mxu0 %v4349
        %6503 = vmatpush1.bf16.msra.mxu0 %v4348
        %6504 = vmatprep.subr.bf16.mxu0 %v4355
        %6505 = vmatpush1.bf16.msra.mxu0 %v4354
        %6506 = vmatprep.subr.bf16.mxu0 %v4361
        %6507 = vmatpush1.bf16.msra.mxu0 %v4360
        %6508 = vmatprep.subr.bf16.mxu0 %v4367
        %6509 = vmatpush1.bf16.msra.mxu0 %v4366
        %6510 = vmatprep.subr.bf16.mxu0 %v4373
        %6511 = vmatpush1.bf16.msra.mxu0 %v4372
        %6512 = vmatprep.subr.bf16.mxu0 %v4379
        %6513 = vmatpush1.bf16.msra.mxu0 %v4378
        %6514 = vmatprep.subr.bf16.mxu0 %v4385
        %6515 = vmatpush1.bf16.msra.mxu0 %v4384
        %6516 = vmatprep.subr.bf16.mxu0 %v4391
        %6517 = vmatpush1.bf16.msra.mxu0 %v4390
        %6518 = vmatprep.subr.bf16.mxu0 %v4397
        %6519 = vmatpush1.bf16.msra.mxu0 %v4396
        %6520 = vmatprep.mubr.bf16.mxu0 %v2101
        %6521 = vmatmul.mubr.bf16.gmra.mrb[0].mxu0 %v2100
        %v6522 = vpop.f32.mrb[0].mxu0
        %v6523 = vadd.f32 %v6370, %v6522
        %v6524 = vpop.f32.mrb[0].mxu0
        %v6525 = vadd.f32 %v6372, %v6524
        %v6526 = vpop.f32.mrb[0].mxu0
        %v6527 = vadd.f32 %v6374, %v6526
        %v6528 = vpop.f32.mrb[0].mxu0
        %v6529 = vadd.f32 %v6376, %v6528
        %6530 = vmatprep.mubr.bf16.mxu0 %v2113
        %6531 = vmatmul.mubr.bf16.gmra.mrb[0].mxu0 %v2112
        %v6532 = vpop.f32.mrb[0].mxu0
        %v6533 = vadd.f32 %v6380, %v6532
        %v6534 = vpop.f32.mrb[0].mxu0
        %v6535 = vadd.f32 %v6382, %v6534
        %v6536 = vpop.f32.mrb[0].mxu0
        %v6537 = vadd.f32 %v6384, %v6536
        %v6538 = vpop.f32.mrb[0].mxu0
        %v6539 = vadd.f32 %v6386, %v6538
        %6540 = vmatprep.mubr.bf16.mxu0 %v2125
        %6541 = vmatmul.mubr.bf16.gmra.mrb[0].mxu0 %v2124
        %v6542 = vpop.f32.mrb[0].mxu0
        %v6543 = vadd.f32 %v6390, %v6542
        %v6544 = vpop.f32.mrb[0].mxu0
        %v6545 = vadd.f32 %v6392, %v6544
        %v6546 = vpop.f32.mrb[0].mxu0
        %v6547 = vadd.f32 %v6394, %v6546
        %v6548 = vpop.f32.mrb[0].mxu0
        %v6549 = vadd.f32 %v6396, %v6548
        %6550 = vmatprep.mubr.bf16.mxu0 %v2137
        %6551 = vmatmul.mubr.bf16.gmra.mrb[0].mxu0 %v2136
        %v6552 = vpop.f32.mrb[0].mxu0
        %v6553 = vadd.f32 %v6400, %v6552
        %v6554 = vpop.f32.mrb[0].mxu0
        %v6555 = vadd.f32 %v6402, %v6554
        %v6556 = vpop.f32.mrb[0].mxu0
        %v6557 = vadd.f32 %v6404, %v6556
        %v6558 = vpop.f32.mrb[0].mxu0
        %v6559 = vadd.f32 %v6406, %v6558
        %6560 = vmatprep.mubr.bf16.mxu0 %v2149
        %6561 = vmatmul.mubr.bf16.gmra.mrb[0].mxu0 %v2148
        %v6562 = vpop.f32.mrb[0].mxu0
        %v6563 = vadd.f32 %v6410, %v6562
        %v6564 = vpop.f32.mrb[0].mxu0
        %v6565 = vadd.f32 %v6412, %v6564
        %v6566 = vpop.f32.mrb[0].mxu0
        %v6567 = vadd.f32 %v6414, %v6566
        %v6568 = vpop.f32.mrb[0].mxu0
        %v6569 = vadd.f32 %v6416, %v6568
        %6570 = vmatprep.mubr.bf16.mxu0 %v2161
        %6571 = vmatmul.mubr.bf16.gmra.mrb[0].mxu0 %v2160
        %v6572 = vpop.f32.mrb[0].mxu0
        %v6573 = vadd.f32 %v6420, %v6572
        %v6574 = vpop.f32.mrb[0].mxu0
        %v6575 = vadd.f32 %v6422, %v6574
        %v6576 = vpop.f32.mrb[0].mxu0
        %v6577 = vadd.f32 %v6424, %v6576
        %v6578 = vpop.f32.mrb[0].mxu0
        %v6579 = vadd.f32 %v6426, %v6578
        %6580 = vmatprep.mubr.bf16.mxu0 %v2173
        %6581 = vmatmul.mubr.bf16.gmra.mrb[0].mxu0 %v2172
        %v6582 = vpop.f32.mrb[0].mxu0
        %v6583 = vadd.f32 %v6430, %v6582
        %v6584 = vpop.f32.mrb[0].mxu0
        %v6585 = vadd.f32 %v6432, %v6584
        %v6586 = vpop.f32.mrb[0].mxu0
        %v6587 = vadd.f32 %v6434, %v6586
        %v6588 = vpop.f32.mrb[0].mxu0
        %v6589 = vadd.f32 %v6436, %v6588
        %6590 = vmatprep.mubr.bf16.mxu0 %v2185
        %6591 = vmatmul.mubr.bf16.gmra.mrb[0].mxu0 %v2184
        %v6592 = vpop.f32.mrb[0].mxu0
        %v6593 = vadd.f32 %v6440, %v6592
        %v6594 = vpop.f32.mrb[0].mxu0
        %v6595 = vadd.f32 %v6442, %v6594
        %v6596 = vpop.f32.mrb[0].mxu0
        %v6597 = vadd.f32 %v6444, %v6596
        %v6598 = vpop.f32.mrb[0].mxu0
        %v6599 = vadd.f32 %v6446, %v6598
        %6600 = vmatprep.mubr.bf16.mxu0 %v2197
        %6601 = vmatmul.mubr.bf16.gmra.mrb[0].mxu0 %v2196
        %v6602 = vpop.f32.mrb[0].mxu0
        %v6603 = vadd.f32 %v6450, %v6602
        %v6604 = vpop.f32.mrb[0].mxu0
        %v6605 = vadd.f32 %v6452, %v6604
        %v6606 = vpop.f32.mrb[0].mxu0
        %v6607 = vadd.f32 %v6454, %v6606
        %v6608 = vpop.f32.mrb[0].mxu0
        %v6609 = vadd.f32 %v6456, %v6608
        %6610 = vmatprep.mubr.bf16.mxu0 %v2209
        %6611 = vmatmul.mubr.bf16.gmra.mrb[0].mxu0 %v2208
        %v6612 = vpop.f32.mrb[0].mxu0
        %v6613 = vadd.f32 %v6460, %v6612
        %v6614 = vpop.f32.mrb[0].mxu0
        %v6615 = vadd.f32 %v6462, %v6614
        %v6616 = vpop.f32.mrb[0].mxu0
        %v6617 = vadd.f32 %v6464, %v6616
        %v6618 = vpop.f32.mrb[0].mxu0
        %v6619 = vadd.f32 %v6466, %v6618
        %6620 = vmatprep.mubr.bf16.mxu0 %v2221
        %6621 = vmatmul.mubr.bf16.gmra.mrb[0].mxu0 %v2220
        %v6622 = vpop.f32.mrb[0].mxu0
        %v6623 = vadd.f32 %v6470, %v6622
        %v6624 = vpop.f32.mrb[0].mxu0
        %v6625 = vadd.f32 %v6472, %v6624
        %v6626 = vpop.f32.mrb[0].mxu0
        %v6627 = vadd.f32 %v6474, %v6626
        %v6628 = vpop.f32.mrb[0].mxu0
        %v6629 = vadd.f32 %v6476, %v6628
        %6630 = vmatprep.mubr.bf16.mxu0 %v2233
        %6631 = vmatmul.mubr.bf16.gmra.mrb[0].mxu0 %v2232
        %v6632 = vpop.f32.mrb[0].mxu0
        %v6633 = vadd.f32 %v6480, %v6632
        %v6634 = vpop.f32.mrb[0].mxu0
        %v6635 = vadd.f32 %v6482, %v6634
        %v6636 = vpop.f32.mrb[0].mxu0
        %v6637 = vadd.f32 %v6484, %v6636
        %v6638 = vpop.f32.mrb[0].mxu0
        %v6639 = vadd.f32 %v6486, %v6638
        %6640 = vdwg.mxu0
        %6641 = vmatprep.subr.bf16.mxu0 %v4403
        %6642 = vmatpush1.bf16.msra.mxu0 %v4402
        %6643 = vmatprep.subr.bf16.mxu0 %v4409
        %6644 = vmatpush1.bf16.msra.mxu0 %v4408
        %6645 = vmatprep.subr.bf16.mxu0 %v4415
        %6646 = vmatpush1.bf16.msra.mxu0 %v4414
        %6647 = vmatprep.subr.bf16.mxu0 %v4421
        %6648 = vmatpush1.bf16.msra.mxu0 %v4420
        %6649 = vmatprep.subr.bf16.mxu0 %v4427
        %6650 = vmatpush1.bf16.msra.mxu0 %v4426
        %6651 = vmatprep.subr.bf16.mxu0 %v4433
        %6652 = vmatpush1.bf16.msra.mxu0 %v4432
        %6653 = vmatprep.subr.bf16.mxu0 %v4439
        %6654 = vmatpush1.bf16.msra.mxu0 %v4438
        %6655 = vmatprep.subr.bf16.mxu0 %v4445
        %6656 = vmatpush1.bf16.msra.mxu0 %v4444
        %6657 = vmatprep.subr.bf16.mxu0 %v4451
        %6658 = vmatpush1.bf16.msra.mxu0 %v4450
        %6659 = vmatprep.subr.bf16.mxu0 %v4457
        %6660 = vmatpush1.bf16.msra.mxu0 %v4456
        %6661 = vmatprep.subr.bf16.mxu0 %v4463
        %6662 = vmatpush1.bf16.msra.mxu0 %v4462
        %6663 = vmatprep.subr.bf16.mxu0 %v4469
        %6664 = vmatpush1.bf16.msra.mxu0 %v4468
        %6665 = vmatprep.subr.bf16.mxu0 %v4475
        %6666 = vmatpush1.bf16.msra.mxu0 %v4474
        %6667 = vmatprep.subr.bf16.mxu0 %v4481
        %6668 = vmatpush1.bf16.msra.mxu0 %v4480
        %6669 = vmatprep.subr.bf16.mxu0 %v4487
        %6670 = vmatpush1.bf16.msra.mxu0 %v4486
        %6671 = vmatprep.subr.bf16.mxu0 %v4493
        %6672 = vmatpush1.bf16.msra.mxu0 %v4492
        %6673 = vmatprep.mubr.bf16.mxu0 %v2103
        %6674 = vmatmul.mubr.bf16.gmra.mrb[0].mxu0 %v2102
        %v6675 = vpop.f32.mrb[0].mxu0
        %v6676 = vadd.f32 %v6523, %v6675
        %v6677 = vpop.f32.mrb[0].mxu0
        %v6678 = vadd.f32 %v6525, %v6677
        %v6679 = vpop.f32.mrb[0].mxu0
        %v6680 = vadd.f32 %v6527, %v6679
        %v6681 = vpop.f32.mrb[0].mxu0
        %v6682 = vadd.f32 %v6529, %v6681
        %6683 = vmatprep.mubr.bf16.mxu0 %v2115
        %6684 = vmatmul.mubr.bf16.gmra.mrb[0].mxu0 %v2114
        %v6685 = vpop.f32.mrb[0].mxu0
        %v6686 = vadd.f32 %v6533, %v6685
        %v6687 = vpop.f32.mrb[0].mxu0
        %v6688 = vadd.f32 %v6535, %v6687
        %v6689 = vpop.f32.mrb[0].mxu0
        %v6690 = vadd.f32 %v6537, %v6689
        %v6691 = vpop.f32.mrb[0].mxu0
        %v6692 = vadd.f32 %v6539, %v6691
        %6693 = vmatprep.mubr.bf16.mxu0 %v2127
        %6694 = vmatmul.mubr.bf16.gmra.mrb[0].mxu0 %v2126
        %v6695 = vpop.f32.mrb[0].mxu0
        %v6696 = vadd.f32 %v6543, %v6695
        %v6697 = vpop.f32.mrb[0].mxu0
        %v6698 = vadd.f32 %v6545, %v6697
        %v6699 = vpop.f32.mrb[0].mxu0
        %v6700 = vadd.f32 %v6547, %v6699
        %v6701 = vpop.f32.mrb[0].mxu0
        %v6702 = vadd.f32 %v6549, %v6701
        %6703 = vmatprep.mubr.bf16.mxu0 %v2139
        %6704 = vmatmul.mubr.bf16.gmra.mrb[0].mxu0 %v2138
        %v6705 = vpop.f32.mrb[0].mxu0
        %v6706 = vadd.f32 %v6553, %v6705
        %v6707 = vpop.f32.mrb[0].mxu0
        %v6708 = vadd.f32 %v6555, %v6707
        %v6709 = vpop.f32.mrb[0].mxu0
        %v6710 = vadd.f32 %v6557, %v6709
        %v6711 = vpop.f32.mrb[0].mxu0
        %v6712 = vadd.f32 %v6559, %v6711
        %6713 = vmatprep.mubr.bf16.mxu0 %v2151
        %6714 = vmatmul.mubr.bf16.gmra.mrb[0].mxu0 %v2150
        %v6715 = vpop.f32.mrb[0].mxu0
        %v6716 = vadd.f32 %v6563, %v6715
        %v6717 = vpop.f32.mrb[0].mxu0
        %v6718 = vadd.f32 %v6565, %v6717
        %v6719 = vpop.f32.mrb[0].mxu0
        %v6720 = vadd.f32 %v6567, %v6719
        %v6721 = vpop.f32.mrb[0].mxu0
        %v6722 = vadd.f32 %v6569, %v6721
        %6723 = vmatprep.mubr.bf16.mxu0 %v2163
        %6724 = vmatmul.mubr.bf16.gmra.mrb[0].mxu0 %v2162
        %v6725 = vpop.f32.mrb[0].mxu0
        %v6726 = vadd.f32 %v6573, %v6725
        %v6727 = vpop.f32.mrb[0].mxu0
        %v6728 = vadd.f32 %v6575, %v6727
        %v6729 = vpop.f32.mrb[0].mxu0
        %v6730 = vadd.f32 %v6577, %v6729
        %v6731 = vpop.f32.mrb[0].mxu0
        %v6732 = vadd.f32 %v6579, %v6731
        %6733 = vmatprep.mubr.bf16.mxu0 %v2175
        %6734 = vmatmul.mubr.bf16.gmra.mrb[0].mxu0 %v2174
        %v6735 = vpop.f32.mrb[0].mxu0
        %v6736 = vadd.f32 %v6583, %v6735
        %v6737 = vpop.f32.mrb[0].mxu0
        %v6738 = vadd.f32 %v6585, %v6737
        %v6739 = vpop.f32.mrb[0].mxu0
        %v6740 = vadd.f32 %v6587, %v6739
        %v6741 = vpop.f32.mrb[0].mxu0
        %v6742 = vadd.f32 %v6589, %v6741
        %6743 = vmatprep.mubr.bf16.mxu0 %v2187
        %6744 = vmatmul.mubr.bf16.gmra.mrb[0].mxu0 %v2186
        %v6745 = vpop.f32.mrb[0].mxu0
        %v6746 = vadd.f32 %v6593, %v6745
        %v6747 = vpop.f32.mrb[0].mxu0
        %v6748 = vadd.f32 %v6595, %v6747
        %v6749 = vpop.f32.mrb[0].mxu0
        %v6750 = vadd.f32 %v6597, %v6749
        %v6751 = vpop.f32.mrb[0].mxu0
        %v6752 = vadd.f32 %v6599, %v6751
        %6753 = vmatprep.mubr.bf16.mxu0 %v2199
        %6754 = vmatmul.mubr.bf16.gmra.mrb[0].mxu0 %v2198
        %v6755 = vpop.f32.mrb[0].mxu0
        %v6756 = vadd.f32 %v6603, %v6755
        %v6757 = vpop.f32.mrb[0].mxu0
        %v6758 = vadd.f32 %v6605, %v6757
        %v6759 = vpop.f32.mrb[0].mxu0
        %v6760 = vadd.f32 %v6607, %v6759
        %v6761 = vpop.f32.mrb[0].mxu0
        %v6762 = vadd.f32 %v6609, %v6761
        %6763 = vmatprep.mubr.bf16.mxu0 %v2211
        %6764 = vmatmul.mubr.bf16.gmra.mrb[0].mxu0 %v2210
        %v6765 = vpop.f32.mrb[0].mxu0
        %v6766 = vadd.f32 %v6613, %v6765
        %v6767 = vpop.f32.mrb[0].mxu0
        %v6768 = vadd.f32 %v6615, %v6767
        %v6769 = vpop.f32.mrb[0].mxu0
        %v6770 = vadd.f32 %v6617, %v6769
        %v6771 = vpop.f32.mrb[0].mxu0
        %v6772 = vadd.f32 %v6619, %v6771
        %6773 = vmatprep.mubr.bf16.mxu0 %v2223
        %6774 = vmatmul.mubr.bf16.gmra.mrb[0].mxu0 %v2222
        %v6775 = vpop.f32.mrb[0].mxu0
        %v6776 = vadd.f32 %v6623, %v6775
        %v6777 = vpop.f32.mrb[0].mxu0
        %v6778 = vadd.f32 %v6625, %v6777
        %v6779 = vpop.f32.mrb[0].mxu0
        %v6780 = vadd.f32 %v6627, %v6779
        %v6781 = vpop.f32.mrb[0].mxu0
        %v6782 = vadd.f32 %v6629, %v6781
        %6783 = vmatprep.mubr.bf16.mxu0 %v2235
        %6784 = vmatmul.mubr.bf16.gmra.mrb[0].mxu0 %v2234
        %v6785 = vpop.f32.mrb[0].mxu0
        %v6786 = vadd.f32 %v6633, %v6785
        %v6787 = vpop.f32.mrb[0].mxu0
        %v6788 = vadd.f32 %v6635, %v6787
        %v6789 = vpop.f32.mrb[0].mxu0
        %v6790 = vadd.f32 %v6637, %v6789
        %v6791 = vpop.f32.mrb[0].mxu0
        %v6792 = vadd.f32 %v6639, %v6791
        %6793 = vdwg.mxu0
        %6794 = vmatprep.subr.bf16.mxu0 %v4499
        %6795 = vmatpush1.bf16.msra.mxu0 %v4498
        %6796 = vmatprep.subr.bf16.mxu0 %v4505
        %6797 = vmatpush1.bf16.msra.mxu0 %v4504
        %6798 = vmatprep.subr.bf16.mxu0 %v4511
        %6799 = vmatpush1.bf16.msra.mxu0 %v4510
        %6800 = vmatprep.subr.bf16.mxu0 %v4517
        %6801 = vmatpush1.bf16.msra.mxu0 %v4516
        %6802 = vmatprep.subr.bf16.mxu0 %v4523
        %6803 = vmatpush1.bf16.msra.mxu0 %v4522
        %6804 = vmatprep.subr.bf16.mxu0 %v4529
        %6805 = vmatpush1.bf16.msra.mxu0 %v4528
        %6806 = vmatprep.subr.bf16.mxu0 %v4535
        %6807 = vmatpush1.bf16.msra.mxu0 %v4534
        %6808 = vmatprep.subr.bf16.mxu0 %v4541
        %6809 = vmatpush1.bf16.msra.mxu0 %v4540
        %6810 = vmatprep.subr.bf16.mxu0 %v4547
        %6811 = vmatpush1.bf16.msra.mxu0 %v4546
        %6812 = vmatprep.subr.bf16.mxu0 %v4553
        %6813 = vmatpush1.bf16.msra.mxu0 %v4552
        %6814 = vmatprep.subr.bf16.mxu0 %v4559
        %6815 = vmatpush1.bf16.msra.mxu0 %v4558
        %6816 = vmatprep.subr.bf16.mxu0 %v4565
        %6817 = vmatpush1.bf16.msra.mxu0 %v4564
        %6818 = vmatprep.subr.bf16.mxu0 %v4571
        %6819 = vmatpush1.bf16.msra.mxu0 %v4570
        %6820 = vmatprep.subr.bf16.mxu0 %v4577
        %6821 = vmatpush1.bf16.msra.mxu0 %v4576
        %6822 = vmatprep.subr.bf16.mxu0 %v4583
        %6823 = vmatpush1.bf16.msra.mxu0 %v4582
        %6824 = vmatprep.subr.bf16.mxu0 %v4589
        %6825 = vmatpush1.bf16.msra.mxu0 %v4588
        %6826 = vmatprep.mubr.bf16.mxu0 %v2105
        %6827 = vmatmul.mubr.bf16.gmra.mrb[0].mxu0 %v2104
        %v6828 = vpop.f32.mrb[0].mxu0
        %v6829 = vadd.f32 %v6676, %v6828
        %v6830 = vpop.f32.mrb[0].mxu0
        %v6831 = vadd.f32 %v6678, %v6830
        %v6832 = vpop.f32.mrb[0].mxu0
        %v6833 = vadd.f32 %v6680, %v6832
        %v6834 = vpop.f32.mrb[0].mxu0
        %v6835 = vadd.f32 %v6682, %v6834
        %6836 = vmatprep.mubr.bf16.mxu0 %v2117
        %6837 = vmatmul.mubr.bf16.gmra.mrb[0].mxu0 %v2116
        %v6838 = vpop.f32.mrb[0].mxu0
        %v6839 = vadd.f32 %v6686, %v6838
        %v6840 = vpop.f32.mrb[0].mxu0
        %v6841 = vadd.f32 %v6688, %v6840
        %v6842 = vpop.f32.mrb[0].mxu0
        %v6843 = vadd.f32 %v6690, %v6842
        %v6844 = vpop.f32.mrb[0].mxu0
        %v6845 = vadd.f32 %v6692, %v6844
        %6846 = vmatprep.mubr.bf16.mxu0 %v2129
        %6847 = vmatmul.mubr.bf16.gmra.mrb[0].mxu0 %v2128
        %v6848 = vpop.f32.mrb[0].mxu0
        %v6849 = vadd.f32 %v6696, %v6848
        %v6850 = vpop.f32.mrb[0].mxu0
        %v6851 = vadd.f32 %v6698, %v6850
        %v6852 = vpop.f32.mrb[0].mxu0
        %v6853 = vadd.f32 %v6700, %v6852
        %v6854 = vpop.f32.mrb[0].mxu0
        %v6855 = vadd.f32 %v6702, %v6854
        %6856 = vmatprep.mubr.bf16.mxu0 %v2141
        %6857 = vmatmul.mubr.bf16.gmra.mrb[0].mxu0 %v2140
        %v6858 = vpop.f32.mrb[0].mxu0
        %v6859 = vadd.f32 %v6706, %v6858
        %v6860 = vpop.f32.mrb[0].mxu0
        %v6861 = vadd.f32 %v6708, %v6860
        %v6862 = vpop.f32.mrb[0].mxu0
        %v6863 = vadd.f32 %v6710, %v6862
        %v6864 = vpop.f32.mrb[0].mxu0
        %v6865 = vadd.f32 %v6712, %v6864
        %6866 = vmatprep.mubr.bf16.mxu0 %v2153
        %6867 = vmatmul.mubr.bf16.gmra.mrb[0].mxu0 %v2152
        %v6868 = vpop.f32.mrb[0].mxu0
        %v6869 = vadd.f32 %v6716, %v6868
        %v6870 = vpop.f32.mrb[0].mxu0
        %v6871 = vadd.f32 %v6718, %v6870
        %v6872 = vpop.f32.mrb[0].mxu0
        %v6873 = vadd.f32 %v6720, %v6872
        %v6874 = vpop.f32.mrb[0].mxu0
        %v6875 = vadd.f32 %v6722, %v6874
        %6876 = vmatprep.mubr.bf16.mxu0 %v2165
        %6877 = vmatmul.mubr.bf16.gmra.mrb[0].mxu0 %v2164
        %v6878 = vpop.f32.mrb[0].mxu0
        %v6879 = vadd.f32 %v6726, %v6878
        %v6880 = vpop.f32.mrb[0].mxu0
        %v6881 = vadd.f32 %v6728, %v6880
        %v6882 = vpop.f32.mrb[0].mxu0
        %v6883 = vadd.f32 %v6730, %v6882
        %v6884 = vpop.f32.mrb[0].mxu0
        %v6885 = vadd.f32 %v6732, %v6884
        %6886 = vmatprep.mubr.bf16.mxu0 %v2177
        %6887 = vmatmul.mubr.bf16.gmra.mrb[0].mxu0 %v2176
        %v6888 = vpop.f32.mrb[0].mxu0
        %v6889 = vadd.f32 %v6736, %v6888
        %v6890 = vpop.f32.mrb[0].mxu0
        %v6891 = vadd.f32 %v6738, %v6890
        %v6892 = vpop.f32.mrb[0].mxu0
        %v6893 = vadd.f32 %v6740, %v6892
        %v6894 = vpop.f32.mrb[0].mxu0
        %v6895 = vadd.f32 %v6742, %v6894
        %6896 = vmatprep.mubr.bf16.mxu0 %v2189
        %6897 = vmatmul.mubr.bf16.gmra.mrb[0].mxu0 %v2188
        %v6898 = vpop.f32.mrb[0].mxu0
        %v6899 = vadd.f32 %v6746, %v6898
        %v6900 = vpop.f32.mrb[0].mxu0
        %v6901 = vadd.f32 %v6748, %v6900
        %v6902 = vpop.f32.mrb[0].mxu0
        %v6903 = vadd.f32 %v6750, %v6902
        %v6904 = vpop.f32.mrb[0].mxu0
        %v6905 = vadd.f32 %v6752, %v6904
        %6906 = vmatprep.mubr.bf16.mxu0 %v2201
        %6907 = vmatmul.mubr.bf16.gmra.mrb[0].mxu0 %v2200
        %v6908 = vpop.f32.mrb[0].mxu0
        %v6909 = vadd.f32 %v6756, %v6908
        %v6910 = vpop.f32.mrb[0].mxu0
        %v6911 = vadd.f32 %v6758, %v6910
        %v6912 = vpop.f32.mrb[0].mxu0
        %v6913 = vadd.f32 %v6760, %v6912
        %v6914 = vpop.f32.mrb[0].mxu0
        %v6915 = vadd.f32 %v6762, %v6914
        %6916 = vmatprep.mubr.bf16.mxu0 %v2213
        %6917 = vmatmul.mubr.bf16.gmra.mrb[0].mxu0 %v2212
        %v6918 = vpop.f32.mrb[0].mxu0
        %v6919 = vadd.f32 %v6766, %v6918
        %v6920 = vpop.f32.mrb[0].mxu0
        %v6921 = vadd.f32 %v6768, %v6920
        %v6922 = vpop.f32.mrb[0].mxu0
        %v6923 = vadd.f32 %v6770, %v6922
        %v6924 = vpop.f32.mrb[0].mxu0
        %v6925 = vadd.f32 %v6772, %v6924
        %6926 = vmatprep.mubr.bf16.mxu0 %v2225
        %6927 = vmatmul.mubr.bf16.gmra.mrb[0].mxu0 %v2224
        %v6928 = vpop.f32.mrb[0].mxu0
        %v6929 = vadd.f32 %v6776, %v6928
        %v6930 = vpop.f32.mrb[0].mxu0
        %v6931 = vadd.f32 %v6778, %v6930
        %v6932 = vpop.f32.mrb[0].mxu0
        %v6933 = vadd.f32 %v6780, %v6932
        %v6934 = vpop.f32.mrb[0].mxu0
        %v6935 = vadd.f32 %v6782, %v6934
        %6936 = vmatprep.mubr.bf16.mxu0 %v2237
        %6937 = vmatmul.mubr.bf16.gmra.mrb[0].mxu0 %v2236
        %v6938 = vpop.f32.mrb[0].mxu0
        %v6939 = vadd.f32 %v6786, %v6938
        %v6940 = vpop.f32.mrb[0].mxu0
        %v6941 = vadd.f32 %v6788, %v6940
        %v6942 = vpop.f32.mrb[0].mxu0
        %v6943 = vadd.f32 %v6790, %v6942
        %v6944 = vpop.f32.mrb[0].mxu0
        %v6945 = vadd.f32 %v6792, %v6944
        %6946 = vdwg.mxu0
        %6947 = vmatprep.subr.bf16.mxu0 %v4595
        %6948 = vmatpush1.bf16.msra.mxu0 %v4594
        %6949 = vmatprep.subr.bf16.mxu0 %v4601
        %6950 = vmatpush1.bf16.msra.mxu0 %v4600
        %6951 = vmatprep.subr.bf16.mxu0 %v4607
        %6952 = vmatpush1.bf16.msra.mxu0 %v4606
        %6953 = vmatprep.subr.bf16.mxu0 %v4613
        %6954 = vmatpush1.bf16.msra.mxu0 %v4612
        %6955 = vmatprep.subr.bf16.mxu0 %v4619
        %6956 = vmatpush1.bf16.msra.mxu0 %v4618
        %6957 = vmatprep.subr.bf16.mxu0 %v4625
        %6958 = vmatpush1.bf16.msra.mxu0 %v4624
        %6959 = vmatprep.subr.bf16.mxu0 %v4631
        %6960 = vmatpush1.bf16.msra.mxu0 %v4630
        %6961 = vmatprep.subr.bf16.mxu0 %v4637
        %6962 = vmatpush1.bf16.msra.mxu0 %v4636
        %6963 = vmatprep.subr.bf16.mxu0 %v4643
        %6964 = vmatpush1.bf16.msra.mxu0 %v4642
        %6965 = vmatprep.subr.bf16.mxu0 %v4649
        %6966 = vmatpush1.bf16.msra.mxu0 %v4648
        %6967 = vmatprep.subr.bf16.mxu0 %v4655
        %6968 = vmatpush1.bf16.msra.mxu0 %v4654
        %6969 = vmatprep.subr.bf16.mxu0 %v4661
        %6970 = vmatpush1.bf16.msra.mxu0 %v4660
        %6971 = vmatprep.subr.bf16.mxu0 %v4667
        %6972 = vmatpush1.bf16.msra.mxu0 %v4666
        %6973 = vmatprep.subr.bf16.mxu0 %v4673
        %6974 = vmatpush1.bf16.msra.mxu0 %v4672
        %6975 = vmatprep.subr.bf16.mxu0 %v4679
        %6976 = vmatpush1.bf16.msra.mxu0 %v4678
        %6977 = vmatprep.subr.bf16.mxu0 %v4685
        %6978 = vmatpush1.bf16.msra.mxu0 %v4684
        %6979 = vmatprep.mubr.bf16.mxu0 %v2107
        %6980 = vmatmul.mubr.bf16.gmra.mrb[0].mxu0 %v2106
        %v6981 = vpop.f32.mrb[0].mxu0
        %v6982 = vadd.f32 %v6829, %v6981
        %v6983 = vpop.f32.mrb[0].mxu0
        %v6984 = vadd.f32 %v6831, %v6983
        %v6985 = vpop.f32.mrb[0].mxu0
        %v6986 = vadd.f32 %v6833, %v6985
        %v6987 = vpop.f32.mrb[0].mxu0
        %v6988 = vadd.f32 %v6835, %v6987
        %6989 = vmatprep.mubr.bf16.mxu0 %v2119
        %6990 = vmatmul.mubr.bf16.gmra.mrb[0].mxu0 %v2118
        %v6991 = vpop.f32.mrb[0].mxu0
        %v6992 = vadd.f32 %v6839, %v6991
        %v6993 = vpop.f32.mrb[0].mxu0
        %v6994 = vadd.f32 %v6841, %v6993
        %v6995 = vpop.f32.mrb[0].mxu0
        %v6996 = vadd.f32 %v6843, %v6995
        %v6997 = vpop.f32.mrb[0].mxu0
        %v6998 = vadd.f32 %v6845, %v6997
        %6999 = vmatprep.mubr.bf16.mxu0 %v2131
        %7000 = vmatmul.mubr.bf16.gmra.mrb[0].mxu0 %v2130
        %v7001 = vpop.f32.mrb[0].mxu0
        %v7002 = vadd.f32 %v6849, %v7001
        %v7003 = vpop.f32.mrb[0].mxu0
        %v7004 = vadd.f32 %v6851, %v7003
        %v7005 = vpop.f32.mrb[0].mxu0
        %v7006 = vadd.f32 %v6853, %v7005
        %v7007 = vpop.f32.mrb[0].mxu0
        %v7008 = vadd.f32 %v6855, %v7007
        %7009 = vmatprep.mubr.bf16.mxu0 %v2143
        %7010 = vmatmul.mubr.bf16.gmra.mrb[0].mxu0 %v2142
        %v7011 = vpop.f32.mrb[0].mxu0
        %v7012 = vadd.f32 %v6859, %v7011
        %v7013 = vpop.f32.mrb[0].mxu0
        %v7014 = vadd.f32 %v6861, %v7013
        %v7015 = vpop.f32.mrb[0].mxu0
        %v7016 = vadd.f32 %v6863, %v7015
        %v7017 = vpop.f32.mrb[0].mxu0
        %v7018 = vadd.f32 %v6865, %v7017
        %7019 = vmatprep.mubr.bf16.mxu0 %v2155
        %7020 = vmatmul.mubr.bf16.gmra.mrb[0].mxu0 %v2154
        %v7021 = vpop.f32.mrb[0].mxu0
        %v7022 = vadd.f32 %v6869, %v7021
        %v7023 = vpop.f32.mrb[0].mxu0
        %v7024 = vadd.f32 %v6871, %v7023
        %v7025 = vpop.f32.mrb[0].mxu0
        %v7026 = vadd.f32 %v6873, %v7025
        %v7027 = vpop.f32.mrb[0].mxu0
        %v7028 = vadd.f32 %v6875, %v7027
        %7029 = vmatprep.mubr.bf16.mxu0 %v2167
        %7030 = vmatmul.mubr.bf16.gmra.mrb[0].mxu0 %v2166
        %v7031 = vpop.f32.mrb[0].mxu0
        %v7032 = vadd.f32 %v6879, %v7031
        %v7033 = vpop.f32.mrb[0].mxu0
        %v7034 = vadd.f32 %v6881, %v7033
        %v7035 = vpop.f32.mrb[0].mxu0
        %v7036 = vadd.f32 %v6883, %v7035
        %v7037 = vpop.f32.mrb[0].mxu0
        %v7038 = vadd.f32 %v6885, %v7037
        %7039 = vmatprep.mubr.bf16.mxu0 %v2179
        %7040 = vmatmul.mubr.bf16.gmra.mrb[0].mxu0 %v2178
        %v7041 = vpop.f32.mrb[0].mxu0
        %v7042 = vadd.f32 %v6889, %v7041
        %v7043 = vpop.f32.mrb[0].mxu0
        %v7044 = vadd.f32 %v6891, %v7043
        %v7045 = vpop.f32.mrb[0].mxu0
        %v7046 = vadd.f32 %v6893, %v7045
        %v7047 = vpop.f32.mrb[0].mxu0
        %v7048 = vadd.f32 %v6895, %v7047
        %7049 = vmatprep.mubr.bf16.mxu0 %v2191
        %7050 = vmatmul.mubr.bf16.gmra.mrb[0].mxu0 %v2190
        %v7051 = vpop.f32.mrb[0].mxu0
        %v7052 = vadd.f32 %v6899, %v7051
        %v7053 = vpop.f32.mrb[0].mxu0
        %v7054 = vadd.f32 %v6901, %v7053
        %v7055 = vpop.f32.mrb[0].mxu0
        %v7056 = vadd.f32 %v6903, %v7055
        %v7057 = vpop.f32.mrb[0].mxu0
        %v7058 = vadd.f32 %v6905, %v7057
        %7059 = vmatprep.mubr.bf16.mxu0 %v2203
        %7060 = vmatmul.mubr.bf16.gmra.mrb[0].mxu0 %v2202
        %v7061 = vpop.f32.mrb[0].mxu0
        %v7062 = vadd.f32 %v6909, %v7061
        %v7063 = vpop.f32.mrb[0].mxu0
        %v7064 = vadd.f32 %v6911, %v7063
        %v7065 = vpop.f32.mrb[0].mxu0
        %v7066 = vadd.f32 %v6913, %v7065
        %v7067 = vpop.f32.mrb[0].mxu0
        %v7068 = vadd.f32 %v6915, %v7067
        %7069 = vmatprep.mubr.bf16.mxu0 %v2215
        %7070 = vmatmul.mubr.bf16.gmra.mrb[0].mxu0 %v2214
        %v7071 = vpop.f32.mrb[0].mxu0
        %v7072 = vadd.f32 %v6919, %v7071
        %v7073 = vpop.f32.mrb[0].mxu0
        %v7074 = vadd.f32 %v6921, %v7073
        %v7075 = vpop.f32.mrb[0].mxu0
        %v7076 = vadd.f32 %v6923, %v7075
        %v7077 = vpop.f32.mrb[0].mxu0
        %v7078 = vadd.f32 %v6925, %v7077
        %7079 = vmatprep.mubr.bf16.mxu0 %v2227
        %7080 = vmatmul.mubr.bf16.gmra.mrb[0].mxu0 %v2226
        %v7081 = vpop.f32.mrb[0].mxu0
        %v7082 = vadd.f32 %v6929, %v7081
        %v7083 = vpop.f32.mrb[0].mxu0
        %v7084 = vadd.f32 %v6931, %v7083
        %v7085 = vpop.f32.mrb[0].mxu0
        %v7086 = vadd.f32 %v6933, %v7085
        %v7087 = vpop.f32.mrb[0].mxu0
        %v7088 = vadd.f32 %v6935, %v7087
        %7089 = vmatprep.mubr.bf16.mxu0 %v2239
        %7090 = vmatmul.mubr.bf16.gmra.mrb[0].mxu0 %v2238
        %v7091 = vpop.f32.mrb[0].mxu0
        %v7092 = vadd.f32 %v6939, %v7091
        %v7093 = vpop.f32.mrb[0].mxu0
        %v7094 = vadd.f32 %v6941, %v7093
        %v7095 = vpop.f32.mrb[0].mxu0
        %v7096 = vadd.f32 %v6943, %v7095
        %v7097 = vpop.f32.mrb[0].mxu0
        %v7098 = vadd.f32 %v6945, %v7097
        %7099 = vdwg.mxu0
        %7100 = vmatprep.subr.bf16.mxu0 %v4117
        %7101 = vmatpush1.bf16.msra.mxu0 %v4116
        %7102 = vmatprep.subr.bf16.mxu0 %v4123
        %7103 = vmatpush1.bf16.msra.mxu0 %v4122
        %7104 = vmatprep.subr.bf16.mxu0 %v4129
        %7105 = vmatpush1.bf16.msra.mxu0 %v4128
        %7106 = vmatprep.subr.bf16.mxu0 %v4135
        %7107 = vmatpush1.bf16.msra.mxu0 %v4134
        %7108 = vmatprep.subr.bf16.mxu0 %v4141
        %7109 = vmatpush1.bf16.msra.mxu0 %v4140
        %7110 = vmatprep.subr.bf16.mxu0 %v4147
        %7111 = vmatpush1.bf16.msra.mxu0 %v4146
        %7112 = vmatprep.subr.bf16.mxu0 %v4153
        %7113 = vmatpush1.bf16.msra.mxu0 %v4152
        %7114 = vmatprep.subr.bf16.mxu0 %v4159
        %7115 = vmatpush1.bf16.msra.mxu0 %v4158
        %7116 = vmatprep.subr.bf16.mxu0 %v4165
        %7117 = vmatpush1.bf16.msra.mxu0 %v4164
        %7118 = vmatprep.subr.bf16.mxu0 %v4171
        %7119 = vmatpush1.bf16.msra.mxu0 %v4170
        %7120 = vmatprep.subr.bf16.mxu0 %v4177
        %7121 = vmatpush1.bf16.msra.mxu0 %v4176
        %7122 = vmatprep.subr.bf16.mxu0 %v4183
        %7123 = vmatpush1.bf16.msra.mxu0 %v4182
        %7124 = vmatprep.subr.bf16.mxu0 %v4189
        %7125 = vmatpush1.bf16.msra.mxu0 %v4188
        %7126 = vmatprep.subr.bf16.mxu0 %v4195
        %7127 = vmatpush1.bf16.msra.mxu0 %v4194
        %7128 = vmatprep.subr.bf16.mxu0 %v4201
        %7129 = vmatpush1.bf16.msra.mxu0 %v4200
        %7130 = vmatprep.subr.bf16.mxu0 %v4207
        %7131 = vmatpush1.bf16.msra.mxu0 %v4206
        %7132 = vmatprep.mubr.bf16.mxu0 %v2097
        %7133 = vmatmul.mubr.bf16.gmra.mrb[0].mxu0 %v2096
        %v7134 = vpop.f32.mrb[0].mxu0
        %v7135 = vadd.f32 0.0, %v7134
        %v7136 = vpop.f32.mrb[0].mxu0
        %v7137 = vadd.f32 0.0, %v7136
        %v7138 = vpop.f32.mrb[0].mxu0
        %v7139 = vadd.f32 0.0, %v7138
        %v7140 = vpop.f32.mrb[0].mxu0
        %v7141 = vadd.f32 0.0, %v7140
        %7142 = vmatprep.mubr.bf16.mxu0 %v2109
        %7143 = vmatmul.mubr.bf16.gmra.mrb[0].mxu0 %v2108
        %v7144 = vpop.f32.mrb[0].mxu0
        %v7145 = vadd.f32 0.0, %v7144
        %v7146 = vpop.f32.mrb[0].mxu0
        %v7147 = vadd.f32 0.0, %v7146
        %v7148 = vpop.f32.mrb[0].mxu0
        %v7149 = vadd.f32 0.0, %v7148
        %v7150 = vpop.f32.mrb[0].mxu0
        %v7151 = vadd.f32 0.0, %v7150
        %7152 = vmatprep.mubr.bf16.mxu0 %v2121
        %7153 = vmatmul.mubr.bf16.gmra.mrb[0].mxu0 %v2120
        %v7154 = vpop.f32.mrb[0].mxu0
        %v7155 = vadd.f32 0.0, %v7154
        %v7156 = vpop.f32.mrb[0].mxu0
        %v7157 = vadd.f32 0.0, %v7156
        %v7158 = vpop.f32.mrb[0].mxu0
        %v7159 = vadd.f32 0.0, %v7158
        %v7160 = vpop.f32.mrb[0].mxu0
        %v7161 = vadd.f32 0.0, %v7160
        %7162 = vmatprep.mubr.bf16.mxu0 %v2133
        %7163 = vmatmul.mubr.bf16.gmra.mrb[0].mxu0 %v2132
        %v7164 = vpop.f32.mrb[0].mxu0
        %v7165 = vadd.f32 0.0, %v7164
        %v7166 = vpop.f32.mrb[0].mxu0
        %v7167 = vadd.f32 0.0, %v7166
        %v7168 = vpop.f32.mrb[0].mxu0
        %v7169 = vadd.f32 0.0, %v7168
        %v7170 = vpop.f32.mrb[0].mxu0
        %v7171 = vadd.f32 0.0, %v7170
        %7172 = vmatprep.mubr.bf16.mxu0 %v2145
        %7173 = vmatmul.mubr.bf16.gmra.mrb[0].mxu0 %v2144
        %v7174 = vpop.f32.mrb[0].mxu0
        %v7175 = vadd.f32 0.0, %v7174
        %v7176 = vpop.f32.mrb[0].mxu0
        %v7177 = vadd.f32 0.0, %v7176
        %v7178 = vpop.f32.mrb[0].mxu0
        %v7179 = vadd.f32 0.0, %v7178
        %v7180 = vpop.f32.mrb[0].mxu0
        %v7181 = vadd.f32 0.0, %v7180
        %7182 = vmatprep.mubr.bf16.mxu0 %v2157
        %7183 = vmatmul.mubr.bf16.gmra.mrb[0].mxu0 %v2156
        %v7184 = vpop.f32.mrb[0].mxu0
        %v7185 = vadd.f32 0.0, %v7184
        %v7186 = vpop.f32.mrb[0].mxu0
        %v7187 = vadd.f32 0.0, %v7186
        %v7188 = vpop.f32.mrb[0].mxu0
        %v7189 = vadd.f32 0.0, %v7188
        %v7190 = vpop.f32.mrb[0].mxu0
        %v7191 = vadd.f32 0.0, %v7190
        %7192 = vmatprep.mubr.bf16.mxu0 %v2169
        %7193 = vmatmul.mubr.bf16.gmra.mrb[0].mxu0 %v2168
        %v7194 = vpop.f32.mrb[0].mxu0
        %v7195 = vadd.f32 0.0, %v7194
        %v7196 = vpop.f32.mrb[0].mxu0
        %v7197 = vadd.f32 0.0, %v7196
        %v7198 = vpop.f32.mrb[0].mxu0
        %v7199 = vadd.f32 0.0, %v7198
        %v7200 = vpop.f32.mrb[0].mxu0
        %v7201 = vadd.f32 0.0, %v7200
        %7202 = vmatprep.mubr.bf16.mxu0 %v2181
        %7203 = vmatmul.mubr.bf16.gmra.mrb[0].mxu0 %v2180
        %v7204 = vpop.f32.mrb[0].mxu0
        %v7205 = vadd.f32 0.0, %v7204
        %v7206 = vpop.f32.mrb[0].mxu0
        %v7207 = vadd.f32 0.0, %v7206
        %v7208 = vpop.f32.mrb[0].mxu0
        %v7209 = vadd.f32 0.0, %v7208
        %v7210 = vpop.f32.mrb[0].mxu0
        %v7211 = vadd.f32 0.0, %v7210
        %7212 = vmatprep.mubr.bf16.mxu0 %v2193
        %7213 = vmatmul.mubr.bf16.gmra.mrb[0].mxu0 %v2192
        %v7214 = vpop.f32.mrb[0].mxu0
        %v7215 = vadd.f32 0.0, %v7214
        %v7216 = vpop.f32.mrb[0].mxu0
        %v7217 = vadd.f32 0.0, %v7216
        %v7218 = vpop.f32.mrb[0].mxu0
        %v7219 = vadd.f32 0.0, %v7218
        %v7220 = vpop.f32.mrb[0].mxu0
        %v7221 = vadd.f32 0.0, %v7220
        %7222 = vmatprep.mubr.bf16.mxu0 %v2205
        %7223 = vmatmul.mubr.bf16.gmra.mrb[0].mxu0 %v2204
        %v7224 = vpop.f32.mrb[0].mxu0
        %v7225 = vadd.f32 0.0, %v7224
        %v7226 = vpop.f32.mrb[0].mxu0
        %v7227 = vadd.f32 0.0, %v7226
        %v7228 = vpop.f32.mrb[0].mxu0
        %v7229 = vadd.f32 0.0, %v7228
        %v7230 = vpop.f32.mrb[0].mxu0
        %v7231 = vadd.f32 0.0, %v7230
        %7232 = vmatprep.mubr.bf16.mxu0 %v2217
        %7233 = vmatmul.mubr.bf16.gmra.mrb[0].mxu0 %v2216
        %v7234 = vpop.f32.mrb[0].mxu0
        %v7235 = vadd.f32 0.0, %v7234
        %v7236 = vpop.f32.mrb[0].mxu0
        %v7237 = vadd.f32 0.0, %v7236
        %v7238 = vpop.f32.mrb[0].mxu0
        %v7239 = vadd.f32 0.0, %v7238
        %v7240 = vpop.f32.mrb[0].mxu0
        %v7241 = vadd.f32 0.0, %v7240
        %7242 = vmatprep.mubr.bf16.mxu0 %v2229
        %7243 = vmatmul.mubr.bf16.gmra.mrb[0].mxu0 %v2228
        %v7244 = vpop.f32.mrb[0].mxu0
        %v7245 = vadd.f32 0.0, %v7244
        %v7246 = vpop.f32.mrb[0].mxu0
        %v7247 = vadd.f32 0.0, %v7246
        %v7248 = vpop.f32.mrb[0].mxu0
        %v7249 = vadd.f32 0.0, %v7248
        %v7250 = vpop.f32.mrb[0].mxu0
        %v7251 = vadd.f32 0.0, %v7250
        %7252 = vdwg.mxu0
        %7253 = vmatprep.subr.bf16.mxu0 %v4213
        %7254 = vmatpush1.bf16.msra.mxu0 %v4212
        %7255 = vmatprep.subr.bf16.mxu0 %v4219
        %7256 = vmatpush1.bf16.msra.mxu0 %v4218
        %7257 = vmatprep.subr.bf16.mxu0 %v4225
        %7258 = vmatpush1.bf16.msra.mxu0 %v4224
        %7259 = vmatprep.subr.bf16.mxu0 %v4231
        %7260 = vmatpush1.bf16.msra.mxu0 %v4230
        %7261 = vmatprep.subr.bf16.mxu0 %v4237
        %7262 = vmatpush1.bf16.msra.mxu0 %v4236
        %7263 = vmatprep.subr.bf16.mxu0 %v4243
        %7264 = vmatpush1.bf16.msra.mxu0 %v4242
        %7265 = vmatprep.subr.bf16.mxu0 %v4249
        %7266 = vmatpush1.bf16.msra.mxu0 %v4248
        %7267 = vmatprep.subr.bf16.mxu0 %v4255
        %7268 = vmatpush1.bf16.msra.mxu0 %v4254
        %7269 = vmatprep.subr.bf16.mxu0 %v4261
        %7270 = vmatpush1.bf16.msra.mxu0 %v4260
        %7271 = vmatprep.subr.bf16.mxu0 %v4267
        %7272 = vmatpush1.bf16.msra.mxu0 %v4266
        %7273 = vmatprep.subr.bf16.mxu0 %v4273
        %7274 = vmatpush1.bf16.msra.mxu0 %v4272
        %7275 = vmatprep.subr.bf16.mxu0 %v4279
        %7276 = vmatpush1.bf16.msra.mxu0 %v4278
        %7277 = vmatprep.subr.bf16.mxu0 %v4285
        %7278 = vmatpush1.bf16.msra.mxu0 %v4284
        %7279 = vmatprep.subr.bf16.mxu0 %v4291
        %7280 = vmatpush1.bf16.msra.mxu0 %v4290
        %7281 = vmatprep.subr.bf16.mxu0 %v4297
        %7282 = vmatpush1.bf16.msra.mxu0 %v4296
        %7283 = vmatprep.subr.bf16.mxu0 %v4303
        %7284 = vmatpush1.bf16.msra.mxu0 %v4302
        %7285 = vmatprep.mubr.bf16.mxu0 %v2099
        %7286 = vmatmul.mubr.bf16.gmra.mrb[0].mxu0 %v2098
        %v7287 = vpop.f32.mrb[0].mxu0
        %v7288 = vadd.f32 %v7135, %v7287
        %v7289 = vpop.f32.mrb[0].mxu0
        %v7290 = vadd.f32 %v7137, %v7289
        %v7291 = vpop.f32.mrb[0].mxu0
        %v7292 = vadd.f32 %v7139, %v7291
        %v7293 = vpop.f32.mrb[0].mxu0
        %v7294 = vadd.f32 %v7141, %v7293
        %7295 = vmatprep.mubr.bf16.mxu0 %v2111
        %7296 = vmatmul.mubr.bf16.gmra.mrb[0].mxu0 %v2110
        %v7297 = vpop.f32.mrb[0].mxu0
        %v7298 = vadd.f32 %v7145, %v7297
        %v7299 = vpop.f32.mrb[0].mxu0
        %v7300 = vadd.f32 %v7147, %v7299
        %v7301 = vpop.f32.mrb[0].mxu0
        %v7302 = vadd.f32 %v7149, %v7301
        %v7303 = vpop.f32.mrb[0].mxu0
        %v7304 = vadd.f32 %v7151, %v7303
        %7305 = vmatprep.mubr.bf16.mxu0 %v2123
        %7306 = vmatmul.mubr.bf16.gmra.mrb[0].mxu0 %v2122
        %v7307 = vpop.f32.mrb[0].mxu0
        %v7308 = vadd.f32 %v7155, %v7307
        %v7309 = vpop.f32.mrb[0].mxu0
        %v7310 = vadd.f32 %v7157, %v7309
        %v7311 = vpop.f32.mrb[0].mxu0
        %v7312 = vadd.f32 %v7159, %v7311
        %v7313 = vpop.f32.mrb[0].mxu0
        %v7314 = vadd.f32 %v7161, %v7313
        %7315 = vmatprep.mubr.bf16.mxu0 %v2135
        %7316 = vmatmul.mubr.bf16.gmra.mrb[0].mxu0 %v2134
        %v7317 = vpop.f32.mrb[0].mxu0
        %v7318 = vadd.f32 %v7165, %v7317
        %v7319 = vpop.f32.mrb[0].mxu0
        %v7320 = vadd.f32 %v7167, %v7319
        %v7321 = vpop.f32.mrb[0].mxu0
        %v7322 = vadd.f32 %v7169, %v7321
        %v7323 = vpop.f32.mrb[0].mxu0
        %v7324 = vadd.f32 %v7171, %v7323
        %7325 = vmatprep.mubr.bf16.mxu0 %v2147
        %7326 = vmatmul.mubr.bf16.gmra.mrb[0].mxu0 %v2146
        %v7327 = vpop.f32.mrb[0].mxu0
        %v7328 = vadd.f32 %v7175, %v7327
        %v7329 = vpop.f32.mrb[0].mxu0
        %v7330 = vadd.f32 %v7177, %v7329
        %v7331 = vpop.f32.mrb[0].mxu0
        %v7332 = vadd.f32 %v7179, %v7331
        %v7333 = vpop.f32.mrb[0].mxu0
        %v7334 = vadd.f32 %v7181, %v7333
        %7335 = vmatprep.mubr.bf16.mxu0 %v2159
        %7336 = vmatmul.mubr.bf16.gmra.mrb[0].mxu0 %v2158
        %v7337 = vpop.f32.mrb[0].mxu0
        %v7338 = vadd.f32 %v7185, %v7337
        %v7339 = vpop.f32.mrb[0].mxu0
        %v7340 = vadd.f32 %v7187, %v7339
        %v7341 = vpop.f32.mrb[0].mxu0
        %v7342 = vadd.f32 %v7189, %v7341
        %v7343 = vpop.f32.mrb[0].mxu0
        %v7344 = vadd.f32 %v7191, %v7343
        %7345 = vmatprep.mubr.bf16.mxu0 %v2171
        %7346 = vmatmul.mubr.bf16.gmra.mrb[0].mxu0 %v2170
        %v7347 = vpop.f32.mrb[0].mxu0
        %v7348 = vadd.f32 %v7195, %v7347
        %v7349 = vpop.f32.mrb[0].mxu0
        %v7350 = vadd.f32 %v7197, %v7349
        %v7351 = vpop.f32.mrb[0].mxu0
        %v7352 = vadd.f32 %v7199, %v7351
        %v7353 = vpop.f32.mrb[0].mxu0
        %v7354 = vadd.f32 %v7201, %v7353
        %7355 = vmatprep.mubr.bf16.mxu0 %v2183
        %7356 = vmatmul.mubr.bf16.gmra.mrb[0].mxu0 %v2182
        %v7357 = vpop.f32.mrb[0].mxu0
        %v7358 = vadd.f32 %v7205, %v7357
        %v7359 = vpop.f32.mrb[0].mxu0
        %v7360 = vadd.f32 %v7207, %v7359
        %v7361 = vpop.f32.mrb[0].mxu0
        %v7362 = vadd.f32 %v7209, %v7361
        %v7363 = vpop.f32.mrb[0].mxu0
        %v7364 = vadd.f32 %v7211, %v7363
        %7365 = vmatprep.mubr.bf16.mxu0 %v2195
        %7366 = vmatmul.mubr.bf16.gmra.mrb[0].mxu0 %v2194
        %v7367 = vpop.f32.mrb[0].mxu0
        %v7368 = vadd.f32 %v7215, %v7367
        %v7369 = vpop.f32.mrb[0].mxu0
        %v7370 = vadd.f32 %v7217, %v7369
        %v7371 = vpop.f32.mrb[0].mxu0
        %v7372 = vadd.f32 %v7219, %v7371
        %v7373 = vpop.f32.mrb[0].mxu0
        %v7374 = vadd.f32 %v7221, %v7373
        %7375 = vmatprep.mubr.bf16.mxu0 %v2207
        %7376 = vmatmul.mubr.bf16.gmra.mrb[0].mxu0 %v2206
        %v7377 = vpop.f32.mrb[0].mxu0
        %v7378 = vadd.f32 %v7225, %v7377
        %v7379 = vpop.f32.mrb[0].mxu0
        %v7380 = vadd.f32 %v7227, %v7379
        %v7381 = vpop.f32.mrb[0].mxu0
        %v7382 = vadd.f32 %v7229, %v7381
        %v7383 = vpop.f32.mrb[0].mxu0
        %v7384 = vadd.f32 %v7231, %v7383
        %7385 = vmatprep.mubr.bf16.mxu0 %v2219
        %7386 = vmatmul.mubr.bf16.gmra.mrb[0].mxu0 %v2218
        %v7387 = vpop.f32.mrb[0].mxu0
        %v7388 = vadd.f32 %v7235, %v7387
        %v7389 = vpop.f32.mrb[0].mxu0
        %v7390 = vadd.f32 %v7237, %v7389
        %v7391 = vpop.f32.mrb[0].mxu0
        %v7392 = vadd.f32 %v7239, %v7391
        %v7393 = vpop.f32.mrb[0].mxu0
        %v7394 = vadd.f32 %v7241, %v7393
        %7395 = vmatprep.mubr.bf16.mxu0 %v2231
        %7396 = vmatmul.mubr.bf16.gmra.mrb[0].mxu0 %v2230
        %v7397 = vpop.f32.mrb[0].mxu0
        %v7398 = vadd.f32 %v7245, %v7397
        %v7399 = vpop.f32.mrb[0].mxu0
        %v7400 = vadd.f32 %v7247, %v7399
        %v7401 = vpop.f32.mrb[0].mxu0
        %v7402 = vadd.f32 %v7249, %v7401
        %v7403 = vpop.f32.mrb[0].mxu0
        %v7404 = vadd.f32 %v7251, %v7403
        %7405 = vdwg.mxu0
        %7406 = vmatprep.subr.bf16.mxu0 %v4309
        %7407 = vmatpush1.bf16.msra.mxu0 %v4308
        %7408 = vmatprep.subr.bf16.mxu0 %v4315
        %7409 = vmatpush1.bf16.msra.mxu0 %v4314
        %7410 = vmatprep.subr.bf16.mxu0 %v4321
        %7411 = vmatpush1.bf16.msra.mxu0 %v4320
        %7412 = vmatprep.subr.bf16.mxu0 %v4327
        %7413 = vmatpush1.bf16.msra.mxu0 %v4326
        %7414 = vmatprep.subr.bf16.mxu0 %v4333
        %7415 = vmatpush1.bf16.msra.mxu0 %v4332
        %7416 = vmatprep.subr.bf16.mxu0 %v4339
        %7417 = vmatpush1.bf16.msra.mxu0 %v4338
        %7418 = vmatprep.subr.bf16.mxu0 %v4345
        %7419 = vmatpush1.bf16.msra.mxu0 %v4344
        %7420 = vmatprep.subr.bf16.mxu0 %v4351
        %7421 = vmatpush1.bf16.msra.mxu0 %v4350
        %7422 = vmatprep.subr.bf16.mxu0 %v4357
        %7423 = vmatpush1.bf16.msra.mxu0 %v4356
        %7424 = vmatprep.subr.bf16.mxu0 %v4363
        %7425 = vmatpush1.bf16.msra.mxu0 %v4362
        %7426 = vmatprep.subr.bf16.mxu0 %v4369
        %7427 = vmatpush1.bf16.msra.mxu0 %v4368
        %7428 = vmatprep.subr.bf16.mxu0 %v4375
        %7429 = vmatpush1.bf16.msra.mxu0 %v4374
        %7430 = vmatprep.subr.bf16.mxu0 %v4381
        %7431 = vmatpush1.bf16.msra.mxu0 %v4380
        %7432 = vmatprep.subr.bf16.mxu0 %v4387
        %7433 = vmatpush1.bf16.msra.mxu0 %v4386
        %7434 = vmatprep.subr.bf16.mxu0 %v4393
        %7435 = vmatpush1.bf16.msra.mxu0 %v4392
        %7436 = vmatprep.subr.bf16.mxu0 %v4399
        %7437 = vmatpush1.bf16.msra.mxu0 %v4398
        %7438 = vmatprep.mubr.bf16.mxu0 %v2101
        %7439 = vmatmul.mubr.bf16.gmra.mrb[0].mxu0 %v2100
        %v7440 = vpop.f32.mrb[0].mxu0
        %v7441 = vadd.f32 %v7288, %v7440
        %v7442 = vpop.f32.mrb[0].mxu0
        %v7443 = vadd.f32 %v7290, %v7442
        %v7444 = vpop.f32.mrb[0].mxu0
        %v7445 = vadd.f32 %v7292, %v7444
        %v7446 = vpop.f32.mrb[0].mxu0
        %v7447 = vadd.f32 %v7294, %v7446
        %7448 = vmatprep.mubr.bf16.mxu0 %v2113
        %7449 = vmatmul.mubr.bf16.gmra.mrb[0].mxu0 %v2112
        %v7450 = vpop.f32.mrb[0].mxu0
        %v7451 = vadd.f32 %v7298, %v7450
        %v7452 = vpop.f32.mrb[0].mxu0
        %v7453 = vadd.f32 %v7300, %v7452
        %v7454 = vpop.f32.mrb[0].mxu0
        %v7455 = vadd.f32 %v7302, %v7454
        %v7456 = vpop.f32.mrb[0].mxu0
        %v7457 = vadd.f32 %v7304, %v7456
        %7458 = vmatprep.mubr.bf16.mxu0 %v2125
        %7459 = vmatmul.mubr.bf16.gmra.mrb[0].mxu0 %v2124
        %v7460 = vpop.f32.mrb[0].mxu0
        %v7461 = vadd.f32 %v7308, %v7460
        %v7462 = vpop.f32.mrb[0].mxu0
        %v7463 = vadd.f32 %v7310, %v7462
        %v7464 = vpop.f32.mrb[0].mxu0
        %v7465 = vadd.f32 %v7312, %v7464
        %v7466 = vpop.f32.mrb[0].mxu0
        %v7467 = vadd.f32 %v7314, %v7466
        %7468 = vmatprep.mubr.bf16.mxu0 %v2137
        %7469 = vmatmul.mubr.bf16.gmra.mrb[0].mxu0 %v2136
        %v7470 = vpop.f32.mrb[0].mxu0
        %v7471 = vadd.f32 %v7318, %v7470
        %v7472 = vpop.f32.mrb[0].mxu0
        %v7473 = vadd.f32 %v7320, %v7472
        %v7474 = vpop.f32.mrb[0].mxu0
        %v7475 = vadd.f32 %v7322, %v7474
        %v7476 = vpop.f32.mrb[0].mxu0
        %v7477 = vadd.f32 %v7324, %v7476
        %7478 = vmatprep.mubr.bf16.mxu0 %v2149
        %7479 = vmatmul.mubr.bf16.gmra.mrb[0].mxu0 %v2148
        %v7480 = vpop.f32.mrb[0].mxu0
        %v7481 = vadd.f32 %v7328, %v7480
        %v7482 = vpop.f32.mrb[0].mxu0
        %v7483 = vadd.f32 %v7330, %v7482
        %v7484 = vpop.f32.mrb[0].mxu0
        %v7485 = vadd.f32 %v7332, %v7484
        %v7486 = vpop.f32.mrb[0].mxu0
        %v7487 = vadd.f32 %v7334, %v7486
        %7488 = vmatprep.mubr.bf16.mxu0 %v2161
        %7489 = vmatmul.mubr.bf16.gmra.mrb[0].mxu0 %v2160
        %v7490 = vpop.f32.mrb[0].mxu0
        %v7491 = vadd.f32 %v7338, %v7490
        %v7492 = vpop.f32.mrb[0].mxu0
        %v7493 = vadd.f32 %v7340, %v7492
        %v7494 = vpop.f32.mrb[0].mxu0
        %v7495 = vadd.f32 %v7342, %v7494
        %v7496 = vpop.f32.mrb[0].mxu0
        %v7497 = vadd.f32 %v7344, %v7496
        %7498 = vmatprep.mubr.bf16.mxu0 %v2173
        %7499 = vmatmul.mubr.bf16.gmra.mrb[0].mxu0 %v2172
        %v7500 = vpop.f32.mrb[0].mxu0
        %v7501 = vadd.f32 %v7348, %v7500
        %v7502 = vpop.f32.mrb[0].mxu0
        %v7503 = vadd.f32 %v7350, %v7502
        %v7504 = vpop.f32.mrb[0].mxu0
        %v7505 = vadd.f32 %v7352, %v7504
        %v7506 = vpop.f32.mrb[0].mxu0
        %v7507 = vadd.f32 %v7354, %v7506
        %7508 = vmatprep.mubr.bf16.mxu0 %v2185
        %7509 = vmatmul.mubr.bf16.gmra.mrb[0].mxu0 %v2184
        %v7510 = vpop.f32.mrb[0].mxu0
        %v7511 = vadd.f32 %v7358, %v7510
        %v7512 = vpop.f32.mrb[0].mxu0
        %v7513 = vadd.f32 %v7360, %v7512
        %v7514 = vpop.f32.mrb[0].mxu0
        %v7515 = vadd.f32 %v7362, %v7514
        %v7516 = vpop.f32.mrb[0].mxu0
        %v7517 = vadd.f32 %v7364, %v7516
        %7518 = vmatprep.mubr.bf16.mxu0 %v2197
        %7519 = vmatmul.mubr.bf16.gmra.mrb[0].mxu0 %v2196
        %v7520 = vpop.f32.mrb[0].mxu0
        %v7521 = vadd.f32 %v7368, %v7520
        %v7522 = vpop.f32.mrb[0].mxu0
        %v7523 = vadd.f32 %v7370, %v7522
        %v7524 = vpop.f32.mrb[0].mxu0
        %v7525 = vadd.f32 %v7372, %v7524
        %v7526 = vpop.f32.mrb[0].mxu0
        %v7527 = vadd.f32 %v7374, %v7526
        %7528 = vmatprep.mubr.bf16.mxu0 %v2209
        %7529 = vmatmul.mubr.bf16.gmra.mrb[0].mxu0 %v2208
        %v7530 = vpop.f32.mrb[0].mxu0
        %v7531 = vadd.f32 %v7378, %v7530
        %v7532 = vpop.f32.mrb[0].mxu0
        %v7533 = vadd.f32 %v7380, %v7532
        %v7534 = vpop.f32.mrb[0].mxu0
        %v7535 = vadd.f32 %v7382, %v7534
        %v7536 = vpop.f32.mrb[0].mxu0
        %v7537 = vadd.f32 %v7384, %v7536
        %7538 = vmatprep.mubr.bf16.mxu0 %v2221
        %7539 = vmatmul.mubr.bf16.gmra.mrb[0].mxu0 %v2220
        %v7540 = vpop.f32.mrb[0].mxu0
        %v7541 = vadd.f32 %v7388, %v7540
        %v7542 = vpop.f32.mrb[0].mxu0
        %v7543 = vadd.f32 %v7390, %v7542
        %v7544 = vpop.f32.mrb[0].mxu0
        %v7545 = vadd.f32 %v7392, %v7544
        %v7546 = vpop.f32.mrb[0].mxu0
        %v7547 = vadd.f32 %v7394, %v7546
        %7548 = vmatprep.mubr.bf16.mxu0 %v2233
        %7549 = vmatmul.mubr.bf16.gmra.mrb[0].mxu0 %v2232
        %v7550 = vpop.f32.mrb[0].mxu0
        %v7551 = vadd.f32 %v7398, %v7550
        %v7552 = vpop.f32.mrb[0].mxu0
        %v7553 = vadd.f32 %v7400, %v7552
        %v7554 = vpop.f32.mrb[0].mxu0
        %v7555 = vadd.f32 %v7402, %v7554
        %v7556 = vpop.f32.mrb[0].mxu0
        %v7557 = vadd.f32 %v7404, %v7556
        %7558 = vdwg.mxu0
        %7559 = vmatprep.subr.bf16.mxu0 %v4405
        %7560 = vmatpush1.bf16.msra.mxu0 %v4404
        %7561 = vmatprep.subr.bf16.mxu0 %v4411
        %7562 = vmatpush1.bf16.msra.mxu0 %v4410
        %7563 = vmatprep.subr.bf16.mxu0 %v4417
        %7564 = vmatpush1.bf16.msra.mxu0 %v4416
        %7565 = vmatprep.subr.bf16.mxu0 %v4423
        %7566 = vmatpush1.bf16.msra.mxu0 %v4422
        %7567 = vmatprep.subr.bf16.mxu0 %v4429
        %7568 = vmatpush1.bf16.msra.mxu0 %v4428
        %7569 = vmatprep.subr.bf16.mxu0 %v4435
        %7570 = vmatpush1.bf16.msra.mxu0 %v4434
        %7571 = vmatprep.subr.bf16.mxu0 %v4441
        %7572 = vmatpush1.bf16.msra.mxu0 %v4440
        %7573 = vmatprep.subr.bf16.mxu0 %v4447
        %7574 = vmatpush1.bf16.msra.mxu0 %v4446
        %7575 = vmatprep.subr.bf16.mxu0 %v4453
        %7576 = vmatpush1.bf16.msra.mxu0 %v4452
        %7577 = vmatprep.subr.bf16.mxu0 %v4459
        %7578 = vmatpush1.bf16.msra.mxu0 %v4458
        %7579 = vmatprep.subr.bf16.mxu0 %v4465
        %7580 = vmatpush1.bf16.msra.mxu0 %v4464
        %7581 = vmatprep.subr.bf16.mxu0 %v4471
        %7582 = vmatpush1.bf16.msra.mxu0 %v4470
        %7583 = vmatprep.subr.bf16.mxu0 %v4477
        %7584 = vmatpush1.bf16.msra.mxu0 %v4476
        %7585 = vmatprep.subr.bf16.mxu0 %v4483
        %7586 = vmatpush1.bf16.msra.mxu0 %v4482
        %7587 = vmatprep.subr.bf16.mxu0 %v4489
        %7588 = vmatpush1.bf16.msra.mxu0 %v4488
        %7589 = vmatprep.subr.bf16.mxu0 %v4495
        %7590 = vmatpush1.bf16.msra.mxu0 %v4494
        %7591 = vmatprep.mubr.bf16.mxu0 %v2103
        %7592 = vmatmul.mubr.bf16.gmra.mrb[0].mxu0 %v2102
        %v7593 = vpop.f32.mrb[0].mxu0
        %v7594 = vadd.f32 %v7441, %v7593
        %v7595 = vpop.f32.mrb[0].mxu0
        %v7596 = vadd.f32 %v7443, %v7595
        %v7597 = vpop.f32.mrb[0].mxu0
        %v7598 = vadd.f32 %v7445, %v7597
        %v7599 = vpop.f32.mrb[0].mxu0
        %v7600 = vadd.f32 %v7447, %v7599
        %7601 = vmatprep.mubr.bf16.mxu0 %v2115
        %7602 = vmatmul.mubr.bf16.gmra.mrb[0].mxu0 %v2114
        %v7603 = vpop.f32.mrb[0].mxu0
        %v7604 = vadd.f32 %v7451, %v7603
        %v7605 = vpop.f32.mrb[0].mxu0
        %v7606 = vadd.f32 %v7453, %v7605
        %v7607 = vpop.f32.mrb[0].mxu0
        %v7608 = vadd.f32 %v7455, %v7607
        %v7609 = vpop.f32.mrb[0].mxu0
        %v7610 = vadd.f32 %v7457, %v7609
        %7611 = vmatprep.mubr.bf16.mxu0 %v2127
        %7612 = vmatmul.mubr.bf16.gmra.mrb[0].mxu0 %v2126
        %v7613 = vpop.f32.mrb[0].mxu0
        %v7614 = vadd.f32 %v7461, %v7613
        %v7615 = vpop.f32.mrb[0].mxu0
        %v7616 = vadd.f32 %v7463, %v7615
        %v7617 = vpop.f32.mrb[0].mxu0
        %v7618 = vadd.f32 %v7465, %v7617
        %v7619 = vpop.f32.mrb[0].mxu0
        %v7620 = vadd.f32 %v7467, %v7619
        %7621 = vmatprep.mubr.bf16.mxu0 %v2139
        %7622 = vmatmul.mubr.bf16.gmra.mrb[0].mxu0 %v2138
        %v7623 = vpop.f32.mrb[0].mxu0
        %v7624 = vadd.f32 %v7471, %v7623
        %v7625 = vpop.f32.mrb[0].mxu0
        %v7626 = vadd.f32 %v7473, %v7625
        %v7627 = vpop.f32.mrb[0].mxu0
        %v7628 = vadd.f32 %v7475, %v7627
        %v7629 = vpop.f32.mrb[0].mxu0
        %v7630 = vadd.f32 %v7477, %v7629
        %7631 = vmatprep.mubr.bf16.mxu0 %v2151
        %7632 = vmatmul.mubr.bf16.gmra.mrb[0].mxu0 %v2150
        %v7633 = vpop.f32.mrb[0].mxu0
        %v7634 = vadd.f32 %v7481, %v7633
        %v7635 = vpop.f32.mrb[0].mxu0
        %v7636 = vadd.f32 %v7483, %v7635
        %v7637 = vpop.f32.mrb[0].mxu0
        %v7638 = vadd.f32 %v7485, %v7637
        %v7639 = vpop.f32.mrb[0].mxu0
        %v7640 = vadd.f32 %v7487, %v7639
        %7641 = vmatprep.mubr.bf16.mxu0 %v2163
        %7642 = vmatmul.mubr.bf16.gmra.mrb[0].mxu0 %v2162
        %v7643 = vpop.f32.mrb[0].mxu0
        %v7644 = vadd.f32 %v7491, %v7643
        %v7645 = vpop.f32.mrb[0].mxu0
        %v7646 = vadd.f32 %v7493, %v7645
        %v7647 = vpop.f32.mrb[0].mxu0
        %v7648 = vadd.f32 %v7495, %v7647
        %v7649 = vpop.f32.mrb[0].mxu0
        %v7650 = vadd.f32 %v7497, %v7649
        %7651 = vmatprep.mubr.bf16.mxu0 %v2175
        %7652 = vmatmul.mubr.bf16.gmra.mrb[0].mxu0 %v2174
        %v7653 = vpop.f32.mrb[0].mxu0
        %v7654 = vadd.f32 %v7501, %v7653
        %v7655 = vpop.f32.mrb[0].mxu0
        %v7656 = vadd.f32 %v7503, %v7655
        %v7657 = vpop.f32.mrb[0].mxu0
        %v7658 = vadd.f32 %v7505, %v7657
        %v7659 = vpop.f32.mrb[0].mxu0
        %v7660 = vadd.f32 %v7507, %v7659
        %7661 = vmatprep.mubr.bf16.mxu0 %v2187
        %7662 = vmatmul.mubr.bf16.gmra.mrb[0].mxu0 %v2186
        %v7663 = vpop.f32.mrb[0].mxu0
        %v7664 = vadd.f32 %v7511, %v7663
        %v7665 = vpop.f32.mrb[0].mxu0
        %v7666 = vadd.f32 %v7513, %v7665
        %v7667 = vpop.f32.mrb[0].mxu0
        %v7668 = vadd.f32 %v7515, %v7667
        %v7669 = vpop.f32.mrb[0].mxu0
        %v7670 = vadd.f32 %v7517, %v7669
        %7671 = vmatprep.mubr.bf16.mxu0 %v2199
        %7672 = vmatmul.mubr.bf16.gmra.mrb[0].mxu0 %v2198
        %v7673 = vpop.f32.mrb[0].mxu0
        %v7674 = vadd.f32 %v7521, %v7673
        %v7675 = vpop.f32.mrb[0].mxu0
        %v7676 = vadd.f32 %v7523, %v7675
        %v7677 = vpop.f32.mrb[0].mxu0
        %v7678 = vadd.f32 %v7525, %v7677
        %v7679 = vpop.f32.mrb[0].mxu0
        %v7680 = vadd.f32 %v7527, %v7679
        %7681 = vmatprep.mubr.bf16.mxu0 %v2211
        %7682 = vmatmul.mubr.bf16.gmra.mrb[0].mxu0 %v2210
        %v7683 = vpop.f32.mrb[0].mxu0
        %v7684 = vadd.f32 %v7531, %v7683
        %v7685 = vpop.f32.mrb[0].mxu0
        %v7686 = vadd.f32 %v7533, %v7685
        %v7687 = vpop.f32.mrb[0].mxu0
        %v7688 = vadd.f32 %v7535, %v7687
        %v7689 = vpop.f32.mrb[0].mxu0
        %v7690 = vadd.f32 %v7537, %v7689
        %7691 = vmatprep.mubr.bf16.mxu0 %v2223
        %7692 = vmatmul.mubr.bf16.gmra.mrb[0].mxu0 %v2222
        %v7693 = vpop.f32.mrb[0].mxu0
        %v7694 = vadd.f32 %v7541, %v7693
        %v7695 = vpop.f32.mrb[0].mxu0
        %v7696 = vadd.f32 %v7543, %v7695
        %v7697 = vpop.f32.mrb[0].mxu0
        %v7698 = vadd.f32 %v7545, %v7697
        %v7699 = vpop.f32.mrb[0].mxu0
        %v7700 = vadd.f32 %v7547, %v7699
        %7701 = vmatprep.mubr.bf16.mxu0 %v2235
        %7702 = vmatmul.mubr.bf16.gmra.mrb[0].mxu0 %v2234
        %v7703 = vpop.f32.mrb[0].mxu0
        %v7704 = vadd.f32 %v7551, %v7703
        %v7705 = vpop.f32.mrb[0].mxu0
        %v7706 = vadd.f32 %v7553, %v7705
        %v7707 = vpop.f32.mrb[0].mxu0
        %v7708 = vadd.f32 %v7555, %v7707
        %v7709 = vpop.f32.mrb[0].mxu0
        %v7710 = vadd.f32 %v7557, %v7709
        %7711 = vdwg.mxu0
        %7712 = vmatprep.subr.bf16.mxu0 %v4501
        %7713 = vmatpush1.bf16.msra.mxu0 %v4500
        %7714 = vmatprep.subr.bf16.mxu0 %v4507
        %7715 = vmatpush1.bf16.msra.mxu0 %v4506
        %7716 = vmatprep.subr.bf16.mxu0 %v4513
        %7717 = vmatpush1.bf16.msra.mxu0 %v4512
        %7718 = vmatprep.subr.bf16.mxu0 %v4519
        %7719 = vmatpush1.bf16.msra.mxu0 %v4518
        %7720 = vmatprep.subr.bf16.mxu0 %v4525
        %7721 = vmatpush1.bf16.msra.mxu0 %v4524
        %7722 = vmatprep.subr.bf16.mxu0 %v4531
        %7723 = vmatpush1.bf16.msra.mxu0 %v4530
        %7724 = vmatprep.subr.bf16.mxu0 %v4537
        %7725 = vmatpush1.bf16.msra.mxu0 %v4536
        %7726 = vmatprep.subr.bf16.mxu0 %v4543
        %7727 = vmatpush1.bf16.msra.mxu0 %v4542
        %7728 = vmatprep.subr.bf16.mxu0 %v4549
        %7729 = vmatpush1.bf16.msra.mxu0 %v4548
        %7730 = vmatprep.subr.bf16.mxu0 %v4555
        %7731 = vmatpush1.bf16.msra.mxu0 %v4554
        %7732 = vmatprep.subr.bf16.mxu0 %v4561
        %7733 = vmatpush1.bf16.msra.mxu0 %v4560
        %7734 = vmatprep.subr.bf16.mxu0 %v4567
        %7735 = vmatpush1.bf16.msra.mxu0 %v4566
        %7736 = vmatprep.subr.bf16.mxu0 %v4573
        %7737 = vmatpush1.bf16.msra.mxu0 %v4572
        %7738 = vmatprep.subr.bf16.mxu0 %v4579
        %7739 = vmatpush1.bf16.msra.mxu0 %v4578
        %7740 = vmatprep.subr.bf16.mxu0 %v4585
        %7741 = vmatpush1.bf16.msra.mxu0 %v4584
        %7742 = vmatprep.subr.bf16.mxu0 %v4591
        %7743 = vmatpush1.bf16.msra.mxu0 %v4590
        %7744 = vmatprep.mubr.bf16.mxu0 %v2105
        %7745 = vmatmul.mubr.bf16.gmra.mrb[0].mxu0 %v2104
        %v7746 = vpop.f32.mrb[0].mxu0
        %v7747 = vadd.f32 %v7594, %v7746
        %v7748 = vpop.f32.mrb[0].mxu0
        %v7749 = vadd.f32 %v7596, %v7748
        %v7750 = vpop.f32.mrb[0].mxu0
        %v7751 = vadd.f32 %v7598, %v7750
        %v7752 = vpop.f32.mrb[0].mxu0
        %v7753 = vadd.f32 %v7600, %v7752
        %7754 = vmatprep.mubr.bf16.mxu0 %v2117
        %7755 = vmatmul.mubr.bf16.gmra.mrb[0].mxu0 %v2116
        %v7756 = vpop.f32.mrb[0].mxu0
        %v7757 = vadd.f32 %v7604, %v7756
        %v7758 = vpop.f32.mrb[0].mxu0
        %v7759 = vadd.f32 %v7606, %v7758
        %v7760 = vpop.f32.mrb[0].mxu0
        %v7761 = vadd.f32 %v7608, %v7760
        %v7762 = vpop.f32.mrb[0].mxu0
        %v7763 = vadd.f32 %v7610, %v7762
        %7764 = vmatprep.mubr.bf16.mxu0 %v2129
        %7765 = vmatmul.mubr.bf16.gmra.mrb[0].mxu0 %v2128
        %v7766 = vpop.f32.mrb[0].mxu0
        %v7767 = vadd.f32 %v7614, %v7766
        %v7768 = vpop.f32.mrb[0].mxu0
        %v7769 = vadd.f32 %v7616, %v7768
        %v7770 = vpop.f32.mrb[0].mxu0
        %v7771 = vadd.f32 %v7618, %v7770
        %v7772 = vpop.f32.mrb[0].mxu0
        %v7773 = vadd.f32 %v7620, %v7772
        %7774 = vmatprep.mubr.bf16.mxu0 %v2141
        %7775 = vmatmul.mubr.bf16.gmra.mrb[0].mxu0 %v2140
        %v7776 = vpop.f32.mrb[0].mxu0
        %v7777 = vadd.f32 %v7624, %v7776
        %v7778 = vpop.f32.mrb[0].mxu0
        %v7779 = vadd.f32 %v7626, %v7778
        %v7780 = vpop.f32.mrb[0].mxu0
        %v7781 = vadd.f32 %v7628, %v7780
        %v7782 = vpop.f32.mrb[0].mxu0
        %v7783 = vadd.f32 %v7630, %v7782
        %7784 = vmatprep.mubr.bf16.mxu0 %v2153
        %7785 = vmatmul.mubr.bf16.gmra.mrb[0].mxu0 %v2152
        %v7786 = vpop.f32.mrb[0].mxu0
        %v7787 = vadd.f32 %v7634, %v7786
        %v7788 = vpop.f32.mrb[0].mxu0
        %v7789 = vadd.f32 %v7636, %v7788
        %v7790 = vpop.f32.mrb[0].mxu0
        %v7791 = vadd.f32 %v7638, %v7790
        %v7792 = vpop.f32.mrb[0].mxu0
        %v7793 = vadd.f32 %v7640, %v7792
        %7794 = vmatprep.mubr.bf16.mxu0 %v2165
        %7795 = vmatmul.mubr.bf16.gmra.mrb[0].mxu0 %v2164
        %v7796 = vpop.f32.mrb[0].mxu0
        %v7797 = vadd.f32 %v7644, %v7796
        %v7798 = vpop.f32.mrb[0].mxu0
        %v7799 = vadd.f32 %v7646, %v7798
        %v7800 = vpop.f32.mrb[0].mxu0
        %v7801 = vadd.f32 %v7648, %v7800
        %v7802 = vpop.f32.mrb[0].mxu0
        %v7803 = vadd.f32 %v7650, %v7802
        %7804 = vmatprep.mubr.bf16.mxu0 %v2177
        %7805 = vmatmul.mubr.bf16.gmra.mrb[0].mxu0 %v2176
        %v7806 = vpop.f32.mrb[0].mxu0
        %v7807 = vadd.f32 %v7654, %v7806
        %v7808 = vpop.f32.mrb[0].mxu0
        %v7809 = vadd.f32 %v7656, %v7808
        %v7810 = vpop.f32.mrb[0].mxu0
        %v7811 = vadd.f32 %v7658, %v7810
        %v7812 = vpop.f32.mrb[0].mxu0
        %v7813 = vadd.f32 %v7660, %v7812
        %7814 = vmatprep.mubr.bf16.mxu0 %v2189
        %7815 = vmatmul.mubr.bf16.gmra.mrb[0].mxu0 %v2188
        %v7816 = vpop.f32.mrb[0].mxu0
        %v7817 = vadd.f32 %v7664, %v7816
        %v7818 = vpop.f32.mrb[0].mxu0
        %v7819 = vadd.f32 %v7666, %v7818
        %v7820 = vpop.f32.mrb[0].mxu0
        %v7821 = vadd.f32 %v7668, %v7820
        %v7822 = vpop.f32.mrb[0].mxu0
        %v7823 = vadd.f32 %v7670, %v7822
        %7824 = vmatprep.mubr.bf16.mxu0 %v2201
        %7825 = vmatmul.mubr.bf16.gmra.mrb[0].mxu0 %v2200
        %v7826 = vpop.f32.mrb[0].mxu0
        %v7827 = vadd.f32 %v7674, %v7826
        %v7828 = vpop.f32.mrb[0].mxu0
        %v7829 = vadd.f32 %v7676, %v7828
        %v7830 = vpop.f32.mrb[0].mxu0
        %v7831 = vadd.f32 %v7678, %v7830
        %v7832 = vpop.f32.mrb[0].mxu0
        %v7833 = vadd.f32 %v7680, %v7832
        %7834 = vmatprep.mubr.bf16.mxu0 %v2213
        %7835 = vmatmul.mubr.bf16.gmra.mrb[0].mxu0 %v2212
        %v7836 = vpop.f32.mrb[0].mxu0
        %v7837 = vadd.f32 %v7684, %v7836
        %v7838 = vpop.f32.mrb[0].mxu0
        %v7839 = vadd.f32 %v7686, %v7838
        %v7840 = vpop.f32.mrb[0].mxu0
        %v7841 = vadd.f32 %v7688, %v7840
        %v7842 = vpop.f32.mrb[0].mxu0
        %v7843 = vadd.f32 %v7690, %v7842
        %7844 = vmatprep.mubr.bf16.mxu0 %v2225
        %7845 = vmatmul.mubr.bf16.gmra.mrb[0].mxu0 %v2224
        %v7846 = vpop.f32.mrb[0].mxu0
        %v7847 = vadd.f32 %v7694, %v7846
        %v7848 = vpop.f32.mrb[0].mxu0
        %v7849 = vadd.f32 %v7696, %v7848
        %v7850 = vpop.f32.mrb[0].mxu0
        %v7851 = vadd.f32 %v7698, %v7850
        %v7852 = vpop.f32.mrb[0].mxu0
        %v7853 = vadd.f32 %v7700, %v7852
        %7854 = vmatprep.mubr.bf16.mxu0 %v2237
        %7855 = vmatmul.mubr.bf16.gmra.mrb[0].mxu0 %v2236
        %v7856 = vpop.f32.mrb[0].mxu0
        %v7857 = vadd.f32 %v7704, %v7856
        %v7858 = vpop.f32.mrb[0].mxu0
        %v7859 = vadd.f32 %v7706, %v7858
        %v7860 = vpop.f32.mrb[0].mxu0
        %v7861 = vadd.f32 %v7708, %v7860
        %v7862 = vpop.f32.mrb[0].mxu0
        %v7863 = vadd.f32 %v7710, %v7862
        %7864 = vdwg.mxu0
        %7865 = vmatprep.subr.bf16.mxu0 %v4597
        %7866 = vmatpush1.bf16.msra.mxu0 %v4596
        %7867 = vmatprep.subr.bf16.mxu0 %v4603
        %7868 = vmatpush1.bf16.msra.mxu0 %v4602
        %7869 = vmatprep.subr.bf16.mxu0 %v4609
        %7870 = vmatpush1.bf16.msra.mxu0 %v4608
        %7871 = vmatprep.subr.bf16.mxu0 %v4615
        %7872 = vmatpush1.bf16.msra.mxu0 %v4614
        %7873 = vmatprep.subr.bf16.mxu0 %v4621
        %7874 = vmatpush1.bf16.msra.mxu0 %v4620
        %7875 = vmatprep.subr.bf16.mxu0 %v4627
        %7876 = vmatpush1.bf16.msra.mxu0 %v4626
        %7877 = vmatprep.subr.bf16.mxu0 %v4633
        %7878 = vmatpush1.bf16.msra.mxu0 %v4632
        %7879 = vmatprep.subr.bf16.mxu0 %v4639
        %7880 = vmatpush1.bf16.msra.mxu0 %v4638
        %7881 = vmatprep.subr.bf16.mxu0 %v4645
        %7882 = vmatpush1.bf16.msra.mxu0 %v4644
        %7883 = vmatprep.subr.bf16.mxu0 %v4651
        %7884 = vmatpush1.bf16.msra.mxu0 %v4650
        %7885 = vmatprep.subr.bf16.mxu0 %v4657
        %7886 = vmatpush1.bf16.msra.mxu0 %v4656
        %7887 = vmatprep.subr.bf16.mxu0 %v4663
        %7888 = vmatpush1.bf16.msra.mxu0 %v4662
        %7889 = vmatprep.subr.bf16.mxu0 %v4669
        %7890 = vmatpush1.bf16.msra.mxu0 %v4668
        %7891 = vmatprep.subr.bf16.mxu0 %v4675
        %7892 = vmatpush1.bf16.msra.mxu0 %v4674
        %7893 = vmatprep.subr.bf16.mxu0 %v4681
        %7894 = vmatpush1.bf16.msra.mxu0 %v4680
        %7895 = vmatprep.subr.bf16.mxu0 %v4687
        %7896 = vmatpush1.bf16.msra.mxu0 %v4686
        %7897 = vmatprep.mubr.bf16.mxu0 %v2107
        %7898 = vmatmul.mubr.bf16.gmra.mrb[0].mxu0 %v2106
        %v7899 = vpop.f32.mrb[0].mxu0
        %v7900 = vadd.f32 %v7747, %v7899
        %v7901 = vpop.f32.mrb[0].mxu0
        %v7902 = vadd.f32 %v7749, %v7901
        %v7903 = vpop.f32.mrb[0].mxu0
        %v7904 = vadd.f32 %v7751, %v7903
        %v7905 = vpop.f32.mrb[0].mxu0
        %v7906 = vadd.f32 %v7753, %v7905
        %7907 = vmatprep.mubr.bf16.mxu0 %v2119
        %7908 = vmatmul.mubr.bf16.gmra.mrb[0].mxu0 %v2118
        %v7909 = vpop.f32.mrb[0].mxu0
        %v7910 = vadd.f32 %v7757, %v7909
        %v7911 = vpop.f32.mrb[0].mxu0
        %v7912 = vadd.f32 %v7759, %v7911
        %v7913 = vpop.f32.mrb[0].mxu0
        %v7914 = vadd.f32 %v7761, %v7913
        %v7915 = vpop.f32.mrb[0].mxu0
        %v7916 = vadd.f32 %v7763, %v7915
        %7917 = vmatprep.mubr.bf16.mxu0 %v2131
        %7918 = vmatmul.mubr.bf16.gmra.mrb[0].mxu0 %v2130
        %v7919 = vpop.f32.mrb[0].mxu0
        %v7920 = vadd.f32 %v7767, %v7919
        %v7921 = vpop.f32.mrb[0].mxu0
        %v7922 = vadd.f32 %v7769, %v7921
        %v7923 = vpop.f32.mrb[0].mxu0
        %v7924 = vadd.f32 %v7771, %v7923
        %v7925 = vpop.f32.mrb[0].mxu0
        %v7926 = vadd.f32 %v7773, %v7925
        %7927 = vmatprep.mubr.bf16.mxu0 %v2143
        %7928 = vmatmul.mubr.bf16.gmra.mrb[0].mxu0 %v2142
        %v7929 = vpop.f32.mrb[0].mxu0
        %v7930 = vadd.f32 %v7777, %v7929
        %v7931 = vpop.f32.mrb[0].mxu0
        %v7932 = vadd.f32 %v7779, %v7931
        %v7933 = vpop.f32.mrb[0].mxu0
        %v7934 = vadd.f32 %v7781, %v7933
        %v7935 = vpop.f32.mrb[0].mxu0
        %v7936 = vadd.f32 %v7783, %v7935
        %7937 = vmatprep.mubr.bf16.mxu0 %v2155
        %7938 = vmatmul.mubr.bf16.gmra.mrb[0].mxu0 %v2154
        %v7939 = vpop.f32.mrb[0].mxu0
        %v7940 = vadd.f32 %v7787, %v7939
        %v7941 = vpop.f32.mrb[0].mxu0
        %v7942 = vadd.f32 %v7789, %v7941
        %v7943 = vpop.f32.mrb[0].mxu0
        %v7944 = vadd.f32 %v7791, %v7943
        %v7945 = vpop.f32.mrb[0].mxu0
        %v7946 = vadd.f32 %v7793, %v7945
        %7947 = vmatprep.mubr.bf16.mxu0 %v2167
        %7948 = vmatmul.mubr.bf16.gmra.mrb[0].mxu0 %v2166
        %v7949 = vpop.f32.mrb[0].mxu0
        %v7950 = vadd.f32 %v7797, %v7949
        %v7951 = vpop.f32.mrb[0].mxu0
        %v7952 = vadd.f32 %v7799, %v7951
        %v7953 = vpop.f32.mrb[0].mxu0
        %v7954 = vadd.f32 %v7801, %v7953
        %v7955 = vpop.f32.mrb[0].mxu0
        %v7956 = vadd.f32 %v7803, %v7955
        %7957 = vmatprep.mubr.bf16.mxu0 %v2179
        %7958 = vmatmul.mubr.bf16.gmra.mrb[0].mxu0 %v2178
        %v7959 = vpop.f32.mrb[0].mxu0
        %v7960 = vadd.f32 %v7807, %v7959
        %v7961 = vpop.f32.mrb[0].mxu0
        %v7962 = vadd.f32 %v7809, %v7961
        %v7963 = vpop.f32.mrb[0].mxu0
        %v7964 = vadd.f32 %v7811, %v7963
        %v7965 = vpop.f32.mrb[0].mxu0
        %v7966 = vadd.f32 %v7813, %v7965
        %7967 = vmatprep.mubr.bf16.mxu0 %v2191
        %7968 = vmatmul.mubr.bf16.gmra.mrb[0].mxu0 %v2190
        %v7969 = vpop.f32.mrb[0].mxu0
        %v7970 = vadd.f32 %v7817, %v7969
        %v7971 = vpop.f32.mrb[0].mxu0
        %v7972 = vadd.f32 %v7819, %v7971
        %v7973 = vpop.f32.mrb[0].mxu0
        %v7974 = vadd.f32 %v7821, %v7973
        %v7975 = vpop.f32.mrb[0].mxu0
        %v7976 = vadd.f32 %v7823, %v7975
        %7977 = vmatprep.mubr.bf16.mxu0 %v2203
        %7978 = vmatmul.mubr.bf16.gmra.mrb[0].mxu0 %v2202
        %v7979 = vpop.f32.mrb[0].mxu0
        %v7980 = vadd.f32 %v7827, %v7979
        %v7981 = vpop.f32.mrb[0].mxu0
        %v7982 = vadd.f32 %v7829, %v7981
        %v7983 = vpop.f32.mrb[0].mxu0
        %v7984 = vadd.f32 %v7831, %v7983
        %v7985 = vpop.f32.mrb[0].mxu0
        %v7986 = vadd.f32 %v7833, %v7985
        %7987 = vmatprep.mubr.bf16.mxu0 %v2215
        %7988 = vmatmul.mubr.bf16.gmra.mrb[0].mxu0 %v2214
        %v7989 = vpop.f32.mrb[0].mxu0
        %v7990 = vadd.f32 %v7837, %v7989
        %v7991 = vpop.f32.mrb[0].mxu0
        %v7992 = vadd.f32 %v7839, %v7991
        %v7993 = vpop.f32.mrb[0].mxu0
        %v7994 = vadd.f32 %v7841, %v7993
        %v7995 = vpop.f32.mrb[0].mxu0
        %v7996 = vadd.f32 %v7843, %v7995
        %7997 = vmatprep.mubr.bf16.mxu0 %v2227
        %7998 = vmatmul.mubr.bf16.gmra.mrb[0].mxu0 %v2226
        %v7999 = vpop.f32.mrb[0].mxu0
        %v8000 = vadd.f32 %v7847, %v7999
        %v8001 = vpop.f32.mrb[0].mxu0
        %v8002 = vadd.f32 %v7849, %v8001
        %v8003 = vpop.f32.mrb[0].mxu0
        %v8004 = vadd.f32 %v7851, %v8003
        %v8005 = vpop.f32.mrb[0].mxu0
        %v8006 = vadd.f32 %v7853, %v8005
        %8007 = vmatprep.mubr.bf16.mxu0 %v2239
        %8008 = vmatmul.mubr.bf16.gmra.mrb[0].mxu0 %v2238
        %v8009 = vpop.f32.mrb[0].mxu0
        %v8010 = vadd.f32 %v7857, %v8009
        %v8011 = vpop.f32.mrb[0].mxu0
        %v8012 = vadd.f32 %v7859, %v8011
        %v8013 = vpop.f32.mrb[0].mxu0
        %v8014 = vadd.f32 %v7861, %v8013
        %v8015 = vpop.f32.mrb[0].mxu0
        %v8016 = vadd.f32 %v7863, %v8015
        %8017 = vdwg.mxu0
        %v8018 = vadd.f32 %v800, %v6064
        %v8019 = vadd.f32 %v801, %v6066
        %v8020 = vadd.f32 %v802, %v6982
        %v8021 = vadd.f32 %v803, %v6984
        %v8022 = vadd.f32 %v804, %v7900
        %v8023 = vadd.f32 %v805, %v7902
        %v8024 = vadd.f32 %v806, %v6068
        %v8025 = vadd.f32 %v807, %v6070
        %v8026 = vadd.f32 %v808, %v6986
        %v8027 = vadd.f32 %v809, %v6988
        %v8028 = vadd.f32 %v810, %v7904
        %v8029 = vadd.f32 %v811, %v7906
        %v8030 = vadd.f32 %v812, %v6074
        %v8031 = vadd.f32 %v813, %v6076
        %v8032 = vadd.f32 %v814, %v6992
        %v8033 = vadd.f32 %v815, %v6994
        %v8034 = vadd.f32 %v816, %v7910
        %v8035 = vadd.f32 %v817, %v7912
        %v8036 = vadd.f32 %v818, %v6078
        %v8037 = vadd.f32 %v819, %v6080
        %v8038 = vadd.f32 %v820, %v6996
        %v8039 = vadd.f32 %v821, %v6998
        %v8040 = vadd.f32 %v822, %v7914
        %v8041 = vadd.f32 %v823, %v7916
        %v8042 = vadd.f32 %v824, %v6084
        %v8043 = vadd.f32 %v825, %v6086
        %v8044 = vadd.f32 %v826, %v7002
        %v8045 = vadd.f32 %v827, %v7004
        %v8046 = vadd.f32 %v828, %v7920
        %v8047 = vadd.f32 %v829, %v7922
        %v8048 = vadd.f32 %v830, %v6088
        %v8049 = vadd.f32 %v831, %v6090
        %v8050 = vadd.f32 %v832, %v7006
        %v8051 = vadd.f32 %v833, %v7008
        %v8052 = vadd.f32 %v834, %v7924
        %v8053 = vadd.f32 %v835, %v7926
        %v8054 = vadd.f32 %v836, %v6094
        %v8055 = vadd.f32 %v837, %v6096
        %v8056 = vadd.f32 %v838, %v7012
        %v8057 = vadd.f32 %v839, %v7014
        %v8058 = vadd.f32 %v840, %v7930
        %v8059 = vadd.f32 %v841, %v7932
        %v8060 = vadd.f32 %v842, %v6098
        %v8061 = vadd.f32 %v843, %v6100
        %v8062 = vadd.f32 %v844, %v7016
        %v8063 = vadd.f32 %v845, %v7018
        %v8064 = vadd.f32 %v846, %v7934
        %v8065 = vadd.f32 %v847, %v7936
        %v8066 = vadd.f32 %v848, %v6104
        %v8067 = vadd.f32 %v849, %v6106
        %v8068 = vadd.f32 %v850, %v7022
        %v8069 = vadd.f32 %v851, %v7024
        %v8070 = vadd.f32 %v852, %v7940
        %v8071 = vadd.f32 %v853, %v7942
        %v8072 = vadd.f32 %v854, %v6108
        %v8073 = vadd.f32 %v855, %v6110
        %v8074 = vadd.f32 %v856, %v7026
        %v8075 = vadd.f32 %v857, %v7028
        %v8076 = vadd.f32 %v858, %v7944
        %v8077 = vadd.f32 %v859, %v7946
        %v8078 = vadd.f32 %v860, %v6114
        %v8079 = vadd.f32 %v861, %v6116
        %v8080 = vadd.f32 %v862, %v7032
        %v8081 = vadd.f32 %v863, %v7034
        %v8082 = vadd.f32 %v864, %v7950
        %v8083 = vadd.f32 %v865, %v7952
        %v8084 = vadd.f32 %v866, %v6118
        %v8085 = vadd.f32 %v867, %v6120
        %v8086 = vadd.f32 %v868, %v7036
        %v8087 = vadd.f32 %v869, %v7038
        %v8088 = vadd.f32 %v870, %v7954
        %v8089 = vadd.f32 %v871, %v7956
        %v8090 = vadd.f32 %v872, %v6124
        %v8091 = vadd.f32 %v873, %v6126
        %v8092 = vadd.f32 %v874, %v7042
        %v8093 = vadd.f32 %v875, %v7044
        %v8094 = vadd.f32 %v876, %v7960
        %v8095 = vadd.f32 %v877, %v7962
        %v8096 = vadd.f32 %v878, %v6128
        %v8097 = vadd.f32 %v879, %v6130
        %v8098 = vadd.f32 %v880, %v7046
        %v8099 = vadd.f32 %v881, %v7048
        %v8100 = vadd.f32 %v882, %v7964
        %v8101 = vadd.f32 %v883, %v7966
        %v8102 = vadd.f32 %v884, %v6134
        %v8103 = vadd.f32 %v885, %v6136
        %v8104 = vadd.f32 %v886, %v7052
        %v8105 = vadd.f32 %v887, %v7054
        %v8106 = vadd.f32 %v888, %v7970
        %v8107 = vadd.f32 %v889, %v7972
        %v8108 = vadd.f32 %v890, %v6138
        %v8109 = vadd.f32 %v891, %v6140
        %v8110 = vadd.f32 %v892, %v7056
        %v8111 = vadd.f32 %v893, %v7058
        %v8112 = vadd.f32 %v894, %v7974
        %v8113 = vadd.f32 %v895, %v7976
        %v8114 = vadd.f32 %v896, %v6144
        %v8115 = vadd.f32 %v897, %v6146
        %v8116 = vadd.f32 %v898, %v7062
        %v8117 = vadd.f32 %v899, %v7064
        %v8118 = vadd.f32 %v900, %v7980
        %v8119 = vadd.f32 %v901, %v7982
        %v8120 = vadd.f32 %v902, %v6148
        %v8121 = vadd.f32 %v903, %v6150
        %v8122 = vadd.f32 %v904, %v7066
        %v8123 = vadd.f32 %v905, %v7068
        %v8124 = vadd.f32 %v906, %v7984
        %v8125 = vadd.f32 %v907, %v7986
        %v8126 = vadd.f32 %v908, %v6154
        %v8127 = vadd.f32 %v909, %v6156
        %v8128 = vadd.f32 %v910, %v7072
        %v8129 = vadd.f32 %v911, %v7074
        %v8130 = vadd.f32 %v912, %v7990
        %v8131 = vadd.f32 %v913, %v7992
        %v8132 = vadd.f32 %v914, %v6158
        %v8133 = vadd.f32 %v915, %v6160
        %v8134 = vadd.f32 %v916, %v7076
        %v8135 = vadd.f32 %v917, %v7078
        %v8136 = vadd.f32 %v918, %v7994
        %v8137 = vadd.f32 %v919, %v7996
        %v8138 = vadd.f32 %v920, %v6164
        %v8139 = vadd.f32 %v921, %v6166
        %v8140 = vadd.f32 %v922, %v7082
        %v8141 = vadd.f32 %v923, %v7084
        %v8142 = vadd.f32 %v924, %v8000
        %v8143 = vadd.f32 %v925, %v8002
        %v8144 = vadd.f32 %v926, %v6168
        %v8145 = vadd.f32 %v927, %v6170
        %v8146 = vadd.f32 %v928, %v7086
        %v8147 = vadd.f32 %v929, %v7088
        %v8148 = vadd.f32 %v930, %v8004
        %v8149 = vadd.f32 %v931, %v8006
        %v8150 = vadd.f32 %v932, %v6174
        %v8151 = vadd.f32 %v933, %v6176
        %v8152 = vadd.f32 %v934, %v7092
        %v8153 = vadd.f32 %v935, %v7094
        %v8154 = vadd.f32 %v936, %v8010
        %v8155 = vadd.f32 %v937, %v8012
        %v8156 = vadd.f32 %v938, %v6178
        %v8157 = vadd.f32 %v939, %v6180
        %v8158 = vadd.f32 %v940, %v7096
        %v8159 = vadd.f32 %v941, %v7098
        %v8160 = vadd.f32 %v942, %v8014
        %v8161 = vadd.f32 %v943, %v8016
        %8162 = vst [vmem:[%s326] sm:$0xff] %v8018
        %8163 = vst [vmem:[%s326 + $0x8] sm:$0xff] %v8019
        %8164 = vst [vmem:[%s326 + $0x10] sm:$0xff] %v8020
        %8165 = vst [vmem:[%s326 + $0x18] sm:$0xff] %v8021
        %8166 = vst [vmem:[%s326 + $0x20] sm:$0xff] %v8022
        %8167 = vst [vmem:[%s326 + $0x28] sm:$0xff] %v8023
        %8168 = vst [vmem:[%s326 + $0x30] sm:$0xff] %v8024
        %8169 = vst [vmem:[%s326 + $0x38] sm:$0xff] %v8025
        %8170 = vst [vmem:[%s326 + $0x40] sm:$0xff] %v8026
        %8171 = vst [vmem:[%s326 + $0x48] sm:$0xff] %v8027
        %8172 = vst [vmem:[%s326 + $0x50] sm:$0xff] %v8028
        %8173 = vst [vmem:[%s326 + $0x58] sm:$0xff] %v8029
        %8174 = vst [vmem:[%s326 + $0x60] sm:$0xff] %v8030
        %8175 = vst [vmem:[%s326 + $0x68] sm:$0xff] %v8031
        %8176 = vst [vmem:[%s326 + $0x70] sm:$0xff] %v8032
        %8177 = vst [vmem:[%s326 + $0x78] sm:$0xff] %v8033
        %8178 = vst [vmem:[%s326 + $0x80] sm:$0xff] %v8034
        %8179 = vst [vmem:[%s326 + $0x88] sm:$0xff] %v8035
        %8180 = vst [vmem:[%s326 + $0x90] sm:$0xff] %v8036
        %8181 = vst [vmem:[%s326 + $0x98] sm:$0xff] %v8037
        %8182 = vst [vmem:[%s326 + $0xa0] sm:$0xff] %v8038
        %8183 = vst [vmem:[%s326 + $0xa8] sm:$0xff] %v8039
        %8184 = vst [vmem:[%s326 + $0xb0] sm:$0xff] %v8040
        %8185 = vst [vmem:[%s326 + $0xb8] sm:$0xff] %v8041
        %8186 = vst [vmem:[%s326 + $0xc0] sm:$0xff] %v8042
        %8187 = vst [vmem:[%s326 + $0xc8] sm:$0xff] %v8043
        %8188 = vst [vmem:[%s326 + $0xd0] sm:$0xff] %v8044
        %8189 = vst [vmem:[%s326 + $0xd8] sm:$0xff] %v8045
        %8190 = vst [vmem:[%s326 + $0xe0] sm:$0xff] %v8046
        %8191 = vst [vmem:[%s326 + $0xe8] sm:$0xff] %v8047
        %8192 = vst [vmem:[%s326 + $0xf0] sm:$0xff] %v8048
        %8193 = vst [vmem:[%s326 + $0xf8] sm:$0xff] %v8049
        %8194 = vst [vmem:[%s326 + $0x100] sm:$0xff] %v8050
        %8195 = vst [vmem:[%s326 + $0x108] sm:$0xff] %v8051
        %8196 = vst [vmem:[%s326 + $0x110] sm:$0xff] %v8052
        %8197 = vst [vmem:[%s326 + $0x118] sm:$0xff] %v8053
        %8198 = vst [vmem:[%s326 + $0x120] sm:$0xff] %v8054
        %8199 = vst [vmem:[%s326 + $0x128] sm:$0xff] %v8055
        %8200 = vst [vmem:[%s326 + $0x130] sm:$0xff] %v8056
        %8201 = vst [vmem:[%s326 + $0x138] sm:$0xff] %v8057
        %8202 = vst [vmem:[%s326 + $0x140] sm:$0xff] %v8058
        %8203 = vst [vmem:[%s326 + $0x148] sm:$0xff] %v8059
        %8204 = vst [vmem:[%s326 + $0x150] sm:$0xff] %v8060
        %8205 = vst [vmem:[%s326 + $0x158] sm:$0xff] %v8061
        %8206 = vst [vmem:[%s326 + $0x160] sm:$0xff] %v8062
        %8207 = vst [vmem:[%s326 + $0x168] sm:$0xff] %v8063
        %8208 = vst [vmem:[%s326 + $0x170] sm:$0xff] %v8064
        %8209 = vst [vmem:[%s326 + $0x178] sm:$0xff] %v8065
        %8210 = vst [vmem:[%s326 + $0x180] sm:$0xff] %v8066
        %8211 = vst [vmem:[%s326 + $0x188] sm:$0xff] %v8067
        %8212 = vst [vmem:[%s326 + $0x190] sm:$0xff] %v8068
        %8213 = vst [vmem:[%s326 + $0x198] sm:$0xff] %v8069
        %8214 = vst [vmem:[%s326 + $0x1a0] sm:$0xff] %v8070
        %8215 = vst [vmem:[%s326 + $0x1a8] sm:$0xff] %v8071
        %8216 = vst [vmem:[%s326 + $0x1b0] sm:$0xff] %v8072
        %8217 = vst [vmem:[%s326 + $0x1b8] sm:$0xff] %v8073
        %8218 = vst [vmem:[%s326 + $0x1c0] sm:$0xff] %v8074
        %8219 = vst [vmem:[%s326 + $0x1c8] sm:$0xff] %v8075
        %8220 = vst [vmem:[%s326 + $0x1d0] sm:$0xff] %v8076
        %8221 = vst [vmem:[%s326 + $0x1d8] sm:$0xff] %v8077
        %8222 = vst [vmem:[%s326 + $0x1e0] sm:$0xff] %v8078
        %8223 = vst [vmem:[%s326 + $0x1e8] sm:$0xff] %v8079
        %8224 = vst [vmem:[%s326 + $0x1f0] sm:$0xff] %v8080
        %8225 = vst [vmem:[%s326 + $0x1f8] sm:$0xff] %v8081
        %8226 = vst [vmem:[%s326 + $0x200] sm:$0xff] %v8082
        %8227 = vst [vmem:[%s326 + $0x208] sm:$0xff] %v8083
        %8228 = vst [vmem:[%s326 + $0x210] sm:$0xff] %v8084
        %8229 = vst [vmem:[%s326 + $0x218] sm:$0xff] %v8085
        %8230 = vst [vmem:[%s326 + $0x220] sm:$0xff] %v8086
        %8231 = vst [vmem:[%s326 + $0x228] sm:$0xff] %v8087
        %8232 = vst [vmem:[%s326 + $0x230] sm:$0xff] %v8088
        %8233 = vst [vmem:[%s326 + $0x238] sm:$0xff] %v8089
        %8234 = vst [vmem:[%s326 + $0x240] sm:$0xff] %v8090
        %8235 = vst [vmem:[%s326 + $0x248] sm:$0xff] %v8091
        %8236 = vst [vmem:[%s326 + $0x250] sm:$0xff] %v8092
        %8237 = vst [vmem:[%s326 + $0x258] sm:$0xff] %v8093
        %8238 = vst [vmem:[%s326 + $0x260] sm:$0xff] %v8094
        %8239 = vst [vmem:[%s326 + $0x268] sm:$0xff] %v8095
        %8240 = vst [vmem:[%s326 + $0x270] sm:$0xff] %v8096
        %8241 = vst [vmem:[%s326 + $0x278] sm:$0xff] %v8097
        %8242 = vst [vmem:[%s326 + $0x280] sm:$0xff] %v8098
        %8243 = vst [vmem:[%s326 + $0x288] sm:$0xff] %v8099
        %8244 = vst [vmem:[%s326 + $0x290] sm:$0xff] %v8100
        %8245 = vst [vmem:[%s326 + $0x298] sm:$0xff] %v8101
        %8246 = vst [vmem:[%s326 + $0x2a0] sm:$0xff] %v8102
        %8247 = vst [vmem:[%s326 + $0x2a8] sm:$0xff] %v8103
        %8248 = vst [vmem:[%s326 + $0x2b0] sm:$0xff] %v8104
        %8249 = vst [vmem:[%s326 + $0x2b8] sm:$0xff] %v8105
        %8250 = vst [vmem:[%s326 + $0x2c0] sm:$0xff] %v8106
        %8251 = vst [vmem:[%s326 + $0x2c8] sm:$0xff] %v8107
        %8252 = vst [vmem:[%s326 + $0x2d0] sm:$0xff] %v8108
        %8253 = vst [vmem:[%s326 + $0x2d8] sm:$0xff] %v8109
        %8254 = vst [vmem:[%s326 + $0x2e0] sm:$0xff] %v8110
        %8255 = vst [vmem:[%s326 + $0x2e8] sm:$0xff] %v8111
        %8256 = vst [vmem:[%s326 + $0x2f0] sm:$0xff] %v8112
        %8257 = vst [vmem:[%s326 + $0x2f8] sm:$0xff] %v8113
        %8258 = vst [vmem:[%s326 + $0x300] sm:$0xff] %v8114
        %8259 = vst [vmem:[%s326 + $0x308] sm:$0xff] %v8115
        %8260 = vst [vmem:[%s326 + $0x310] sm:$0xff] %v8116
        %8261 = vst [vmem:[%s326 + $0x318] sm:$0xff] %v8117
        %8262 = vst [vmem:[%s326 + $0x320] sm:$0xff] %v8118
        %8263 = vst [vmem:[%s326 + $0x328] sm:$0xff] %v8119
        %8264 = vst [vmem:[%s326 + $0x330] sm:$0xff] %v8120
        %8265 = vst [vmem:[%s326 + $0x338] sm:$0xff] %v8121
        %8266 = vst [vmem:[%s326 + $0x340] sm:$0xff] %v8122
        %8267 = vst [vmem:[%s326 + $0x348] sm:$0xff] %v8123
        %8268 = vst [vmem:[%s326 + $0x350] sm:$0xff] %v8124
        %8269 = vst [vmem:[%s326 + $0x358] sm:$0xff] %v8125
        %8270 = vst [vmem:[%s326 + $0x360] sm:$0xff] %v8126
        %8271 = vst [vmem:[%s326 + $0x368] sm:$0xff] %v8127
        %8272 = vst [vmem:[%s326 + $0x370] sm:$0xff] %v8128
        %8273 = vst [vmem:[%s326 + $0x378] sm:$0xff] %v8129
        %8274 = vst [vmem:[%s326 + $0x380] sm:$0xff] %v8130
        %8275 = vst [vmem:[%s326 + $0x388] sm:$0xff] %v8131
        %8276 = vst [vmem:[%s326 + $0x390] sm:$0xff] %v8132
        %8277 = vst [vmem:[%s326 + $0x398] sm:$0xff] %v8133
        %8278 = vst [vmem:[%s326 + $0x3a0] sm:$0xff] %v8134
        %8279 = vst [vmem:[%s326 + $0x3a8] sm:$0xff] %v8135
        %8280 = vst [vmem:[%s326 + $0x3b0] sm:$0xff] %v8136
        %8281 = vst [vmem:[%s326 + $0x3b8] sm:$0xff] %v8137
        %8282 = vst [vmem:[%s326 + $0x3c0] sm:$0xff] %v8138
        %8283 = vst [vmem:[%s326 + $0x3c8] sm:$0xff] %v8139
        %8284 = vst [vmem:[%s326 + $0x3d0] sm:$0xff] %v8140
        %8285 = vst [vmem:[%s326 + $0x3d8] sm:$0xff] %v8141
        %8286 = vst [vmem:[%s326 + $0x3e0] sm:$0xff] %v8142
        %8287 = vst [vmem:[%s326 + $0x3e8] sm:$0xff] %v8143
        %8288 = vst [vmem:[%s326 + $0x3f0] sm:$0xff] %v8144
        %8289 = vst [vmem:[%s326 + $0x3f8] sm:$0xff] %v8145
        %8290 = vst [vmem:[%s326 + $0x400] sm:$0xff] %v8146
        %8291 = vst [vmem:[%s326 + $0x408] sm:$0xff] %v8147
        %8292 = vst [vmem:[%s326 + $0x410] sm:$0xff] %v8148
        %8293 = vst [vmem:[%s326 + $0x418] sm:$0xff] %v8149
        %8294 = vst [vmem:[%s326 + $0x420] sm:$0xff] %v8150
        %8295 = vst [vmem:[%s326 + $0x428] sm:$0xff] %v8151
        %8296 = vst [vmem:[%s326 + $0x430] sm:$0xff] %v8152
        %8297 = vst [vmem:[%s326 + $0x438] sm:$0xff] %v8153
        %8298 = vst [vmem:[%s326 + $0x440] sm:$0xff] %v8154
        %8299 = vst [vmem:[%s326 + $0x448] sm:$0xff] %v8155
        %8300 = vst [vmem:[%s326 + $0x450] sm:$0xff] %v8156
        %8301 = vst [vmem:[%s326 + $0x458] sm:$0xff] %v8157
        %8302 = vst [vmem:[%s326 + $0x460] sm:$0xff] %v8158
        %8303 = vst [vmem:[%s326 + $0x468] sm:$0xff] %v8159
        %8304 = vst [vmem:[%s326 + $0x470] sm:$0xff] %v8160
        %8305 = vst [vmem:[%s326 + $0x478] sm:$0xff] %v8161
        %s8306 = sand.u32 %s148, 1
        %s8307 = scalar_lea.sflag [#allocation4], %s8306
        %s8308 = sand.u32 %s148, 1
        %s8309 = smul.addr %s8308, 1152
        %s8310 = scalar_lea.vmem [#allocation10], %s8309
        // Predicated region
        $region57: #{tpu_custom_call.1} parent=35 // pred_check
          %p8311 = pneg %p158
        $region58: #{tpu_custom_call.1} parent=35 // pred_check_branch
          %8313 = sbr.rel (%p8311) target = $region60
        $region59: #{tpu_custom_call.1} parent=35 // pred_region
          %s8314 = smul.u32 24, %s31
          %s8316 = ssub.s32 18432, 18432
          %8317 = vsyncadd %s8307, %s8316
          %s8318 = smul.addr %s8314, 6
          %s8319 = smul.addr %s8318, 128
          %s8320 = scalar_lea.hbm %s4, %s8319
          %s8321 = sshll.u32 %s8310, 4
          %s8322 = int_to_ptr.vmem [resolvable:$true] %s8321
          %8327 = dma.vmem_to_hbm [thread:$0]  %s8322, 18432, %s8320, %s8307, 768, 768, 48
        $region60: #{tpu_custom_call.1} parent=35 // pred_fallthru
          _
      $region36: #{tpu_custom_call.1} parent=5 // pred_fallthru
        _
      %p8328 = scmp.le.s32.totalorder 2, %s22
      // Predicated region
      $region61: #{tpu_custom_call.1} parent=5 // pred_check
        %p8329 = pneg %p8328
      $region62: #{tpu_custom_call.1} parent=5 // pred_check_branch
        %8331 = sbr.rel (%p8329) target = $region64
      $region63: #{tpu_custom_call.1} parent=5 // pred_region
        %s8332 = ssub.s32 %s22, 2
        // Predicated region
        $region65: #{tpu_custom_call.1} parent=63 // pred_check
          %p8333 = pneg %p164
        $region66: #{tpu_custom_call.1} parent=63 // pred_check_branch
          %8335 = sbr.rel (%p8333) target = $region68
        $region67: #{tpu_custom_call.1} parent=63 // pred_region
          %s8336 = sand.u32 %s149, 1
          %s8337 = scalar_lea.sflag [#allocation4], %s8336
          %s8338 = sand.u32 %s149, 1
          %s8339 = smul.addr %s8338, 1152
          %s8340 = scalar_lea.vmem [#allocation10], %s8339
          %8341 = dma.done %s8337, 18432
        $region68: #{tpu_custom_call.1} parent=63 // pred_fallthru
          _
      $region64: #{tpu_custom_call.1} parent=5 // pred_fallthru
        _
    $region6: #{tpu_custom_call.1} parent=1 // loop_footer
      %s26 = sadd.s32 1, %s22
    $region7: #{tpu_custom_call.1} parent=1 // loop_footer_branch
      %21 = sbr.rel target = $region3
    $region8: #{tpu_custom_call.1} parent=1 // loop_exit
      _
    %8342 = vsyncpa [#allocation3], 1
    %s8343 = scalar_lea.sflag [#allocation3], 1
    %8344 = vsyncpa %s8343, 1
    %8345 = vsyncpa [#allocation6], 1
    %s8346 = scalar_lea.sflag [#allocation6], 1
    %8347 = vsyncpa %s8346, 1
    %8348 = vsyncpa [#allocation9], 1
    %s8349 = scalar_lea.sflag [#allocation9], 1
    %8350 = vsyncpa %s8349, 1
    %8351 = vsyncpa [#allocation4], 1
    %s8352 = scalar_lea.sflag [#allocation4], 1
    %8353 = vsyncpa %s8352, 1

</llo_original>
